<compile_context>
chip_gen: v7x
topology: tpu7x:2x2x1
jax: 0.10.0
libtpu: 0.0.40
codegen_flags: <defaults>
</compile_context>

<pallas_src>
import functools

import jax
import jax.numpy as jnp
from jax.experimental import pallas as pl
from jax.experimental.pallas import tpu as pltpu


# ----------------------------------------------------------------------------
# Config (mirrors the PyTorch config object; small demo sizes)
# ----------------------------------------------------------------------------
class Config:
    num_classes = 4
    use_confidences = False            # selects the torch.ones confidence branch
    volume_aggregation_method = "sum"
    backbone_weightFile = "none"


VOLUME_MULTIPLIER = 50.0
VOLUME_SIZE = 16        # module hard-codes 64; reduced for the small demo
CUBOID_SIDE = 250.0
V2V_OUT_CHANNELS = 16   # V2VModel(config.num_classes, 16)
V2V_HIDDEN = 32
VMEM_LIMIT_BYTES = 48 * 1024 * 1024   # < v7x 64 MiB physical, > v5e 16 MiB default


def _pick_tile(n, cap):
    """Largest power-of-two tile (>=128, <=cap) dividing n, else the full extent."""
    for t in (2048, 1024, 512, 256, 128):
        if t <= cap and n % t == 0:
            return t
    return n


# ----------------------------------------------------------------------------
# Kernel 1: synthetic Loc_SCN backbone stand-in.
#   2x2 average pool (two MXU matmuls) + 1x1 conv (1 -> num_classes channels),
#   written with a single broadcast store of the whole (K, hp, wp) block.
# TODO(synk): the real Loc_SCN architecture is not defined in the given module;
#             this is a deterministic stand-in with the same output contract.
# ----------------------------------------------------------------------------
def _backbone_kernel(x_ref, p_ref, pt_ref, w_ref, b_ref, o_ref):
    x = x_ref[0]                                                          # (H, W)
    pooled = jnp.dot(p_ref[...], x, preferred_element_type=jnp.float32)   # (hp, W)
    pooled = jnp.dot(pooled, pt_ref[...], preferred_element_type=jnp.float32)  # (hp, wp)
    w = w_ref[...][:, :, None]                                            # (K, 1, 1)
    b = b_ref[...][:, :, None]                                            # (K, 1, 1)
    o_ref[0] = pooled[None, :, :] * w + b                                 # one store


def backbone_forward(x_img, w, b):
    """x_img: (B, 1, H, W) NCHW  ->  heatmaps/features (B, K, H//2, W//2) NCHW."""
    B, _, H, W = x_img.shape
    K = w.shape[-1]
    hp, wp = H // 2, W // 2
    x2d = x_img[:, 0]                                                     # (B, H, W)

    rows = jnp.arange(hp)
    P = jnp.zeros((hp, H), jnp.float32)
    P = P.at[rows, 2 * rows].set(0.5).at[rows, 2 * rows + 1].set(0.5)     # (hp, H)
    cols = jnp.arange(wp)
    PT = jnp.zeros((W, wp), jnp.float32)
    PT = PT.at[2 * cols, cols].set(0.5).at[2 * cols + 1, cols].set(0.5)   # (W, wp)

    w_col = w.reshape(K, 1).astype(jnp.float32)
    b_col = b.reshape(K, 1).astype(jnp.float32)

    return pl.pallas_call(
        _backbone_kernel,
        out_shape=jax.ShapeDtypeStruct((B, K, hp, wp), jnp.float32),
        grid=(B,),
        in_specs=[
            pl.BlockSpec((1, H, W), lambda bi: (bi, 0, 0)),
            pl.BlockSpec((hp, H), lambda bi: (0, 0)),
            pl.BlockSpec((W, wp), lambda bi: (0, 0)),
            pl.BlockSpec((K, 1), lambda bi: (0, 0)),
            pl.BlockSpec((K, 1), lambda bi: (0, 0)),
        ],
        out_specs=pl.BlockSpec((1, K, hp, wp), lambda bi: (bi, 0, 0, 0)),
        compiler_params=pltpu.CompilerParams(
            dimension_semantics=("parallel",),
            vmem_limit_bytes=VMEM_LIMIT_BYTES),
    )(x2d, P, PT, w_col, b_col)


# ----------------------------------------------------------------------------
# Kernel 2: fused op.unproject_heatmaps + V2V (1x1x1 MLP stand-in) + online
#   softmax statistics.
#   Per voxel tile (lane-dense, T voxels on lanes):
#     project world coords with each view's P (3x4), build separable bilinear
#     grid_sample(align_corners=True, zero padding) weights, contract (hw, T)
#     weights against the conf/W1-folded per-view features (HID, hw) on the MXU,
#     mask invalid depths, sum views, then bias + ReLU + W2 (32->16) and write
#     the final (16, T) volume tile scaled by the volume multiplier.  While the
#     tile is still in vregs, accumulate per-channel online max / sum-exp into
#     resident (C, 1) output blocks (no second read of the volume for stats).
# ----------------------------------------------------------------------------
def _unproject_v2v_kernel(coord_ref, proj_ref, feat_ref, b1_ref, w2t_ref, b2_ref,
                          px_ref, py_ref, vol_ref, m_ref, s_ref,
                          *, n_views, hm_h, hm_w, multiplier):
    ti = pl.program_id(1)
    coords = coord_ref[0]                          # (3, T) component-major, lane-dense
    T = coords.shape[1]
    HID = feat_ref.shape[1]

    # Algebraic fold of the reference normalize / grid_sample(align_corners=True)
    # un-normalize chain: ix = ((2*(u/hm_h - .5)) + 1) * .5 * (hm_w - 1)
    #                        = u * (hm_w - 1) / hm_h   (and symmetrically for iy).
    # (x divided by heatmap_shape[0], y by heatmap_shape[1], exactly as the reference.)
    sx = (hm_w - 1.0) / hm_h
    sy = (hm_h - 1.0) / hm_w

    hid_acc = jnp.zeros((HID, T), jnp.float32)
    for view in range(n_views):
        P = proj_ref[view]                         # (3, 4) static index, per-batch block
        homo = (P[:, 0:1] * coords[0:1, :] + P[:, 1:2] * coords[1:2, :]
                + P[:, 2:3] * coords[2:3, :] + P[:, 3:4])          # (3, T)
        xh = homo[0:1, :]
        yh = homo[1:2, :]
        zh = homo[2:3, :]
        invalid = zh <= 0.0                        # (1, T) depth must be > 0
        z_safe = jnp.where(zh == 0.0, 1.0, zh)     # avoid div-by-zero, as in reference
        inv_z = pl.reciprocal(z_safe, approx=True)  # EUP slot, off the VPU
        ix = xh * inv_z * sx                       # (1, T) pixel x
        iy = yh * inv_z * sy                       # (1, T) pixel y
        # Separable bilinear weights with implicit zero padding. Negative-depth
        # points get weights from a reflected (u, v) and are zeroed via `invalid`
        # after the matmul — numerically identical to masking before it, since
        # the mask is per-voxel (whole column).
        wx = jnp.maximum(0.0, 1.0 - jnp.abs(ix - px_ref[...]))     # (w, T)
        wy = jnp.maximum(0.0, 1.0 - jnp.abs(iy - py_ref[...]))     # (h, T)
        wmatT = (wy[:, None, :] * wx[None, :, :]).reshape(-1, T)   # (h*w, T)
        fv = feat_ref[view]                                        # (HID, hw) bf16
        sampled = jnp.dot(fv, wmatT.astype(jnp.bfloat16),
                          preferred_element_type=jnp.float32)      # (HID, T)
        hid_acc = hid_acc + jnp.where(invalid, 0.0, sampled)

    hid = jnp.maximum(hid_acc + b1_ref[...], 0.0)                  # (HID, T)
    v = (jnp.dot(w2t_ref[...], hid, preferred_element_type=jnp.float32)
         + b2_ref[...]) * multiplier                               # (C, T), *50 folded
    vol_ref[0] = v

    # online softmax statistics over the voxel axis (accumulators are resident
    # output blocks; voxel-tile axis is the innermost grid axis).
    C = v.shape[0]

    @pl.when(ti == 0)
    def _():
        m_ref[0] = jnp.full((C, 1), -jnp.inf, jnp.float32)
        s_ref[0] = jnp.zeros((C, 1), jnp.float32)

    m_old = m_ref[0]
    m_new = jnp.maximum(m_old, jnp.max(v, axis=-1, keepdims=True))
    s_ref[0] = (s_ref[0] * jnp.exp(m_old - m_new)
                + jnp.sum(jnp.exp(v - m_new), axis=-1, keepdims=True))
    m_ref[0] = m_new


def unproject_v2v_fused(featp, proj_flat, coord_cm, b1_col, w2t, b2_col,
                        heatmap_shape, n_views, multiplier):
    # featp: (B*n_views, HID, hw) bf16 (conf & V2V-W1 pre-folded)
    # proj_flat: (B*n_views, 3, 4);  coord_cm: (B, 3, n_vox)
    BV, HID, hw = featp.shape
    B = BV // n_views
    n_vox = coord_cm.shape[2]
    h, w = heatmap_shape
    C = w2t.shape[0]

    # Cap the voxel tile so the (hw, T) weight intermediate stays ~12 MiB even at
    # real heatmap sizes (keeps v7x's 64 MiB VMEM comfortable).
    cap = max(128, min(1024, (12 * 1024 * 1024) // max(1, hw * 6)))
    tile = _pick_tile(n_vox, cap)
    n_tiles = n_vox // tile

    px = jnp.arange(w, dtype=jnp.float32)[:, None]   # (w, 1)
    py = jnp.arange(h, dtype=jnp.float32)[:, None]   # (h, 1)

    kern = functools.partial(_unproject_v2v_kernel, n_views=n_views,
                             hm_h=float(h), hm_w=float(w),
                             multiplier=float(multiplier))
    return pl.pallas_call(
        kern,
        out_shape=(jax.ShapeDtypeStruct((B, C, n_vox), jnp.float32),
                   jax.ShapeDtypeStruct((B, C, 1), jnp.float32),
                   jax.ShapeDtypeStruct((B, C, 1), jnp.float32)),
        grid=(B, n_tiles),   # voxel tile innermost: per-batch view blocks stay resident
        in_specs=[
            pl.BlockSpec((1, 3, tile), lambda bi, ti: (bi, 0, ti)),
            pl.BlockSpec((n_views, 3, 4), lambda bi, ti: (bi, 0, 0)),
            pl.BlockSpec((n_views, HID, hw), lambda bi, ti: (bi, 0, 0)),  # bf16 feats
            pl.BlockSpec((HID, 1), lambda bi, ti: (0, 0)),
            pl.BlockSpec((C, HID), lambda bi, ti: (0, 0)),
            pl.BlockSpec((C, 1), lambda bi, ti: (0, 0)),
            pl.BlockSpec((w, 1), lambda bi, ti: (0, 0)),
            pl.BlockSpec((h, 1), lambda bi, ti: (0, 0)),
        ],
        out_specs=(pl.BlockSpec((1, C, tile), lambda bi, ti: (bi, 0, ti)),
                   pl.BlockSpec((1, C, 1), lambda bi, ti: (bi, 0, 0)),
                   pl.BlockSpec((1, C, 1), lambda bi, ti: (bi, 0, 0))),
        compiler_params=pltpu.CompilerParams(
            dimension_semantics=("parallel", "arbitrary"),
            vmem_limit_bytes=VMEM_LIMIT_BYTES),
    )(coord_cm, proj_flat, featp, b1_col, w2t, b2_col, px, py)


# ----------------------------------------------------------------------------
# Kernel 3: op.integrate_tensor_3d_with_coordinates normalize pass (the max /
#   sum-exp statistics already came out of the unproject kernel).  Tiled over
#   the voxel axis: normalize, write soft volumes, accumulate the soft-argmax
#   keypoints into a resident (C, 3) output block on the MXU.
# ----------------------------------------------------------------------------
def _softmax_norm_kernel(vol_ref, coord_ref, m_ref, s_ref, kp_ref, soft_ref):
    ti = pl.program_id(1)

    @pl.when(ti == 0)
    def _():
        kp_ref[...] = jnp.zeros_like(kp_ref)

    v = vol_ref[0]                                                  # (C, tile), *50 folded
    inv_s = 1.0 / s_ref[0]                                          # (C, 1), tiny exact divide
    p = jnp.exp(v - m_ref[0]) * inv_s                               # (C, tile) softmax
    soft_ref[0] = p
    kp_ref[0] += jnp.dot(p, coord_ref[0], preferred_element_type=jnp.float32)  # (C, 3)


def softmax_normalize(vol_cn, coord_flat, m, s, tile):
    B, C, n_vox = vol_cn.shape
    n_tiles = n_vox // tile
    kp, soft = pl.pallas_call(
        _softmax_norm_kernel,
        out_shape=(jax.ShapeDtypeStruct((B, C, 3), jnp.float32),
                   jax.ShapeDtypeStruct((B, C, n_vox), jnp.float32)),
        grid=(B, n_tiles),
        in_specs=[
            pl.BlockSpec((1, C, tile), lambda bi, ti: (bi, 0, ti)),
            pl.BlockSpec((1, tile, 3), lambda bi, ti: (bi, ti, 0)),
            pl.BlockSpec((1, C, 1), lambda bi, ti: (bi, 0, 0)),
            pl.BlockSpec((1, C, 1), lambda bi, ti: (bi, 0, 0)),
        ],
        out_specs=(pl.BlockSpec((1, C, 3), lambda bi, ti: (bi, 0, 0)),
                   pl.BlockSpec((1, C, tile), lambda bi, ti: (bi, 0, ti))),
        compiler_params=pltpu.CompilerParams(
            dimension_semantics=("parallel", "arbitrary"),
            vmem_limit_bytes=VMEM_LIMIT_BYTES),
    )(vol_cn, coord_flat, m, s)
    return kp, soft


# ----------------------------------------------------------------------------
# Glue (plain JAX): camera rescale, projection bmm, SVD triangulation, coord grid
# ----------------------------------------------------------------------------
def update_after_resize(Kmat, image_shape, new_image_shape):
    height, width = image_shape
    new_height, new_width = new_image_shape
    sx = new_width / width
    sy = new_height / height
    fx = Kmat[:, 0, 0] * sx
    fy = Kmat[:, 1, 1] * sy
    cx = Kmat[:, 0, 2] * sx
    cy = Kmat[:, 1, 2] * sy
    zeros = jnp.zeros_like(fx)
    ones = jnp.ones_like(fx)
    row0 = jnp.stack([fx, zeros, cx], axis=-1)
    row1 = jnp.stack([zeros, fy, cy], axis=-1)
    row2 = jnp.stack([zeros, zeros, ones], axis=-1)
    return jnp.stack([row0, row1, row2], axis=1)


def forward(params, config, AP_img, AP_K, AP_T, LAT_img, LAT_K, LAT_T):
    B = AP_img.shape[0]
    n_joints = config.num_classes
    V = VOLUME_SIZE
    n_vox = V * V * V

    # ---- backbone (Pallas) ----
    AP_hmap = backbone_forward(AP_img, params["bb_w"], params["bb_b"])
    LAT_hmap = backbone_forward(LAT_img, params["bb_w"], params["bb_b"])
    AP_feat, LAT_feat = AP_hmap, LAT_hmap       # stand-in backbone: features == heatmaps

    if config.use_confidences:
        # TODO(synk): Loc_SCN vol-confidence head is unspecified; uniform confidences used.
        vol_confidences = jnp.ones((B, 2, n_joints), jnp.float32) + 1e-32
        vol_confidences = vol_confidences / jnp.sum(vol_confidences, axis=1, keepdims=True)
    else:
        vol_confidences = jnp.ones((B, 2, n_joints), jnp.float32)

    image_shape = tuple(AP_img.shape[2:])
    heatmap_shape = tuple(AP_feat.shape[2:])

    AP_K_r = update_after_resize(AP_K, image_shape, heatmap_shape)
    LAT_K_r = update_after_resize(LAT_K, image_shape, heatmap_shape)
    AP_proj = jnp.einsum("bij,bjk->bik", AP_K_r, AP_T)
    LAT_proj = jnp.einsum("bij,bjk->bik", LAT_K_r, LAT_T)
    proj_matricies = jnp.stack([AP_proj, LAT_proj], axis=1)      # (B, 2, 3, 4)
    features = jnp.stack([AP_feat, LAT_feat], axis=1)            # (B, 2, K, h, w)

    # ---- base point: linear triangulation via 4x4 SVD (no Pallas equivalent) ----
    center_2d = jnp.array([heatmap_shape[0] / 2.0, heatmap_shape[1] / 2.0], jnp.float32)

    def _triangulate(proj_b):                                    # proj_b: (2, 3, 4)
        pts = jnp.tile(center_2d[None, :], (proj_b.shape[0], 1))
        A = proj_b[:, 2:3, :] * pts[:, :, None] - proj_b[:, :2, :]
        A = A.reshape(-1, 4)
        _, _, vt = jnp.linalg.svd(A)
        ph = -vt[-1]
        return ph[:3] / ph[3]

    base_points = jax.vmap(_triangulate)(proj_matricies)         # (B, 3)

    sides = jnp.array([CUBOID_SIDE, CUBOID_SIDE, CUBOID_SIDE], jnp.float32)
    position = base_points - sides[None, :] / 2.0                # (B, 3)
    # TODO(synk): volumetric.Cuboid3D bookkeeping objects are not returned by forward; omitted.

    ar = jnp.arange(V, dtype=jnp.float32)
    grid = jnp.stack(jnp.meshgrid(ar, ar, ar, indexing="ij"), axis=-1).reshape(-1, 3)
    step = sides / (V - 1.0)
    # component-major coords (B, 3, n_vox) so the kernel sees lane-dense rows
    coord_cm = position[:, :, None] + step[None, :, None] * grid.T[None, :, :]
    coord_flat = jnp.swapaxes(coord_cm, 1, 2)                    # (B, n_vox, 3)
    coord_volumes = coord_flat.reshape(B, V, V, V, 3)

    if config.volume_aggregation_method.startswith("conf"):
        agg_conf = vol_confidences
    elif config.volume_aggregation_method == "sum":
        agg_conf = None                       # all-ones: skip the multiply entirely
    else:
        # TODO(synk): 'max' / 'softmax' volume aggregation branches not implemented.
        raise NotImplementedError(config.volume_aggregation_method)

    # ---- fold conf and the V2V first 1x1x1 conv into the per-view features ----
    # sampling is linear: (conf ⊙ (wmat @ feat)) @ W1 == wmat @ ((feat ⊙ conf) @ W1)
    h, w = heatmap_shape
    feat_chw = features.reshape(B, 2, n_joints, h * w)           # channel-first flat, no transpose
    if agg_conf is not None:
        feat_chw = feat_chw * agg_conf[..., None]
    featp = jnp.einsum("kh,bvkp->bvhp", params["v2v_w1"], feat_chw)   # (B, 2, HID, hw)
    featp = featp.astype(jnp.bfloat16).reshape(B * 2, V2V_HIDDEN, h * w)
    proj_flat = proj_matricies.reshape(B * 2, 3, 4)

    volumes_scaled_cn, m_stats, s_stats = unproject_v2v_fused(
        featp, proj_flat, coord_cm,
        params["v2v_b1"].reshape(V2V_HIDDEN, 1),
        params["v2v_w2"].T,                                      # (16, 32)
        params["v2v_b2"].reshape(V2V_OUT_CHANNELS, 1),
        heatmap_shape, n_views=2,
        multiplier=VOLUME_MULTIPLIER)                            # (B, 16, n_vox) *50

    tile_i = _pick_tile(n_vox, 2048)
    vol_keypoints_3d, soft_volumes = softmax_normalize(
        volumes_scaled_cn, coord_flat, m_stats, s_stats, tile_i)
    volumes = soft_volumes.reshape(B, V2V_OUT_CHANNELS, V, V, V)

    return vol_keypoints_3d, volumes, coord_volumes, AP_hmap, LAT_hmap


def init_params(key, num_classes):
    k1, k2, k3 = jax.random.split(key, 3)
    return {
        "bb_w": 0.5 + 0.1 * jax.random.normal(k1, (1, num_classes), jnp.float32),
        "bb_b": jnp.full((1, num_classes), 0.1, jnp.float32),
        "v2v_w1": 0.2 * jax.random.normal(k2, (num_classes, V2V_HIDDEN), jnp.float32),
        "v2v_b1": jnp.zeros((1, V2V_HIDDEN), jnp.float32),
        "v2v_w2": 0.2 * jax.random.normal(k3, (V2V_HIDDEN, V2V_OUT_CHANNELS), jnp.float32),
        "v2v_b2": jnp.zeros((1, V2V_OUT_CHANNELS), jnp.float32),
    }


if __name__ == "__main__":
    config = Config()
    key = jax.random.PRNGKey(0)
    k_img1, k_img2 = jax.random.split(key, 2)

    B, H, W = 2, 16, 16
    Kc = config.num_classes
    params = init_params(jax.random.PRNGKey(42), Kc)

    AP_img = jax.random.normal(k_img1, (B, 1, H, W), jnp.float32)
    LAT_img = jax.random.normal(k_img2, (B, 1, H, W), jnp.float32)

    f = 30.0
    K_intr = jnp.array([[f, 0.0, W / 2.0],
                        [0.0, f, H / 2.0],
                        [0.0, 0.0, 1.0]], jnp.float32)
    AP_K = jnp.tile(K_intr[None], (B, 1, 1))
    LAT_K = jnp.tile(K_intr[None], (B, 1, 1))

    eye3 = jnp.eye(3, dtype=jnp.float32)
    t_vec = jnp.array([0.0, 0.0, 500.0], jnp.float32)
    AP_T = jnp.tile(jnp.concatenate([eye3, t_vec[:, None]], axis=1)[None], (B, 1, 1))
    R_lat = jnp.array([[0.0, 0.0, 1.0],
                       [0.0, 1.0, 0.0],
                       [-1.0, 0.0, 0.0]], jnp.float32)
    LAT_T = jnp.tile(jnp.concatenate([R_lat, t_vec[:, None]], axis=1)[None], (B, 1, 1))

    fwd = jax.jit(lambda a, b, c, d, e, g: forward(params, config, a, b, c, d, e, g))
    outs = fwd(AP_img, AP_K, AP_T, LAT_img, LAT_K, LAT_T)
    outs = jax.block_until_ready(outs)
    vol_keypoints_3d, volumes, coord_volumes, AP_hmap, LAT_hmap = outs

    assert vol_keypoints_3d.shape == (B, V2V_OUT_CHANNELS, 3)
    assert volumes.shape == (B, V2V_OUT_CHANNELS, VOLUME_SIZE, VOLUME_SIZE, VOLUME_SIZE)
    assert coord_volumes.shape == (B, VOLUME_SIZE, VOLUME_SIZE, VOLUME_SIZE, 3)
    assert AP_hmap.shape == (B, Kc, H // 2, W // 2)
    assert LAT_hmap.shape == (B, Kc, H // 2, W // 2)
    assert bool(jnp.all(jnp.isfinite(vol_keypoints_3d)))
    assert bool(jnp.all(jnp.isfinite(volumes)))
    # softmax volumes must sum to 1 per channel per batch
    assert bool(jnp.all(jnp.abs(jnp.sum(volumes.reshape(B, V2V_OUT_CHANNELS, -1), axis=-1) - 1.0) < 1e-3))
    print("KERNEL_OK")
</pallas_src>

<mosaic_0001>
module attributes {stable_mosaic.version = 11 : i64} {
  func.func @_backbone_kernel(%arg0: i32, %arg1: memref<1x16x16xf32, #tpu.memory_space<vmem>>, %arg2: memref<8x16xf32, #tpu.memory_space<vmem>>, %arg3: memref<16x8xf32, #tpu.memory_space<vmem>>, %arg4: memref<4x1xf32, #tpu.memory_space<vmem>>, %arg5: memref<4x1xf32, #tpu.memory_space<vmem>>, %arg6: memref<1x4x8x8xf32, #tpu.memory_space<vmem>>) attributes {dimension_semantics = [#tpu.dimension_semantics<parallel>], iteration_bounds = array<i64: 2>, scalar_prefetch = 0 : i64, scratch_operands = 0 : i64, tpu.core_type = #tpu.core_type<tc>, window_params = [{transform_indices = @transform_0, window_bounds = array<i64: 1, 16, 16>}, {pipeline_mode = #tpu.pipeline_mode<synchronous>, transform_indices = @transform_1, window_bounds = array<i64: 8, 16>}, {pipeline_mode = #tpu.pipeline_mode<synchronous>, transform_indices = @transform_2, window_bounds = array<i64: 16, 8>}, {pipeline_mode = #tpu.pipeline_mode<synchronous>, transform_indices = @transform_3, window_bounds = array<i64: 4, 1>}, {pipeline_mode = #tpu.pipeline_mode<synchronous>, transform_indices = @transform_4, window_bounds = array<i64: 4, 1>}, {transform_indices = @transform_5, window_bounds = array<i64: 1, 4, 8, 8>}]} {
    %c0 = arith.constant 0 : index
    %c0_0 = arith.constant 0 : index
    %c0_1 = arith.constant 0 : index
    %0 = vector.load %arg1[%c0, %c0_0, %c0_1] : memref<1x16x16xf32, #tpu.memory_space<vmem>>, vector<1x16x16xf32>
    %1 = vector.shape_cast %0 : vector<1x16x16xf32> to vector<16x16xf32>
    %c0_2 = arith.constant 0 : index
    %c0_3 = arith.constant 0 : index
    %2 = vector.load %arg2[%c0_2, %c0_3] : memref<8x16xf32, #tpu.memory_space<vmem>>, vector<8x16xf32>
    %cst = arith.constant dense<0.000000e+00> : vector<8x16xf32>
    %3 = tpu.matmul %2, %1, %cst {dimension_numbers = #tpu.dot_dimension_numbers<[1], [0], [0], [1], [0, 0, 1, 1], [], []>} : vector<8x16xf32>, vector<16x16xf32>, vector<8x16xf32> -> vector<8x16xf32>
    %c0_4 = arith.constant 0 : index
    %c0_5 = arith.constant 0 : index
    %4 = vector.load %arg3[%c0_4, %c0_5] : memref<16x8xf32, #tpu.memory_space<vmem>>, vector<16x8xf32>
    %cst_6 = arith.constant dense<0.000000e+00> : vector<8x8xf32>
    %5 = tpu.matmul %3, %4, %cst_6 {dimension_numbers = #tpu.dot_dimension_numbers<[1], [0], [0], [1], [0, 0, 1, 1], [], []>} : vector<8x16xf32>, vector<16x8xf32>, vector<8x8xf32> -> vector<8x8xf32>
    %c0_7 = arith.constant 0 : index
    %c0_8 = arith.constant 0 : index
    %6 = vector.load %arg4[%c0_7, %c0_8] : memref<4x1xf32, #tpu.memory_space<vmem>>, vector<4x1xf32>
    %7 = vector.shape_cast %6 : vector<4x1xf32> to vector<4x1x1xf32>
    %c0_9 = arith.constant 0 : index
    %c0_10 = arith.constant 0 : index
    %8 = vector.load %arg5[%c0_9, %c0_10] : memref<4x1xf32, #tpu.memory_space<vmem>>, vector<4x1xf32>
    %9 = vector.shape_cast %8 : vector<4x1xf32> to vector<4x1x1xf32>
    %10 = vector.shape_cast %5 : vector<8x8xf32> to vector<1x8x8xf32>
    %11 = vector.broadcast %10 : vector<1x8x8xf32> to vector<4x8x8xf32>
    %12 = vector.broadcast %7 : vector<4x1x1xf32> to vector<4x8x8xf32>
    %13 = arith.mulf %11, %12 : vector<4x8x8xf32>
    %14 = vector.broadcast %9 : vector<4x1x1xf32> to vector<4x8x8xf32>
    %15 = arith.addf %13, %14 : vector<4x8x8xf32>
    %c0_11 = arith.constant 0 : index
    %c0_12 = arith.constant 0 : index
    %c0_13 = arith.constant 0 : index
    %c0_14 = arith.constant 0 : index
    %16 = vector.load %arg6[%c0_11, %c0_12, %c0_13, %c0_14] : memref<1x4x8x8xf32, #tpu.memory_space<vmem>>, vector<1x4x8x8xf32>
    %17 = vector.shape_cast %16 : vector<1x4x8x8xf32> to vector<4x8x8xf32>
    %18 = vector.shape_cast %15 : vector<4x8x8xf32> to vector<1x4x8x8xf32>
    tpu.vector_store %arg6[%c0_11, %c0_12, %c0_13, %c0_14], %18 {strides = array<i32>} : memref<1x4x8x8xf32, #tpu.memory_space<vmem>>, vector<1x4x8x8xf32>,
    return
  }
  func.func @transform_0(%arg0: i32) -> (i32, i32, i32) {
    %c0_i32 = arith.constant 0 : i32
    %c0_i32_0 = arith.constant 0 : i32
    %c0_i32_1 = arith.constant 0 : i32
    return %arg0, %c0_i32, %c0_i32_0 : i32, i32, i32
  }
  func.func @transform_1(%arg0: i32) -> (i32, i32) {
    %c0_i32 = arith.constant 0 : i32
    %c0_i32_0 = arith.constant 0 : i32
    %c0_i32_1 = arith.constant 0 : i32
    return %c0_i32, %c0_i32_0 : i32, i32
  }
  func.func @transform_2(%arg0: i32) -> (i32, i32) {
    %c0_i32 = arith.constant 0 : i32
    %c0_i32_0 = arith.constant 0 : i32
    %c0_i32_1 = arith.constant 0 : i32
    return %c0_i32, %c0_i32_0 : i32, i32
  }
  func.func @transform_3(%arg0: i32) -> (i32, i32) {
    %c0_i32 = arith.constant 0 : i32
    %c0_i32_0 = arith.constant 0 : i32
    %c0_i32_1 = arith.constant 0 : i32
    return %c0_i32, %c0_i32_0 : i32, i32
  }
  func.func @transform_4(%arg0: i32) -> (i32, i32) {
    %c0_i32 = arith.constant 0 : i32
    %c0_i32_0 = arith.constant 0 : i32
    %c0_i32_1 = arith.constant 0 : i32
    return %c0_i32, %c0_i32_0 : i32, i32
  }
  func.func @transform_5(%arg0: i32) -> (i32, i32, i32, i32) {
    %c0_i32 = arith.constant 0 : i32
    %c0_i32_0 = arith.constant 0 : i32
    %c0_i32_1 = arith.constant 0 : i32
    %c0_i32_2 = arith.constant 0 : i32
    return %arg0, %c0_i32, %c0_i32_0, %c0_i32_1 : i32, i32, i32, i32
  }
}

module attributes {stable_mosaic.version = 11 : i64} {
  func.func @_softmax_norm_kernel(%arg0: i32, %arg1: i32, %arg2: memref<1x16x2048xf32, #tpu.memory_space<vmem>>, %arg3: memref<1x2048x3xf32, #tpu.memory_space<vmem>>, %arg4: memref<1x16x1xf32, #tpu.memory_space<vmem>>, %arg5: memref<1x16x1xf32, #tpu.memory_space<vmem>>, %arg6: memref<1x16x3xf32, #tpu.memory_space<vmem>>, %arg7: memref<1x16x2048xf32, #tpu.memory_space<vmem>>) attributes {dimension_semantics = [#tpu.dimension_semantics<parallel>, #tpu.dimension_semantics<arbitrary>], iteration_bounds = array<i64: 2, 2>, scalar_prefetch = 0 : i64, scratch_operands = 0 : i64, tpu.core_type = #tpu.core_type<tc>, window_params = [{transform_indices = @transform_0, window_bounds = array<i64: 1, 16, 2048>}, {transform_indices = @transform_1, window_bounds = array<i64: 1, 2048, 3>}, {transform_indices = @transform_2, window_bounds = array<i64: 1, 16, 1>}, {transform_indices = @transform_3, window_bounds = array<i64: 1, 16, 1>}, {transform_indices = @transform_4, window_bounds = array<i64: 1, 16, 3>}, {transform_indices = @transform_5, window_bounds = array<i64: 1, 16, 2048>}]} {
    %c0_i32 = arith.constant 0 : i32
    %0 = arith.cmpi eq, %arg1, %c0_i32 : i32
    %1 = arith.extui %0 : i1 to i32
    %c0_i32_0 = arith.constant 0 : i32
    %2 = arith.cmpi ne, %1, %c0_i32_0 : i32
    scf.if %2 {
      %cst_22 = arith.constant 0.000000e+00 : f32
      %28 = vector.broadcast %cst_22 : f32 to vector<1x16x3xf32>
      %c0_23 = arith.constant 0 : index
      %c0_24 = arith.constant 0 : index
      %c0_25 = arith.constant 0 : index
      %29 = vector.load %arg6[%c0_23, %c0_24, %c0_25] : memref<1x16x3xf32, #tpu.memory_space<vmem>>, vector<1x16x3xf32>
      tpu.vector_store %arg6[%c0_23, %c0_24, %c0_25], %28 {strides = array<i32>} : memref<1x16x3xf32, #tpu.memory_space<vmem>>, vector<1x16x3xf32>,
    } else {
    }
    %c0 = arith.constant 0 : index
    %c0_1 = arith.constant 0 : index
    %c0_2 = arith.constant 0 : index
    %3 = vector.load %arg2[%c0, %c0_1, %c0_2] : memref<1x16x2048xf32, #tpu.memory_space<vmem>>, vector<1x16x2048xf32>
    %4 = vector.shape_cast %3 : vector<1x16x2048xf32> to vector<16x2048xf32>
    %c0_3 = arith.constant 0 : index
    %c0_4 = arith.constant 0 : index
    %c0_5 = arith.constant 0 : index
    %5 = vector.load %arg5[%c0_3, %c0_4, %c0_5] : memref<1x16x1xf32, #tpu.memory_space<vmem>>, vector<1x16x1xf32>
    %6 = vector.shape_cast %5 : vector<1x16x1xf32> to vector<16x1xf32>
    %cst = arith.constant 1.000000e+00 : f32
    %7 = vector.broadcast %cst : f32 to vector<16x1xf32>
    %8 = arith.divf %7, %6 : vector<16x1xf32>
    %c0_6 = arith.constant 0 : index
    %c0_7 = arith.constant 0 : index
    %c0_8 = arith.constant 0 : index
    %9 = vector.load %arg4[%c0_6, %c0_7, %c0_8] : memref<1x16x1xf32, #tpu.memory_space<vmem>>, vector<1x16x1xf32>
    %10 = vector.shape_cast %9 : vector<1x16x1xf32> to vector<16x1xf32>
    %11 = vector.broadcast %10 : vector<16x1xf32> to vector<16x2048xf32>
    %12 = arith.subf %4, %11 : vector<16x2048xf32>
    %13 = math.exp %12 : vector<16x2048xf32>
    %14 = vector.broadcast %8 : vector<16x1xf32> to vector<16x2048xf32>
    %15 = arith.mulf %13, %14 : vector<16x2048xf32>
    %c0_9 = arith.constant 0 : index
    %c0_10 = arith.constant 0 : index
    %c0_11 = arith.constant 0 : index
    %16 = vector.load %arg7[%c0_9, %c0_10, %c0_11] : memref<1x16x2048xf32, #tpu.memory_space<vmem>>, vector<1x16x2048xf32>
    %17 = vector.shape_cast %16 : vector<1x16x2048xf32> to vector<16x2048xf32>
    %18 = vector.shape_cast %15 : vector<16x2048xf32> to vector<1x16x2048xf32>
    tpu.vector_store %arg7[%c0_9, %c0_10, %c0_11], %18 {strides = array<i32>} : memref<1x16x2048xf32, #tpu.memory_space<vmem>>, vector<1x16x2048xf32>,
    %c0_12 = arith.constant 0 : index
    %c0_13 = arith.constant 0 : index
    %c0_14 = arith.constant 0 : index
    %19 = vector.load %arg6[%c0_12, %c0_13, %c0_14] : memref<1x16x3xf32, #tpu.memory_space<vmem>>, vector<1x16x3xf32>
    %20 = vector.shape_cast %19 : vector<1x16x3xf32> to vector<16x3xf32>
    %c0_15 = arith.constant 0 : index
    %c0_16 = arith.constant 0 : index
    %c0_17 = arith.constant 0 : index
    %21 = vector.load %arg3[%c0_15, %c0_16, %c0_17] : memref<1x2048x3xf32, #tpu.memory_space<vmem>>, vector<1x2048x3xf32>
    %22 = vector.shape_cast %21 : vector<1x2048x3xf32> to vector<2048x3xf32>
    %cst_18 = arith.constant dense<0.000000e+00> : vector<16x3xf32>
    %23 = tpu.matmul %15, %22, %cst_18 {dimension_numbers = #tpu.dot_dimension_numbers<[1], [0], [0], [1], [0, 0, 1, 1], [], []>} : vector<16x2048xf32>, vector<2048x3xf32>, vector<16x3xf32> -> vector<16x3xf32>
    %24 = arith.addf %20, %23 : vector<16x3xf32>
    %c0_19 = arith.constant 0 : index
    %c0_20 = arith.constant 0 : index
    %c0_21 = arith.constant 0 : index
    %25 = vector.load %arg6[%c0_19, %c0_20, %c0_21] : memref<1x16x3xf32, #tpu.memory_space<vmem>>, vector<1x16x3xf32>
    %26 = vector.shape_cast %25 : vector<1x16x3xf32> to vector<16x3xf32>
    %27 = vector.shape_cast %24 : vector<16x3xf32> to vector<1x16x3xf32>
    tpu.vector_store %arg6[%c0_19, %c0_20, %c0_21], %27 {strides = array<i32>} : memref<1x16x3xf32, #tpu.memory_space<vmem>>, vector<1x16x3xf32>,
    return
  }
  func.func @transform_0(%arg0: i32, %arg1: i32) -> (i32, i32, i32) {
    %c0_i32 = arith.constant 0 : i32
    %c0_i32_0 = arith.constant 0 : i32
    return %arg0, %c0_i32, %arg1 : i32, i32, i32
  }
  func.func @transform_1(%arg0: i32, %arg1: i32) -> (i32, i32, i32) {
    %c0_i32 = arith.constant 0 : i32
    %c0_i32_0 = arith.constant 0 : i32
    return %arg0, %arg1, %c0_i32 : i32, i32, i32
  }
  func.func @transform_2(%arg0: i32, %arg1: i32) -> (i32, i32, i32) {
    %c0_i32 = arith.constant 0 : i32
    %c0_i32_0 = arith.constant 0 : i32
    %c0_i32_1 = arith.constant 0 : i32
    return %arg0, %c0_i32, %c0_i32_0 : i32, i32, i32
  }
  func.func @transform_3(%arg0: i32, %arg1: i32) -> (i32, i32, i32) {
    %c0_i32 = arith.constant 0 : i32
    %c0_i32_0 = arith.constant 0 : i32
    %c0_i32_1 = arith.constant 0 : i32
    return %arg0, %c0_i32, %c0_i32_0 : i32, i32, i32
  }
  func.func @transform_4(%arg0: i32, %arg1: i32) -> (i32, i32, i32) {
    %c0_i32 = arith.constant 0 : i32
    %c0_i32_0 = arith.constant 0 : i32
    %c0_i32_1 = arith.constant 0 : i32
    return %arg0, %c0_i32, %c0_i32_0 : i32, i32, i32
  }
  func.func @transform_5(%arg0: i32, %arg1: i32) -> (i32, i32, i32) {
    %c0_i32 = arith.constant 0 : i32
    %c0_i32_0 = arith.constant 0 : i32
    return %arg0, %c0_i32, %arg1 : i32, i32, i32
  }
}

module attributes {stable_mosaic.version = 11 : i64} {
  func.func @_unproject_v2v_kernel(%arg0: i32, %arg1: i32, %arg2: memref<1x3x1024xf32, #tpu.memory_space<vmem>>, %arg3: memref<2x3x4xf32, #tpu.memory_space<vmem>>, %arg4: memref<2x32x64xbf16, #tpu.memory_space<vmem>>, %arg5: memref<32x1xf32, #tpu.memory_space<vmem>>, %arg6: memref<16x32xf32, #tpu.memory_space<vmem>>, %arg7: memref<16x1xf32, #tpu.memory_space<vmem>>, %arg8: memref<8x1xf32, #tpu.memory_space<vmem>>, %arg9: memref<8x1xf32, #tpu.memory_space<vmem>>, %arg10: memref<1x16x1024xf32, #tpu.memory_space<vmem>>, %arg11: memref<1x16x1xf32, #tpu.memory_space<vmem>>, %arg12: memref<1x16x1xf32, #tpu.memory_space<vmem>>) attributes {dimension_semantics = [#tpu.dimension_semantics<parallel>, #tpu.dimension_semantics<arbitrary>], iteration_bounds = array<i64: 2, 4>, scalar_prefetch = 0 : i64, scratch_operands = 0 : i64, tpu.core_type = #tpu.core_type<tc>, window_params = [{transform_indices = @transform_0, window_bounds = array<i64: 1, 3, 1024>}, {transform_indices = @transform_1, window_bounds = array<i64: 2, 3, 4>}, {transform_indices = @transform_2, window_bounds = array<i64: 2, 32, 64>}, {pipeline_mode = #tpu.pipeline_mode<synchronous>, transform_indices = @transform_3, window_bounds = array<i64: 32, 1>}, {pipeline_mode = #tpu.pipeline_mode<synchronous>, transform_indices = @transform_4, window_bounds = array<i64: 16, 32>}, {pipeline_mode = #tpu.pipeline_mode<synchronous>, transform_indices = @transform_5, window_bounds = array<i64: 16, 1>}, {pipeline_mode = #tpu.pipeline_mode<synchronous>, transform_indices = @transform_6, window_bounds = array<i64: 8, 1>}, {pipeline_mode = #tpu.pipeline_mode<synchronous>, transform_indices = @transform_7, window_bounds = array<i64: 8, 1>}, {transform_indices = @transform_8, window_bounds = array<i64: 1, 16, 1024>}, {transform_indices = @transform_9, window_bounds = array<i64: 1, 16, 1>}, {transform_indices = @transform_10, window_bounds = array<i64: 1, 16, 1>}]} {
    %c0 = arith.constant 0 : index
    %c0_0 = arith.constant 0 : index
    %c0_1 = arith.constant 0 : index
    %0 = vector.load %arg2[%c0, %c0_0, %c0_1] : memref<1x3x1024xf32, #tpu.memory_space<vmem>>, vector<1x3x1024xf32>
    %1 = vector.shape_cast %0 : vector<1x3x1024xf32> to vector<3x1024xf32>
    %cst = arith.constant 0.000000e+00 : f32
    %2 = vector.broadcast %cst : f32 to vector<32x1024xf32>
    %c0_2 = arith.constant 0 : index
    %c0_3 = arith.constant 0 : index
    %c0_4 = arith.constant 0 : index
    %3 = vector.load %arg3[%c0_2, %c0_3, %c0_4] : memref<2x3x4xf32, #tpu.memory_space<vmem>>, vector<1x3x4xf32>
    %4 = vector.shape_cast %3 : vector<1x3x4xf32> to vector<3x4xf32>
    %5 = vector.extract_strided_slice %4 {offsets = [0, 0], sizes = [3, 1], strides = [1, 1]} : vector<3x4xf32> to vector<3x1xf32>
    %6 = vector.extract_strided_slice %1 {offsets = [0, 0], sizes = [1, 1024], strides = [1, 1]} : vector<3x1024xf32> to vector<1x1024xf32>
    %7 = vector.broadcast %5 : vector<3x1xf32> to vector<3x1024xf32>
    %8 = vector.broadcast %6 : vector<1x1024xf32> to vector<3x1024xf32>
    %9 = arith.mulf %7, %8 : vector<3x1024xf32>
    %10 = vector.extract_strided_slice %4 {offsets = [0, 1], sizes = [3, 1], strides = [1, 1]} : vector<3x4xf32> to vector<3x1xf32>
    %11 = vector.extract_strided_slice %1 {offsets = [1, 0], sizes = [1, 1024], strides = [1, 1]} : vector<3x1024xf32> to vector<1x1024xf32>
    %12 = vector.broadcast %10 : vector<3x1xf32> to vector<3x1024xf32>
    %13 = vector.broadcast %11 : vector<1x1024xf32> to vector<3x1024xf32>
    %14 = arith.mulf %12, %13 : vector<3x1024xf32>
    %15 = arith.addf %9, %14 : vector<3x1024xf32>
    %16 = vector.extract_strided_slice %4 {offsets = [0, 2], sizes = [3, 1], strides = [1, 1]} : vector<3x4xf32> to vector<3x1xf32>
    %17 = vector.extract_strided_slice %1 {offsets = [2, 0], sizes = [1, 1024], strides = [1, 1]} : vector<3x1024xf32> to vector<1x1024xf32>
    %18 = vector.broadcast %16 : vector<3x1xf32> to vector<3x1024xf32>
    %19 = vector.broadcast %17 : vector<1x1024xf32> to vector<3x1024xf32>
    %20 = arith.mulf %18, %19 : vector<3x1024xf32>
    %21 = arith.addf %15, %20 : vector<3x1024xf32>
    %22 = vector.extract_strided_slice %4 {offsets = [0, 3], sizes = [3, 1], strides = [1, 1]} : vector<3x4xf32> to vector<3x1xf32>
    %23 = vector.broadcast %22 : vector<3x1xf32> to vector<3x1024xf32>
    %24 = arith.addf %21, %23 : vector<3x1024xf32>
    %25 = vector.extract_strided_slice %24 {offsets = [0, 0], sizes = [1, 1024], strides = [1, 1]} : vector<3x1024xf32> to vector<1x1024xf32>
    %26 = vector.extract_strided_slice %24 {offsets = [1, 0], sizes = [1, 1024], strides = [1, 1]} : vector<3x1024xf32> to vector<1x1024xf32>
    %27 = vector.extract_strided_slice %24 {offsets = [2, 0], sizes = [1, 1024], strides = [1, 1]} : vector<3x1024xf32> to vector<1x1024xf32>
    %cst_5 = arith.constant 0.000000e+00 : f32
    %28 = vector.broadcast %cst_5 : f32 to vector<1x1024xf32>
    %29 = arith.cmpf ole, %27, %28 : vector<1x1024xf32>
    %cst_6 = arith.constant 0.000000e+00 : f32
    %30 = vector.broadcast %cst_6 : f32 to vector<1x1024xf32>
    %31 = arith.cmpf oeq, %27, %30 : vector<1x1024xf32>
    %cst_7 = arith.constant 1.000000e+00 : f32
    %32 = vector.broadcast %cst_7 : f32 to vector<1x1024xf32>
    %33 = arith.select %31, %32, %27 : vector<1x1024xi1>, vector<1x1024xf32>
    %34 = tpu.reciprocal %33 {approx = true} : vector<1x1024xf32> -> vector<1x1024xf32>
    %35 = arith.mulf %25, %34 : vector<1x1024xf32>
    %cst_8 = arith.constant 8.750000e-01 : f32
    %36 = vector.broadcast %cst_8 : f32 to vector<1x1024xf32>
    %37 = arith.mulf %35, %36 : vector<1x1024xf32>
    %38 = arith.mulf %26, %34 : vector<1x1024xf32>
    %cst_9 = arith.constant 8.750000e-01 : f32
    %39 = vector.broadcast %cst_9 : f32 to vector<1x1024xf32>
    %40 = arith.mulf %38, %39 : vector<1x1024xf32>
    %c0_10 = arith.constant 0 : index
    %c0_11 = arith.constant 0 : index
    %41 = vector.load %arg8[%c0_10, %c0_11] : memref<8x1xf32, #tpu.memory_space<vmem>>, vector<8x1xf32>
    %42 = vector.broadcast %37 : vector<1x1024xf32> to vector<8x1024xf32>
    %43 = vector.broadcast %41 : vector<8x1xf32> to vector<8x1024xf32>
    %44 = arith.subf %42, %43 : vector<8x1024xf32>
    %45 = math.absf %44 : vector<8x1024xf32>
    %cst_12 = arith.constant 1.000000e+00 : f32
    %46 = vector.broadcast %cst_12 : f32 to vector<8x1024xf32>
    %47 = arith.subf %46, %45 : vector<8x1024xf32>
    %cst_13 = arith.constant 0.000000e+00 : f32
    %48 = vector.broadcast %cst_13 : f32 to vector<8x1024xf32>
    %49 = arith.maximumf %48, %47 : vector<8x1024xf32>
    %c0_14 = arith.constant 0 : index
    %c0_15 = arith.constant 0 : index
    %50 = vector.load %arg9[%c0_14, %c0_15] : memref<8x1xf32, #tpu.memory_space<vmem>>, vector<8x1xf32>
    %51 = vector.broadcast %40 : vector<1x1024xf32> to vector<8x1024xf32>
    %52 = vector.broadcast %50 : vector<8x1xf32> to vector<8x1024xf32>
    %53 = arith.subf %51, %52 : vector<8x1024xf32>
    %54 = math.absf %53 : vector<8x1024xf32>
    %cst_16 = arith.constant 1.000000e+00 : f32
    %55 = vector.broadcast %cst_16 : f32 to vector<8x1024xf32>
    %56 = arith.subf %55, %54 : vector<8x1024xf32>
    %cst_17 = arith.constant 0.000000e+00 : f32
    %57 = vector.broadcast %cst_17 : f32 to vector<8x1024xf32>
    %58 = arith.maximumf %57, %56 : vector<8x1024xf32>
    %59 = vector.shape_cast %58 : vector<8x1024xf32> to vector<8x1x1024xf32>
    %60 = vector.shape_cast %49 : vector<8x1024xf32> to vector<1x8x1024xf32>
    %61 = vector.broadcast %59 : vector<8x1x1024xf32> to vector<8x8x1024xf32>
    %62 = vector.broadcast %60 : vector<1x8x1024xf32> to vector<8x8x1024xf32>
    %63 = arith.mulf %61, %62 : vector<8x8x1024xf32>
    %64 = vector.shape_cast %63 : vector<8x8x1024xf32> to vector<64x1024xf32>
    %c0_18 = arith.constant 0 : index
    %c0_19 = arith.constant 0 : index
    %c0_20 = arith.constant 0 : index
    %65 = vector.load %arg4[%c0_18, %c0_19, %c0_20] : memref<2x32x64xbf16, #tpu.memory_space<vmem>>, vector<1x32x64xbf16>
    %66 = vector.shape_cast %65 : vector<1x32x64xbf16> to vector<32x64xbf16>
    %67 = arith.truncf %64 : vector<64x1024xf32> to vector<64x1024xbf16>
    %cst_21 = arith.constant dense<0.000000e+00> : vector<32x1024xf32>
    %68 = tpu.matmul %66, %67, %cst_21 {dimension_numbers = #tpu.dot_dimension_numbers<[1], [0], [0], [1], [0, 0, 1, 1], [], []>} : vector<32x64xbf16>, vector<64x1024xbf16>, vector<32x1024xf32> -> vector<32x1024xf32>
    %cst_22 = arith.constant 0.000000e+00 : f32
    %69 = vector.shape_cast %29 : vector<1x1024xi1> to vector<1x1024xi1>
    %70 = vector.broadcast %69 : vector<1x1024xi1> to vector<32x1024xi1>
    %71 = vector.broadcast %cst_22 : f32 to vector<32x1024xf32>
    %72 = arith.select %70, %71, %68 : vector<32x1024xi1>, vector<32x1024xf32>
    %73 = arith.addf %2, %72 : vector<32x1024xf32>
    %c1 = arith.constant 1 : index
    %c0_23 = arith.constant 0 : index
    %c0_24 = arith.constant 0 : index
    %74 = vector.load %arg3[%c1, %c0_23, %c0_24] : memref<2x3x4xf32, #tpu.memory_space<vmem>>, vector<1x3x4xf32>
    %75 = vector.shape_cast %74 : vector<1x3x4xf32> to vector<3x4xf32>
    %76 = vector.extract_strided_slice %75 {offsets = [0, 0], sizes = [3, 1], strides = [1, 1]} : vector<3x4xf32> to vector<3x1xf32>
    %77 = vector.extract_strided_slice %1 {offsets = [0, 0], sizes = [1, 1024], strides = [1, 1]} : vector<3x1024xf32> to vector<1x1024xf32>
    %78 = vector.broadcast %76 : vector<3x1xf32> to vector<3x1024xf32>
    %79 = vector.broadcast %77 : vector<1x1024xf32> to vector<3x1024xf32>
    %80 = arith.mulf %78, %79 : vector<3x1024xf32>
    %81 = vector.extract_strided_slice %75 {offsets = [0, 1], sizes = [3, 1], strides = [1, 1]} : vector<3x4xf32> to vector<3x1xf32>
    %82 = vector.extract_strided_slice %1 {offsets = [1, 0], sizes = [1, 1024], strides = [1, 1]} : vector<3x1024xf32> to vector<1x1024xf32>
    %83 = vector.broadcast %81 : vector<3x1xf32> to vector<3x1024xf32>
    %84 = vector.broadcast %82 : vector<1x1024xf32> to vector<3x1024xf32>
    %85 = arith.mulf %83, %84 : vector<3x1024xf32>
    %86 = arith.addf %80, %85 : vector<3x1024xf32>
    %87 = vector.extract_strided_slice %75 {offsets = [0, 2], sizes = [3, 1], strides = [1, 1]} : vector<3x4xf32> to vector<3x1xf32>
    %88 = vector.extract_strided_slice %1 {offsets = [2, 0], sizes = [1, 1024], strides = [1, 1]} : vector<3x1024xf32> to vector<1x1024xf32>
    %89 = vector.broadcast %87 : vector<3x1xf32> to vector<3x1024xf32>
    %90 = vector.broadcast %88 : vector<1x1024xf32> to vector<3x1024xf32>
    %91 = arith.mulf %89, %90 : vector<3x1024xf32>
    %92 = arith.addf %86, %91 : vector<3x1024xf32>
    %93 = vector.extract_strided_slice %75 {offsets = [0, 3], sizes = [3, 1], strides = [1, 1]} : vector<3x4xf32> to vector<3x1xf32>
    %94 = vector.broadcast %93 : vector<3x1xf32> to vector<3x1024xf32>
    %95 = arith.addf %92, %94 : vector<3x1024xf32>
    %96 = vector.extract_strided_slice %95 {offsets = [0, 0], sizes = [1, 1024], strides = [1, 1]} : vector<3x1024xf32> to vector<1x1024xf32>
    %97 = vector.extract_strided_slice %95 {offsets = [1, 0], sizes = [1, 1024], strides = [1, 1]} : vector<3x1024xf32> to vector<1x1024xf32>
    %98 = vector.extract_strided_slice %95 {offsets = [2, 0], sizes = [1, 1024], strides = [1, 1]} : vector<3x1024xf32> to vector<1x1024xf32>
    %cst_25 = arith.constant 0.000000e+00 : f32
    %99 = vector.broadcast %cst_25 : f32 to vector<1x1024xf32>
    %100 = arith.cmpf ole, %98, %99 : vector<1x1024xf32>
    %cst_26 = arith.constant 0.000000e+00 : f32
    %101 = vector.broadcast %cst_26 : f32 to vector<1x1024xf32>
    %102 = arith.cmpf oeq, %98, %101 : vector<1x1024xf32>
    %cst_27 = arith.constant 1.000000e+00 : f32
    %103 = vector.broadcast %cst_27 : f32 to vector<1x1024xf32>
    %104 = arith.select %102, %103, %98 : vector<1x1024xi1>, vector<1x1024xf32>
    %105 = tpu.reciprocal %104 {approx = true} : vector<1x1024xf32> -> vector<1x1024xf32>
    %106 = arith.mulf %96, %105 : vector<1x1024xf32>
    %cst_28 = arith.constant 8.750000e-01 : f32
    %107 = vector.broadcast %cst_28 : f32 to vector<1x1024xf32>
    %108 = arith.mulf %106, %107 : vector<1x1024xf32>
    %109 = arith.mulf %97, %105 : vector<1x1024xf32>
    %cst_29 = arith.constant 8.750000e-01 : f32
    %110 = vector.broadcast %cst_29 : f32 to vector<1x1024xf32>
    %111 = arith.mulf %109, %110 : vector<1x1024xf32>
    %c0_30 = arith.constant 0 : index
    %c0_31 = arith.constant 0 : index
    %112 = vector.load %arg8[%c0_30, %c0_31] : memref<8x1xf32, #tpu.memory_space<vmem>>, vector<8x1xf32>
    %113 = vector.broadcast %108 : vector<1x1024xf32> to vector<8x1024xf32>
    %114 = vector.broadcast %112 : vector<8x1xf32> to vector<8x1024xf32>
    %115 = arith.subf %113, %114 : vector<8x1024xf32>
    %116 = math.absf %115 : vector<8x1024xf32>
    %cst_32 = arith.constant 1.000000e+00 : f32
    %117 = vector.broadcast %cst_32 : f32 to vector<8x1024xf32>
    %118 = arith.subf %117, %116 : vector<8x1024xf32>
    %cst_33 = arith.constant 0.000000e+00 : f32
    %119 = vector.broadcast %cst_33 : f32 to vector<8x1024xf32>
    %120 = arith.maximumf %119, %118 : vector<8x1024xf32>
    %c0_34 = arith.constant 0 : index
    %c0_35 = arith.constant 0 : index
    %121 = vector.load %arg9[%c0_34, %c0_35] : memref<8x1xf32, #tpu.memory_space<vmem>>, vector<8x1xf32>
    %122 = vector.broadcast %111 : vector<1x1024xf32> to vector<8x1024xf32>
    %123 = vector.broadcast %121 : vector<8x1xf32> to vector<8x1024xf32>
    %124 = arith.subf %122, %123 : vector<8x1024xf32>
    %125 = math.absf %124 : vector<8x1024xf32>
    %cst_36 = arith.constant 1.000000e+00 : f32
    %126 = vector.broadcast %cst_36 : f32 to vector<8x1024xf32>
    %127 = arith.subf %126, %125 : vector<8x1024xf32>
    %cst_37 = arith.constant 0.000000e+00 : f32
    %128 = vector.broadcast %cst_37 : f32 to vector<8x1024xf32>
    %129 = arith.maximumf %128, %127 : vector<8x1024xf32>
    %130 = vector.shape_cast %129 : vector<8x1024xf32> to vector<8x1x1024xf32>
    %131 = vector.shape_cast %120 : vector<8x1024xf32> to vector<1x8x1024xf32>
    %132 = vector.broadcast %130 : vector<8x1x1024xf32> to vector<8x8x1024xf32>
    %133 = vector.broadcast %131 : vector<1x8x1024xf32> to vector<8x8x1024xf32>
    %134 = arith.mulf %132, %133 : vector<8x8x1024xf32>
    %135 = vector.shape_cast %134 : vector<8x8x1024xf32> to vector<64x1024xf32>
    %c1_38 = arith.constant 1 : index
    %c0_39 = arith.constant 0 : index
    %c0_40 = arith.constant 0 : index
    %136 = vector.load %arg4[%c1_38, %c0_39, %c0_40] : memref<2x32x64xbf16, #tpu.memory_space<vmem>>, vector<1x32x64xbf16>
    %137 = vector.shape_cast %136 : vector<1x32x64xbf16> to vector<32x64xbf16>
    %138 = arith.truncf %135 : vector<64x1024xf32> to vector<64x1024xbf16>
    %cst_41 = arith.constant dense<0.000000e+00> : vector<32x1024xf32>
    %139 = tpu.matmul %137, %138, %cst_41 {dimension_numbers = #tpu.dot_dimension_numbers<[1], [0], [0], [1], [0, 0, 1, 1], [], []>} : vector<32x64xbf16>, vector<64x1024xbf16>, vector<32x1024xf32> -> vector<32x1024xf32>
    %cst_42 = arith.constant 0.000000e+00 : f32
    %140 = vector.shape_cast %100 : vector<1x1024xi1> to vector<1x1024xi1>
    %141 = vector.broadcast %140 : vector<1x1024xi1> to vector<32x1024xi1>
    %142 = vector.broadcast %cst_42 : f32 to vector<32x1024xf32>
    %143 = arith.select %141, %142, %139 : vector<32x1024xi1>, vector<32x1024xf32>
    %144 = arith.addf %73, %143 : vector<32x1024xf32>
    %c0_43 = arith.constant 0 : index
    %c0_44 = arith.constant 0 : index
    %145 = vector.load %arg5[%c0_43, %c0_44] : memref<32x1xf32, #tpu.memory_space<vmem>>, vector<32x1xf32>
    %146 = vector.broadcast %145 : vector<32x1xf32> to vector<32x1024xf32>
    %147 = arith.addf %144, %146 : vector<32x1024xf32>
    %cst_45 = arith.constant 0.000000e+00 : f32
    %148 = vector.broadcast %cst_45 : f32 to vector<32x1024xf32>
    %149 = arith.maximumf %147, %148 : vector<32x1024xf32>
    %c0_46 = arith.constant 0 : index
    %c0_47 = arith.constant 0 : index
    %150 = vector.load %arg6[%c0_46, %c0_47] : memref<16x32xf32, #tpu.memory_space<vmem>>, vector<16x32xf32>
    %cst_48 = arith.constant dense<0.000000e+00> : vector<16x1024xf32>
    %151 = tpu.matmul %150, %149, %cst_48 {dimension_numbers = #tpu.dot_dimension_numbers<[1], [0], [0], [1], [0, 0, 1, 1], [], []>} : vector<16x32xf32>, vector<32x1024xf32>, vector<16x1024xf32> -> vector<16x1024xf32>
    %c0_49 = arith.constant 0 : index
    %c0_50 = arith.constant 0 : index
    %152 = vector.load %arg7[%c0_49, %c0_50] : memref<16x1xf32, #tpu.memory_space<vmem>>, vector<16x1xf32>
    %153 = vector.broadcast %152 : vector<16x1xf32> to vector<16x1024xf32>
    %154 = arith.addf %151, %153 : vector<16x1024xf32>
    %cst_51 = arith.constant 5.000000e+01 : f32
    %155 = vector.broadcast %cst_51 : f32 to vector<16x1024xf32>
    %156 = arith.mulf %154, %155 : vector<16x1024xf32>
    %c0_52 = arith.constant 0 : index
    %c0_53 = arith.constant 0 : index
    %c0_54 = arith.constant 0 : index
    %157 = vector.load %arg10[%c0_52, %c0_53, %c0_54] : memref<1x16x1024xf32, #tpu.memory_space<vmem>>, vector<1x16x1024xf32>
    %158 = vector.shape_cast %157 : vector<1x16x1024xf32> to vector<16x1024xf32>
    %159 = vector.shape_cast %156 : vector<16x1024xf32> to vector<1x16x1024xf32>
    tpu.vector_store %arg10[%c0_52, %c0_53, %c0_54], %159 {strides = array<i32>} : memref<1x16x1024xf32, #tpu.memory_space<vmem>>, vector<1x16x1024xf32>,
    %c0_i32 = arith.constant 0 : i32
    %160 = arith.cmpi eq, %arg1, %c0_i32 : i32
    %161 = arith.extui %160 : i1 to i32
    %c0_i32_55 = arith.constant 0 : i32
    %162 = arith.cmpi ne, %161, %c0_i32_55 : i32
    scf.if %162 {
      %cst_70 = arith.constant 0xFF800000 : f32
      %185 = vector.broadcast %cst_70 : f32 to vector<16x1xf32>
      %c0_71 = arith.constant 0 : index
      %c0_72 = arith.constant 0 : index
      %c0_73 = arith.constant 0 : index
      %186 = vector.load %arg11[%c0_71, %c0_72, %c0_73] : memref<1x16x1xf32, #tpu.memory_space<vmem>>, vector<1x16x1xf32>
      %187 = vector.shape_cast %186 : vector<1x16x1xf32> to vector<16x1xf32>
      %188 = vector.shape_cast %185 : vector<16x1xf32> to vector<1x16x1xf32>
      tpu.vector_store %arg11[%c0_71, %c0_72, %c0_73], %188 {strides = array<i32>} : memref<1x16x1xf32, #tpu.memory_space<vmem>>, vector<1x16x1xf32>,
      %cst_74 = arith.constant 0.000000e+00 : f32
      %189 = vector.broadcast %cst_74 : f32 to vector<16x1xf32>
      %c0_75 = arith.constant 0 : index
      %c0_76 = arith.constant 0 : index
      %c0_77 = arith.constant 0 : index
      %190 = vector.load %arg12[%c0_75, %c0_76, %c0_77] : memref<1x16x1xf32, #tpu.memory_space<vmem>>, vector<1x16x1xf32>
      %191 = vector.shape_cast %190 : vector<1x16x1xf32> to vector<16x1xf32>
      %192 = vector.shape_cast %189 : vector<16x1xf32> to vector<1x16x1xf32>
      tpu.vector_store %arg12[%c0_75, %c0_76, %c0_77], %192 {strides = array<i32>} : memref<1x16x1xf32, #tpu.memory_space<vmem>>, vector<1x16x1xf32>,
    } else {
    }
    %c0_56 = arith.constant 0 : index
    %c0_57 = arith.constant 0 : index
    %c0_58 = arith.constant 0 : index
    %163 = vector.load %arg11[%c0_56, %c0_57, %c0_58] : memref<1x16x1xf32, #tpu.memory_space<vmem>>, vector<1x16x1xf32>
    %164 = vector.shape_cast %163 : vector<1x16x1xf32> to vector<16x1xf32>
    %cst_59 = arith.constant dense<0xFF800000> : vector<16xf32>
    %165 = vector.multi_reduction <maximumf>, %156, %cst_59 [1] : vector<16x1024xf32> to vector<16xf32>
    %166 = vector.shape_cast %165 : vector<16xf32> to vector<16x1xf32>
    %167 = arith.maximumf %164, %166 : vector<16x1xf32>
    %c0_60 = arith.constant 0 : index
    %c0_61 = arith.constant 0 : index
    %c0_62 = arith.constant 0 : index
    %168 = vector.load %arg12[%c0_60, %c0_61, %c0_62] : memref<1x16x1xf32, #tpu.memory_space<vmem>>, vector<1x16x1xf32>
    %169 = vector.shape_cast %168 : vector<1x16x1xf32> to vector<16x1xf32>
    %170 = arith.subf %164, %167 : vector<16x1xf32>
    %171 = math.exp %170 : vector<16x1xf32>
    %172 = arith.mulf %169, %171 : vector<16x1xf32>
    %173 = vector.broadcast %167 : vector<16x1xf32> to vector<16x1024xf32>
    %174 = arith.subf %156, %173 : vector<16x1024xf32>
    %175 = math.exp %174 : vector<16x1024xf32>
    %cst_63 = arith.constant dense<0.000000e+00> : vector<16xf32>
    %176 = vector.multi_reduction <add>, %175, %cst_63 [1] : vector<16x1024xf32> to vector<16xf32>
    %177 = vector.shape_cast %176 : vector<16xf32> to vector<16x1xf32>
    %178 = arith.addf %172, %177 : vector<16x1xf32>
    %c0_64 = arith.constant 0 : index
    %c0_65 = arith.constant 0 : index
    %c0_66 = arith.constant 0 : index
    %179 = vector.load %arg12[%c0_64, %c0_65, %c0_66] : memref<1x16x1xf32, #tpu.memory_space<vmem>>, vector<1x16x1xf32>
    %180 = vector.shape_cast %179 : vector<1x16x1xf32> to vector<16x1xf32>
    %181 = vector.shape_cast %178 : vector<16x1xf32> to vector<1x16x1xf32>
    tpu.vector_store %arg12[%c0_64, %c0_65, %c0_66], %181 {strides = array<i32>} : memref<1x16x1xf32, #tpu.memory_space<vmem>>, vector<1x16x1xf32>,
    %c0_67 = arith.constant 0 : index
    %c0_68 = arith.constant 0 : index
    %c0_69 = arith.constant 0 : index
    %182 = vector.load %arg11[%c0_67, %c0_68, %c0_69] : memref<1x16x1xf32, #tpu.memory_space<vmem>>, vector<1x16x1xf32>
    %183 = vector.shape_cast %182 : vector<1x16x1xf32> to vector<16x1xf32>
    %184 = vector.shape_cast %167 : vector<16x1xf32> to vector<1x16x1xf32>
    tpu.vector_store %arg11[%c0_67, %c0_68, %c0_69], %184 {strides = array<i32>} : memref<1x16x1xf32, #tpu.memory_space<vmem>>, vector<1x16x1xf32>,
    return
  }
  func.func @transform_0(%arg0: i32, %arg1: i32) -> (i32, i32, i32) {
    %c0_i32 = arith.constant 0 : i32
    %c0_i32_0 = arith.constant 0 : i32
    return %arg0, %c0_i32, %arg1 : i32, i32, i32
  }
  func.func @transform_1(%arg0: i32, %arg1: i32) -> (i32, i32, i32) {
    %c0_i32 = arith.constant 0 : i32
    %c0_i32_0 = arith.constant 0 : i32
    %c0_i32_1 = arith.constant 0 : i32
    return %arg0, %c0_i32, %c0_i32_0 : i32, i32, i32
  }
  func.func @transform_2(%arg0: i32, %arg1: i32) -> (i32, i32, i32) {
    %c0_i32 = arith.constant 0 : i32
    %c0_i32_0 = arith.constant 0 : i32
    %c0_i32_1 = arith.constant 0 : i32
    return %arg0, %c0_i32, %c0_i32_0 : i32, i32, i32
  }
  func.func @transform_3(%arg0: i32, %arg1: i32) -> (i32, i32) {
    %c0_i32 = arith.constant 0 : i32
    %c0_i32_0 = arith.constant 0 : i32
    %c0_i32_1 = arith.constant 0 : i32
    return %c0_i32, %c0_i32_0 : i32, i32
  }
  func.func @transform_4(%arg0: i32, %arg1: i32) -> (i32, i32) {
    %c0_i32 = arith.constant 0 : i32
    %c0_i32_0 = arith.constant 0 : i32
    %c0_i32_1 = arith.constant 0 : i32
    return %c0_i32, %c0_i32_0 : i32, i32
  }
  func.func @transform_5(%arg0: i32, %arg1: i32) -> (i32, i32) {
    %c0_i32 = arith.constant 0 : i32
    %c0_i32_0 = arith.constant 0 : i32
    %c0_i32_1 = arith.constant 0 : i32
    return %c0_i32, %c0_i32_0 : i32, i32
  }
  func.func @transform_6(%arg0: i32, %arg1: i32) -> (i32, i32) {
    %c0_i32 = arith.constant 0 : i32
    %c0_i32_0 = arith.constant 0 : i32
    %c0_i32_1 = arith.constant 0 : i32
    return %c0_i32, %c0_i32_0 : i32, i32
  }
  func.func @transform_7(%arg0: i32, %arg1: i32) -> (i32, i32) {
    %c0_i32 = arith.constant 0 : i32
    %c0_i32_0 = arith.constant 0 : i32
    %c0_i32_1 = arith.constant 0 : i32
    return %c0_i32, %c0_i32_0 : i32, i32
  }
  func.func @transform_8(%arg0: i32, %arg1: i32) -> (i32, i32, i32) {
    %c0_i32 = arith.constant 0 : i32
    %c0_i32_0 = arith.constant 0 : i32
    return %arg0, %c0_i32, %arg1 : i32, i32, i32
  }
  func.func @transform_9(%arg0: i32, %arg1: i32) -> (i32, i32, i32) {
    %c0_i32 = arith.constant 0 : i32
    %c0_i32_0 = arith.constant 0 : i32
    %c0_i32_1 = arith.constant 0 : i32
    return %arg0, %c0_i32, %c0_i32_0 : i32, i32, i32
  }
  func.func @transform_10(%arg0: i32, %arg1: i32) -> (i32, i32, i32) {
    %c0_i32 = arith.constant 0 : i32
    %c0_i32_0 = arith.constant 0 : i32
    %c0_i32_1 = arith.constant 0 : i32
    return %arg0, %c0_i32, %c0_i32_0 : i32, i32, i32
  }
}

</mosaic_0001>

<llo_original>
// kernel: custom-call.61
$region0: #{custom-call.61}
  %s0 = inlined_call_operand.vmem [shape: f32[2,8,4], index: 0, kind: input, shape index: {}]
  %s1 = inlined_call_operand.vmem [shape: f32[2,8,4], index: 1, kind: output, shape index: {0}]
  %s2 = inlined_call_operand.vmem [shape: f32[2,4], index: 2, kind: output, shape index: {1}]
  %3 = xla_tuple %s1, %s2
  $region1: #{custom-call.61} parent=0
    #allocation0 [shape = 'u8[8192]{0}', space=vmem, size = 0x2000, scoped, tag = 'operand span for operand 0']
    #allocation1 [shape = 'u8[8192]{0}', space=vmem, size = 0x2000, scoped, tag = 'operand span for operand 1']
    #allocation2 [shape = 'u8[4096]{0}', space=vmem, size = 0x1000, scoped, tag = 'operand span for operand 2']
    #allocation3 [shape = 'u8[2048]{0}', space=vmem, size = 0x800, scoped, tag = 'packed  for operand 2']
    loop: start=0, step=1, limit=4
    $region2: #{custom-call.61} parent=1 // loop_pre_header
      _
    $region3: #{custom-call.61} parent=1 // loop_header
      %s5 = sphi 0, %s9
      %p6 = scmp.ge.s32.totalorder %s5, 4
      %s12 = sphi 0, %s31
      %s13 = sphi 0, %s27
      %s14 = sphi 0, %s23
      %s15 = sphi 0, %s12
      %s16 = sphi 0, %s13
      %s17 = sphi 0, %s14
      %s18 = sphi 0, %s15
      %s19 = sphi 0, %s16
      %s20 = sphi 0, %s17
      %s46 = sphi 0, %s48
      %s49 = sphi 0, %s46
      %s50 = sphi 0, %s49
      %s66 = sphi 0, %s50
    $region4: #{custom-call.61} parent=1 // loop_header_branch
      %8 = sbr.rel (%p6) target = $region8
    $region5: #{custom-call.61} parent=1 // loop_body
      %s10 = ssub.s32 %s5, 1
      %s11 = ssub.s32 %s5, 2
      %s21 = sadd.s32 1, %s14
      %p22 = scmp.ge.s32.totalorder %s21, 1
      %s23 = scalar_select %p22, 0, %s21
      %s24 = sadd.s32 1, %s13
      %s25 = scalar_select %p22, %s24, %s13
      %p26 = scmp.ge.s32.totalorder %s25, 1
      %s27 = scalar_select %p26, 0, %s25
      %s28 = sadd.s32 1, %s12
      %s29 = scalar_select %p26, %s28, %s12
      %p30 = scmp.ge.s32.totalorder %s29, 2
      %s31 = scalar_select %p30, 0, %s29
      %p32 = scmp.lt.s32.totalorder %s12, 0
      %s33 = ssub.s32 0, %s12
      %s34 = scalar_select %p32, %s33, %s12
      %s35 = sshrl.u32 %s34, 3
      %s36 = ssub.s32 0, %s35
      %s37 = scalar_select %p32, %s36, %s35
      %p38 = scmp.lt.s32.totalorder %s31, 0
      %s39 = ssub.s32 0, %s31
      %s40 = scalar_select %p38, %s39, %s31
      %s41 = sshrl.u32 %s40, 3
      %s42 = ssub.s32 0, %s41
      %s43 = scalar_select %p38, %s42, %s41
      %s44 = ssub.s32 %s37, %s43
      %p45 = scmp.eq.s32.totalorder %s44, 0
      %s47 = sadd.s32 %s46, 1
      %s48 = scalar_select %p45, %s46, %s47
      %p51 = pneg %p45
      %p52 = scmp.eq.s32.totalorder %s5, 1
      %p53 = por %p51, %p52
      %p54 = scmp.ne.s32.totalorder %s46, %s49
      %p55 = scmp.eq.s32.totalorder %s5, 0
      %p56 = por %p54, %p55
      %p57 = scmp.ne.s32.totalorder %s46, %s49
      %p58 = scmp.eq.s32.totalorder %s10, 1
      %p59 = por %p57, %p58
      %p60 = scmp.ne.s32.totalorder %s49, %s50
      %p61 = scmp.eq.s32.totalorder %s10, 0
      %p62 = por %p60, %p61
      %p63 = scmp.ne.s32.totalorder %s49, %s50
      %p64 = scmp.eq.s32.totalorder %s11, 1
      %p65 = por %p63, %p64
      %p67 = scmp.ne.s32.totalorder %s50, %s66
      %p68 = scmp.eq.s32.totalorder %s11, 0
      %p69 = por %p67, %p68
      %p70 = scmp.le.s32.totalorder 1, %s5
      %p71 = scmp.lt.s32.totalorder %s5, 3
      %p72 = pnand %p70, %p71
      %p73 = pneg %p72
      // Predicated region
      $region9: #{custom-call.61} parent=5 // pred_check
        _
      $region10: #{custom-call.61} parent=5 // pred_check_branch
        %75 = sbr.rel (%p72) target = $region12
      $region11: #{custom-call.61} parent=5 // pred_region
        %s76 = ssub.s32 %s5, 1
      $region12: #{custom-call.61} parent=5 // pred_fallthru
        _
      %p77 = scmp.lt.s32.totalorder %s5, 2
      // Predicated region
      $region13: #{custom-call.61} parent=5 // pred_check
        %p78 = pneg %p77
      $region14: #{custom-call.61} parent=5 // pred_check_branch
        %80 = sbr.rel (%p78) target = $region16
      $region15: #{custom-call.61} parent=5 // pred_region
        %s81 = sand.u32 %s5, 1
        %s82 = sand.u32 %s5, 1
        %s83 = smul.addr %s82, 8
        %s84 = scalar_lea.vmem [#allocation0], %s83
        %s85 = sadd.s32 %s14, %s13
        %s86 = sadd.s32 %s85, %s12
        %s87 = smul.addr %s86, 8
        %s88 = scalar_lea.vmem %s0, %s87
        // Predicated region
        $region17: #{custom-call.61} parent=15 // pred_check
          _
        $region18: #{custom-call.61} parent=15 // pred_check_branch
          %90 = sbr.rel (0) target = $region20
        $region19: #{custom-call.61} parent=15 // pred_region
          // Predicated region
          $region21: #{custom-call.61} parent=19 // pred_check
            _
          $region22: #{custom-call.61} parent=19 // pred_check_branch
            %92 = sbr.rel (0) target = $region24
          $region23: #{custom-call.61} parent=19 // pred_region
            // Predicated region
            $region36: #{custom-call.61} parent=23 // pred_check
              _
            $region37: #{custom-call.61} parent=23 // pred_check_branch
              %107 = sbr.rel (0) target = $region39
            $region38: #{custom-call.61} parent=23 // pred_region
              loop: start=0, step=1, limit=1
              $region40: #{custom-call.61} parent=38 // loop_pre_header
                _
              $region41: #{custom-call.61} parent=38 // loop_header
                %s109 = sphi 0, %s113
                %p110 = scmp.ge.s32.totalorder %s109, 1
                %s114 = sphi %s88, %s88
                %s115 = sphi %s84, %s84
              $region42: #{custom-call.61} parent=38 // loop_header_branch
                %112 = sbr.rel (%p110) target = $region46
              $region43: #{custom-call.61} parent=38 // loop_body
                %v116 = vld [vmem:[%s114] sm:$0xff]
                %117 = vst [vmem:[%s115] sm:$0xff] %v116
              $region44: #{custom-call.61} parent=38 // loop_footer
                %s113 = sadd.s32 1, %s109
              $region45: #{custom-call.61} parent=38 // loop_footer_branch
                %108 = sbr.rel target = $region41
              $region46: #{custom-call.61} parent=38 // loop_exit
                _
            $region39: #{custom-call.61} parent=23 // pred_fallthru
              _
            // Predicated region
            $region47: #{custom-call.61} parent=23 // pred_check
              _
            $region48: #{custom-call.61} parent=23 // pred_check_branch
              %119 = sbr.rel target = $region50
            $region49: #{custom-call.61} parent=23 // pred_region
              _
            $region50: #{custom-call.61} parent=23 // pred_fallthru
              _
          $region24: #{custom-call.61} parent=19 // pred_fallthru
            _
          // Predicated region
          $region25: #{custom-call.61} parent=19 // pred_check
            _
          $region26: #{custom-call.61} parent=19 // pred_check_branch
            %94 = sbr.rel target = $region28
          $region27: #{custom-call.61} parent=19 // pred_region
            loop: start=0, step=1, limit=1
            $region29: #{custom-call.61} parent=27 // loop_pre_header
              _
            $region30: #{custom-call.61} parent=27 // loop_header
              %s97 = sphi 0, %s101
              %p98 = scmp.ge.s32.totalorder %s97, 1
              %s102 = sphi %s88, %s88
              %s103 = sphi %s84, %s84
            $region31: #{custom-call.61} parent=27 // loop_header_branch
              %100 = sbr.rel (%p98) target = $region35
            $region32: #{custom-call.61} parent=27 // loop_body
              %v104 = vld [vmem:[%s102] sm:$0xff]
              %105 = vst [vmem:[%s103] sm:$0xff] %v104
            $region33: #{custom-call.61} parent=27 // loop_footer
              %s101 = sadd.s32 1, %s97
            $region34: #{custom-call.61} parent=27 // loop_footer_branch
              %96 = sbr.rel target = $region30
            $region35: #{custom-call.61} parent=27 // loop_exit
              _
          $region28: #{custom-call.61} parent=19 // pred_fallthru
            _
        $region20: #{custom-call.61} parent=15 // pred_fallthru
          _
        %120 = vnop
      $region16: #{custom-call.61} parent=5 // pred_fallthru
        _
      %p121 = scmp.le.s32.totalorder 1, %s5
      %p122 = scmp.lt.s32.totalorder %s5, 3
      %p123 = pnand %p121, %p122
      %p124 = pneg %p123
      // Predicated region
      $region51: #{custom-call.61} parent=5 // pred_check
        _
      $region52: #{custom-call.61} parent=5 // pred_check_branch
        %126 = sbr.rel (%p123) target = $region54
      $region53: #{custom-call.61} parent=5 // pred_region
        #allocation4 [shape = 'f32[8,128]{1,0}', space=vmem, size = 0x1000, scoped, tag = 'scratch for Householder reflectors']
        %s127 = ssub.s32 %s5, 1
        %s128 = sand.u32 %s10, 1
        %s129 = sand.u32 %s10, 1
        %s130 = smul.addr %s129, 8
        %s131 = scalar_lea.vmem [#allocation0], %s130
        %s132 = sand.u32 %s10, 1
        %s133 = sand.u32 %s10, 1
        %s134 = smul.addr %s133, 8
        %s135 = scalar_lea.vmem [#allocation0], %s134
        %s136 = sand.u32 %s10, 1
        %s137 = sand.u32 %s10, 1
        %s138 = smul.addr %s137, 8
        %s139 = scalar_lea.vmem [#allocation1], %s138
        %p140 = pneg %p62
        %p141 = pneg %p59
        %s142 = sand.u32 %s49, 1
        %s143 = sand.u32 %s49, 1
        %s144 = smul.addr %s143, 2
        %s145 = scalar_lea.vmem [#allocation3], %s144
        %p146 = scmp.lt.s32.totalorder %s15, 0
        %s147 = ssub.s32 0, %s15
        %s148 = scalar_select %p146, %s147, %s15
        %s149 = sshrl.u32 %s148, 3
        %s150 = ssub.s32 0, %s149
        %s151 = scalar_select %p146, %s150, %s149
        %s152 = sand.u32 %s15, 7
        %s153 = scalar_lea.vmem [#allocation2], %s152
        %v154 = vld [vmem:[%s131] sm:$0xff]
        %155 = vst [vmem:[%s139] sm:$0xff] %v154
        %156 = vst [vmem:[%s153] sm:$0x1] 0.0
        loop: start=0, step=1, limit=4
        $region55: #{custom-call.61} parent=53 // loop_pre_header
          _
        $region56: #{custom-call.61} parent=53 // loop_header
          %s158 = sphi 0, %s162
          %p159 = scmp.ge.s32.totalorder %s158, 4
        $region57: #{custom-call.61} parent=53 // loop_header_branch
          %161 = sbr.rel (%p159) target = $region61
        $region58: #{custom-call.61} parent=53 // loop_body
          %v163 = vld [vmem:[%s139] sm:$0xff]
          %v164 = vlaneseq
          %v165 = vshrl.u32 %v164, 7
          %v167 = vstv %s158
          %vm168 = vcmp.gt.s32.totalorder %v165, %v167
          %vm169 = vcmp.lt.s32.totalorder %v165, 8
          %vm170 = vmand %vm168, %vm169
          %v171 = vsel %vm170, %v163, 0.0
          %v172 = vmul.f32 %v171, %v171
          %v173 = vrot.slane %v172, 4
          %v174 = vadd.f32 %v172, %v173
          %v175 = vrot.slane %v174, 2
          %v176 = vadd.f32 %v174, %v175
          %v177 = vrot.slane %v176, 1
          %v178 = vadd.f32 %v176, %v177
          %v179 = vrsqrt.pop %v178
          %v180 = vmul.f32 %v178, %v179
          %vm181 = vcmp.eq.f32.partialorder %v178, inf
          %v182 = vsel %vm181, %v178, %v180
          %vm183 = vcmp.eq.f32.partialorder %v178, 0.0
          %v184 = vand.u32 %v178, 2147483648
          %v185 = vsel %vm183, %v184, %v182
          %vm186 = vcmp.eq.f32.partialorder %v178, 0.0
          %s187 = sshrl.u32 %s158, 3
          %s188 = sand.u32 %s158, 7
          %s189 = smul.addr %s187, 8
          %s190 = sadd.s32 %s188, %s189
          %s191 = scalar_lea.vmem %s139, %s190 [#allocation1]
          %v192 = vld [vmem:[%s191] ss:$0 sm:$0xff]
          %v193 = vand.u32 2147483647, %v192
          %v194 = vmax.f32 %v193, 0.0
          %v195 = vand.u32 2147483647, %v185
          %v196 = vmax.f32 %v194, %v195
          %v197 = vrcp.pop %v196
          %v198 = vmul.f32 %v193, %v197
          %v199 = vmul.f32 %v198, %v198
          %v200 = vrcp.pop %v196
          %v201 = vmul.f32 0.0, %v200
          %v202 = vmul.f32 %v201, %v201
          %v203 = vadd.f32 %v199, %v202
          %v204 = vrcp.pop %v196
          %v205 = vmul.f32 %v195, %v204
          %v206 = vmul.f32 %v205, %v205
          %v207 = vadd.f32 %v203, %v206
          %vm208 = vcmp.eq.f32.partialorder %v196, 0.0
          %v209 = vrsqrt.pop %v207
          %v210 = vmul.f32 %v207, %v209
          %vm211 = vcmp.eq.f32.partialorder %v207, inf
          %v212 = vsel %vm211, %v207, %v210
          %vm213 = vcmp.eq.f32.partialorder %v207, 0.0
          %v214 = vand.u32 %v207, 2147483648
          %v215 = vsel %vm213, %v214, %v212
          %v216 = vmul.f32 %v196, %v215
          %v217 = vsel %vm208, 0.0, %v216
          %vm218 = vcmp.lt.f32.partialorder %v192, 0.0
          %v219 = vxor.u32 %v217, 2147483648
          %v220 = vsel %vm218, %v217, %v219
          %v221 = vsub.f32 %v220, %v192
          %v222 = vrcp.pop %v220
          %v223 = vmul.f32 %v221, %v222
          %v224 = vsel %vm186, %v192, %v220
          %v225 = vsel %vm186, 0.0, %v223
          %v226 = vsub.f32 %v192, %v224
          %s227 = smov %s139
          %v228 = vlaneseq
          %v229 = vshrl.u32 %v228, 7
          %v230 = vmov %v229
          %v231 = vld [vmem:[%s227] sm:$0xff]
          %v233 = vstv %s158
          %vm234 = vcmp.gt.s32.totalorder %v230, %v233
          %vm235 = vcmp.lt.s32.totalorder %v230, 8
          %vm236 = vmand %vm234, %vm235
          %v237 = vsel %vm236, %v231, 0.0
          %v238 = vrcp.pop %v226
          %v239 = vmul.f32 %v237, %v238
          %v240 = vsel %vm186, 0.0, %v239
          %v241 = vstv %s158
          %v242 = vlaneseq
          %v243 = vand.u32 %v242, 127
          %vm244 = vcmp.eq.s32.totalorder %v243, %v241
          %v245 = vsel %vm244, %v240, 0.0
          %246 = vadd.xlane.f32.xlu0 %v245
          %v247 = vpop.xlane.xlu0 %246
          %248 = vst [vmem:[#allocation4] sm:$0xff] %v247
          %s249 = scalar_lea.vmem [#allocation4], %s158
          %250 = vst [vmem:[%s249] sm:$0x1] 1.0
          %v251 = vstv %s158
          %v252 = vlaneseq
          %v253 = vand.u32 %v252, 127
          %vm254 = vcmp.eq.s32.totalorder %v253, %v251
          %v255 = vsel %vm254, %v225, 0.0
          %256 = vadd.xlane.f32.xlu0 %v255
          %v257 = vpop.xlane.xlu0 %256
          %v258 = vstv %s158
          %v259 = vlaneseq
          %v260 = vand.u32 %v259, 127
          %vm261 = vcmp.eq.s32.totalorder %v260, %v258
          %v262 = vld [vmem:[%s153] ss:$0 sm:$0xff]
          %v263 = vsel %vm261, %v257, %v262
          %264 = vst [vmem:[%s153] sm:$0x1] %v263
          %s265 = smov %s139
          %s266 = smov [#allocation4]
          %v267 = vlaneseq
          %v268 = vshrl.u32 %v267, 7
          %v269 = vmov %v268
          %v271 = vld [vmem:[%s266] sm:$0xff]
          %v272 = vld [vmem:[%s265] sm:$0xff]
          %v273 = vmul.f32 %v271, %v272
          %vm274 = vcmp.lt.s32.totalorder %v269, 8
          %v275 = vsel %vm274, %v273, 0.0
          %v276 = vrot.slane %v275, 4
          %v277 = vadd.f32 %v275, %v276
          %v278 = vrot.slane %v277, 2
          %v279 = vadd.f32 %v277, %v278
          %v280 = vrot.slane %v279, 1
          %v281 = vadd.f32 %v279, %v280
          %s282 = smov %s265
          %s283 = smov %s266
          %v284 = vlaneseq
          %v285 = vshrl.u32 %v284, 7
          %v286 = vmov %v285
          %v287 = vmul.f32 %v281, %v257
          %v289 = vlaneseq
          %v290 = vand.u32 %v289, 127
          %v291 = vld [vmem:[%s283] sm:$0xff]
          %v292 = vmul.f32 %v291, %v287
          %v293 = vld [vmem:[%s282] sm:$0xff]
          %v294 = vstv %s158
          %vm295 = vcmp.gt.s32.totalorder %v290, %v294
          %v296 = vsub.f32 %v293, %v292
          %v297 = vsel %vm295, %v296, %v293
          %v298 = vstv %s158
          %v299 = vlaneseq
          %v300 = vand.u32 %v299, 127
          %vm301 = vcmp.eq.s32.totalorder %v300, %v298
          %v302 = vstv %s158
          %vm303 = vcmp.ge.s32.totalorder %v286, %v302
          %vm304 = vmand %vm301, %vm303
          %v305 = vsel %vm304, %v291, %v297
          %306 = vst [vmem:[%s282] sm:$0xff] %v305
          %s307 = scalar_lea.vmem %s282, %s158
          %v308 = vld [vmem:[%s307] ss:$0 sm:$0xff]
          %v309 = vstv %s158
          %v310 = vlaneseq
          %v311 = vand.u32 %v310, 127
          %vm312 = vcmp.eq.s32.totalorder %v311, %v309
          %v313 = vsel %vm312, %v224, %v308
          %314 = vst [vmem:[%s307] sm:$0x1] %v313
        $region59: #{custom-call.61} parent=53 // loop_footer
          %s162 = sadd.s32 1, %s158
        $region60: #{custom-call.61} parent=53 // loop_footer_branch
          %157 = sbr.rel target = $region56
        $region61: #{custom-call.61} parent=53 // loop_exit
          _
        %s316 = sshllo.u32 0, 2
        %v318 = vld [vmem:[#allocation2] sm:%s316]
        %s319 = sshllo.u32 0, 2
        %320 = vst [vmem:[%s145] sm:%s319] %v318
        %s321 = sand.u32 %s10, 1
        %s322 = sand.u32 %s10, 1
        %s323 = smul.addr %s322, 8
        %s324 = scalar_lea.vmem [#allocation1], %s323
        %s325 = sand.u32 %s49, 1
        %s326 = sand.u32 %s49, 1
        %s327 = smul.addr %s326, 2
        %s328 = scalar_lea.vmem [#allocation3], %s327
        %s329 = sadd.s32 %s17, %s16
        %s330 = sadd.s32 %s329, %s15
        %s331 = smul.addr %s330, 8
        %s332 = scalar_lea.vmem %s1, %s331
        // Predicated region
        $region62: #{custom-call.61} parent=53 // pred_check
          _
        $region63: #{custom-call.61} parent=53 // pred_check_branch
          %334 = sbr.rel (0) target = $region65
        $region64: #{custom-call.61} parent=53 // pred_region
          // Predicated region
          $region66: #{custom-call.61} parent=64 // pred_check
            _
          $region67: #{custom-call.61} parent=64 // pred_check_branch
            %336 = sbr.rel (0) target = $region69
          $region68: #{custom-call.61} parent=64 // pred_region
            // Predicated region
            $region81: #{custom-call.61} parent=68 // pred_check
              _
            $region82: #{custom-call.61} parent=68 // pred_check_branch
              %351 = sbr.rel (0) target = $region84
            $region83: #{custom-call.61} parent=68 // pred_region
              loop: start=0, step=1, limit=1
              $region85: #{custom-call.61} parent=83 // loop_pre_header
                _
              $region86: #{custom-call.61} parent=83 // loop_header
                %s353 = sphi 0, %s357
                %p354 = scmp.ge.s32.totalorder %s353, 1
                %s358 = sphi %s324, %s324
                %s359 = sphi %s332, %s332
              $region87: #{custom-call.61} parent=83 // loop_header_branch
                %356 = sbr.rel (%p354) target = $region91
              $region88: #{custom-call.61} parent=83 // loop_body
                %v360 = vld [vmem:[%s358] sm:$0xff]
                %361 = vst [vmem:[%s359] sm:$0xff] %v360
              $region89: #{custom-call.61} parent=83 // loop_footer
                %s357 = sadd.s32 1, %s353
              $region90: #{custom-call.61} parent=83 // loop_footer_branch
                %352 = sbr.rel target = $region86
              $region91: #{custom-call.61} parent=83 // loop_exit
                _
            $region84: #{custom-call.61} parent=68 // pred_fallthru
              _
            // Predicated region
            $region92: #{custom-call.61} parent=68 // pred_check
              _
            $region93: #{custom-call.61} parent=68 // pred_check_branch
              %363 = sbr.rel target = $region95
            $region94: #{custom-call.61} parent=68 // pred_region
              _
            $region95: #{custom-call.61} parent=68 // pred_fallthru
              _
          $region69: #{custom-call.61} parent=64 // pred_fallthru
            _
          // Predicated region
          $region70: #{custom-call.61} parent=64 // pred_check
            _
          $region71: #{custom-call.61} parent=64 // pred_check_branch
            %338 = sbr.rel target = $region73
          $region72: #{custom-call.61} parent=64 // pred_region
            loop: start=0, step=1, limit=1
            $region74: #{custom-call.61} parent=72 // loop_pre_header
              _
            $region75: #{custom-call.61} parent=72 // loop_header
              %s341 = sphi 0, %s345
              %p342 = scmp.ge.s32.totalorder %s341, 1
              %s346 = sphi %s324, %s324
              %s347 = sphi %s332, %s332
            $region76: #{custom-call.61} parent=72 // loop_header_branch
              %344 = sbr.rel (%p342) target = $region80
            $region77: #{custom-call.61} parent=72 // loop_body
              %v348 = vld [vmem:[%s346] sm:$0xff]
              %349 = vst [vmem:[%s347] sm:$0xff] %v348
            $region78: #{custom-call.61} parent=72 // loop_footer
              %s345 = sadd.s32 1, %s341
            $region79: #{custom-call.61} parent=72 // loop_footer_branch
              %340 = sbr.rel target = $region75
            $region80: #{custom-call.61} parent=72 // loop_exit
              _
          $region73: #{custom-call.61} parent=64 // pred_fallthru
            _
        $region65: #{custom-call.61} parent=53 // pred_fallthru
          _
        %364 = vnop
        // Predicated region
        $region96: #{custom-call.61} parent=53 // pred_check
          %p365 = pneg %p59
        $region97: #{custom-call.61} parent=53 // pred_check_branch
          %367 = sbr.rel (%p365) target = $region99
        $region98: #{custom-call.61} parent=53 // pred_region
          %p368 = scmp.lt.s32.totalorder %s15, 0
          %s369 = ssub.s32 0, %s15
          %s370 = scalar_select %p368, %s369, %s15
          %s371 = sshrl.u32 %s370, 3
          %s372 = ssub.s32 0, %s371
          %s373 = scalar_select %p368, %s372, %s371
          %s374 = smul.addr %s373, 2
          %s375 = scalar_lea.vmem %s2, %s374
          // Predicated region
          $region100: #{custom-call.61} parent=98 // pred_check
            _
          $region101: #{custom-call.61} parent=98 // pred_check_branch
            %377 = sbr.rel (0) target = $region103
          $region102: #{custom-call.61} parent=98 // pred_region
            // Predicated region
            $region104: #{custom-call.61} parent=102 // pred_check
              _
            $region105: #{custom-call.61} parent=102 // pred_check_branch
              %379 = sbr.rel target = $region107
            $region106: #{custom-call.61} parent=102 // pred_region
              // Predicated region
              $region119: #{custom-call.61} parent=106 // pred_check
                _
              $region120: #{custom-call.61} parent=106 // pred_check_branch
                %394 = sbr.rel (0) target = $region122
              $region121: #{custom-call.61} parent=106 // pred_region
                loop: start=0, step=1, limit=1
                $region123: #{custom-call.61} parent=121 // loop_pre_header
                  _
                $region124: #{custom-call.61} parent=121 // loop_header
                  %s397 = sphi 0, %s401
                  %p398 = scmp.ge.s32.totalorder %s397, 1
                  %s402 = sphi %s328, %s328
                  %s403 = sphi %s375, %s375
                $region125: #{custom-call.61} parent=121 // loop_header_branch
                  %400 = sbr.rel (%p398) target = $region129
                $region126: #{custom-call.61} parent=121 // loop_body
                  %v404 = vld [vmem:[%s402] sm:$0x3]
                  %405 = vst [vmem:[%s403] sm:$0x3] %v404
                $region127: #{custom-call.61} parent=121 // loop_footer
                  %s401 = sadd.s32 1, %s397
                $region128: #{custom-call.61} parent=121 // loop_footer_branch
                  %396 = sbr.rel target = $region124
                $region129: #{custom-call.61} parent=121 // loop_exit
                  _
              $region122: #{custom-call.61} parent=106 // pred_fallthru
                _
            $region107: #{custom-call.61} parent=102 // pred_fallthru
              _
            // Predicated region
            $region108: #{custom-call.61} parent=102 // pred_check
              _
            $region109: #{custom-call.61} parent=102 // pred_check_branch
              %381 = sbr.rel (0) target = $region111
            $region110: #{custom-call.61} parent=102 // pred_region
              loop: start=0, step=1, limit=1
              $region112: #{custom-call.61} parent=110 // loop_pre_header
                _
              $region113: #{custom-call.61} parent=110 // loop_header
                %s384 = sphi 0, %s388
                %p385 = scmp.ge.s32.totalorder %s384, 1
                %s389 = sphi %s328, %s328
                %s390 = sphi %s375, %s375
              $region114: #{custom-call.61} parent=110 // loop_header_branch
                %387 = sbr.rel (%p385) target = $region118
              $region115: #{custom-call.61} parent=110 // loop_body
                %v391 = vld [vmem:[%s389] sm:$0x3]
                %392 = vst [vmem:[%s390] sm:$0x3] %v391
              $region116: #{custom-call.61} parent=110 // loop_footer
                %s388 = sadd.s32 1, %s384
              $region117: #{custom-call.61} parent=110 // loop_footer_branch
                %383 = sbr.rel target = $region113
              $region118: #{custom-call.61} parent=110 // loop_exit
                _
            $region111: #{custom-call.61} parent=102 // pred_fallthru
              _
          $region103: #{custom-call.61} parent=98 // pred_fallthru
            _
          %406 = vnop
        $region99: #{custom-call.61} parent=53 // pred_fallthru
          _
      $region54: #{custom-call.61} parent=5 // pred_fallthru
        _
      %p407 = scmp.le.s32.totalorder 2, %s5
      // Predicated region
      $region130: #{custom-call.61} parent=5 // pred_check
        %p408 = pneg %p407
      $region131: #{custom-call.61} parent=5 // pred_check_branch
        %410 = sbr.rel (%p408) target = $region133
      $region132: #{custom-call.61} parent=5 // pred_region
        %s411 = ssub.s32 %s5, 2
        %s412 = sand.u32 %s11, 1
        %s413 = sand.u32 %s11, 1
        %s414 = smul.addr %s413, 8
        %s415 = scalar_lea.vmem [#allocation1], %s414
        // Predicated region
        $region134: #{custom-call.61} parent=132 // pred_check
          %p416 = pneg %p65
        $region135: #{custom-call.61} parent=132 // pred_check_branch
          %418 = sbr.rel (%p416) target = $region137
        $region136: #{custom-call.61} parent=132 // pred_region
          %s419 = sand.u32 %s50, 1
          %s420 = sand.u32 %s50, 1
          %s421 = smul.addr %s420, 2
          %s422 = scalar_lea.vmem [#allocation3], %s421
        $region137: #{custom-call.61} parent=132 // pred_fallthru
          _
      $region133: #{custom-call.61} parent=5 // pred_fallthru
        _
    $region6: #{custom-call.61} parent=1 // loop_footer
      %s9 = sadd.s32 1, %s5
    $region7: #{custom-call.61} parent=1 // loop_footer_branch
      %4 = sbr.rel target = $region3
    $region8: #{custom-call.61} parent=1 // loop_exit
      _

// kernel: custom-call.62
$region0: #{custom-call.62}
  %s0 = inlined_call_operand.vmem [shape: f32[2,4,4], index: 0, kind: input, shape index: {}]
  %s1 = inlined_call_operand.vmem [shape: f32[2,4,4], index: 1, kind: output, shape index: {}]
  $region1: #{custom-call.62} parent=0
    #allocation0 [shape = 'u8[4096]{0}', space=vmem, size = 0x1000, scoped, tag = 'operand span for operand 0']
    #allocation1 [shape = 'u8[4096]{0}', space=vmem, size = 0x1000, scoped, tag = 'packed  for operand 0']
    #allocation2 [shape = 'u8[4096]{0}', space=vmem, size = 0x1000, scoped, tag = 'operand span for operand 1']
    #allocation3 [shape = 'u8[4096]{0}', space=vmem, size = 0x1000, scoped, tag = 'packed  for operand 1']
    loop: start=0, step=1, limit=4
    $region2: #{custom-call.62} parent=1 // loop_pre_header
      _
    $region3: #{custom-call.62} parent=1 // loop_header
      %s3 = sphi 0, %s7
      %p4 = scmp.ge.s32.totalorder %s3, 4
    $region4: #{custom-call.62} parent=1 // loop_header_branch
      %6 = sbr.rel (%p4) target = $region8
    $region5: #{custom-call.62} parent=1 // loop_body
      %s8 = ssub.s32 %s3, 1
      %s9 = ssub.s32 %s3, 2
      %s10 = sadd.s32 %s3, 1
      %p11 = scmp.le.s32.totalorder 1, %s3
      %p12 = scmp.lt.s32.totalorder %s3, 3
      %p13 = pnand %p11, %p12
      %p14 = pneg %p13
      // Predicated region
      $region9: #{custom-call.62} parent=5 // pred_check
        _
      $region10: #{custom-call.62} parent=5 // pred_check_branch
        %16 = sbr.rel (%p13) target = $region12
      $region11: #{custom-call.62} parent=5 // pred_region
        %s17 = ssub.s32 %s3, 1
      $region12: #{custom-call.62} parent=5 // pred_fallthru
        _
      %p18 = scmp.lt.s32.totalorder %s3, 2
      // Predicated region
      $region13: #{custom-call.62} parent=5 // pred_check
        %p19 = pneg %p18
      $region14: #{custom-call.62} parent=5 // pred_check_branch
        %21 = sbr.rel (%p19) target = $region16
      $region15: #{custom-call.62} parent=5 // pred_region
        %s22 = sand.u32 %s3, 1
        %s23 = sand.u32 %s3, 1
        %s24 = smul.addr %s23, 4
        %s25 = scalar_lea.vmem [#allocation1], %s24
        %s26 = smul.addr %s3, 4
        %s27 = scalar_lea.vmem %s0, %s26
        // Predicated region
        $region17: #{custom-call.62} parent=15 // pred_check
          _
        $region18: #{custom-call.62} parent=15 // pred_check_branch
          %29 = sbr.rel (0) target = $region20
        $region19: #{custom-call.62} parent=15 // pred_region
          // Predicated region
          $region21: #{custom-call.62} parent=19 // pred_check
            _
          $region22: #{custom-call.62} parent=19 // pred_check_branch
            %31 = sbr.rel target = $region24
          $region23: #{custom-call.62} parent=19 // pred_region
            // Predicated region
            $region36: #{custom-call.62} parent=23 // pred_check
              _
            $region37: #{custom-call.62} parent=23 // pred_check_branch
              %46 = sbr.rel (0) target = $region39
            $region38: #{custom-call.62} parent=23 // pred_region
              loop: start=0, step=1, limit=1
              $region40: #{custom-call.62} parent=38 // loop_pre_header
                _
              $region41: #{custom-call.62} parent=38 // loop_header
                %s49 = sphi 0, %s53
                %p50 = scmp.ge.s32.totalorder %s49, 1
                %s54 = sphi %s27, %s27
                %s55 = sphi %s25, %s25
              $region42: #{custom-call.62} parent=38 // loop_header_branch
                %52 = sbr.rel (%p50) target = $region46
              $region43: #{custom-call.62} parent=38 // loop_body
                %v56 = vld [vmem:[%s54] sm:$0xf]
                %57 = vst [vmem:[%s55] sm:$0xf] %v56
              $region44: #{custom-call.62} parent=38 // loop_footer
                %s53 = sadd.s32 1, %s49
              $region45: #{custom-call.62} parent=38 // loop_footer_branch
                %48 = sbr.rel target = $region41
              $region46: #{custom-call.62} parent=38 // loop_exit
                _
            $region39: #{custom-call.62} parent=23 // pred_fallthru
              _
          $region24: #{custom-call.62} parent=19 // pred_fallthru
            _
          // Predicated region
          $region25: #{custom-call.62} parent=19 // pred_check
            _
          $region26: #{custom-call.62} parent=19 // pred_check_branch
            %33 = sbr.rel (0) target = $region28
          $region27: #{custom-call.62} parent=19 // pred_region
            loop: start=0, step=1, limit=1
            $region29: #{custom-call.62} parent=27 // loop_pre_header
              _
            $region30: #{custom-call.62} parent=27 // loop_header
              %s36 = sphi 0, %s40
              %p37 = scmp.ge.s32.totalorder %s36, 1
              %s41 = sphi %s27, %s27
              %s42 = sphi %s25, %s25
            $region31: #{custom-call.62} parent=27 // loop_header_branch
              %39 = sbr.rel (%p37) target = $region35
            $region32: #{custom-call.62} parent=27 // loop_body
              %v43 = vld [vmem:[%s41] sm:$0xf]
              %44 = vst [vmem:[%s42] sm:$0xf] %v43
            $region33: #{custom-call.62} parent=27 // loop_footer
              %s40 = sadd.s32 1, %s36
            $region34: #{custom-call.62} parent=27 // loop_footer_branch
              %35 = sbr.rel target = $region30
            $region35: #{custom-call.62} parent=27 // loop_exit
              _
          $region28: #{custom-call.62} parent=19 // pred_fallthru
            _
        $region20: #{custom-call.62} parent=15 // pred_fallthru
          _
        %58 = vnop
      $region16: #{custom-call.62} parent=5 // pred_fallthru
        _
      %p59 = scmp.le.s32.totalorder 1, %s3
      %p60 = scmp.lt.s32.totalorder %s3, 3
      %p61 = pnand %p59, %p60
      %p62 = pneg %p61
      // Predicated region
      $region47: #{custom-call.62} parent=5 // pred_check
        _
      $region48: #{custom-call.62} parent=5 // pred_check_branch
        %64 = sbr.rel (%p61) target = $region50
      $region49: #{custom-call.62} parent=5 // pred_region
        %s65 = ssub.s32 %s3, 1
        %s66 = sand.u32 %s8, 1
        %s67 = sand.u32 %s8, 1
        %s68 = smul.addr %s67, 4
        %s69 = scalar_lea.vmem [#allocation1], %s68
        %s70 = sand.u32 %s8, 1
        %s71 = sand.u32 %s8, 1
        %s72 = smul.addr %s71, 4
        %s73 = scalar_lea.vmem [#allocation1], %s72
        %s74 = sand.u32 %s8, 1
        %s75 = sand.u32 %s8, 1
        %s76 = smul.addr %s75, 4
        %s77 = scalar_lea.vmem [#allocation3], %s76
        %s79 = sshllo.u32 0, 4
        %v80 = vld [vmem:[%s73] sm:%s79]
        %81 = vst [vmem:[#allocation0] sm:%s79] %v80
        %v82 = vlaneseq
        %v83 = vand.u32 %v82, 127
        %v84 = vlaneseq
        %v85 = vshrl.u32 %v84, 7
        %vm87 = vcmp.eq.s32.totalorder %v83, %v85
        %v88 = vld [vmem:[#allocation0] sm:$0xff]
        %v89 = vlaneseq
        %v90 = vand.u32 %v89, 127
        %vm91 = vcmp.eq.s32.totalorder %v90, 0
        %v92 = vsel %vm91, %v88, 1.0
        %v93 = vsel %vm87, %v92, 0.0
        %s94 = scalar_lea.vmem [#allocation0], 1
        %v95 = vld [vmem:[%s94] ss:$0 sm:$0xff]
        %vm96 = vcmask 31744
        %v97 = vsel %vm96, %v95, 0.0
        %v98 = vlaneseq
        %v99 = vand.u32 %v98, 127
        %vm100 = vcmp.eq.s32.totalorder %v99, 1
        %v101 = vmul.f32 %v97, %v93
        %102 = vadd.xlane.f32.xlu0 %v101
        %v103 = vpop.xlane.xlu0 %102
        %v104 = vsel %vm100, %v103, %v93
        %s105 = scalar_lea.vmem [#allocation0], 2
        %v106 = vld [vmem:[%s105] ss:$0 sm:$0xff]
        %vm107 = vcmask 31744
        %v108 = vsel %vm107, %v106, 0.0
        %v109 = vlaneseq
        %v110 = vand.u32 %v109, 127
        %vm111 = vcmp.eq.s32.totalorder %v110, 2
        %v112 = vmul.f32 %v108, %v104
        %113 = vadd.xlane.f32.xlu0 %v112
        %v114 = vpop.xlane.xlu0 %113
        %v115 = vsel %vm111, %v114, %v104
        %s116 = scalar_lea.vmem [#allocation0], 3
        %v117 = vld [vmem:[%s116] ss:$0 sm:$0xff]
        %vm118 = vcmask 31744
        %v119 = vsel %vm118, %v117, 0.0
        %v120 = vlaneseq
        %v121 = vand.u32 %v120, 127
        %vm122 = vcmp.eq.s32.totalorder %v121, 3
        %v123 = vmul.f32 %v119, %v115
        %124 = vadd.xlane.f32.xlu0 %v123
        %v125 = vpop.xlane.xlu0 %124
        %v126 = vsel %vm122, %v125, %v115
        %127 = vst [vmem:[#allocation2] sm:$0xff] %v126
        %s129 = sshllo.u32 0, 4
        %v131 = vld [vmem:[#allocation2] sm:%s129]
        %s132 = sshllo.u32 0, 4
        %133 = vst [vmem:[%s77] sm:%s132] %v131
        %s134 = sand.u32 %s8, 1
        %s135 = sand.u32 %s8, 1
        %s136 = smul.addr %s135, 4
        %s137 = scalar_lea.vmem [#allocation3], %s136
        %s138 = smul.addr %s8, 4
        %s139 = scalar_lea.vmem %s1, %s138
        // Predicated region
        $region51: #{custom-call.62} parent=49 // pred_check
          _
        $region52: #{custom-call.62} parent=49 // pred_check_branch
          %141 = sbr.rel (0) target = $region54
        $region53: #{custom-call.62} parent=49 // pred_region
          // Predicated region
          $region55: #{custom-call.62} parent=53 // pred_check
            _
          $region56: #{custom-call.62} parent=53 // pred_check_branch
            %143 = sbr.rel target = $region58
          $region57: #{custom-call.62} parent=53 // pred_region
            // Predicated region
            $region70: #{custom-call.62} parent=57 // pred_check
              _
            $region71: #{custom-call.62} parent=57 // pred_check_branch
              %158 = sbr.rel (0) target = $region73
            $region72: #{custom-call.62} parent=57 // pred_region
              loop: start=0, step=1, limit=1
              $region74: #{custom-call.62} parent=72 // loop_pre_header
                _
              $region75: #{custom-call.62} parent=72 // loop_header
                %s161 = sphi 0, %s165
                %p162 = scmp.ge.s32.totalorder %s161, 1
                %s166 = sphi %s137, %s137
                %s167 = sphi %s139, %s139
              $region76: #{custom-call.62} parent=72 // loop_header_branch
                %164 = sbr.rel (%p162) target = $region80
              $region77: #{custom-call.62} parent=72 // loop_body
                %v168 = vld [vmem:[%s166] sm:$0xf]
                %169 = vst [vmem:[%s167] sm:$0xf] %v168
              $region78: #{custom-call.62} parent=72 // loop_footer
                %s165 = sadd.s32 1, %s161
              $region79: #{custom-call.62} parent=72 // loop_footer_branch
                %160 = sbr.rel target = $region75
              $region80: #{custom-call.62} parent=72 // loop_exit
                _
            $region73: #{custom-call.62} parent=57 // pred_fallthru
              _
          $region58: #{custom-call.62} parent=53 // pred_fallthru
            _
          // Predicated region
          $region59: #{custom-call.62} parent=53 // pred_check
            _
          $region60: #{custom-call.62} parent=53 // pred_check_branch
            %145 = sbr.rel (0) target = $region62
          $region61: #{custom-call.62} parent=53 // pred_region
            loop: start=0, step=1, limit=1
            $region63: #{custom-call.62} parent=61 // loop_pre_header
              _
            $region64: #{custom-call.62} parent=61 // loop_header
              %s148 = sphi 0, %s152
              %p149 = scmp.ge.s32.totalorder %s148, 1
              %s153 = sphi %s137, %s137
              %s154 = sphi %s139, %s139
            $region65: #{custom-call.62} parent=61 // loop_header_branch
              %151 = sbr.rel (%p149) target = $region69
            $region66: #{custom-call.62} parent=61 // loop_body
              %v155 = vld [vmem:[%s153] sm:$0xf]
              %156 = vst [vmem:[%s154] sm:$0xf] %v155
            $region67: #{custom-call.62} parent=61 // loop_footer
              %s152 = sadd.s32 1, %s148
            $region68: #{custom-call.62} parent=61 // loop_footer_branch
              %147 = sbr.rel target = $region64
            $region69: #{custom-call.62} parent=61 // loop_exit
              _
          $region62: #{custom-call.62} parent=53 // pred_fallthru
            _
        $region54: #{custom-call.62} parent=49 // pred_fallthru
          _
        %170 = vnop
      $region50: #{custom-call.62} parent=5 // pred_fallthru
        _
      %p171 = scmp.le.s32.totalorder 2, %s3
      // Predicated region
      $region81: #{custom-call.62} parent=5 // pred_check
        %p172 = pneg %p171
      $region82: #{custom-call.62} parent=5 // pred_check_branch
        %174 = sbr.rel (%p172) target = $region84
      $region83: #{custom-call.62} parent=5 // pred_region
        %s175 = ssub.s32 %s3, 2
        %s176 = sand.u32 %s9, 1
        %s177 = sand.u32 %s9, 1
        %s178 = smul.addr %s177, 4
        %s179 = scalar_lea.vmem [#allocation3], %s178
      $region84: #{custom-call.62} parent=5 // pred_fallthru
        _
    $region6: #{custom-call.62} parent=1 // loop_footer
      %s7 = sadd.s32 1, %s3
    $region7: #{custom-call.62} parent=1 // loop_footer_branch
      %2 = sbr.rel target = $region3
    $region8: #{custom-call.62} parent=1 // loop_exit
      _

// kernel: custom-call.54
$region0: #{custom-call.54}
  %s0 = inlined_call_operand.hbm [shape: pred[2], index: 0, kind: output, shape index: {}]

// kernel: custom-call.59
$region0: #{custom-call.59}
  %s0 = inlined_call_operand.vmem [shape: f32[2,4,4], index: 0, kind: input, shape index: {}]
  %s1 = inlined_call_operand.vmem [shape: f32[2,4,4], index: 1, kind: output, shape index: {}]
  $region1: #{custom-call.59} parent=0
    #allocation0 [shape = 'u8[4096]{0}', space=vmem, size = 0x1000, scoped, tag = 'operand span for operand 0']
    #allocation1 [shape = 'u8[4096]{0}', space=vmem, size = 0x1000, scoped, tag = 'packed  for operand 0']
    #allocation2 [shape = 'u8[4096]{0}', space=vmem, size = 0x1000, scoped, tag = 'operand span for operand 1']
    #allocation3 [shape = 'u8[4096]{0}', space=vmem, size = 0x1000, scoped, tag = 'packed  for operand 1']
    loop: start=0, step=1, limit=4
    $region2: #{custom-call.59} parent=1 // loop_pre_header
      _
    $region3: #{custom-call.59} parent=1 // loop_header
      %s3 = sphi 0, %s7
      %p4 = scmp.ge.s32.totalorder %s3, 4
      %s10 = sphi 0, %s29
      %s11 = sphi 0, %s25
      %s12 = sphi 0, %s21
      %s13 = sphi 0, %s10
      %s14 = sphi 0, %s11
      %s15 = sphi 0, %s12
      %s16 = sphi 0, %s13
      %s17 = sphi 0, %s14
      %s18 = sphi 0, %s15
    $region4: #{custom-call.59} parent=1 // loop_header_branch
      %6 = sbr.rel (%p4) target = $region8
    $region5: #{custom-call.59} parent=1 // loop_body
      %s8 = ssub.s32 %s3, 1
      %s9 = ssub.s32 %s3, 2
      %s19 = sadd.s32 1, %s12
      %p20 = scmp.ge.s32.totalorder %s19, 1
      %s21 = scalar_select %p20, 0, %s19
      %s22 = sadd.s32 1, %s11
      %s23 = scalar_select %p20, %s22, %s11
      %p24 = scmp.ge.s32.totalorder %s23, 1
      %s25 = scalar_select %p24, 0, %s23
      %s26 = sadd.s32 1, %s10
      %s27 = scalar_select %p24, %s26, %s10
      %p28 = scmp.ge.s32.totalorder %s27, 2
      %s29 = scalar_select %p28, 0, %s27
      %p30 = scmp.le.s32.totalorder 1, %s3
      %p31 = scmp.lt.s32.totalorder %s3, 3
      %p32 = pnand %p30, %p31
      %p33 = pneg %p32
      // Predicated region
      $region9: #{custom-call.59} parent=5 // pred_check
        _
      $region10: #{custom-call.59} parent=5 // pred_check_branch
        %35 = sbr.rel (%p32) target = $region12
      $region11: #{custom-call.59} parent=5 // pred_region
        %s36 = ssub.s32 %s3, 1
      $region12: #{custom-call.59} parent=5 // pred_fallthru
        _
      %p37 = scmp.lt.s32.totalorder %s3, 2
      // Predicated region
      $region13: #{custom-call.59} parent=5 // pred_check
        %p38 = pneg %p37
      $region14: #{custom-call.59} parent=5 // pred_check_branch
        %40 = sbr.rel (%p38) target = $region16
      $region15: #{custom-call.59} parent=5 // pred_region
        %s41 = sand.u32 %s3, 1
        %s42 = sand.u32 %s3, 1
        %s43 = smul.addr %s42, 4
        %s44 = scalar_lea.vmem [#allocation1], %s43
        %s45 = sadd.s32 %s12, %s11
        %s46 = sadd.s32 %s45, %s10
        %s47 = smul.addr %s46, 4
        %s48 = scalar_lea.vmem %s0, %s47
        // Predicated region
        $region17: #{custom-call.59} parent=15 // pred_check
          _
        $region18: #{custom-call.59} parent=15 // pred_check_branch
          %50 = sbr.rel (0) target = $region20
        $region19: #{custom-call.59} parent=15 // pred_region
          // Predicated region
          $region21: #{custom-call.59} parent=19 // pred_check
            _
          $region22: #{custom-call.59} parent=19 // pred_check_branch
            %52 = sbr.rel target = $region24
          $region23: #{custom-call.59} parent=19 // pred_region
            // Predicated region
            $region36: #{custom-call.59} parent=23 // pred_check
              _
            $region37: #{custom-call.59} parent=23 // pred_check_branch
              %67 = sbr.rel (0) target = $region39
            $region38: #{custom-call.59} parent=23 // pred_region
              loop: start=0, step=1, limit=1
              $region40: #{custom-call.59} parent=38 // loop_pre_header
                _
              $region41: #{custom-call.59} parent=38 // loop_header
                %s70 = sphi 0, %s74
                %p71 = scmp.ge.s32.totalorder %s70, 1
                %s75 = sphi %s48, %s48
                %s76 = sphi %s44, %s44
              $region42: #{custom-call.59} parent=38 // loop_header_branch
                %73 = sbr.rel (%p71) target = $region46
              $region43: #{custom-call.59} parent=38 // loop_body
                %v77 = vld [vmem:[%s75] sm:$0xf]
                %78 = vst [vmem:[%s76] sm:$0xf] %v77
              $region44: #{custom-call.59} parent=38 // loop_footer
                %s74 = sadd.s32 1, %s70
              $region45: #{custom-call.59} parent=38 // loop_footer_branch
                %69 = sbr.rel target = $region41
              $region46: #{custom-call.59} parent=38 // loop_exit
                _
            $region39: #{custom-call.59} parent=23 // pred_fallthru
              _
          $region24: #{custom-call.59} parent=19 // pred_fallthru
            _
          // Predicated region
          $region25: #{custom-call.59} parent=19 // pred_check
            _
          $region26: #{custom-call.59} parent=19 // pred_check_branch
            %54 = sbr.rel (0) target = $region28
          $region27: #{custom-call.59} parent=19 // pred_region
            loop: start=0, step=1, limit=1
            $region29: #{custom-call.59} parent=27 // loop_pre_header
              _
            $region30: #{custom-call.59} parent=27 // loop_header
              %s57 = sphi 0, %s61
              %p58 = scmp.ge.s32.totalorder %s57, 1
              %s62 = sphi %s48, %s48
              %s63 = sphi %s44, %s44
            $region31: #{custom-call.59} parent=27 // loop_header_branch
              %60 = sbr.rel (%p58) target = $region35
            $region32: #{custom-call.59} parent=27 // loop_body
              %v64 = vld [vmem:[%s62] sm:$0xf]
              %65 = vst [vmem:[%s63] sm:$0xf] %v64
            $region33: #{custom-call.59} parent=27 // loop_footer
              %s61 = sadd.s32 1, %s57
            $region34: #{custom-call.59} parent=27 // loop_footer_branch
              %56 = sbr.rel target = $region30
            $region35: #{custom-call.59} parent=27 // loop_exit
              _
          $region28: #{custom-call.59} parent=19 // pred_fallthru
            _
        $region20: #{custom-call.59} parent=15 // pred_fallthru
          _
        %79 = vnop
      $region16: #{custom-call.59} parent=5 // pred_fallthru
        _
      %p80 = scmp.le.s32.totalorder 1, %s3
      %p81 = scmp.lt.s32.totalorder %s3, 3
      %p82 = pnand %p80, %p81
      %p83 = pneg %p82
      // Predicated region
      $region47: #{custom-call.59} parent=5 // pred_check
        _
      $region48: #{custom-call.59} parent=5 // pred_check_branch
        %85 = sbr.rel (%p82) target = $region50
      $region49: #{custom-call.59} parent=5 // pred_region
        %s86 = ssub.s32 %s3, 1
        %s87 = sand.u32 %s8, 1
        %s88 = sand.u32 %s8, 1
        %s89 = smul.addr %s88, 4
        %s90 = scalar_lea.vmem [#allocation1], %s89
        %s91 = sand.u32 %s8, 1
        %s92 = sand.u32 %s8, 1
        %s93 = smul.addr %s92, 4
        %s94 = scalar_lea.vmem [#allocation1], %s93
        %s95 = sand.u32 %s8, 1
        %s96 = sand.u32 %s8, 1
        %s97 = smul.addr %s96, 4
        %s98 = scalar_lea.vmem [#allocation3], %s97
        %s100 = sshllo.u32 0, 4
        %v101 = vld [vmem:[%s94] sm:%s100]
        %102 = vst [vmem:[#allocation0] sm:%s100] %v101
        %103 = vst [vmem:[#allocation2] sm:$0xff] 0.0
        %vm104 = vcmask 7168
        %v105 = vld [vmem:[#allocation2] ss:$0 sm:$0xff]
        %v106 = vld [vmem:[#allocation0] ss:$0 sm:$0xff]
        %v107 = vmul.f32 %v105, %v105
        %108 = vadd.xlane.f32.xlu0 %v107
        %v109 = vpop.xlane.xlu0 %108
        %v110 = vsub.f32 %v106, %v109
        %v111 = vrsqrt.pop %v110
        %v112 = vld [vmem:[#allocation0] sm:$0xff]
        %v113 = vld [vmem:[#allocation2] sm:$0xff]
        %v114 = vmul.f32 %v113, %v105
        %115 = vadd.xlane.f32.xlu0 %v114
        %v116 = vpop.xlane.xlu0 %115
        %v117 = vsub.f32 %v112, %v116
        %v118 = vmul.f32 %v117, %v111
        %v119 = vsel %vm104, %v118, 0.0
        %v120 = vadd.f32 %v113, %v119
        %121 = vst [vmem:[#allocation2] sm:$0xff] %v120
        %vm122 = vcmask 15368
        %s123 = scalar_lea.vmem [#allocation2], 1
        %v124 = vld [vmem:[%s123] ss:$0 sm:$0xff]
        %s125 = scalar_lea.vmem [#allocation0], 1
        %v126 = vld [vmem:[%s125] ss:$0 sm:$0xff]
        %v127 = vmul.f32 %v124, %v124
        %128 = vadd.xlane.f32.xlu0 %v127
        %v129 = vpop.xlane.xlu0 %128
        %v130 = vsub.f32 %v126, %v129
        %v131 = vrsqrt.pop %v130
        %v132 = vld [vmem:[#allocation0] sm:$0xff]
        %v133 = vld [vmem:[#allocation2] sm:$0xff]
        %v134 = vmul.f32 %v133, %v124
        %135 = vadd.xlane.f32.xlu0 %v134
        %v136 = vpop.xlane.xlu0 %135
        %v137 = vsub.f32 %v132, %v136
        %v138 = vmul.f32 %v137, %v131
        %vm139 = vcmask 1047553
        %vm140 = vmand %vm122, %vm139
        %v141 = vsel %vm140, %v138, 0.0
        %v142 = vadd.f32 %v133, %v141
        %143 = vst [vmem:[#allocation2] sm:$0xff] %v142
        %vm144 = vcmask 23568
        %s145 = scalar_lea.vmem [#allocation2], 2
        %v146 = vld [vmem:[%s145] ss:$0 sm:$0xff]
        %s147 = scalar_lea.vmem [#allocation0], 2
        %v148 = vld [vmem:[%s147] ss:$0 sm:$0xff]
        %v149 = vmul.f32 %v146, %v146
        %150 = vadd.xlane.f32.xlu0 %v149
        %v151 = vpop.xlane.xlu0 %150
        %v152 = vsub.f32 %v148, %v151
        %v153 = vrsqrt.pop %v152
        %v154 = vld [vmem:[#allocation0] sm:$0xff]
        %v155 = vld [vmem:[#allocation2] sm:$0xff]
        %v156 = vmul.f32 %v155, %v146
        %157 = vadd.xlane.f32.xlu0 %v156
        %v158 = vpop.xlane.xlu0 %157
        %v159 = vsub.f32 %v154, %v158
        %v160 = vmul.f32 %v159, %v153
        %vm161 = vcmask 1047554
        %vm162 = vmand %vm144, %vm161
        %v163 = vsel %vm162, %v160, 0.0
        %v164 = vadd.f32 %v155, %v163
        %165 = vst [vmem:[#allocation2] sm:$0xff] %v164
        %vm166 = vcmask 31768
        %s167 = scalar_lea.vmem [#allocation2], 3
        %v168 = vld [vmem:[%s167] ss:$0 sm:$0xff]
        %s169 = scalar_lea.vmem [#allocation0], 3
        %v170 = vld [vmem:[%s169] ss:$0 sm:$0xff]
        %v171 = vmul.f32 %v168, %v168
        %172 = vadd.xlane.f32.xlu0 %v171
        %v173 = vpop.xlane.xlu0 %172
        %v174 = vsub.f32 %v170, %v173
        %v175 = vrsqrt.pop %v174
        %v176 = vld [vmem:[#allocation0] sm:$0xff]
        %v177 = vld [vmem:[#allocation2] sm:$0xff]
        %v178 = vmul.f32 %v177, %v168
        %179 = vadd.xlane.f32.xlu0 %v178
        %v180 = vpop.xlane.xlu0 %179
        %v181 = vsub.f32 %v176, %v180
        %v182 = vmul.f32 %v181, %v175
        %vm183 = vcmask 1047555
        %vm184 = vmand %vm166, %vm183
        %v185 = vsel %vm184, %v182, 0.0
        %v186 = vadd.f32 %v177, %v185
        %187 = vst [vmem:[#allocation2] sm:$0xff] %v186
        %s189 = sshllo.u32 0, 4
        %v191 = vld [vmem:[#allocation2] sm:%s189]
        %s192 = sshllo.u32 0, 4
        %193 = vst [vmem:[%s98] sm:%s192] %v191
        %s194 = sand.u32 %s8, 1
        %s195 = sand.u32 %s8, 1
        %s196 = smul.addr %s195, 4
        %s197 = scalar_lea.vmem [#allocation3], %s196
        %s198 = sadd.s32 %s15, %s14
        %s199 = sadd.s32 %s198, %s13
        %s200 = smul.addr %s199, 4
        %s201 = scalar_lea.vmem %s1, %s200
        // Predicated region
        $region51: #{custom-call.59} parent=49 // pred_check
          _
        $region52: #{custom-call.59} parent=49 // pred_check_branch
          %203 = sbr.rel (0) target = $region54
        $region53: #{custom-call.59} parent=49 // pred_region
          // Predicated region
          $region55: #{custom-call.59} parent=53 // pred_check
            _
          $region56: #{custom-call.59} parent=53 // pred_check_branch
            %205 = sbr.rel target = $region58
          $region57: #{custom-call.59} parent=53 // pred_region
            // Predicated region
            $region70: #{custom-call.59} parent=57 // pred_check
              _
            $region71: #{custom-call.59} parent=57 // pred_check_branch
              %220 = sbr.rel (0) target = $region73
            $region72: #{custom-call.59} parent=57 // pred_region
              loop: start=0, step=1, limit=1
              $region74: #{custom-call.59} parent=72 // loop_pre_header
                _
              $region75: #{custom-call.59} parent=72 // loop_header
                %s223 = sphi 0, %s227
                %p224 = scmp.ge.s32.totalorder %s223, 1
                %s228 = sphi %s197, %s197
                %s229 = sphi %s201, %s201
              $region76: #{custom-call.59} parent=72 // loop_header_branch
                %226 = sbr.rel (%p224) target = $region80
              $region77: #{custom-call.59} parent=72 // loop_body
                %v230 = vld [vmem:[%s228] sm:$0xf]
                %231 = vst [vmem:[%s229] sm:$0xf] %v230
              $region78: #{custom-call.59} parent=72 // loop_footer
                %s227 = sadd.s32 1, %s223
              $region79: #{custom-call.59} parent=72 // loop_footer_branch
                %222 = sbr.rel target = $region75
              $region80: #{custom-call.59} parent=72 // loop_exit
                _
            $region73: #{custom-call.59} parent=57 // pred_fallthru
              _
          $region58: #{custom-call.59} parent=53 // pred_fallthru
            _
          // Predicated region
          $region59: #{custom-call.59} parent=53 // pred_check
            _
          $region60: #{custom-call.59} parent=53 // pred_check_branch
            %207 = sbr.rel (0) target = $region62
          $region61: #{custom-call.59} parent=53 // pred_region
            loop: start=0, step=1, limit=1
            $region63: #{custom-call.59} parent=61 // loop_pre_header
              _
            $region64: #{custom-call.59} parent=61 // loop_header
              %s210 = sphi 0, %s214
              %p211 = scmp.ge.s32.totalorder %s210, 1
              %s215 = sphi %s197, %s197
              %s216 = sphi %s201, %s201
            $region65: #{custom-call.59} parent=61 // loop_header_branch
              %213 = sbr.rel (%p211) target = $region69
            $region66: #{custom-call.59} parent=61 // loop_body
              %v217 = vld [vmem:[%s215] sm:$0xf]
              %218 = vst [vmem:[%s216] sm:$0xf] %v217
            $region67: #{custom-call.59} parent=61 // loop_footer
              %s214 = sadd.s32 1, %s210
            $region68: #{custom-call.59} parent=61 // loop_footer_branch
              %209 = sbr.rel target = $region64
            $region69: #{custom-call.59} parent=61 // loop_exit
              _
          $region62: #{custom-call.59} parent=53 // pred_fallthru
            _
        $region54: #{custom-call.59} parent=49 // pred_fallthru
          _
        %232 = vnop
      $region50: #{custom-call.59} parent=5 // pred_fallthru
        _
      %p233 = scmp.le.s32.totalorder 2, %s3
      // Predicated region
      $region81: #{custom-call.59} parent=5 // pred_check
        %p234 = pneg %p233
      $region82: #{custom-call.59} parent=5 // pred_check_branch
        %236 = sbr.rel (%p234) target = $region84
      $region83: #{custom-call.59} parent=5 // pred_region
        %s237 = ssub.s32 %s3, 2
        %s238 = sand.u32 %s9, 1
        %s239 = sand.u32 %s9, 1
        %s240 = smul.addr %s239, 4
        %s241 = scalar_lea.vmem [#allocation3], %s240
      $region84: #{custom-call.59} parent=5 // pred_fallthru
        _
    $region6: #{custom-call.59} parent=1 // loop_footer
      %s7 = sadd.s32 1, %s3
    $region7: #{custom-call.59} parent=1 // loop_footer_branch
      %2 = sbr.rel target = $region3
    $region8: #{custom-call.59} parent=1 // loop_exit
      _

// kernel: custom-call.60
$region0: #{custom-call.60}
  %s0 = inlined_call_operand.vmem [shape: f32[2,1,4,4], index: 0, kind: input, shape index: {}]
  %s1 = inlined_call_operand.vmem [shape: f32[2,1,4,4], index: 1, kind: output, shape index: {}]
  $region1: #{custom-call.60} parent=0
    #allocation0 [shape = 'u8[4096]{0}', space=vmem, size = 0x1000, scoped, tag = 'operand span for operand 0']
    #allocation1 [shape = 'u8[4096]{0}', space=vmem, size = 0x1000, scoped, tag = 'packed  for operand 0']
    #allocation2 [shape = 'u8[4096]{0}', space=vmem, size = 0x1000, scoped, tag = 'operand span for operand 1']
    #allocation3 [shape = 'u8[4096]{0}', space=vmem, size = 0x1000, scoped, tag = 'packed  for operand 1']
    loop: start=0, step=1, limit=4
    $region2: #{custom-call.60} parent=1 // loop_pre_header
      _
    $region3: #{custom-call.60} parent=1 // loop_header
      %s3 = sphi 0, %s7
      %p4 = scmp.ge.s32.totalorder %s3, 4
      %s10 = sphi 0, %s36
      %s11 = sphi 0, %s32
      %s12 = sphi 0, %s28
      %s13 = sphi 0, %s24
      %s14 = sphi 0, %s10
      %s15 = sphi 0, %s11
      %s16 = sphi 0, %s12
      %s17 = sphi 0, %s13
      %s18 = sphi 0, %s14
      %s19 = sphi 0, %s15
      %s20 = sphi 0, %s16
      %s21 = sphi 0, %s17
    $region4: #{custom-call.60} parent=1 // loop_header_branch
      %6 = sbr.rel (%p4) target = $region8
    $region5: #{custom-call.60} parent=1 // loop_body
      %s8 = ssub.s32 %s3, 1
      %s9 = ssub.s32 %s3, 2
      %s22 = sadd.s32 1, %s13
      %p23 = scmp.ge.s32.totalorder %s22, 1
      %s24 = scalar_select %p23, 0, %s22
      %s25 = sadd.s32 1, %s12
      %s26 = scalar_select %p23, %s25, %s12
      %p27 = scmp.ge.s32.totalorder %s26, 1
      %s28 = scalar_select %p27, 0, %s26
      %s29 = sadd.s32 1, %s11
      %s30 = scalar_select %p27, %s29, %s11
      %p31 = scmp.ge.s32.totalorder %s30, 1
      %s32 = scalar_select %p31, 0, %s30
      %s33 = sadd.s32 1, %s10
      %s34 = scalar_select %p31, %s33, %s10
      %p35 = scmp.ge.s32.totalorder %s34, 2
      %s36 = scalar_select %p35, 0, %s34
      %p37 = scmp.le.s32.totalorder 1, %s3
      %p38 = scmp.lt.s32.totalorder %s3, 3
      %p39 = pnand %p37, %p38
      %p40 = pneg %p39
      // Predicated region
      $region9: #{custom-call.60} parent=5 // pred_check
        _
      $region10: #{custom-call.60} parent=5 // pred_check_branch
        %42 = sbr.rel (%p39) target = $region12
      $region11: #{custom-call.60} parent=5 // pred_region
        %s43 = ssub.s32 %s3, 1
      $region12: #{custom-call.60} parent=5 // pred_fallthru
        _
      %p44 = scmp.lt.s32.totalorder %s3, 2
      // Predicated region
      $region13: #{custom-call.60} parent=5 // pred_check
        %p45 = pneg %p44
      $region14: #{custom-call.60} parent=5 // pred_check_branch
        %47 = sbr.rel (%p45) target = $region16
      $region15: #{custom-call.60} parent=5 // pred_region
        %s48 = sand.u32 %s3, 1
        %s49 = sand.u32 %s3, 1
        %s50 = smul.addr %s49, 4
        %s51 = scalar_lea.vmem [#allocation1], %s50
        %s52 = sadd.s32 %s13, %s12
        %s53 = sadd.s32 %s52, %s11
        %s54 = sadd.s32 %s53, %s10
        %s55 = smul.addr %s54, 4
        %s56 = scalar_lea.vmem %s0, %s55
        // Predicated region
        $region17: #{custom-call.60} parent=15 // pred_check
          _
        $region18: #{custom-call.60} parent=15 // pred_check_branch
          %58 = sbr.rel (0) target = $region20
        $region19: #{custom-call.60} parent=15 // pred_region
          // Predicated region
          $region21: #{custom-call.60} parent=19 // pred_check
            _
          $region22: #{custom-call.60} parent=19 // pred_check_branch
            %60 = sbr.rel target = $region24
          $region23: #{custom-call.60} parent=19 // pred_region
            // Predicated region
            $region36: #{custom-call.60} parent=23 // pred_check
              _
            $region37: #{custom-call.60} parent=23 // pred_check_branch
              %75 = sbr.rel (0) target = $region39
            $region38: #{custom-call.60} parent=23 // pred_region
              loop: start=0, step=1, limit=1
              $region40: #{custom-call.60} parent=38 // loop_pre_header
                _
              $region41: #{custom-call.60} parent=38 // loop_header
                %s78 = sphi 0, %s82
                %p79 = scmp.ge.s32.totalorder %s78, 1
                %s83 = sphi %s56, %s56
                %s84 = sphi %s51, %s51
              $region42: #{custom-call.60} parent=38 // loop_header_branch
                %81 = sbr.rel (%p79) target = $region46
              $region43: #{custom-call.60} parent=38 // loop_body
                %v85 = vld [vmem:[%s83] sm:$0xf]
                %86 = vst [vmem:[%s84] sm:$0xf] %v85
              $region44: #{custom-call.60} parent=38 // loop_footer
                %s82 = sadd.s32 1, %s78
              $region45: #{custom-call.60} parent=38 // loop_footer_branch
                %77 = sbr.rel target = $region41
              $region46: #{custom-call.60} parent=38 // loop_exit
                _
            $region39: #{custom-call.60} parent=23 // pred_fallthru
              _
          $region24: #{custom-call.60} parent=19 // pred_fallthru
            _
          // Predicated region
          $region25: #{custom-call.60} parent=19 // pred_check
            _
          $region26: #{custom-call.60} parent=19 // pred_check_branch
            %62 = sbr.rel (0) target = $region28
          $region27: #{custom-call.60} parent=19 // pred_region
            loop: start=0, step=1, limit=1
            $region29: #{custom-call.60} parent=27 // loop_pre_header
              _
            $region30: #{custom-call.60} parent=27 // loop_header
              %s65 = sphi 0, %s69
              %p66 = scmp.ge.s32.totalorder %s65, 1
              %s70 = sphi %s56, %s56
              %s71 = sphi %s51, %s51
            $region31: #{custom-call.60} parent=27 // loop_header_branch
              %68 = sbr.rel (%p66) target = $region35
            $region32: #{custom-call.60} parent=27 // loop_body
              %v72 = vld [vmem:[%s70] sm:$0xf]
              %73 = vst [vmem:[%s71] sm:$0xf] %v72
            $region33: #{custom-call.60} parent=27 // loop_footer
              %s69 = sadd.s32 1, %s65
            $region34: #{custom-call.60} parent=27 // loop_footer_branch
              %64 = sbr.rel target = $region30
            $region35: #{custom-call.60} parent=27 // loop_exit
              _
          $region28: #{custom-call.60} parent=19 // pred_fallthru
            _
        $region20: #{custom-call.60} parent=15 // pred_fallthru
          _
        %87 = vnop
      $region16: #{custom-call.60} parent=5 // pred_fallthru
        _
      %p88 = scmp.le.s32.totalorder 1, %s3
      %p89 = scmp.lt.s32.totalorder %s3, 3
      %p90 = pnand %p88, %p89
      %p91 = pneg %p90
      // Predicated region
      $region47: #{custom-call.60} parent=5 // pred_check
        _
      $region48: #{custom-call.60} parent=5 // pred_check_branch
        %93 = sbr.rel (%p90) target = $region50
      $region49: #{custom-call.60} parent=5 // pred_region
        #allocation4 [shape = 'f32[4,4]{1,0}', space=vmem, size = 0x1000, scoped, tag = 'rescaled input a']
        %s94 = ssub.s32 %s3, 1
        %s95 = sand.u32 %s8, 1
        %s96 = sand.u32 %s8, 1
        %s97 = smul.addr %s96, 4
        %s98 = scalar_lea.vmem [#allocation1], %s97
        %s99 = sand.u32 %s8, 1
        %s100 = sand.u32 %s8, 1
        %s101 = smul.addr %s100, 4
        %s102 = scalar_lea.vmem [#allocation1], %s101
        %s103 = sand.u32 %s8, 1
        %s104 = sand.u32 %s8, 1
        %s105 = smul.addr %s104, 4
        %s106 = scalar_lea.vmem [#allocation3], %s105
        %s108 = sshllo.u32 0, 4
        %v109 = vld [vmem:[%s102] sm:%s108]
        %110 = vst [vmem:[#allocation0] sm:%s108] %v109
        %v111 = vlaneseq
        %v112 = vand.u32 %v111, 127
        %vm113 = vcmp.lt.s32.totalorder %v112, 4
        %v114 = vlaneseq
        %v115 = vshrl.u32 %v114, 7
        %vm117 = vcmp.eq.s32.totalorder %v115, %v112
        %v118 = vld [vmem:[#allocation0] sm:$0xff]
        %v119 = vsel %vm117, %v118, 0.0
        %120 = vadd.xlane.f32.xlu0 %v119
        %v121 = vpop.xlane.xlu0 %120
        %vm122 = vcmp.ge.s32.totalorder %v115, %v112
        %vm123 = vmand %vm122, %vm113
        %v124 = vsel %vm123, %v118, 0.0
        %v125 = vrcp.pop %v121
        %v126 = vmul.f32 %v124, %v125
        %127 = vst [vmem:[#allocation4] sm:$0xff] %v126
        %v128 = vlaneseq
        %v129 = vand.u32 %v128, 127
        %v130 = vlaneseq
        %v131 = vshrl.u32 %v130, 7
        %vm133 = vcmp.eq.s32.totalorder %v129, %v131
        %v134 = vlaneseq
        %v135 = vand.u32 %v134, 127
        %vm136 = vcmp.eq.s32.totalorder %v135, 0
        %v137 = vsel %vm136, 1.0, -1.0
        %v138 = vsel %vm133, %v137, 0.0
        %s139 = scalar_lea.vmem [#allocation4], 1
        %v140 = vld [vmem:[%s139] ss:$0 sm:$0xff]
        %v141 = vxor.u32 %v140, 2147483648
        %v142 = vlaneseq
        %v143 = vand.u32 %v142, 127
        %vm144 = vcmp.eq.s32.totalorder %v143, 1
        %v145 = vmul.f32 %v141, %v138
        %146 = vadd.xlane.f32.xlu0 %v145
        %v147 = vpop.xlane.xlu0 %146
        %v148 = vsel %vm144, %v147, %v138
        %s149 = scalar_lea.vmem [#allocation4], 2
        %v150 = vld [vmem:[%s149] ss:$0 sm:$0xff]
        %v151 = vxor.u32 %v150, 2147483648
        %v152 = vlaneseq
        %v153 = vand.u32 %v152, 127
        %vm154 = vcmp.eq.s32.totalorder %v153, 2
        %v155 = vmul.f32 %v151, %v148
        %156 = vadd.xlane.f32.xlu0 %v155
        %v157 = vpop.xlane.xlu0 %156
        %v158 = vsel %vm154, %v157, %v148
        %s159 = scalar_lea.vmem [#allocation4], 3
        %v160 = vld [vmem:[%s159] ss:$0 sm:$0xff]
        %v161 = vxor.u32 %v160, 2147483648
        %v162 = vlaneseq
        %v163 = vand.u32 %v162, 127
        %vm164 = vcmp.eq.s32.totalorder %v163, 3
        %v165 = vmul.f32 %v161, %v158
        %166 = vadd.xlane.f32.xlu0 %v165
        %v167 = vpop.xlane.xlu0 %166
        %v168 = vsel %vm164, %v167, %v158
        %v169 = vrcp.pop %v121
        %v170 = vmul.f32 %v168, %v169
        %vm171 = vweird.f32 %v121
        %v172 = vsel %vm171, %v168, %v170
        %173 = vst [vmem:[#allocation2] sm:$0xff] %v172
        %s175 = sshllo.u32 0, 4
        %v177 = vld [vmem:[#allocation2] sm:%s175]
        %s178 = sshllo.u32 0, 4
        %179 = vst [vmem:[%s106] sm:%s178] %v177
        %s180 = sand.u32 %s8, 1
        %s181 = sand.u32 %s8, 1
        %s182 = smul.addr %s181, 4
        %s183 = scalar_lea.vmem [#allocation3], %s182
        %s184 = sadd.s32 %s17, %s16
        %s185 = sadd.s32 %s184, %s15
        %s186 = sadd.s32 %s185, %s14
        %s187 = smul.addr %s186, 4
        %s188 = scalar_lea.vmem %s1, %s187
        // Predicated region
        $region51: #{custom-call.60} parent=49 // pred_check
          _
        $region52: #{custom-call.60} parent=49 // pred_check_branch
          %190 = sbr.rel (0) target = $region54
        $region53: #{custom-call.60} parent=49 // pred_region
          // Predicated region
          $region55: #{custom-call.60} parent=53 // pred_check
            _
          $region56: #{custom-call.60} parent=53 // pred_check_branch
            %192 = sbr.rel target = $region58
          $region57: #{custom-call.60} parent=53 // pred_region
            // Predicated region
            $region70: #{custom-call.60} parent=57 // pred_check
              _
            $region71: #{custom-call.60} parent=57 // pred_check_branch
              %207 = sbr.rel (0) target = $region73
            $region72: #{custom-call.60} parent=57 // pred_region
              loop: start=0, step=1, limit=1
              $region74: #{custom-call.60} parent=72 // loop_pre_header
                _
              $region75: #{custom-call.60} parent=72 // loop_header
                %s210 = sphi 0, %s214
                %p211 = scmp.ge.s32.totalorder %s210, 1
                %s215 = sphi %s183, %s183
                %s216 = sphi %s188, %s188
              $region76: #{custom-call.60} parent=72 // loop_header_branch
                %213 = sbr.rel (%p211) target = $region80
              $region77: #{custom-call.60} parent=72 // loop_body
                %v217 = vld [vmem:[%s215] sm:$0xf]
                %218 = vst [vmem:[%s216] sm:$0xf] %v217
              $region78: #{custom-call.60} parent=72 // loop_footer
                %s214 = sadd.s32 1, %s210
              $region79: #{custom-call.60} parent=72 // loop_footer_branch
                %209 = sbr.rel target = $region75
              $region80: #{custom-call.60} parent=72 // loop_exit
                _
            $region73: #{custom-call.60} parent=57 // pred_fallthru
              _
          $region58: #{custom-call.60} parent=53 // pred_fallthru
            _
          // Predicated region
          $region59: #{custom-call.60} parent=53 // pred_check
            _
          $region60: #{custom-call.60} parent=53 // pred_check_branch
            %194 = sbr.rel (0) target = $region62
          $region61: #{custom-call.60} parent=53 // pred_region
            loop: start=0, step=1, limit=1
            $region63: #{custom-call.60} parent=61 // loop_pre_header
              _
            $region64: #{custom-call.60} parent=61 // loop_header
              %s197 = sphi 0, %s201
              %p198 = scmp.ge.s32.totalorder %s197, 1
              %s202 = sphi %s183, %s183
              %s203 = sphi %s188, %s188
            $region65: #{custom-call.60} parent=61 // loop_header_branch
              %200 = sbr.rel (%p198) target = $region69
            $region66: #{custom-call.60} parent=61 // loop_body
              %v204 = vld [vmem:[%s202] sm:$0xf]
              %205 = vst [vmem:[%s203] sm:$0xf] %v204
            $region67: #{custom-call.60} parent=61 // loop_footer
              %s201 = sadd.s32 1, %s197
            $region68: #{custom-call.60} parent=61 // loop_footer_branch
              %196 = sbr.rel target = $region64
            $region69: #{custom-call.60} parent=61 // loop_exit
              _
          $region62: #{custom-call.60} parent=53 // pred_fallthru
            _
        $region54: #{custom-call.60} parent=49 // pred_fallthru
          _
        %219 = vnop
      $region50: #{custom-call.60} parent=5 // pred_fallthru
        _
      %p220 = scmp.le.s32.totalorder 2, %s3
      // Predicated region
      $region81: #{custom-call.60} parent=5 // pred_check
        %p221 = pneg %p220
      $region82: #{custom-call.60} parent=5 // pred_check_branch
        %223 = sbr.rel (%p221) target = $region84
      $region83: #{custom-call.60} parent=5 // pred_region
        %s224 = ssub.s32 %s3, 2
        %s225 = sand.u32 %s9, 1
        %s226 = sand.u32 %s9, 1
        %s227 = smul.addr %s226, 4
        %s228 = scalar_lea.vmem [#allocation3], %s227
      $region84: #{custom-call.60} parent=5 // pred_fallthru
        _
    $region6: #{custom-call.60} parent=1 // loop_footer
      %s7 = sadd.s32 1, %s3
    $region7: #{custom-call.60} parent=1 // loop_footer_branch
      %2 = sbr.rel target = $region3
    $region8: #{custom-call.60} parent=1 // loop_exit
      _

// kernel: custom-call.22
$region0: #{custom-call.22}
  %s0 = inlined_call_operand.vmem [shape: f32[2,2,2], index: 0, kind: input, shape index: {}]
  %s1 = inlined_call_operand.vmem [shape: f32[2,2,2], index: 1, kind: input, shape index: {}]
  %s2 = inlined_call_operand.vmem [shape: f32[2,2,2], index: 2, kind: input, shape index: {}]
  %s3 = inlined_call_operand.vmem [shape: f32[2,2,2], index: 3, kind: input, shape index: {}]
  %s4 = inlined_call_operand.vmem [shape: f32[2,2], index: 4, kind: output, shape index: {0}]
  %s5 = inlined_call_operand.vmem [shape: f32[2,2], index: 5, kind: output, shape index: {1}]
  %s6 = inlined_call_operand.vmem [shape: f32[2,2,2], index: 6, kind: output, shape index: {2}]
  %s7 = inlined_call_operand.vmem [shape: f32[2,2,2], index: 7, kind: output, shape index: {3}]
  %s8 = inlined_call_operand.vmem [shape: f32[2,2,2], index: 8, kind: output, shape index: {4}]
  %s9 = inlined_call_operand.vmem [shape: f32[2,2,2], index: 9, kind: output, shape index: {5}]
  %10 = xla_tuple %s4, %s5, %s6, %s7, %s8, %s9
  $region1: #{custom-call.22} parent=0
    #allocation0 [shape = 'u8[4096]{0}', space=vmem, size = 0x1000, scoped, tag = 'operand span for operand 0']
    #allocation1 [shape = 'u8[2048]{0}', space=vmem, size = 0x800, scoped, tag = 'packed  for operand 0']
    #allocation2 [shape = 'u8[4096]{0}', space=vmem, size = 0x1000, scoped, tag = 'operand span for operand 1']
    #allocation3 [shape = 'u8[2048]{0}', space=vmem, size = 0x800, scoped, tag = 'packed  for operand 1']
    #allocation4 [shape = 'u8[4096]{0}', space=vmem, size = 0x1000, scoped, tag = 'operand span for operand 2']
    #allocation5 [shape = 'u8[2048]{0}', space=vmem, size = 0x800, scoped, tag = 'packed  for operand 2']
    #allocation6 [shape = 'u8[4096]{0}', space=vmem, size = 0x1000, scoped, tag = 'operand span for operand 3']
    #allocation7 [shape = 'u8[2048]{0}', space=vmem, size = 0x800, scoped, tag = 'packed  for operand 3']
    #allocation8 [shape = 'u8[4096]{0}', space=vmem, size = 0x1000, scoped, tag = 'operand span for operand 4']
    #allocation9 [shape = 'u8[2048]{0}', space=vmem, size = 0x800, scoped, tag = 'packed  for operand 4']
    #allocation10 [shape = 'u8[4096]{0}', space=vmem, size = 0x1000, scoped, tag = 'operand span for operand 5']
    #allocation11 [shape = 'u8[2048]{0}', space=vmem, size = 0x800, scoped, tag = 'packed  for operand 5']
    #allocation12 [shape = 'u8[4096]{0}', space=vmem, size = 0x1000, scoped, tag = 'operand span for operand 6']
    #allocation13 [shape = 'u8[2048]{0}', space=vmem, size = 0x800, scoped, tag = 'packed  for operand 6']
    #allocation14 [shape = 'u8[4096]{0}', space=vmem, size = 0x1000, scoped, tag = 'operand span for operand 7']
    #allocation15 [shape = 'u8[2048]{0}', space=vmem, size = 0x800, scoped, tag = 'packed  for operand 7']
    #allocation16 [shape = 'u8[4096]{0}', space=vmem, size = 0x1000, scoped, tag = 'operand span for operand 8']
    #allocation17 [shape = 'u8[2048]{0}', space=vmem, size = 0x800, scoped, tag = 'packed  for operand 8']
    #allocation18 [shape = 'u8[4096]{0}', space=vmem, size = 0x1000, scoped, tag = 'operand span for operand 9']
    #allocation19 [shape = 'u8[2048]{0}', space=vmem, size = 0x800, scoped, tag = 'packed  for operand 9']
    loop: start=0, step=1, limit=4
    $region2: #{custom-call.22} parent=1 // loop_pre_header
      _
    $region3: #{custom-call.22} parent=1 // loop_header
      %s12 = sphi 0, %s16
      %p13 = scmp.ge.s32.totalorder %s12, 4
      %s24 = sphi 0, %s26
      %s27 = sphi 0, %s24
      %s28 = sphi 0, %s27
      %s44 = sphi 0, %s28
      %s52 = sphi 0, %s54
      %s55 = sphi 0, %s52
      %s56 = sphi 0, %s55
      %s72 = sphi 0, %s56
    $region4: #{custom-call.22} parent=1 // loop_header_branch
      %15 = sbr.rel (%p13) target = $region8
    $region5: #{custom-call.22} parent=1 // loop_body
      %s17 = ssub.s32 %s12, 1
      %s18 = ssub.s32 %s12, 2
      %s19 = sadd.s32 %s12, 1
      %s20 = sshrl.u32 %s12, 3
      %s21 = sshrl.u32 %s19, 3
      %s22 = ssub.s32 %s20, %s21
      %p23 = scmp.eq.s32.totalorder %s22, 0
      %s25 = sadd.s32 %s24, 1
      %s26 = scalar_select %p23, %s24, %s25
      %p29 = pneg %p23
      %p30 = scmp.eq.s32.totalorder %s12, 1
      %p31 = por %p29, %p30
      %p32 = scmp.ne.s32.totalorder %s24, %s27
      %p33 = scmp.eq.s32.totalorder %s12, 0
      %p34 = por %p32, %p33
      %p35 = scmp.ne.s32.totalorder %s24, %s27
      %p36 = scmp.eq.s32.totalorder %s17, 1
      %p37 = por %p35, %p36
      %p38 = scmp.ne.s32.totalorder %s27, %s28
      %p39 = scmp.eq.s32.totalorder %s17, 0
      %p40 = por %p38, %p39
      %p41 = scmp.ne.s32.totalorder %s27, %s28
      %p42 = scmp.eq.s32.totalorder %s18, 1
      %p43 = por %p41, %p42
      %p45 = scmp.ne.s32.totalorder %s28, %s44
      %p46 = scmp.eq.s32.totalorder %s18, 0
      %p47 = por %p45, %p46
      %s48 = sshrl.u32 %s12, 3
      %s49 = sshrl.u32 %s19, 3
      %s50 = ssub.s32 %s48, %s49
      %p51 = scmp.eq.s32.totalorder %s50, 0
      %s53 = sadd.s32 %s52, 1
      %s54 = scalar_select %p51, %s52, %s53
      %p57 = pneg %p51
      %p58 = scmp.eq.s32.totalorder %s12, 1
      %p59 = por %p57, %p58
      %p60 = scmp.ne.s32.totalorder %s52, %s55
      %p61 = scmp.eq.s32.totalorder %s12, 0
      %p62 = por %p60, %p61
      %p63 = scmp.ne.s32.totalorder %s52, %s55
      %p64 = scmp.eq.s32.totalorder %s17, 1
      %p65 = por %p63, %p64
      %p66 = scmp.ne.s32.totalorder %s55, %s56
      %p67 = scmp.eq.s32.totalorder %s17, 0
      %p68 = por %p66, %p67
      %p69 = scmp.ne.s32.totalorder %s55, %s56
      %p70 = scmp.eq.s32.totalorder %s18, 1
      %p71 = por %p69, %p70
      %p73 = scmp.ne.s32.totalorder %s56, %s72
      %p74 = scmp.eq.s32.totalorder %s18, 0
      %p75 = por %p73, %p74
      %p76 = scmp.le.s32.totalorder 1, %s12
      %p77 = scmp.lt.s32.totalorder %s12, 3
      %p78 = pnand %p76, %p77
      %p79 = pneg %p78
      // Predicated region
      $region9: #{custom-call.22} parent=5 // pred_check
        _
      $region10: #{custom-call.22} parent=5 // pred_check_branch
        %81 = sbr.rel (%p78) target = $region12
      $region11: #{custom-call.22} parent=5 // pred_region
        %s82 = ssub.s32 %s12, 1
      $region12: #{custom-call.22} parent=5 // pred_fallthru
        _
      %p83 = scmp.lt.s32.totalorder %s12, 2
      // Predicated region
      $region13: #{custom-call.22} parent=5 // pred_check
        %p84 = pneg %p83
      $region14: #{custom-call.22} parent=5 // pred_check_branch
        %86 = sbr.rel (%p84) target = $region16
      $region15: #{custom-call.22} parent=5 // pred_region
        %s87 = sand.u32 %s12, 1
        %s88 = sand.u32 %s12, 1
        %s89 = smul.addr %s88, 2
        %s90 = scalar_lea.vmem [#allocation1], %s89
        %s91 = smul.addr %s12, 2
        %s92 = scalar_lea.vmem %s0, %s91
        // Predicated region
        $region17: #{custom-call.22} parent=15 // pred_check
          _
        $region18: #{custom-call.22} parent=15 // pred_check_branch
          %94 = sbr.rel (0) target = $region20
        $region19: #{custom-call.22} parent=15 // pred_region
          // Predicated region
          $region21: #{custom-call.22} parent=19 // pred_check
            _
          $region22: #{custom-call.22} parent=19 // pred_check_branch
            %96 = sbr.rel target = $region24
          $region23: #{custom-call.22} parent=19 // pred_region
            // Predicated region
            $region36: #{custom-call.22} parent=23 // pred_check
              _
            $region37: #{custom-call.22} parent=23 // pred_check_branch
              %111 = sbr.rel (0) target = $region39
            $region38: #{custom-call.22} parent=23 // pred_region
              loop: start=0, step=1, limit=1
              $region40: #{custom-call.22} parent=38 // loop_pre_header
                _
              $region41: #{custom-call.22} parent=38 // loop_header
                %s114 = sphi 0, %s118
                %p115 = scmp.ge.s32.totalorder %s114, 1
                %s119 = sphi %s92, %s92
                %s120 = sphi %s90, %s90
              $region42: #{custom-call.22} parent=38 // loop_header_branch
                %117 = sbr.rel (%p115) target = $region46
              $region43: #{custom-call.22} parent=38 // loop_body
                %v121 = vld [vmem:[%s119] sm:$0x3]
                %122 = vst [vmem:[%s120] sm:$0x3] %v121
              $region44: #{custom-call.22} parent=38 // loop_footer
                %s118 = sadd.s32 1, %s114
              $region45: #{custom-call.22} parent=38 // loop_footer_branch
                %113 = sbr.rel target = $region41
              $region46: #{custom-call.22} parent=38 // loop_exit
                _
            $region39: #{custom-call.22} parent=23 // pred_fallthru
              _
          $region24: #{custom-call.22} parent=19 // pred_fallthru
            _
          // Predicated region
          $region25: #{custom-call.22} parent=19 // pred_check
            _
          $region26: #{custom-call.22} parent=19 // pred_check_branch
            %98 = sbr.rel (0) target = $region28
          $region27: #{custom-call.22} parent=19 // pred_region
            loop: start=0, step=1, limit=1
            $region29: #{custom-call.22} parent=27 // loop_pre_header
              _
            $region30: #{custom-call.22} parent=27 // loop_header
              %s101 = sphi 0, %s105
              %p102 = scmp.ge.s32.totalorder %s101, 1
              %s106 = sphi %s92, %s92
              %s107 = sphi %s90, %s90
            $region31: #{custom-call.22} parent=27 // loop_header_branch
              %104 = sbr.rel (%p102) target = $region35
            $region32: #{custom-call.22} parent=27 // loop_body
              %v108 = vld [vmem:[%s106] sm:$0x3]
              %109 = vst [vmem:[%s107] sm:$0x3] %v108
            $region33: #{custom-call.22} parent=27 // loop_footer
              %s105 = sadd.s32 1, %s101
            $region34: #{custom-call.22} parent=27 // loop_footer_branch
              %100 = sbr.rel target = $region30
            $region35: #{custom-call.22} parent=27 // loop_exit
              _
          $region28: #{custom-call.22} parent=19 // pred_fallthru
            _
        $region20: #{custom-call.22} parent=15 // pred_fallthru
          _
        %123 = vnop
        %s124 = sand.u32 %s12, 1
        %s125 = sand.u32 %s12, 1
        %s126 = smul.addr %s125, 2
        %s127 = scalar_lea.vmem [#allocation3], %s126
        %s128 = smul.addr %s12, 2
        %s129 = scalar_lea.vmem %s1, %s128
        // Predicated region
        $region47: #{custom-call.22} parent=15 // pred_check
          _
        $region48: #{custom-call.22} parent=15 // pred_check_branch
          %131 = sbr.rel (0) target = $region50
        $region49: #{custom-call.22} parent=15 // pred_region
          // Predicated region
          $region51: #{custom-call.22} parent=49 // pred_check
            _
          $region52: #{custom-call.22} parent=49 // pred_check_branch
            %133 = sbr.rel target = $region54
          $region53: #{custom-call.22} parent=49 // pred_region
            // Predicated region
            $region66: #{custom-call.22} parent=53 // pred_check
              _
            $region67: #{custom-call.22} parent=53 // pred_check_branch
              %148 = sbr.rel (0) target = $region69
            $region68: #{custom-call.22} parent=53 // pred_region
              loop: start=0, step=1, limit=1
              $region70: #{custom-call.22} parent=68 // loop_pre_header
                _
              $region71: #{custom-call.22} parent=68 // loop_header
                %s151 = sphi 0, %s155
                %p152 = scmp.ge.s32.totalorder %s151, 1
                %s156 = sphi %s129, %s129
                %s157 = sphi %s127, %s127
              $region72: #{custom-call.22} parent=68 // loop_header_branch
                %154 = sbr.rel (%p152) target = $region76
              $region73: #{custom-call.22} parent=68 // loop_body
                %v158 = vld [vmem:[%s156] sm:$0x3]
                %159 = vst [vmem:[%s157] sm:$0x3] %v158
              $region74: #{custom-call.22} parent=68 // loop_footer
                %s155 = sadd.s32 1, %s151
              $region75: #{custom-call.22} parent=68 // loop_footer_branch
                %150 = sbr.rel target = $region71
              $region76: #{custom-call.22} parent=68 // loop_exit
                _
            $region69: #{custom-call.22} parent=53 // pred_fallthru
              _
          $region54: #{custom-call.22} parent=49 // pred_fallthru
            _
          // Predicated region
          $region55: #{custom-call.22} parent=49 // pred_check
            _
          $region56: #{custom-call.22} parent=49 // pred_check_branch
            %135 = sbr.rel (0) target = $region58
          $region57: #{custom-call.22} parent=49 // pred_region
            loop: start=0, step=1, limit=1
            $region59: #{custom-call.22} parent=57 // loop_pre_header
              _
            $region60: #{custom-call.22} parent=57 // loop_header
              %s138 = sphi 0, %s142
              %p139 = scmp.ge.s32.totalorder %s138, 1
              %s143 = sphi %s129, %s129
              %s144 = sphi %s127, %s127
            $region61: #{custom-call.22} parent=57 // loop_header_branch
              %141 = sbr.rel (%p139) target = $region65
            $region62: #{custom-call.22} parent=57 // loop_body
              %v145 = vld [vmem:[%s143] sm:$0x3]
              %146 = vst [vmem:[%s144] sm:$0x3] %v145
            $region63: #{custom-call.22} parent=57 // loop_footer
              %s142 = sadd.s32 1, %s138
            $region64: #{custom-call.22} parent=57 // loop_footer_branch
              %137 = sbr.rel target = $region60
            $region65: #{custom-call.22} parent=57 // loop_exit
              _
          $region58: #{custom-call.22} parent=49 // pred_fallthru
            _
        $region50: #{custom-call.22} parent=15 // pred_fallthru
          _
        %160 = vnop
        %s161 = sand.u32 %s12, 1
        %s162 = sand.u32 %s12, 1
        %s163 = smul.addr %s162, 2
        %s164 = scalar_lea.vmem [#allocation5], %s163
        %s165 = smul.addr %s12, 2
        %s166 = scalar_lea.vmem %s2, %s165
        // Predicated region
        $region77: #{custom-call.22} parent=15 // pred_check
          _
        $region78: #{custom-call.22} parent=15 // pred_check_branch
          %168 = sbr.rel (0) target = $region80
        $region79: #{custom-call.22} parent=15 // pred_region
          // Predicated region
          $region81: #{custom-call.22} parent=79 // pred_check
            _
          $region82: #{custom-call.22} parent=79 // pred_check_branch
            %170 = sbr.rel target = $region84
          $region83: #{custom-call.22} parent=79 // pred_region
            // Predicated region
            $region96: #{custom-call.22} parent=83 // pred_check
              _
            $region97: #{custom-call.22} parent=83 // pred_check_branch
              %185 = sbr.rel (0) target = $region99
            $region98: #{custom-call.22} parent=83 // pred_region
              loop: start=0, step=1, limit=1
              $region100: #{custom-call.22} parent=98 // loop_pre_header
                _
              $region101: #{custom-call.22} parent=98 // loop_header
                %s188 = sphi 0, %s192
                %p189 = scmp.ge.s32.totalorder %s188, 1
                %s193 = sphi %s166, %s166
                %s194 = sphi %s164, %s164
              $region102: #{custom-call.22} parent=98 // loop_header_branch
                %191 = sbr.rel (%p189) target = $region106
              $region103: #{custom-call.22} parent=98 // loop_body
                %v195 = vld [vmem:[%s193] sm:$0x3]
                %196 = vst [vmem:[%s194] sm:$0x3] %v195
              $region104: #{custom-call.22} parent=98 // loop_footer
                %s192 = sadd.s32 1, %s188
              $region105: #{custom-call.22} parent=98 // loop_footer_branch
                %187 = sbr.rel target = $region101
              $region106: #{custom-call.22} parent=98 // loop_exit
                _
            $region99: #{custom-call.22} parent=83 // pred_fallthru
              _
          $region84: #{custom-call.22} parent=79 // pred_fallthru
            _
          // Predicated region
          $region85: #{custom-call.22} parent=79 // pred_check
            _
          $region86: #{custom-call.22} parent=79 // pred_check_branch
            %172 = sbr.rel (0) target = $region88
          $region87: #{custom-call.22} parent=79 // pred_region
            loop: start=0, step=1, limit=1
            $region89: #{custom-call.22} parent=87 // loop_pre_header
              _
            $region90: #{custom-call.22} parent=87 // loop_header
              %s175 = sphi 0, %s179
              %p176 = scmp.ge.s32.totalorder %s175, 1
              %s180 = sphi %s166, %s166
              %s181 = sphi %s164, %s164
            $region91: #{custom-call.22} parent=87 // loop_header_branch
              %178 = sbr.rel (%p176) target = $region95
            $region92: #{custom-call.22} parent=87 // loop_body
              %v182 = vld [vmem:[%s180] sm:$0x3]
              %183 = vst [vmem:[%s181] sm:$0x3] %v182
            $region93: #{custom-call.22} parent=87 // loop_footer
              %s179 = sadd.s32 1, %s175
            $region94: #{custom-call.22} parent=87 // loop_footer_branch
              %174 = sbr.rel target = $region90
            $region95: #{custom-call.22} parent=87 // loop_exit
              _
          $region88: #{custom-call.22} parent=79 // pred_fallthru
            _
        $region80: #{custom-call.22} parent=15 // pred_fallthru
          _
        %197 = vnop
        %s198 = sand.u32 %s12, 1
        %s199 = sand.u32 %s12, 1
        %s200 = smul.addr %s199, 2
        %s201 = scalar_lea.vmem [#allocation7], %s200
        %s202 = smul.addr %s12, 2
        %s203 = scalar_lea.vmem %s3, %s202
        // Predicated region
        $region107: #{custom-call.22} parent=15 // pred_check
          _
        $region108: #{custom-call.22} parent=15 // pred_check_branch
          %205 = sbr.rel (0) target = $region110
        $region109: #{custom-call.22} parent=15 // pred_region
          // Predicated region
          $region111: #{custom-call.22} parent=109 // pred_check
            _
          $region112: #{custom-call.22} parent=109 // pred_check_branch
            %207 = sbr.rel target = $region114
          $region113: #{custom-call.22} parent=109 // pred_region
            // Predicated region
            $region126: #{custom-call.22} parent=113 // pred_check
              _
            $region127: #{custom-call.22} parent=113 // pred_check_branch
              %222 = sbr.rel (0) target = $region129
            $region128: #{custom-call.22} parent=113 // pred_region
              loop: start=0, step=1, limit=1
              $region130: #{custom-call.22} parent=128 // loop_pre_header
                _
              $region131: #{custom-call.22} parent=128 // loop_header
                %s225 = sphi 0, %s229
                %p226 = scmp.ge.s32.totalorder %s225, 1
                %s230 = sphi %s203, %s203
                %s231 = sphi %s201, %s201
              $region132: #{custom-call.22} parent=128 // loop_header_branch
                %228 = sbr.rel (%p226) target = $region136
              $region133: #{custom-call.22} parent=128 // loop_body
                %v232 = vld [vmem:[%s230] sm:$0x3]
                %233 = vst [vmem:[%s231] sm:$0x3] %v232
              $region134: #{custom-call.22} parent=128 // loop_footer
                %s229 = sadd.s32 1, %s225
              $region135: #{custom-call.22} parent=128 // loop_footer_branch
                %224 = sbr.rel target = $region131
              $region136: #{custom-call.22} parent=128 // loop_exit
                _
            $region129: #{custom-call.22} parent=113 // pred_fallthru
              _
          $region114: #{custom-call.22} parent=109 // pred_fallthru
            _
          // Predicated region
          $region115: #{custom-call.22} parent=109 // pred_check
            _
          $region116: #{custom-call.22} parent=109 // pred_check_branch
            %209 = sbr.rel (0) target = $region118
          $region117: #{custom-call.22} parent=109 // pred_region
            loop: start=0, step=1, limit=1
            $region119: #{custom-call.22} parent=117 // loop_pre_header
              _
            $region120: #{custom-call.22} parent=117 // loop_header
              %s212 = sphi 0, %s216
              %p213 = scmp.ge.s32.totalorder %s212, 1
              %s217 = sphi %s203, %s203
              %s218 = sphi %s201, %s201
            $region121: #{custom-call.22} parent=117 // loop_header_branch
              %215 = sbr.rel (%p213) target = $region125
            $region122: #{custom-call.22} parent=117 // loop_body
              %v219 = vld [vmem:[%s217] sm:$0x3]
              %220 = vst [vmem:[%s218] sm:$0x3] %v219
            $region123: #{custom-call.22} parent=117 // loop_footer
              %s216 = sadd.s32 1, %s212
            $region124: #{custom-call.22} parent=117 // loop_footer_branch
              %211 = sbr.rel target = $region120
            $region125: #{custom-call.22} parent=117 // loop_exit
              _
          $region118: #{custom-call.22} parent=109 // pred_fallthru
            _
        $region110: #{custom-call.22} parent=15 // pred_fallthru
          _
        %234 = vnop
      $region16: #{custom-call.22} parent=5 // pred_fallthru
        _
      %p235 = scmp.le.s32.totalorder 1, %s12
      %p236 = scmp.lt.s32.totalorder %s12, 3
      %p237 = pnand %p235, %p236
      %p238 = pneg %p237
      // Predicated region
      $region137: #{custom-call.22} parent=5 // pred_check
        _
      $region138: #{custom-call.22} parent=5 // pred_check_branch
        %240 = sbr.rel (%p237) target = $region140
      $region139: #{custom-call.22} parent=5 // pred_region
        #allocation20 [shape = 'f32[2,2]{1,0}', space=vmem, size = 0x1000, scoped, tag = 'a top-left matrix']
        #allocation21 [shape = 'f32[2,2]{1,0}', space=vmem, size = 0x1000, scoped, tag = 'a top-right matrix']
        #allocation22 [shape = 'f32[2,2]{1,0}', space=vmem, size = 0x1000, scoped, tag = 'a bottom-left matrix']
        #allocation23 [shape = 'f32[2,2]{1,0}', space=vmem, size = 0x1000, scoped, tag = 'a bottom-right matrix']
        %s241 = ssub.s32 %s12, 1
        %s242 = sand.u32 %s17, 1
        %s243 = sand.u32 %s17, 1
        %s244 = smul.addr %s243, 2
        %s245 = scalar_lea.vmem [#allocation1], %s244
        %s246 = sand.u32 %s17, 1
        %s247 = sand.u32 %s17, 1
        %s248 = smul.addr %s247, 2
        %s249 = scalar_lea.vmem [#allocation3], %s248
        %s250 = sand.u32 %s17, 1
        %s251 = sand.u32 %s17, 1
        %s252 = smul.addr %s251, 2
        %s253 = scalar_lea.vmem [#allocation5], %s252
        %s254 = sand.u32 %s17, 1
        %s255 = sand.u32 %s17, 1
        %s256 = smul.addr %s255, 2
        %s257 = scalar_lea.vmem [#allocation7], %s256
        %s258 = sand.u32 %s17, 1
        %s259 = sand.u32 %s17, 1
        %s260 = smul.addr %s259, 2
        %s261 = scalar_lea.vmem [#allocation1], %s260
        %s262 = sand.u32 %s17, 1
        %s263 = sand.u32 %s17, 1
        %s264 = smul.addr %s263, 2
        %s265 = scalar_lea.vmem [#allocation3], %s264
        %s266 = sand.u32 %s17, 1
        %s267 = sand.u32 %s17, 1
        %s268 = smul.addr %s267, 2
        %s269 = scalar_lea.vmem [#allocation5], %s268
        %s270 = sand.u32 %s17, 1
        %s271 = sand.u32 %s17, 1
        %s272 = smul.addr %s271, 2
        %s273 = scalar_lea.vmem [#allocation7], %s272
        %p274 = pneg %p40
        %p275 = pneg %p37
        %s276 = sand.u32 %s27, 1
        %s277 = sand.u32 %s27, 1
        %s278 = smul.addr %s277, 2
        %s279 = scalar_lea.vmem [#allocation9], %s278
        %p280 = pneg %p68
        %p281 = pneg %p65
        %s282 = sand.u32 %s55, 1
        %s283 = sand.u32 %s55, 1
        %s284 = smul.addr %s283, 2
        %s285 = scalar_lea.vmem [#allocation11], %s284
        %s286 = sand.u32 %s17, 1
        %s287 = sand.u32 %s17, 1
        %s288 = smul.addr %s287, 2
        %s289 = scalar_lea.vmem [#allocation13], %s288
        %s290 = sand.u32 %s17, 1
        %s291 = sand.u32 %s17, 1
        %s292 = smul.addr %s291, 2
        %s293 = scalar_lea.vmem [#allocation15], %s292
        %s294 = sand.u32 %s17, 1
        %s295 = sand.u32 %s17, 1
        %s296 = smul.addr %s295, 2
        %s297 = scalar_lea.vmem [#allocation17], %s296
        %s298 = sand.u32 %s17, 1
        %s299 = sand.u32 %s17, 1
        %s300 = smul.addr %s299, 2
        %s301 = scalar_lea.vmem [#allocation19], %s300
        %s303 = sshllo.u32 0, 2
        %v304 = vld [vmem:[%s261] sm:%s303]
        %305 = vst [vmem:[#allocation0] sm:%s303] %v304
        %s307 = sshllo.u32 0, 2
        %v308 = vld [vmem:[%s265] sm:%s307]
        %309 = vst [vmem:[#allocation2] sm:%s307] %v308
        %s311 = sshllo.u32 0, 2
        %v312 = vld [vmem:[%s269] sm:%s311]
        %313 = vst [vmem:[#allocation4] sm:%s311] %v312
        %s315 = sshllo.u32 0, 2
        %v316 = vld [vmem:[%s273] sm:%s315]
        %317 = vst [vmem:[#allocation6] sm:%s315] %v316
        %s318 = sshrl.u32 %s17, 3
        %s319 = sshrl.u32 %s17, 3
        %s320 = smov [#allocation20]
        %v321 = vld [vmem:[#allocation0] sm:$0xff]
        %322 = vst [vmem:[%s320] sm:$0xff] %v321
        %s323 = smov [#allocation21]
        %v324 = vld [vmem:[#allocation2] sm:$0xff]
        %325 = vst [vmem:[%s323] sm:$0xff] %v324
        %s326 = smov [#allocation22]
        %v327 = vld [vmem:[#allocation4] sm:$0xff]
        %328 = vst [vmem:[%s326] sm:$0xff] %v327
        %s329 = smov [#allocation23]
        %v330 = vld [vmem:[#allocation6] sm:$0xff]
        %331 = vst [vmem:[%s329] sm:$0xff] %v330
        %332 = vst [vmem:[#allocation12] sm:$0xff] 0.0
        %333 = vst [vmem:[#allocation14] sm:$0xff] 0.0
        %334 = vst [vmem:[#allocation16] sm:$0xff] 0.0
        %335 = vst [vmem:[#allocation18] sm:$0xff] 0.0
        %s336 = smov [#allocation12]
        %v337 = vlaneseq
        %v338 = vand.u32 %v337, 127
        %v339 = vmov %v338
        %v340 = vlaneseq
        %v341 = vshrl.u32 %v340, 7
        %v342 = vmov %v341
        %v343 = vld [vmem:[%s336] sm:$0x3]
        %vm346 = vcmp.eq.s32.totalorder %v342, %v339
        %v347 = vsel %vm346, 1.0, %v343
        %348 = vst [vmem:[%s336] sm:$0x3] %v347
        %s349 = smov [#allocation18]
        %v350 = vlaneseq
        %v351 = vand.u32 %v350, 127
        %v352 = vmov %v351
        %v353 = vlaneseq
        %v354 = vshrl.u32 %v353, 7
        %v355 = vmov %v354
        %v356 = vld [vmem:[%s349] sm:$0x3]
        %vm359 = vcmp.eq.s32.totalorder %v355, %v352
        %v360 = vsel %vm359, 1.0, %v356
        %361 = vst [vmem:[%s349] sm:$0x3] %v360
        // While loop
        $region141: #{custom-call.22} parent=139 // loop_pre_header
          _
        $region142: #{custom-call.22} parent=139 // loop_header
          %s363 = sphi 0, %s905
          %v364 = vlaneseq
          %v365 = vand.u32 %v364, 127
          %v366 = vmov %v365
          %v367 = vlaneseq
          %v368 = vshrl.u32 %v367, 7
          %v369 = vmov %v368
          %s370 = smov [#allocation20]
          %v371 = vlaneseq
          %v372 = vand.u32 %v371, 127
          %vm373 = vcmp.ge.s32.totalorder %v372, 0
          %vm374 = vcmp.lt.s32.totalorder %v372, 2
          %vm375 = vmand %vm373, %vm374
          %v376 = vld [vmem:[%s370] sm:$0x3]
          %v377 = vsel %vm375, %v376, 0.0
          %v378 = vmul.f32 %v377, %v377
          %vm381 = vcmp.eq.s32.totalorder %v369, %v366
          %v382 = vsel %vm381, 0.0, %v378
          %v383 = vlaneseq
          %v384 = vand.u32 %v383, 127
          %v385 = vmov %v384
          %v386 = vlaneseq
          %v387 = vshrl.u32 %v386, 7
          %v388 = vmov %v387
          %s389 = smov [#allocation21]
          %v390 = vlaneseq
          %v391 = vand.u32 %v390, 127
          %vm392 = vcmp.ge.s32.totalorder %v391, 0
          %vm393 = vcmp.lt.s32.totalorder %v391, 2
          %vm394 = vmand %vm392, %vm393
          %v395 = vld [vmem:[%s389] sm:$0x3]
          %v396 = vsel %vm394, %v395, 0.0
          %v397 = vmul.f32 %v396, %v396
          %v398 = vadd.f32 %v382, %v397
          %v399 = vadd.f32 %v378, %v397
          %v400 = vlaneseq
          %v401 = vand.u32 %v400, 127
          %v402 = vmov %v401
          %v403 = vlaneseq
          %v404 = vshrl.u32 %v403, 7
          %v405 = vmov %v404
          %s406 = smov [#allocation22]
          %v407 = vlaneseq
          %v408 = vand.u32 %v407, 127
          %vm409 = vcmp.ge.s32.totalorder %v408, 0
          %vm410 = vcmp.lt.s32.totalorder %v408, 2
          %vm411 = vmand %vm409, %vm410
          %v412 = vld [vmem:[%s406] sm:$0x3]
          %v413 = vsel %vm411, %v412, 0.0
          %v414 = vmul.f32 %v413, %v413
          %v415 = vadd.f32 %v398, %v414
          %v416 = vadd.f32 %v399, %v414
          %v417 = vlaneseq
          %v418 = vand.u32 %v417, 127
          %v419 = vmov %v418
          %v420 = vlaneseq
          %v421 = vshrl.u32 %v420, 7
          %v422 = vmov %v421
          %s423 = smov [#allocation23]
          %v424 = vlaneseq
          %v425 = vand.u32 %v424, 127
          %vm426 = vcmp.ge.s32.totalorder %v425, 0
          %vm427 = vcmp.lt.s32.totalorder %v425, 2
          %vm428 = vmand %vm426, %vm427
          %v429 = vld [vmem:[%s423] sm:$0x3]
          %v430 = vsel %vm428, %v429, 0.0
          %v431 = vmul.f32 %v430, %v430
          %vm434 = vcmp.eq.s32.totalorder %v422, %v419
          %v435 = vsel %vm434, 0.0, %v431
          %v436 = vadd.f32 %v415, %v435
          %v437 = vadd.f32 %v416, %v431
          %438 = vadd.xlane.f32.xlu0 %v437
          %v439 = vpop.xlane.xlu0 %438
          %v440 = vrot.slane %v439, 4
          %v441 = vadd.f32 %v439, %v440
          %v442 = vrot.slane %v441, 2
          %v443 = vadd.f32 %v441, %v442
          %v444 = vrot.slane %v443, 1
          %v445 = vadd.f32 %v443, %v444
          %446 = vadd.xlane.f32.xlu0 %v436
          %v447 = vpop.xlane.xlu0 %446
          %v448 = vrot.slane %v447, 4
          %v449 = vadd.f32 %v447, %v448
          %v450 = vrot.slane %v449, 2
          %v451 = vadd.f32 %v449, %v450
          %v452 = vrot.slane %v451, 1
          %v453 = vadd.f32 %v451, %v452
          %s454 = vtos %v453
          %s455 = vtos %v445
          %s456 = smul.f32 1e-10, %s455
          %p457 = scmp.le.f32.partialorder %s454, %s456
          %p458 = scmp.ge.s32.totalorder %s363, 15
          %p459 = por %p457, %p458
        $region143: #{custom-call.22} parent=139 // loop_header_branch
          %907 = sbr.rel (%p459) target = $region147
        $region144: #{custom-call.22} parent=139 // loop_body
          loop: start=0, step=1, limit=3
          $region148: #{custom-call.22} parent=144 // loop_pre_header
            _
          $region149: #{custom-call.22} parent=144 // loop_header
            %s461 = sphi 0, %s465
            %p462 = scmp.ge.s32.totalorder %s461, 3
          $region150: #{custom-call.22} parent=144 // loop_header_branch
            %464 = sbr.rel (%p462) target = $region154
          $region151: #{custom-call.22} parent=144 // loop_body
            #allocation24 [shape = 'f32[1024]{0}', space=vmem, size = 0x1000, scoped, tag = 'a_tl_diag vmem']
            #allocation25 [shape = 'f32[1024]{0}', space=vmem, size = 0x1000, scoped, tag = 'a_tr_diag vmem']
            #allocation26 [shape = 'f32[1024]{0}', space=vmem, size = 0x1000, scoped, tag = 'a_br_diag vmem']
            #allocation27 [shape = 'f32[1024]{0}', space=vmem, size = 0x1000, scoped, tag = 'rt1 vmem']
            #allocation28 [shape = 'f32[1024]{0}', space=vmem, size = 0x1000, scoped, tag = 'rt2 vmem']
            #allocation29 [shape = 'f32[1024]{0}', space=vmem, size = 0x1000, scoped, tag = 'c vmem']
            #allocation30 [shape = 'f32[1024]{0}', space=vmem, size = 0x1000, scoped, tag = 's vmem']
            #allocation31 [shape = 'f32[4096]{0}', space=vmem, size = 0x4000, scoped, tag = 'c broadcast']
            #allocation32 [shape = 'f32[4096]{0}', space=vmem, size = 0x4000, scoped, tag = 's broadcast']
            %s466 = smov [#allocation20]
            %s467 = smov [#allocation24]
            %v468 = vlaneseq
            %v469 = vand.u32 %v468, 127
            %v470 = vmov %v469
            %v471 = vlaneseq
            %v472 = vshrl.u32 %v471, 7
            %v473 = vmov %v472
            %v474 = vld [vmem:[%s466] sm:$0x3]
            %vm477 = vcmp.eq.s32.totalorder %v473, %v470
            %v478 = vsel %vm477, %v474, 0.0
            %v479 = vrot.slane %v478, 4
            %v480 = vadd.f32 %v478, %v479
            %v481 = vrot.slane %v480, 2
            %v482 = vadd.f32 %v480, %v481
            %v483 = vrot.slane %v482, 1
            %v484 = vadd.f32 %v482, %v483
            %485 = vst [vmem:[%s467] sm:$0x1] %v484
            %s486 = smov [#allocation21]
            %s487 = smov [#allocation25]
            %v488 = vlaneseq
            %v489 = vand.u32 %v488, 127
            %v490 = vmov %v489
            %v491 = vlaneseq
            %v492 = vshrl.u32 %v491, 7
            %v493 = vmov %v492
            %v494 = vld [vmem:[%s486] sm:$0x3]
            %vm497 = vcmp.eq.s32.totalorder %v493, %v490
            %v498 = vsel %vm497, %v494, 0.0
            %v499 = vrot.slane %v498, 4
            %v500 = vadd.f32 %v498, %v499
            %v501 = vrot.slane %v500, 2
            %v502 = vadd.f32 %v500, %v501
            %v503 = vrot.slane %v502, 1
            %v504 = vadd.f32 %v502, %v503
            %505 = vst [vmem:[%s487] sm:$0x1] %v504
            %s506 = smov [#allocation23]
            %s507 = smov [#allocation26]
            %v508 = vlaneseq
            %v509 = vand.u32 %v508, 127
            %v510 = vmov %v509
            %v511 = vlaneseq
            %v512 = vshrl.u32 %v511, 7
            %v513 = vmov %v512
            %v514 = vld [vmem:[%s506] sm:$0x3]
            %vm517 = vcmp.eq.s32.totalorder %v513, %v510
            %v518 = vsel %vm517, %v514, 0.0
            %v519 = vrot.slane %v518, 4
            %v520 = vadd.f32 %v518, %v519
            %v521 = vrot.slane %v520, 2
            %v522 = vadd.f32 %v520, %v521
            %v523 = vrot.slane %v522, 1
            %v524 = vadd.f32 %v522, %v523
            %525 = vst [vmem:[%s507] sm:$0x1] %v524
            %s526 = smov [#allocation29]
            %s527 = smov [#allocation30]
            %s528 = smov [#allocation24]
            %v529 = vld [vmem:[%s528] sm:$0xff]
            %s530 = smov [#allocation25]
            %v531 = vld [vmem:[%s530] sm:$0xff]
            %s532 = smov [#allocation26]
            %v533 = vld [vmem:[%s532] sm:$0xff]
            %v534 = vsub.f32 %v533, %v529
            %v535 = vmul.f32 2.0, %v531
            %v536 = vrcp.pop %v535
            %v537 = vmul.f32 %v534, %v536
            %vm538 = vcmp.ge.f32.partialorder %v537, 0.0
            %v539 = vmul.f32 %v537, %v537
            %v540 = vadd.f32 1.0, %v539
            %v541 = vrsqrt.pop %v540
            %v542 = vmul.f32 %v540, %v541
            %vm543 = vcmp.eq.f32.partialorder %v540, inf
            %v544 = vsel %vm543, %v540, %v542
            %vm545 = vcmp.eq.f32.partialorder %v540, 0.0
            %v546 = vand.u32 %v540, 2147483648
            %v547 = vsel %vm545, %v546, %v544
            %v548 = vxor.u32 %v547, 2147483648
            %v549 = vsel %vm538, %v547, %v548
            %v550 = vadd.f32 %v537, %v549
            %v551 = vrcp.pop %v550
            %v552 = vand.u32 2147483647, %v529
            %v553 = vand.u32 2147483647, %v531
            %v554 = vand.u32 2147483647, %v533
            %v555 = vmin.f32 %v552, %v554
            %v556 = vmul.f32 1.1920929e-08, %v555
            %vm557 = vcmp.le.f32.partialorder %v553, %v556
            %v558 = vsel %vm557, 0.0, %v551
            %v559 = vmul.f32 %v558, %v558
            %v560 = vadd.f32 1.0, %v559
            %v561 = vrsqrt.pop %v560
            %v562 = vmul.f32 %v558, %v561
            %v563 = vmul.f32 %v558, %v531
            %v564 = vsub.f32 %v529, %v563
            %v565 = vmul.f32 %v558, %v531
            %v566 = vadd.f32 %v533, %v565
            %s567 = smov [#allocation27]
            %568 = vst [vmem:[%s567] sm:$0xff] %v564
            %s569 = smov [#allocation28]
            %570 = vst [vmem:[%s569] sm:$0xff] %v566
            %s571 = smov %s526
            %572 = vst [vmem:[%s571] sm:$0xff] %v561
            %s573 = smov %s527
            %574 = vst [vmem:[%s573] sm:$0xff] %v562
            %s575 = smov [#allocation29]
            %v576 = vld [vmem:[%s575] ss:$0 sm:$0xff]
            %v577 = vlaneseq
            %v578 = vand.u32 %v577, 127
            %v579 = vmov %v578
            %v580 = vlaneseq
            %v581 = vshrl.u32 %v580, 7
            %v582 = vmov %v581
            %vm584 = vcmp.eq.s32.totalorder %v582, %v579
            %v585 = vsel %vm584, %v576, 0.0
            %586 = vadd.xlane.f32.xlu0 %v585
            %v587 = vpop.xlane.xlu0 %586
            %s588 = smov [#allocation31]
            %589 = vst [vmem:[%s588] sm:$0xff] %v587
            %s590 = smov [#allocation30]
            %v591 = vld [vmem:[%s590] ss:$0 sm:$0xff]
            %v592 = vlaneseq
            %v593 = vand.u32 %v592, 127
            %v594 = vmov %v593
            %v595 = vlaneseq
            %v596 = vshrl.u32 %v595, 7
            %v597 = vmov %v596
            %vm599 = vcmp.eq.s32.totalorder %v597, %v594
            %v600 = vsel %vm599, %v591, 0.0
            %601 = vadd.xlane.f32.xlu0 %v600
            %v602 = vpop.xlane.xlu0 %601
            %s603 = smov [#allocation32]
            %604 = vst [vmem:[%s603] sm:$0xff] %v602
            %s605 = smov [#allocation31]
            %v606 = vld [vmem:[%s605] sm:$0xff]
            %s607 = smov [#allocation32]
            %v608 = vld [vmem:[%s607] sm:$0xff]
            %s609 = smov [#allocation20]
            %s610 = smov [#allocation21]
            %s611 = smov [#allocation22]
            %s612 = smov [#allocation23]
            %v613 = vld [vmem:[%s609] sm:$0x3]
            %v614 = vld [vmem:[%s610] sm:$0x3]
            %v615 = vld [vmem:[%s611] sm:$0x3]
            %v616 = vld [vmem:[%s612] sm:$0x3]
            %v617 = vmul.f32 %v606, %v613
            %v618 = vmul.f32 %v608, %v615
            %v619 = vsub.f32 %v617, %v618
            %v620 = vmul.f32 %v606, %v614
            %v621 = vmul.f32 %v608, %v616
            %v622 = vsub.f32 %v620, %v621
            %v623 = vmul.f32 %v608, %v613
            %v624 = vmul.f32 %v606, %v615
            %v625 = vadd.f32 %v623, %v624
            %v626 = vmul.f32 %v608, %v614
            %v627 = vmul.f32 %v606, %v616
            %v628 = vadd.f32 %v626, %v627
            %629 = vst [vmem:[%s609] sm:$0x3] %v619
            %630 = vst [vmem:[%s610] sm:$0x3] %v622
            %631 = vst [vmem:[%s611] sm:$0x3] %v625
            %632 = vst [vmem:[%s612] sm:$0x3] %v628
            %s633 = smov [#allocation29]
            %v634 = vld [vmem:[%s633] ss:$0 sm:$0xff]
            %s635 = smov [#allocation30]
            %v636 = vld [vmem:[%s635] ss:$0 sm:$0xff]
            %s637 = smov [#allocation20]
            %s638 = smov [#allocation21]
            %s639 = smov [#allocation22]
            %s640 = smov [#allocation23]
            %v641 = vld [vmem:[%s637] sm:$0x3]
            %v642 = vld [vmem:[%s638] sm:$0x3]
            %v643 = vld [vmem:[%s639] sm:$0x3]
            %v644 = vld [vmem:[%s640] sm:$0x3]
            %v645 = vmul.f32 %v634, %v641
            %v646 = vmul.f32 %v636, %v642
            %v647 = vsub.f32 %v645, %v646
            %v648 = vmul.f32 %v636, %v641
            %v649 = vmul.f32 %v634, %v642
            %v650 = vadd.f32 %v648, %v649
            %v651 = vmul.f32 %v634, %v643
            %v652 = vmul.f32 %v636, %v644
            %v653 = vsub.f32 %v651, %v652
            %v654 = vmul.f32 %v636, %v643
            %v655 = vmul.f32 %v634, %v644
            %v656 = vadd.f32 %v654, %v655
            %657 = vst [vmem:[%s637] sm:$0x3] %v647
            %658 = vst [vmem:[%s638] sm:$0x3] %v650
            %659 = vst [vmem:[%s639] sm:$0x3] %v653
            %660 = vst [vmem:[%s640] sm:$0x3] %v656
            %s661 = smov [#allocation20]
            %s662 = smov [#allocation27]
            %v663 = vlaneseq
            %v664 = vand.u32 %v663, 127
            %v665 = vmov %v664
            %v666 = vlaneseq
            %v667 = vshrl.u32 %v666, 7
            %v668 = vmov %v667
            %v669 = vld [vmem:[%s662] ss:$0 sm:$0xff]
            %v670 = vld [vmem:[%s661] sm:$0x3]
            %vm673 = vcmp.eq.s32.totalorder %v668, %v665
            %v674 = vsel %vm673, %v669, %v670
            %675 = vst [vmem:[%s661] sm:$0x3] %v674
            %s676 = smov [#allocation21]
            %v677 = vlaneseq
            %v678 = vand.u32 %v677, 127
            %v679 = vmov %v678
            %v680 = vlaneseq
            %v681 = vshrl.u32 %v680, 7
            %v682 = vmov %v681
            %v683 = vld [vmem:[%s676] sm:$0x3]
            %vm686 = vcmp.eq.s32.totalorder %v682, %v679
            %v687 = vsel %vm686, 0.0, %v683
            %688 = vst [vmem:[%s676] sm:$0x3] %v687
            %s689 = smov [#allocation22]
            %v690 = vlaneseq
            %v691 = vand.u32 %v690, 127
            %v692 = vmov %v691
            %v693 = vlaneseq
            %v694 = vshrl.u32 %v693, 7
            %v695 = vmov %v694
            %v696 = vld [vmem:[%s689] sm:$0x3]
            %vm699 = vcmp.eq.s32.totalorder %v695, %v692
            %v700 = vsel %vm699, 0.0, %v696
            %701 = vst [vmem:[%s689] sm:$0x3] %v700
            %s702 = smov [#allocation23]
            %s703 = smov [#allocation28]
            %v704 = vlaneseq
            %v705 = vand.u32 %v704, 127
            %v706 = vmov %v705
            %v707 = vlaneseq
            %v708 = vshrl.u32 %v707, 7
            %v709 = vmov %v708
            %v710 = vld [vmem:[%s703] ss:$0 sm:$0xff]
            %v711 = vld [vmem:[%s702] sm:$0x3]
            %vm714 = vcmp.eq.s32.totalorder %v709, %v706
            %v715 = vsel %vm714, %v710, %v711
            %716 = vst [vmem:[%s702] sm:$0x3] %v715
            %s717 = smov [#allocation20]
            %s718 = smov [#allocation21]
            %v719 = vld [vmem:[%s718] sm:$0x3]
            %720 = vrot.lane.b32.xlu0 %v719, 1
            %v721 = vpop.permute.xlu0 %720
            %v722 = vld [vmem:[%s717] sm:$0x3]
            %v723 = vld [vmem:[%s717] sm:$0x3]
            %724 = vrot.lane.b32.xlu0 %v723, 1
            %v725 = vpop.permute.xlu0 %724
            %v726 = vlaneseq
            %v727 = vand.u32 %v726, 127
            %vm728 = vcmp.eq.s32.totalorder %v727, 0
            %v729 = vsel %vm728, %v723, %v725
            %v730 = vlaneseq
            %v731 = vand.u32 %v730, 127
            %vm732 = vcmp.eq.s32.totalorder %v731, 1
            %v733 = vsel %vm732, %v721, %v729
            %v734 = vlaneseq
            %v735 = vand.u32 %v734, 127
            %vm736 = vcmp.ge.s32.totalorder %v735, 0
            %vm737 = vcmp.lt.s32.totalorder %v735, 2
            %vm738 = vmand %vm736, %vm737
            %v739 = vsel %vm738, %v733, 0.0
            %v740 = vld [vmem:[%s718] sm:$0x3]
            %741 = vrot.lane.b32.xlu0 %v740, 127
            %v742 = vpop.permute.xlu0 %741
            %v743 = vlaneseq
            %v744 = vand.u32 %v743, 127
            %vm745 = vcmp.eq.s32.totalorder %v744, 1
            %v746 = vsel %vm745, %v722, %v742
            %747 = vst [vmem:[%s717] sm:$0x3] %v739
            %748 = vst [vmem:[%s718] sm:$0x3] %v746
            %s749 = smov [#allocation22]
            %s750 = smov [#allocation23]
            %v751 = vld [vmem:[%s750] sm:$0x3]
            %752 = vrot.lane.b32.xlu0 %v751, 1
            %v753 = vpop.permute.xlu0 %752
            %v754 = vld [vmem:[%s749] sm:$0x3]
            %v755 = vld [vmem:[%s749] sm:$0x3]
            %756 = vrot.lane.b32.xlu0 %v755, 1
            %v757 = vpop.permute.xlu0 %756
            %v758 = vlaneseq
            %v759 = vand.u32 %v758, 127
            %vm760 = vcmp.eq.s32.totalorder %v759, 0
            %v761 = vsel %vm760, %v755, %v757
            %v762 = vlaneseq
            %v763 = vand.u32 %v762, 127
            %vm764 = vcmp.eq.s32.totalorder %v763, 1
            %v765 = vsel %vm764, %v753, %v761
            %v766 = vlaneseq
            %v767 = vand.u32 %v766, 127
            %vm768 = vcmp.ge.s32.totalorder %v767, 0
            %vm769 = vcmp.lt.s32.totalorder %v767, 2
            %vm770 = vmand %vm768, %vm769
            %v771 = vsel %vm770, %v765, 0.0
            %v772 = vld [vmem:[%s750] sm:$0x3]
            %773 = vrot.lane.b32.xlu0 %v772, 127
            %v774 = vpop.permute.xlu0 %773
            %v775 = vlaneseq
            %v776 = vand.u32 %v775, 127
            %vm777 = vcmp.eq.s32.totalorder %v776, 1
            %v778 = vsel %vm777, %v754, %v774
            %779 = vst [vmem:[%s749] sm:$0x3] %v771
            %780 = vst [vmem:[%s750] sm:$0x3] %v778
            %s781 = smov [#allocation20]
            %s782 = smov [#allocation22]
            %v783 = vld [vmem:[%s781] ss:$0 sm:$0xff]
            %s785 = scalar_lea.vmem %s781, 4294967295
            %v786 = vld [vmem:[%s785] sm:$0x2]
            %v787 = vlaneseq
            %v788 = vshrl.u32 %v787, 7
            %vm789 = vcmp.eq.s32.totalorder %v788, 0
            %v790 = vsel %vm789, %v783, %v786
            %s791 = scalar_lea.vmem %s781, 1
            %v792 = vld [vmem:[%s791] ss:$0 sm:$0xff]
            %793 = vst [vmem:[%s781] sm:$0x3] %v790
            %v794 = vld [vmem:[%s782] ss:$0 sm:$0xff]
            %s795 = scalar_lea.vmem %s781, 1
            %796 = vst [vmem:[%s795] sm:$0x1] %v794
            %s797 = scalar_lea.vmem %s782, 1
            %v798 = vld [vmem:[%s797] sm:$0x1]
            %v799 = vlaneseq
            %v800 = vshrl.u32 %v799, 7
            %vm801 = vcmp.eq.s32.totalorder %v800, 1
            %v802 = vsel %vm801, %v792, %v798
            %v803 = vld [vmem:[%s782] ss:$0 sm:$0xff]
            %804 = vst [vmem:[%s782] sm:$0x3] %v802
            %s805 = smov [#allocation21]
            %s806 = smov [#allocation23]
            %v807 = vld [vmem:[%s805] ss:$0 sm:$0xff]
            %s809 = scalar_lea.vmem %s805, 4294967295
            %v810 = vld [vmem:[%s809] sm:$0x2]
            %v811 = vlaneseq
            %v812 = vshrl.u32 %v811, 7
            %vm813 = vcmp.eq.s32.totalorder %v812, 0
            %v814 = vsel %vm813, %v807, %v810
            %s815 = scalar_lea.vmem %s805, 1
            %v816 = vld [vmem:[%s815] ss:$0 sm:$0xff]
            %817 = vst [vmem:[%s805] sm:$0x3] %v814
            %v818 = vld [vmem:[%s806] ss:$0 sm:$0xff]
            %s819 = scalar_lea.vmem %s805, 1
            %820 = vst [vmem:[%s819] sm:$0x1] %v818
            %s821 = scalar_lea.vmem %s806, 1
            %v822 = vld [vmem:[%s821] sm:$0x1]
            %v823 = vlaneseq
            %v824 = vshrl.u32 %v823, 7
            %vm825 = vcmp.eq.s32.totalorder %v824, 1
            %v826 = vsel %vm825, %v816, %v822
            %v827 = vld [vmem:[%s806] ss:$0 sm:$0xff]
            %828 = vst [vmem:[%s806] sm:$0x3] %v826
            %s829 = smov [#allocation31]
            %v830 = vld [vmem:[%s829] sm:$0xff]
            %s831 = smov [#allocation32]
            %v832 = vld [vmem:[%s831] sm:$0xff]
            %s833 = smov [#allocation12]
            %s834 = smov [#allocation14]
            %s835 = smov [#allocation16]
            %s836 = smov [#allocation18]
            %v837 = vld [vmem:[%s833] sm:$0x3]
            %v838 = vld [vmem:[%s834] sm:$0x3]
            %v839 = vld [vmem:[%s835] sm:$0x3]
            %v840 = vld [vmem:[%s836] sm:$0x3]
            %v841 = vmul.f32 %v830, %v837
            %v842 = vmul.f32 %v832, %v839
            %v843 = vsub.f32 %v841, %v842
            %v844 = vmul.f32 %v830, %v838
            %v845 = vmul.f32 %v832, %v840
            %v846 = vsub.f32 %v844, %v845
            %v847 = vmul.f32 %v832, %v837
            %v848 = vmul.f32 %v830, %v839
            %v849 = vadd.f32 %v847, %v848
            %v850 = vmul.f32 %v832, %v838
            %v851 = vmul.f32 %v830, %v840
            %v852 = vadd.f32 %v850, %v851
            %853 = vst [vmem:[%s833] sm:$0x3] %v843
            %854 = vst [vmem:[%s834] sm:$0x3] %v846
            %855 = vst [vmem:[%s835] sm:$0x3] %v849
            %856 = vst [vmem:[%s836] sm:$0x3] %v852
            %s857 = smov [#allocation12]
            %s858 = smov [#allocation16]
            %v859 = vld [vmem:[%s857] ss:$0 sm:$0xff]
            %s861 = scalar_lea.vmem %s857, 4294967295
            %v862 = vld [vmem:[%s861] sm:$0x2]
            %v863 = vlaneseq
            %v864 = vshrl.u32 %v863, 7
            %vm865 = vcmp.eq.s32.totalorder %v864, 0
            %v866 = vsel %vm865, %v859, %v862
            %s867 = scalar_lea.vmem %s857, 1
            %v868 = vld [vmem:[%s867] ss:$0 sm:$0xff]
            %869 = vst [vmem:[%s857] sm:$0x3] %v866
            %v870 = vld [vmem:[%s858] ss:$0 sm:$0xff]
            %s871 = scalar_lea.vmem %s857, 1
            %872 = vst [vmem:[%s871] sm:$0x1] %v870
            %s873 = scalar_lea.vmem %s858, 1
            %v874 = vld [vmem:[%s873] sm:$0x1]
            %v875 = vlaneseq
            %v876 = vshrl.u32 %v875, 7
            %vm877 = vcmp.eq.s32.totalorder %v876, 1
            %v878 = vsel %vm877, %v868, %v874
            %v879 = vld [vmem:[%s858] ss:$0 sm:$0xff]
            %880 = vst [vmem:[%s858] sm:$0x3] %v878
            %s881 = smov [#allocation14]
            %s882 = smov [#allocation18]
            %v883 = vld [vmem:[%s881] ss:$0 sm:$0xff]
            %s885 = scalar_lea.vmem %s881, 4294967295
            %v886 = vld [vmem:[%s885] sm:$0x2]
            %v887 = vlaneseq
            %v888 = vshrl.u32 %v887, 7
            %vm889 = vcmp.eq.s32.totalorder %v888, 0
            %v890 = vsel %vm889, %v883, %v886
            %s891 = scalar_lea.vmem %s881, 1
            %v892 = vld [vmem:[%s891] ss:$0 sm:$0xff]
            %893 = vst [vmem:[%s881] sm:$0x3] %v890
            %v894 = vld [vmem:[%s882] ss:$0 sm:$0xff]
            %s895 = scalar_lea.vmem %s881, 1
            %896 = vst [vmem:[%s895] sm:$0x1] %v894
            %s897 = scalar_lea.vmem %s882, 1
            %v898 = vld [vmem:[%s897] sm:$0x1]
            %v899 = vlaneseq
            %v900 = vshrl.u32 %v899, 7
            %vm901 = vcmp.eq.s32.totalorder %v900, 1
            %v902 = vsel %vm901, %v892, %v898
            %v903 = vld [vmem:[%s882] ss:$0 sm:$0xff]
            %904 = vst [vmem:[%s882] sm:$0x3] %v902
          $region152: #{custom-call.22} parent=144 // loop_footer
            %s465 = sadd.s32 1, %s461
          $region153: #{custom-call.22} parent=144 // loop_footer_branch
            %460 = sbr.rel target = $region149
          $region154: #{custom-call.22} parent=144 // loop_exit
            _
          %s905 = sadd.s32 %s363, 1
        $region145: #{custom-call.22} parent=139 // loop_footer
          _
        $region146: #{custom-call.22} parent=139 // loop_footer_branch
          %362 = sbr.rel target = $region142
        $region147: #{custom-call.22} parent=139 // loop_exit
          _
        %s908 = sand.u32 %s17, 7
        %s909 = scalar_lea.vmem [#allocation8], %s908
        %s910 = sand.u32 %s17, 7
        %s911 = scalar_lea.vmem [#allocation10], %s910
        %s912 = smov [#allocation20]
        %s913 = smov %s909
        %v914 = vlaneseq
        %v915 = vand.u32 %v914, 127
        %v916 = vmov %v915
        %v917 = vlaneseq
        %v918 = vshrl.u32 %v917, 7
        %v919 = vmov %v918
        %v920 = vld [vmem:[%s912] sm:$0x3]
        %vm923 = vcmp.eq.s32.totalorder %v919, %v916
        %v924 = vsel %vm923, %v920, 0.0
        %v925 = vrot.slane %v924, 4
        %v926 = vadd.f32 %v924, %v925
        %v927 = vrot.slane %v926, 2
        %v928 = vadd.f32 %v926, %v927
        %v929 = vrot.slane %v928, 1
        %v930 = vadd.f32 %v928, %v929
        %931 = vst [vmem:[%s913] sm:$0x1] %v930
        %s932 = smov [#allocation23]
        %s933 = smov %s911
        %v934 = vlaneseq
        %v935 = vand.u32 %v934, 127
        %v936 = vmov %v935
        %v937 = vlaneseq
        %v938 = vshrl.u32 %v937, 7
        %v939 = vmov %v938
        %v940 = vld [vmem:[%s932] sm:$0x3]
        %vm943 = vcmp.eq.s32.totalorder %v939, %v936
        %v944 = vsel %vm943, %v940, 0.0
        %v945 = vrot.slane %v944, 4
        %v946 = vadd.f32 %v944, %v945
        %v947 = vrot.slane %v946, 2
        %v948 = vadd.f32 %v946, %v947
        %v949 = vrot.slane %v948, 1
        %v950 = vadd.f32 %v948, %v949
        %951 = vst [vmem:[%s933] sm:$0x1] %v950
        %s953 = sshllo.u32 0, 2
        %v955 = vld [vmem:[#allocation8] sm:%s953]
        %s956 = sshllo.u32 0, 2
        %957 = vst [vmem:[%s279] sm:%s956] %v955
        %s959 = sshllo.u32 0, 2
        %v961 = vld [vmem:[#allocation10] sm:%s959]
        %s962 = sshllo.u32 0, 2
        %963 = vst [vmem:[%s285] sm:%s962] %v961
        %s965 = sshllo.u32 0, 2
        %v967 = vld [vmem:[#allocation12] sm:%s965]
        %s968 = sshllo.u32 0, 2
        %969 = vst [vmem:[%s289] sm:%s968] %v967
        %s971 = sshllo.u32 0, 2
        %v973 = vld [vmem:[#allocation14] sm:%s971]
        %s974 = sshllo.u32 0, 2
        %975 = vst [vmem:[%s293] sm:%s974] %v973
        %s977 = sshllo.u32 0, 2
        %v979 = vld [vmem:[#allocation16] sm:%s977]
        %s980 = sshllo.u32 0, 2
        %981 = vst [vmem:[%s297] sm:%s980] %v979
        %s983 = sshllo.u32 0, 2
        %v985 = vld [vmem:[#allocation18] sm:%s983]
        %s986 = sshllo.u32 0, 2
        %987 = vst [vmem:[%s301] sm:%s986] %v985
        %s988 = sand.u32 %s27, 1
        %s989 = sand.u32 %s27, 1
        %s990 = smul.addr %s989, 2
        %s991 = scalar_lea.vmem [#allocation9], %s990
        %s992 = sand.u32 %s55, 1
        %s993 = sand.u32 %s55, 1
        %s994 = smul.addr %s993, 2
        %s995 = scalar_lea.vmem [#allocation11], %s994
        %s996 = sand.u32 %s17, 1
        %s997 = sand.u32 %s17, 1
        %s998 = smul.addr %s997, 2
        %s999 = scalar_lea.vmem [#allocation13], %s998
        %s1000 = sand.u32 %s17, 1
        %s1001 = sand.u32 %s17, 1
        %s1002 = smul.addr %s1001, 2
        %s1003 = scalar_lea.vmem [#allocation15], %s1002
        %s1004 = sand.u32 %s17, 1
        %s1005 = sand.u32 %s17, 1
        %s1006 = smul.addr %s1005, 2
        %s1007 = scalar_lea.vmem [#allocation17], %s1006
        %s1008 = sand.u32 %s17, 1
        %s1009 = sand.u32 %s17, 1
        %s1010 = smul.addr %s1009, 2
        %s1011 = scalar_lea.vmem [#allocation19], %s1010
        // Predicated region
        $region155: #{custom-call.22} parent=139 // pred_check
          %p1012 = pneg %p37
        $region156: #{custom-call.22} parent=139 // pred_check_branch
          %1014 = sbr.rel (%p1012) target = $region158
        $region157: #{custom-call.22} parent=139 // pred_region
          %s1015 = sshrl.u32 %s17, 3
          %s1016 = smul.addr %s1015, 2
          %s1017 = scalar_lea.vmem %s4, %s1016
          // Predicated region
          $region159: #{custom-call.22} parent=157 // pred_check
            _
          $region160: #{custom-call.22} parent=157 // pred_check_branch
            %1019 = sbr.rel (0) target = $region162
          $region161: #{custom-call.22} parent=157 // pred_region
            // Predicated region
            $region163: #{custom-call.22} parent=161 // pred_check
              _
            $region164: #{custom-call.22} parent=161 // pred_check_branch
              %1021 = sbr.rel target = $region166
            $region165: #{custom-call.22} parent=161 // pred_region
              // Predicated region
              $region178: #{custom-call.22} parent=165 // pred_check
                _
              $region179: #{custom-call.22} parent=165 // pred_check_branch
                %1036 = sbr.rel (0) target = $region181
              $region180: #{custom-call.22} parent=165 // pred_region
                loop: start=0, step=1, limit=1
                $region182: #{custom-call.22} parent=180 // loop_pre_header
                  _
                $region183: #{custom-call.22} parent=180 // loop_header
                  %s1039 = sphi 0, %s1043
                  %p1040 = scmp.ge.s32.totalorder %s1039, 1
                  %s1044 = sphi %s991, %s991
                  %s1045 = sphi %s1017, %s1017
                $region184: #{custom-call.22} parent=180 // loop_header_branch
                  %1042 = sbr.rel (%p1040) target = $region188
                $region185: #{custom-call.22} parent=180 // loop_body
                  %v1046 = vld [vmem:[%s1044] sm:$0x3]
                  %1047 = vst [vmem:[%s1045] sm:$0x3] %v1046
                $region186: #{custom-call.22} parent=180 // loop_footer
                  %s1043 = sadd.s32 1, %s1039
                $region187: #{custom-call.22} parent=180 // loop_footer_branch
                  %1038 = sbr.rel target = $region183
                $region188: #{custom-call.22} parent=180 // loop_exit
                  _
              $region181: #{custom-call.22} parent=165 // pred_fallthru
                _
            $region166: #{custom-call.22} parent=161 // pred_fallthru
              _
            // Predicated region
            $region167: #{custom-call.22} parent=161 // pred_check
              _
            $region168: #{custom-call.22} parent=161 // pred_check_branch
              %1023 = sbr.rel (0) target = $region170
            $region169: #{custom-call.22} parent=161 // pred_region
              loop: start=0, step=1, limit=1
              $region171: #{custom-call.22} parent=169 // loop_pre_header
                _
              $region172: #{custom-call.22} parent=169 // loop_header
                %s1026 = sphi 0, %s1030
                %p1027 = scmp.ge.s32.totalorder %s1026, 1
                %s1031 = sphi %s991, %s991
                %s1032 = sphi %s1017, %s1017
              $region173: #{custom-call.22} parent=169 // loop_header_branch
                %1029 = sbr.rel (%p1027) target = $region177
              $region174: #{custom-call.22} parent=169 // loop_body
                %v1033 = vld [vmem:[%s1031] sm:$0x3]
                %1034 = vst [vmem:[%s1032] sm:$0x3] %v1033
              $region175: #{custom-call.22} parent=169 // loop_footer
                %s1030 = sadd.s32 1, %s1026
              $region176: #{custom-call.22} parent=169 // loop_footer_branch
                %1025 = sbr.rel target = $region172
              $region177: #{custom-call.22} parent=169 // loop_exit
                _
            $region170: #{custom-call.22} parent=161 // pred_fallthru
              _
          $region162: #{custom-call.22} parent=157 // pred_fallthru
            _
          %1048 = vnop
        $region158: #{custom-call.22} parent=139 // pred_fallthru
          _
        // Predicated region
        $region189: #{custom-call.22} parent=139 // pred_check
          %p1049 = pneg %p65
        $region190: #{custom-call.22} parent=139 // pred_check_branch
          %1051 = sbr.rel (%p1049) target = $region192
        $region191: #{custom-call.22} parent=139 // pred_region
          %s1052 = sshrl.u32 %s17, 3
          %s1053 = smul.addr %s1052, 2
          %s1054 = scalar_lea.vmem %s5, %s1053
          // Predicated region
          $region193: #{custom-call.22} parent=191 // pred_check
            _
          $region194: #{custom-call.22} parent=191 // pred_check_branch
            %1056 = sbr.rel (0) target = $region196
          $region195: #{custom-call.22} parent=191 // pred_region
            // Predicated region
            $region197: #{custom-call.22} parent=195 // pred_check
              _
            $region198: #{custom-call.22} parent=195 // pred_check_branch
              %1058 = sbr.rel target = $region200
            $region199: #{custom-call.22} parent=195 // pred_region
              // Predicated region
              $region212: #{custom-call.22} parent=199 // pred_check
                _
              $region213: #{custom-call.22} parent=199 // pred_check_branch
                %1073 = sbr.rel (0) target = $region215
              $region214: #{custom-call.22} parent=199 // pred_region
                loop: start=0, step=1, limit=1
                $region216: #{custom-call.22} parent=214 // loop_pre_header
                  _
                $region217: #{custom-call.22} parent=214 // loop_header
                  %s1076 = sphi 0, %s1080
                  %p1077 = scmp.ge.s32.totalorder %s1076, 1
                  %s1081 = sphi %s995, %s995
                  %s1082 = sphi %s1054, %s1054
                $region218: #{custom-call.22} parent=214 // loop_header_branch
                  %1079 = sbr.rel (%p1077) target = $region222
                $region219: #{custom-call.22} parent=214 // loop_body
                  %v1083 = vld [vmem:[%s1081] sm:$0x3]
                  %1084 = vst [vmem:[%s1082] sm:$0x3] %v1083
                $region220: #{custom-call.22} parent=214 // loop_footer
                  %s1080 = sadd.s32 1, %s1076
                $region221: #{custom-call.22} parent=214 // loop_footer_branch
                  %1075 = sbr.rel target = $region217
                $region222: #{custom-call.22} parent=214 // loop_exit
                  _
              $region215: #{custom-call.22} parent=199 // pred_fallthru
                _
            $region200: #{custom-call.22} parent=195 // pred_fallthru
              _
            // Predicated region
            $region201: #{custom-call.22} parent=195 // pred_check
              _
            $region202: #{custom-call.22} parent=195 // pred_check_branch
              %1060 = sbr.rel (0) target = $region204
            $region203: #{custom-call.22} parent=195 // pred_region
              loop: start=0, step=1, limit=1
              $region205: #{custom-call.22} parent=203 // loop_pre_header
                _
              $region206: #{custom-call.22} parent=203 // loop_header
                %s1063 = sphi 0, %s1067
                %p1064 = scmp.ge.s32.totalorder %s1063, 1
                %s1068 = sphi %s995, %s995
                %s1069 = sphi %s1054, %s1054
              $region207: #{custom-call.22} parent=203 // loop_header_branch
                %1066 = sbr.rel (%p1064) target = $region211
              $region208: #{custom-call.22} parent=203 // loop_body
                %v1070 = vld [vmem:[%s1068] sm:$0x3]
                %1071 = vst [vmem:[%s1069] sm:$0x3] %v1070
              $region209: #{custom-call.22} parent=203 // loop_footer
                %s1067 = sadd.s32 1, %s1063
              $region210: #{custom-call.22} parent=203 // loop_footer_branch
                %1062 = sbr.rel target = $region206
              $region211: #{custom-call.22} parent=203 // loop_exit
                _
            $region204: #{custom-call.22} parent=195 // pred_fallthru
              _
          $region196: #{custom-call.22} parent=191 // pred_fallthru
            _
          %1085 = vnop
        $region192: #{custom-call.22} parent=139 // pred_fallthru
          _
        %s1086 = smul.addr %s17, 2
        %s1087 = scalar_lea.vmem %s6, %s1086
        // Predicated region
        $region223: #{custom-call.22} parent=139 // pred_check
          _
        $region224: #{custom-call.22} parent=139 // pred_check_branch
          %1089 = sbr.rel (0) target = $region226
        $region225: #{custom-call.22} parent=139 // pred_region
          // Predicated region
          $region227: #{custom-call.22} parent=225 // pred_check
            _
          $region228: #{custom-call.22} parent=225 // pred_check_branch
            %1091 = sbr.rel target = $region230
          $region229: #{custom-call.22} parent=225 // pred_region
            // Predicated region
            $region242: #{custom-call.22} parent=229 // pred_check
              _
            $region243: #{custom-call.22} parent=229 // pred_check_branch
              %1106 = sbr.rel (0) target = $region245
            $region244: #{custom-call.22} parent=229 // pred_region
              loop: start=0, step=1, limit=1
              $region246: #{custom-call.22} parent=244 // loop_pre_header
                _
              $region247: #{custom-call.22} parent=244 // loop_header
                %s1109 = sphi 0, %s1113
                %p1110 = scmp.ge.s32.totalorder %s1109, 1
                %s1114 = sphi %s999, %s999
                %s1115 = sphi %s1087, %s1087
              $region248: #{custom-call.22} parent=244 // loop_header_branch
                %1112 = sbr.rel (%p1110) target = $region252
              $region249: #{custom-call.22} parent=244 // loop_body
                %v1116 = vld [vmem:[%s1114] sm:$0x3]
                %1117 = vst [vmem:[%s1115] sm:$0x3] %v1116
              $region250: #{custom-call.22} parent=244 // loop_footer
                %s1113 = sadd.s32 1, %s1109
              $region251: #{custom-call.22} parent=244 // loop_footer_branch
                %1108 = sbr.rel target = $region247
              $region252: #{custom-call.22} parent=244 // loop_exit
                _
            $region245: #{custom-call.22} parent=229 // pred_fallthru
              _
          $region230: #{custom-call.22} parent=225 // pred_fallthru
            _
          // Predicated region
          $region231: #{custom-call.22} parent=225 // pred_check
            _
          $region232: #{custom-call.22} parent=225 // pred_check_branch
            %1093 = sbr.rel (0) target = $region234
          $region233: #{custom-call.22} parent=225 // pred_region
            loop: start=0, step=1, limit=1
            $region235: #{custom-call.22} parent=233 // loop_pre_header
              _
            $region236: #{custom-call.22} parent=233 // loop_header
              %s1096 = sphi 0, %s1100
              %p1097 = scmp.ge.s32.totalorder %s1096, 1
              %s1101 = sphi %s999, %s999
              %s1102 = sphi %s1087, %s1087
            $region237: #{custom-call.22} parent=233 // loop_header_branch
              %1099 = sbr.rel (%p1097) target = $region241
            $region238: #{custom-call.22} parent=233 // loop_body
              %v1103 = vld [vmem:[%s1101] sm:$0x3]
              %1104 = vst [vmem:[%s1102] sm:$0x3] %v1103
            $region239: #{custom-call.22} parent=233 // loop_footer
              %s1100 = sadd.s32 1, %s1096
            $region240: #{custom-call.22} parent=233 // loop_footer_branch
              %1095 = sbr.rel target = $region236
            $region241: #{custom-call.22} parent=233 // loop_exit
              _
          $region234: #{custom-call.22} parent=225 // pred_fallthru
            _
        $region226: #{custom-call.22} parent=139 // pred_fallthru
          _
        %1118 = vnop
        %s1119 = smul.addr %s17, 2
        %s1120 = scalar_lea.vmem %s7, %s1119
        // Predicated region
        $region253: #{custom-call.22} parent=139 // pred_check
          _
        $region254: #{custom-call.22} parent=139 // pred_check_branch
          %1122 = sbr.rel (0) target = $region256
        $region255: #{custom-call.22} parent=139 // pred_region
          // Predicated region
          $region257: #{custom-call.22} parent=255 // pred_check
            _
          $region258: #{custom-call.22} parent=255 // pred_check_branch
            %1124 = sbr.rel target = $region260
          $region259: #{custom-call.22} parent=255 // pred_region
            // Predicated region
            $region272: #{custom-call.22} parent=259 // pred_check
              _
            $region273: #{custom-call.22} parent=259 // pred_check_branch
              %1139 = sbr.rel (0) target = $region275
            $region274: #{custom-call.22} parent=259 // pred_region
              loop: start=0, step=1, limit=1
              $region276: #{custom-call.22} parent=274 // loop_pre_header
                _
              $region277: #{custom-call.22} parent=274 // loop_header
                %s1142 = sphi 0, %s1146
                %p1143 = scmp.ge.s32.totalorder %s1142, 1
                %s1147 = sphi %s1003, %s1003
                %s1148 = sphi %s1120, %s1120
              $region278: #{custom-call.22} parent=274 // loop_header_branch
                %1145 = sbr.rel (%p1143) target = $region282
              $region279: #{custom-call.22} parent=274 // loop_body
                %v1149 = vld [vmem:[%s1147] sm:$0x3]
                %1150 = vst [vmem:[%s1148] sm:$0x3] %v1149
              $region280: #{custom-call.22} parent=274 // loop_footer
                %s1146 = sadd.s32 1, %s1142
              $region281: #{custom-call.22} parent=274 // loop_footer_branch
                %1141 = sbr.rel target = $region277
              $region282: #{custom-call.22} parent=274 // loop_exit
                _
            $region275: #{custom-call.22} parent=259 // pred_fallthru
              _
          $region260: #{custom-call.22} parent=255 // pred_fallthru
            _
          // Predicated region
          $region261: #{custom-call.22} parent=255 // pred_check
            _
          $region262: #{custom-call.22} parent=255 // pred_check_branch
            %1126 = sbr.rel (0) target = $region264
          $region263: #{custom-call.22} parent=255 // pred_region
            loop: start=0, step=1, limit=1
            $region265: #{custom-call.22} parent=263 // loop_pre_header
              _
            $region266: #{custom-call.22} parent=263 // loop_header
              %s1129 = sphi 0, %s1133
              %p1130 = scmp.ge.s32.totalorder %s1129, 1
              %s1134 = sphi %s1003, %s1003
              %s1135 = sphi %s1120, %s1120
            $region267: #{custom-call.22} parent=263 // loop_header_branch
              %1132 = sbr.rel (%p1130) target = $region271
            $region268: #{custom-call.22} parent=263 // loop_body
              %v1136 = vld [vmem:[%s1134] sm:$0x3]
              %1137 = vst [vmem:[%s1135] sm:$0x3] %v1136
            $region269: #{custom-call.22} parent=263 // loop_footer
              %s1133 = sadd.s32 1, %s1129
            $region270: #{custom-call.22} parent=263 // loop_footer_branch
              %1128 = sbr.rel target = $region266
            $region271: #{custom-call.22} parent=263 // loop_exit
              _
          $region264: #{custom-call.22} parent=255 // pred_fallthru
            _
        $region256: #{custom-call.22} parent=139 // pred_fallthru
          _
        %1151 = vnop
        %s1152 = smul.addr %s17, 2
        %s1153 = scalar_lea.vmem %s8, %s1152
        // Predicated region
        $region283: #{custom-call.22} parent=139 // pred_check
          _
        $region284: #{custom-call.22} parent=139 // pred_check_branch
          %1155 = sbr.rel (0) target = $region286
        $region285: #{custom-call.22} parent=139 // pred_region
          // Predicated region
          $region287: #{custom-call.22} parent=285 // pred_check
            _
          $region288: #{custom-call.22} parent=285 // pred_check_branch
            %1157 = sbr.rel target = $region290
          $region289: #{custom-call.22} parent=285 // pred_region
            // Predicated region
            $region302: #{custom-call.22} parent=289 // pred_check
              _
            $region303: #{custom-call.22} parent=289 // pred_check_branch
              %1172 = sbr.rel (0) target = $region305
            $region304: #{custom-call.22} parent=289 // pred_region
              loop: start=0, step=1, limit=1
              $region306: #{custom-call.22} parent=304 // loop_pre_header
                _
              $region307: #{custom-call.22} parent=304 // loop_header
                %s1175 = sphi 0, %s1179
                %p1176 = scmp.ge.s32.totalorder %s1175, 1
                %s1180 = sphi %s1007, %s1007
                %s1181 = sphi %s1153, %s1153
              $region308: #{custom-call.22} parent=304 // loop_header_branch
                %1178 = sbr.rel (%p1176) target = $region312
              $region309: #{custom-call.22} parent=304 // loop_body
                %v1182 = vld [vmem:[%s1180] sm:$0x3]
                %1183 = vst [vmem:[%s1181] sm:$0x3] %v1182
              $region310: #{custom-call.22} parent=304 // loop_footer
                %s1179 = sadd.s32 1, %s1175
              $region311: #{custom-call.22} parent=304 // loop_footer_branch
                %1174 = sbr.rel target = $region307
              $region312: #{custom-call.22} parent=304 // loop_exit
                _
            $region305: #{custom-call.22} parent=289 // pred_fallthru
              _
          $region290: #{custom-call.22} parent=285 // pred_fallthru
            _
          // Predicated region
          $region291: #{custom-call.22} parent=285 // pred_check
            _
          $region292: #{custom-call.22} parent=285 // pred_check_branch
            %1159 = sbr.rel (0) target = $region294
          $region293: #{custom-call.22} parent=285 // pred_region
            loop: start=0, step=1, limit=1
            $region295: #{custom-call.22} parent=293 // loop_pre_header
              _
            $region296: #{custom-call.22} parent=293 // loop_header
              %s1162 = sphi 0, %s1166
              %p1163 = scmp.ge.s32.totalorder %s1162, 1
              %s1167 = sphi %s1007, %s1007
              %s1168 = sphi %s1153, %s1153
            $region297: #{custom-call.22} parent=293 // loop_header_branch
              %1165 = sbr.rel (%p1163) target = $region301
            $region298: #{custom-call.22} parent=293 // loop_body
              %v1169 = vld [vmem:[%s1167] sm:$0x3]
              %1170 = vst [vmem:[%s1168] sm:$0x3] %v1169
            $region299: #{custom-call.22} parent=293 // loop_footer
              %s1166 = sadd.s32 1, %s1162
            $region300: #{custom-call.22} parent=293 // loop_footer_branch
              %1161 = sbr.rel target = $region296
            $region301: #{custom-call.22} parent=293 // loop_exit
              _
          $region294: #{custom-call.22} parent=285 // pred_fallthru
            _
        $region286: #{custom-call.22} parent=139 // pred_fallthru
          _
        %1184 = vnop
        %s1185 = smul.addr %s17, 2
        %s1186 = scalar_lea.vmem %s9, %s1185
        // Predicated region
        $region313: #{custom-call.22} parent=139 // pred_check
          _
        $region314: #{custom-call.22} parent=139 // pred_check_branch
          %1188 = sbr.rel (0) target = $region316
        $region315: #{custom-call.22} parent=139 // pred_region
          // Predicated region
          $region317: #{custom-call.22} parent=315 // pred_check
            _
          $region318: #{custom-call.22} parent=315 // pred_check_branch
            %1190 = sbr.rel target = $region320
          $region319: #{custom-call.22} parent=315 // pred_region
            // Predicated region
            $region332: #{custom-call.22} parent=319 // pred_check
              _
            $region333: #{custom-call.22} parent=319 // pred_check_branch
              %1205 = sbr.rel (0) target = $region335
            $region334: #{custom-call.22} parent=319 // pred_region
              loop: start=0, step=1, limit=1
              $region336: #{custom-call.22} parent=334 // loop_pre_header
                _
              $region337: #{custom-call.22} parent=334 // loop_header
                %s1208 = sphi 0, %s1212
                %p1209 = scmp.ge.s32.totalorder %s1208, 1
                %s1213 = sphi %s1011, %s1011
                %s1214 = sphi %s1186, %s1186
              $region338: #{custom-call.22} parent=334 // loop_header_branch
                %1211 = sbr.rel (%p1209) target = $region342
              $region339: #{custom-call.22} parent=334 // loop_body
                %v1215 = vld [vmem:[%s1213] sm:$0x3]
                %1216 = vst [vmem:[%s1214] sm:$0x3] %v1215
              $region340: #{custom-call.22} parent=334 // loop_footer
                %s1212 = sadd.s32 1, %s1208
              $region341: #{custom-call.22} parent=334 // loop_footer_branch
                %1207 = sbr.rel target = $region337
              $region342: #{custom-call.22} parent=334 // loop_exit
                _
            $region335: #{custom-call.22} parent=319 // pred_fallthru
              _
          $region320: #{custom-call.22} parent=315 // pred_fallthru
            _
          // Predicated region
          $region321: #{custom-call.22} parent=315 // pred_check
            _
          $region322: #{custom-call.22} parent=315 // pred_check_branch
            %1192 = sbr.rel (0) target = $region324
          $region323: #{custom-call.22} parent=315 // pred_region
            loop: start=0, step=1, limit=1
            $region325: #{custom-call.22} parent=323 // loop_pre_header
              _
            $region326: #{custom-call.22} parent=323 // loop_header
              %s1195 = sphi 0, %s1199
              %p1196 = scmp.ge.s32.totalorder %s1195, 1
              %s1200 = sphi %s1011, %s1011
              %s1201 = sphi %s1186, %s1186
            $region327: #{custom-call.22} parent=323 // loop_header_branch
              %1198 = sbr.rel (%p1196) target = $region331
            $region328: #{custom-call.22} parent=323 // loop_body
              %v1202 = vld [vmem:[%s1200] sm:$0x3]
              %1203 = vst [vmem:[%s1201] sm:$0x3] %v1202
            $region329: #{custom-call.22} parent=323 // loop_footer
              %s1199 = sadd.s32 1, %s1195
            $region330: #{custom-call.22} parent=323 // loop_footer_branch
              %1194 = sbr.rel target = $region326
            $region331: #{custom-call.22} parent=323 // loop_exit
              _
          $region324: #{custom-call.22} parent=315 // pred_fallthru
            _
        $region316: #{custom-call.22} parent=139 // pred_fallthru
          _
        %1217 = vnop
      $region140: #{custom-call.22} parent=5 // pred_fallthru
        _
      %p1218 = scmp.le.s32.totalorder 2, %s12
      // Predicated region
      $region343: #{custom-call.22} parent=5 // pred_check
        %p1219 = pneg %p1218
      $region344: #{custom-call.22} parent=5 // pred_check_branch
        %1221 = sbr.rel (%p1219) target = $region346
      $region345: #{custom-call.22} parent=5 // pred_region
        %s1222 = ssub.s32 %s12, 2
        // Predicated region
        $region347: #{custom-call.22} parent=345 // pred_check
          %p1223 = pneg %p43
        $region348: #{custom-call.22} parent=345 // pred_check_branch
          %1225 = sbr.rel (%p1223) target = $region350
        $region349: #{custom-call.22} parent=345 // pred_region
          %s1226 = sand.u32 %s28, 1
          %s1227 = sand.u32 %s28, 1
          %s1228 = smul.addr %s1227, 2
          %s1229 = scalar_lea.vmem [#allocation9], %s1228
        $region350: #{custom-call.22} parent=345 // pred_fallthru
          _
        // Predicated region
        $region351: #{custom-call.22} parent=345 // pred_check
          %p1230 = pneg %p71
        $region352: #{custom-call.22} parent=345 // pred_check_branch
          %1232 = sbr.rel (%p1230) target = $region354
        $region353: #{custom-call.22} parent=345 // pred_region
          %s1233 = sand.u32 %s56, 1
          %s1234 = sand.u32 %s56, 1
          %s1235 = smul.addr %s1234, 2
          %s1236 = scalar_lea.vmem [#allocation11], %s1235
        $region354: #{custom-call.22} parent=345 // pred_fallthru
          _
        %s1237 = sand.u32 %s18, 1
        %s1238 = sand.u32 %s18, 1
        %s1239 = smul.addr %s1238, 2
        %s1240 = scalar_lea.vmem [#allocation13], %s1239
        %s1241 = sand.u32 %s18, 1
        %s1242 = sand.u32 %s18, 1
        %s1243 = smul.addr %s1242, 2
        %s1244 = scalar_lea.vmem [#allocation15], %s1243
        %s1245 = sand.u32 %s18, 1
        %s1246 = sand.u32 %s18, 1
        %s1247 = smul.addr %s1246, 2
        %s1248 = scalar_lea.vmem [#allocation17], %s1247
        %s1249 = sand.u32 %s18, 1
        %s1250 = sand.u32 %s18, 1
        %s1251 = smul.addr %s1250, 2
        %s1252 = scalar_lea.vmem [#allocation19], %s1251
      $region346: #{custom-call.22} parent=5 // pred_fallthru
        _
    $region6: #{custom-call.22} parent=1 // loop_footer
      %s16 = sadd.s32 1, %s12
    $region7: #{custom-call.22} parent=1 // loop_footer_branch
      %11 = sbr.rel target = $region3
    $region8: #{custom-call.22} parent=1 // loop_exit
      _

// kernel: reverse
$region0: #{reverse}
  %s0 = inlined_call_operand.vmem [shape: f32[2,4], index: 0, kind: input, shape index: {}]
  %s1 = inlined_call_operand.vmem [shape: f32[2,4], index: 1, kind: output, shape index: {}]
  %v2 = vlaneseq
  %v3 = vsub.s32 3, %v2
  %4 = vset.pattern.permute.xlu0 %v3
  $region1: #{reverse} parent=0
    #allocation0 [shape = 'u8[4096]{0}', space=vmem, size = 0x1000, scoped, tag = 'operand span for operand 0']
    #allocation1 [shape = 'u8[1024]{0}', space=vmem, size = 0x400, scoped, tag = 'packed  for operand 0']
    #allocation2 [shape = 'u8[4096]{0}', space=vmem, size = 0x1000, scoped, tag = 'operand span for operand 1']
    #allocation3 [shape = 'u8[1024]{0}', space=vmem, size = 0x400, scoped, tag = 'packed  for operand 1']
    // Predicated region
    $region2: #{reverse} parent=1 // pred_check
      _
    $region3: #{reverse} parent=1 // pred_check_branch
      %6 = sbr.rel (0) target = $region5
    $region4: #{reverse} parent=1 // pred_region
      // Predicated region
      $region6: #{reverse} parent=4 // pred_check
        _
      $region7: #{reverse} parent=4 // pred_check_branch
        %8 = sbr.rel target = $region9
      $region8: #{reverse} parent=4 // pred_region
        // Predicated region
        $region21: #{reverse} parent=8 // pred_check
          _
        $region22: #{reverse} parent=8 // pred_check_branch
          %23 = sbr.rel (0) target = $region24
        $region23: #{reverse} parent=8 // pred_region
          loop: start=0, step=1, limit=1
          $region25: #{reverse} parent=23 // loop_pre_header
            _
          $region26: #{reverse} parent=23 // loop_header
            %s26 = sphi 0, %s30
            %p27 = scmp.ge.s32.totalorder %s26, 1
            %s31 = sphi %s0, %s0
            %s32 = sphi [#allocation1], [#allocation1]
          $region27: #{reverse} parent=23 // loop_header_branch
            %29 = sbr.rel (%p27) target = $region31
          $region28: #{reverse} parent=23 // loop_body
            %v33 = vld [vmem:[%s31] sm:$0x3]
            %34 = vst [vmem:[%s32] sm:$0x3] %v33
          $region29: #{reverse} parent=23 // loop_footer
            %s30 = sadd.s32 1, %s26
          $region30: #{reverse} parent=23 // loop_footer_branch
            %25 = sbr.rel target = $region26
          $region31: #{reverse} parent=23 // loop_exit
            _
        $region24: #{reverse} parent=8 // pred_fallthru
          _
      $region9: #{reverse} parent=4 // pred_fallthru
        _
      // Predicated region
      $region10: #{reverse} parent=4 // pred_check
        _
      $region11: #{reverse} parent=4 // pred_check_branch
        %10 = sbr.rel (0) target = $region13
      $region12: #{reverse} parent=4 // pred_region
        loop: start=0, step=1, limit=1
        $region14: #{reverse} parent=12 // loop_pre_header
          _
        $region15: #{reverse} parent=12 // loop_header
          %s13 = sphi 0, %s17
          %p14 = scmp.ge.s32.totalorder %s13, 1
          %s18 = sphi %s0, %s0
          %s19 = sphi [#allocation1], [#allocation1]
        $region16: #{reverse} parent=12 // loop_header_branch
          %16 = sbr.rel (%p14) target = $region20
        $region17: #{reverse} parent=12 // loop_body
          %v20 = vld [vmem:[%s18] sm:$0x3]
          %21 = vst [vmem:[%s19] sm:$0x3] %v20
        $region18: #{reverse} parent=12 // loop_footer
          %s17 = sadd.s32 1, %s13
        $region19: #{reverse} parent=12 // loop_footer_branch
          %12 = sbr.rel target = $region15
        $region20: #{reverse} parent=12 // loop_exit
          _
      $region13: #{reverse} parent=4 // pred_fallthru
        _
    $region5: #{reverse} parent=1 // pred_fallthru
      _
    %35 = vnop
    %s37 = sshllo.u32 0, 2
    %v38 = vld [vmem:[#allocation1] sm:%s37]
    %39 = vst [vmem:[#allocation0] sm:%s37] %v38
    %v40 = vld [vmem:[#allocation0] sm:$0xff]
    %41 = vperm.xlu0 %4, %v40
    %v42 = vpop.permute.xlu0 %41
    %43 = vst [vmem:[#allocation2] sm:$0xff] %v42
    %s45 = sshllo.u32 0, 2
    %v47 = vld [vmem:[#allocation2] sm:%s45]
    %s48 = sshllo.u32 0, 2
    %49 = vst [vmem:[#allocation3] sm:%s48] %v47
    // Predicated region
    $region32: #{reverse} parent=1 // pred_check
      _
    $region33: #{reverse} parent=1 // pred_check_branch
      %51 = sbr.rel (0) target = $region35
    $region34: #{reverse} parent=1 // pred_region
      // Predicated region
      $region36: #{reverse} parent=34 // pred_check
        _
      $region37: #{reverse} parent=34 // pred_check_branch
        %53 = sbr.rel target = $region39
      $region38: #{reverse} parent=34 // pred_region
        // Predicated region
        $region51: #{reverse} parent=38 // pred_check
          _
        $region52: #{reverse} parent=38 // pred_check_branch
          %68 = sbr.rel (0) target = $region54
        $region53: #{reverse} parent=38 // pred_region
          loop: start=0, step=1, limit=1
          $region55: #{reverse} parent=53 // loop_pre_header
            _
          $region56: #{reverse} parent=53 // loop_header
            %s71 = sphi 0, %s75
            %p72 = scmp.ge.s32.totalorder %s71, 1
            %s76 = sphi [#allocation3], [#allocation3]
            %s77 = sphi %s1, %s1
          $region57: #{reverse} parent=53 // loop_header_branch
            %74 = sbr.rel (%p72) target = $region61
          $region58: #{reverse} parent=53 // loop_body
            %v78 = vld [vmem:[%s76] sm:$0x3]
            %79 = vst [vmem:[%s77] sm:$0x3] %v78
          $region59: #{reverse} parent=53 // loop_footer
            %s75 = sadd.s32 1, %s71
          $region60: #{reverse} parent=53 // loop_footer_branch
            %70 = sbr.rel target = $region56
          $region61: #{reverse} parent=53 // loop_exit
            _
        $region54: #{reverse} parent=38 // pred_fallthru
          _
      $region39: #{reverse} parent=34 // pred_fallthru
        _
      // Predicated region
      $region40: #{reverse} parent=34 // pred_check
        _
      $region41: #{reverse} parent=34 // pred_check_branch
        %55 = sbr.rel (0) target = $region43
      $region42: #{reverse} parent=34 // pred_region
        loop: start=0, step=1, limit=1
        $region44: #{reverse} parent=42 // loop_pre_header
          _
        $region45: #{reverse} parent=42 // loop_header
          %s58 = sphi 0, %s62
          %p59 = scmp.ge.s32.totalorder %s58, 1
          %s63 = sphi [#allocation3], [#allocation3]
          %s64 = sphi %s1, %s1
        $region46: #{reverse} parent=42 // loop_header_branch
          %61 = sbr.rel (%p59) target = $region50
        $region47: #{reverse} parent=42 // loop_body
          %v65 = vld [vmem:[%s63] sm:$0x3]
          %66 = vst [vmem:[%s64] sm:$0x3] %v65
        $region48: #{reverse} parent=42 // loop_footer
          %s62 = sadd.s32 1, %s58
        $region49: #{reverse} parent=42 // loop_footer_branch
          %57 = sbr.rel target = $region45
        $region50: #{reverse} parent=42 // loop_exit
          _
      $region43: #{reverse} parent=34 // pred_fallthru
        _
    $region35: #{reverse} parent=1 // pred_fallthru
      _
    %80 = vnop

// kernel: _lambda_.4
$region0: #{_lambda_.4}
  #allocation0 [shape = 'u32[]', space=smem, size = 0x4, offset = 0x4, fixed_abs, tag = 'smem constant byte address 0x4 - core index']
  #allocation1 [shape = 'u32[144,128]{1,0:T(1,128)}', space=vmem, size = 0x12000, scoped, tag = 'internal scratch']
  %s0 = inlined_call_operand.vmem [shape: f32[2,16,16], index: 0, kind: input, shape index: {}]
  %s1 = inlined_call_operand.vmem [shape: f32[8,16], index: 1, kind: input, shape index: {}]
  %s2 = inlined_call_operand.vmem [shape: f32[16,8], index: 2, kind: input, shape index: {}]
  %s3 = inlined_call_operand.vmem [shape: f32[4,1], index: 3, kind: input, shape index: {}]
  %s4 = inlined_call_operand.vmem [shape: f32[4,1], index: 4, kind: input, shape index: {}]
  %s5 = inlined_call_operand.vmem [shape: f32[2,4,8,8], index: 5, kind: output, shape index: {}]
  %s6 = sld [smem:[#allocation0]]
  $region53: #{_lambda_.4} parent=0
    _
  %s8 = ssub.s32 1, %s6
  %s9 = scalar_select 0, %s8, %s6
  loop: start=0, step=1, limit=4
  $region2: #{_lambda_.4} parent=0 // loop_pre_header
    _
  $region3: #{_lambda_.4} parent=0 // loop_header
    %s11 = sphi 0, %s15
    %p12 = scmp.ge.s32.totalorder %s11, 4
    %s21 = sphi 0, %s23
    %s24 = sphi 0, %s21
    %s25 = sphi 0, %s24
    %s41 = sphi 0, %s25
    %s45 = sphi 0, %s45
    %s47 = sphi 0, %s45
    %s48 = sphi 0, %s47
    %s62 = sphi 0, %s48
    %s66 = sphi 0, %s66
    %s68 = sphi 0, %s66
    %s69 = sphi 0, %s68
    %s83 = sphi 0, %s69
    %s87 = sphi 0, %s87
    %s89 = sphi 0, %s87
    %s90 = sphi 0, %s89
    %s104 = sphi 0, %s90
    %s108 = sphi 0, %s108
    %s110 = sphi 0, %s108
    %s111 = sphi 0, %s110
    %s125 = sphi 0, %s111
    %s131 = sphi 0, %s133
    %s134 = sphi 0, %s131
    %s135 = sphi 0, %s134
    %s151 = sphi 0, %s135
  $region4: #{_lambda_.4} parent=0 // loop_header_branch
    %14 = sbr.rel (%p12) target = $region8
  $region5: #{_lambda_.4} parent=0 // loop_body
    %s16 = ssub.s32 %s11, 1
    %s17 = ssub.s32 %s11, 2
    %s18 = sadd.s32 %s11, 1
    %s19 = ssub.s32 %s11, %s18
    %p20 = scmp.eq.s32.totalorder %s19, 0
    %s22 = sadd.s32 %s21, 1
    %s23 = scalar_select %p20, %s21, %s22
    %p26 = pneg %p20
    %p27 = scmp.eq.s32.totalorder %s11, 1
    %p28 = por %p26, %p27
    %p29 = scmp.ne.s32.totalorder %s21, %s24
    %p30 = scmp.eq.s32.totalorder %s11, 0
    %p31 = por %p29, %p30
    %p32 = scmp.ne.s32.totalorder %s21, %s24
    %p33 = scmp.eq.s32.totalorder %s16, 1
    %p34 = por %p32, %p33
    %p35 = scmp.ne.s32.totalorder %s24, %s25
    %p36 = scmp.eq.s32.totalorder %s16, 0
    %p37 = por %p35, %p36
    %p38 = scmp.ne.s32.totalorder %s24, %s25
    %p39 = scmp.eq.s32.totalorder %s17, 1
    %p40 = por %p38, %p39
    %p42 = scmp.ne.s32.totalorder %s25, %s41
    %p43 = scmp.eq.s32.totalorder %s17, 0
    %p44 = por %p42, %p43
    %s46 = sadd.s32 %s45, 1
    %p49 = scmp.eq.s32.totalorder %s11, 1
    %p50 = scmp.ne.s32.totalorder %s45, %s47
    %p51 = scmp.eq.s32.totalorder %s11, 0
    %p52 = por %p50, %p51
    %p53 = scmp.ne.s32.totalorder %s45, %s47
    %p54 = scmp.eq.s32.totalorder %s16, 1
    %p55 = por %p53, %p54
    %p56 = scmp.ne.s32.totalorder %s47, %s48
    %p57 = scmp.eq.s32.totalorder %s16, 0
    %p58 = por %p56, %p57
    %p59 = scmp.ne.s32.totalorder %s47, %s48
    %p60 = scmp.eq.s32.totalorder %s17, 1
    %p61 = por %p59, %p60
    %p63 = scmp.ne.s32.totalorder %s48, %s62
    %p64 = scmp.eq.s32.totalorder %s17, 0
    %p65 = por %p63, %p64
    %s67 = sadd.s32 %s66, 1
    %p70 = scmp.eq.s32.totalorder %s11, 1
    %p71 = scmp.ne.s32.totalorder %s66, %s68
    %p72 = scmp.eq.s32.totalorder %s11, 0
    %p73 = por %p71, %p72
    %p74 = scmp.ne.s32.totalorder %s66, %s68
    %p75 = scmp.eq.s32.totalorder %s16, 1
    %p76 = por %p74, %p75
    %p77 = scmp.ne.s32.totalorder %s68, %s69
    %p78 = scmp.eq.s32.totalorder %s16, 0
    %p79 = por %p77, %p78
    %p80 = scmp.ne.s32.totalorder %s68, %s69
    %p81 = scmp.eq.s32.totalorder %s17, 1
    %p82 = por %p80, %p81
    %p84 = scmp.ne.s32.totalorder %s69, %s83
    %p85 = scmp.eq.s32.totalorder %s17, 0
    %p86 = por %p84, %p85
    %s88 = sadd.s32 %s87, 1
    %p91 = scmp.eq.s32.totalorder %s11, 1
    %p92 = scmp.ne.s32.totalorder %s87, %s89
    %p93 = scmp.eq.s32.totalorder %s11, 0
    %p94 = por %p92, %p93
    %p95 = scmp.ne.s32.totalorder %s87, %s89
    %p96 = scmp.eq.s32.totalorder %s16, 1
    %p97 = por %p95, %p96
    %p98 = scmp.ne.s32.totalorder %s89, %s90
    %p99 = scmp.eq.s32.totalorder %s16, 0
    %p100 = por %p98, %p99
    %p101 = scmp.ne.s32.totalorder %s89, %s90
    %p102 = scmp.eq.s32.totalorder %s17, 1
    %p103 = por %p101, %p102
    %p105 = scmp.ne.s32.totalorder %s90, %s104
    %p106 = scmp.eq.s32.totalorder %s17, 0
    %p107 = por %p105, %p106
    %s109 = sadd.s32 %s108, 1
    %p112 = scmp.eq.s32.totalorder %s11, 1
    %p113 = scmp.ne.s32.totalorder %s108, %s110
    %p114 = scmp.eq.s32.totalorder %s11, 0
    %p115 = por %p113, %p114
    %p116 = scmp.ne.s32.totalorder %s108, %s110
    %p117 = scmp.eq.s32.totalorder %s16, 1
    %p118 = por %p116, %p117
    %p119 = scmp.ne.s32.totalorder %s110, %s111
    %p120 = scmp.eq.s32.totalorder %s16, 0
    %p121 = por %p119, %p120
    %p122 = scmp.ne.s32.totalorder %s110, %s111
    %p123 = scmp.eq.s32.totalorder %s17, 1
    %p124 = por %p122, %p123
    %p126 = scmp.ne.s32.totalorder %s111, %s125
    %p127 = scmp.eq.s32.totalorder %s17, 0
    %p128 = por %p126, %p127
    %s129 = ssub.s32 %s11, %s18
    %p130 = scmp.eq.s32.totalorder %s129, 0
    %s132 = sadd.s32 %s131, 1
    %s133 = scalar_select %p130, %s131, %s132
    %p136 = pneg %p130
    %p137 = scmp.eq.s32.totalorder %s11, 1
    %p138 = por %p136, %p137
    %p139 = scmp.ne.s32.totalorder %s131, %s134
    %p140 = scmp.eq.s32.totalorder %s11, 0
    %p141 = por %p139, %p140
    %p142 = scmp.ne.s32.totalorder %s131, %s134
    %p143 = scmp.eq.s32.totalorder %s16, 1
    %p144 = por %p142, %p143
    %p145 = scmp.ne.s32.totalorder %s134, %s135
    %p146 = scmp.eq.s32.totalorder %s16, 0
    %p147 = por %p145, %p146
    %p148 = scmp.ne.s32.totalorder %s134, %s135
    %p149 = scmp.eq.s32.totalorder %s17, 1
    %p150 = por %p148, %p149
    %p152 = scmp.ne.s32.totalorder %s135, %s151
    %p153 = scmp.eq.s32.totalorder %s17, 0
    %p154 = por %p152, %p153
    %p155 = scmp.le.s32.totalorder 1, %s11
    %p156 = scmp.lt.s32.totalorder %s11, 3
    %p157 = pnand %p155, %p156
    %p158 = pneg %p157
    // Predicated region
    $region9: #{_lambda_.4} parent=5 // pred_check
      _
    $region10: #{_lambda_.4} parent=5 // pred_check_branch
      %160 = sbr.rel (%p157) target = $region12
    $region11: #{_lambda_.4} parent=5 // pred_region
      %s161 = ssub.s32 %s11, 1
      // Predicated region
      $region13: #{_lambda_.4} parent=11 // pred_check
        %p162 = pneg %p58
      $region14: #{_lambda_.4} parent=11 // pred_check_branch
        %164 = sbr.rel (%p162) target = $region16
      $region15: #{_lambda_.4} parent=11 // pred_region
        _
      $region16: #{_lambda_.4} parent=11 // pred_fallthru
        _
      // Predicated region
      $region17: #{_lambda_.4} parent=11 // pred_check
        %p165 = pneg %p79
      $region18: #{_lambda_.4} parent=11 // pred_check_branch
        %167 = sbr.rel (%p165) target = $region20
      $region19: #{_lambda_.4} parent=11 // pred_region
        _
      $region20: #{_lambda_.4} parent=11 // pred_fallthru
        _
      // Predicated region
      $region21: #{_lambda_.4} parent=11 // pred_check
        %p168 = pneg %p100
      $region22: #{_lambda_.4} parent=11 // pred_check_branch
        %170 = sbr.rel (%p168) target = $region24
      $region23: #{_lambda_.4} parent=11 // pred_region
        _
      $region24: #{_lambda_.4} parent=11 // pred_fallthru
        _
      // Predicated region
      $region25: #{_lambda_.4} parent=11 // pred_check
        %p171 = pneg %p121
      $region26: #{_lambda_.4} parent=11 // pred_check_branch
        %173 = sbr.rel (%p171) target = $region28
      $region27: #{_lambda_.4} parent=11 // pred_region
        _
      $region28: #{_lambda_.4} parent=11 // pred_fallthru
        _
    $region12: #{_lambda_.4} parent=5 // pred_fallthru
      _
    %p174 = scmp.lt.s32.totalorder %s11, 2
    // Predicated region
    $region29: #{_lambda_.4} parent=5 // pred_check
      %p175 = pneg %p174
    $region30: #{_lambda_.4} parent=5 // pred_check_branch
      %177 = sbr.rel (%p175) target = $region32
    $region31: #{_lambda_.4} parent=5 // pred_region
      // Predicated region
      $region33: #{_lambda_.4} parent=31 // pred_check
        %p178 = pneg %p31
      $region34: #{_lambda_.4} parent=31 // pred_check_branch
        %180 = sbr.rel (%p178) target = $region36
      $region35: #{_lambda_.4} parent=31 // pred_region
        %p181 = scmp.lt.s32.totalorder %s11, 1
        %s182 = scalar_select %p181, %s11, 1
        %s183 = smul.addr %s182, 2
        %s184 = smul.addr %s183, 8
        %s185 = scalar_lea.vmem %s0, %s184
      $region36: #{_lambda_.4} parent=31 // pred_fallthru
        _
    $region32: #{_lambda_.4} parent=5 // pred_fallthru
      _
    %p186 = scmp.le.s32.totalorder 1, %s11
    %p187 = scmp.lt.s32.totalorder %s11, 3
    %p188 = pnand %p186, %p187
    %p189 = pneg %p188
    // Predicated region
    $region37: #{_lambda_.4} parent=5 // pred_check
      _
    $region38: #{_lambda_.4} parent=5 // pred_check_branch
      %191 = sbr.rel (%p188) target = $region40
    $region39: #{_lambda_.4} parent=5 // pred_region
      %s192 = ssub.s32 %s11, 1
      %p193 = scmp.lt.s32.totalorder %s16, 1
      %s194 = scalar_select %p193, %s16, 1
      %s195 = smul.addr %s194, 2
      %s196 = smul.addr %s195, 8
      %s197 = scalar_lea.vmem %s0, %s196
      %p198 = pneg %p37
      %p199 = pneg %p34
      %p200 = pneg %p58
      %p201 = pneg %p55
      %p202 = pneg %p79
      %p203 = pneg %p76
      %p204 = pneg %p100
      %p205 = pneg %p97
      %p206 = pneg %p121
      %p207 = pneg %p118
      %p208 = pneg %p147
      %p209 = pneg %p144
      %p210 = scmp.lt.s32.totalorder %s16, 1
      %s211 = scalar_select %p210, %s16, 1
      %s212 = smul.addr %s211, 4
      %s213 = smul.addr %s212, 8
      %s214 = scalar_lea.vmem %s5, %s213
      %p215 = scmp.lt.s32.totalorder %s16, 1
      %s216 = scalar_select %p215, %s16, 1
      %s217 = smul.addr %s216, 2
      %s218 = smul.addr %s217, 8
      %s219 = scalar_lea.vmem %s0, %s218
      %p220 = scmp.lt.s32.totalorder %s16, 1
      %s221 = scalar_select %p220, %s16, 1
      %s222 = smul.addr %s221, 4
      %s223 = smul.addr %s222, 8
      %s224 = scalar_lea.vmem %s5, %s223
      %v225 = vld [vmem:[%s219] sm:$0xff]
      %v226 = vld [vmem:[%s219 + $0x8] sm:$0xff]
      %v227 = vld [vmem:[%s1] sm:$0xff]
      %vm228 = vcmask 130048
      %v230 = vsel %vm228, %v227, 0
      %232 = vmatprep.subr.mxu0 0.0
      %233 = vmatpush1.msra.mxu0 %v225
      %234 = vmatprep.subr.mxu0 0.0
      %235 = vmatpush1.msra.mxu0 %v226
      %236 = vmatprep.subr.mxu0 0.0
      %237 = vmatpush1.msra.mxu0 0.0
      %238 = vmatprep.subr.mxu0 0.0
      %239 = vmatpush1.msra.mxu0 0.0
      %240 = vmatprep.subr.mxu0 0.0
      %241 = vmatpush1.msra.mxu0 0.0
      %242 = vmatprep.subr.mxu0 0.0
      %243 = vmatpush1.msra.mxu0 0.0
      %244 = vmatprep.subr.mxu0 0.0
      %245 = vmatpush1.msra.mxu0 0.0
      %246 = vmatprep.subr.mxu0 0.0
      %247 = vmatpush1.msra.mxu0 0.0
      %248 = vmatprep.subr.mxu0 0.0
      %249 = vmatpush1.msra.mxu0 0.0
      %250 = vmatprep.subr.mxu0 0.0
      %251 = vmatpush1.msra.mxu0 0.0
      %252 = vmatprep.subr.mxu0 0.0
      %253 = vmatpush1.msra.mxu0 0.0
      %254 = vmatprep.subr.mxu0 0.0
      %255 = vmatpush1.msra.mxu0 0.0
      %256 = vmatprep.subr.mxu0 0.0
      %257 = vmatpush1.msra.mxu0 0.0
      %258 = vmatprep.subr.mxu0 0.0
      %259 = vmatpush1.msra.mxu0 0.0
      %260 = vmatprep.subr.mxu0 0.0
      %261 = vmatpush1.msra.mxu0 0.0
      %262 = vmatprep.subr.mxu0 0.0
      %263 = vmatpush1.msra.mxu0 0.0
      %264 = vmatprep.subr.mxu0 0.0
      %265 = vmatpush1.msra.mxu0 0.0
      %266 = vmatprep.subr.mxu0 0.0
      %267 = vmatpush1.msra.mxu0 0.0
      %268 = vmatprep.subr.mxu0 0.0
      %269 = vmatpush1.msra.mxu0 0.0
      %270 = vmatprep.subr.mxu0 0.0
      %271 = vmatpush1.msra.mxu0 0.0
      %272 = vmatprep.subr.mxu0 0.0
      %273 = vmatpush1.msra.mxu0 0.0
      %274 = vmatprep.subr.mxu0 0.0
      %275 = vmatpush1.msra.mxu0 0.0
      %276 = vmatprep.subr.mxu0 0.0
      %277 = vmatpush1.msra.mxu0 0.0
      %278 = vmatprep.subr.mxu0 0.0
      %279 = vmatpush1.msra.mxu0 0.0
      %280 = vmatprep.subr.mxu0 0.0
      %281 = vmatpush1.msra.mxu0 0.0
      %282 = vmatprep.subr.mxu0 0.0
      %283 = vmatpush1.msra.mxu0 0.0
      %284 = vmatprep.subr.mxu0 0.0
      %285 = vmatpush1.msra.mxu0 0.0
      %286 = vmatprep.subr.mxu0 0.0
      %287 = vmatpush1.msra.mxu0 0.0
      %288 = vmatprep.subr.mxu0 0.0
      %289 = vmatpush1.msra.mxu0 0.0
      %290 = vmatprep.subr.mxu0 0.0
      %291 = vmatpush1.msra.mxu0 0.0
      %292 = vmatprep.subr.mxu0 0.0
      %293 = vmatpush1.msra.mxu0 0.0
      %294 = vmatprep.subr.mxu0 0.0
      %295 = vmatpush1.msra.mxu0 0.0
      %296 = vmatprep.mubr.f32.mxu0 0.0
      %297 = vmatmul.mubr.f32.gmra.mrb[0].mxu0 %v230
      %v298 = vpop.f32.mrb[0].mxu0
      %v299 = vadd.f32 0.0, %v298
      %v300 = vpop.f32.mrb[0].mxu0
      %301 = vdwg.mxu0
      %v302 = vld [vmem:[%s2] sm:$0xff]
      %v303 = vld [vmem:[%s2 + $0x8] sm:$0xff]
      %v305 = vsel %vm228, %v299, 0
      %307 = vmatprep.subr.mxu0 0.0
      %308 = vmatpush1.msra.mxu0 %v302
      %309 = vmatprep.subr.mxu0 0.0
      %310 = vmatpush1.msra.mxu0 %v303
      %311 = vmatprep.subr.mxu0 0.0
      %312 = vmatpush1.msra.mxu0 0.0
      %313 = vmatprep.subr.mxu0 0.0
      %314 = vmatpush1.msra.mxu0 0.0
      %315 = vmatprep.subr.mxu0 0.0
      %316 = vmatpush1.msra.mxu0 0.0
      %317 = vmatprep.subr.mxu0 0.0
      %318 = vmatpush1.msra.mxu0 0.0
      %319 = vmatprep.subr.mxu0 0.0
      %320 = vmatpush1.msra.mxu0 0.0
      %321 = vmatprep.subr.mxu0 0.0
      %322 = vmatpush1.msra.mxu0 0.0
      %323 = vmatprep.subr.mxu0 0.0
      %324 = vmatpush1.msra.mxu0 0.0
      %325 = vmatprep.subr.mxu0 0.0
      %326 = vmatpush1.msra.mxu0 0.0
      %327 = vmatprep.subr.mxu0 0.0
      %328 = vmatpush1.msra.mxu0 0.0
      %329 = vmatprep.subr.mxu0 0.0
      %330 = vmatpush1.msra.mxu0 0.0
      %331 = vmatprep.subr.mxu0 0.0
      %332 = vmatpush1.msra.mxu0 0.0
      %333 = vmatprep.subr.mxu0 0.0
      %334 = vmatpush1.msra.mxu0 0.0
      %335 = vmatprep.subr.mxu0 0.0
      %336 = vmatpush1.msra.mxu0 0.0
      %337 = vmatprep.subr.mxu0 0.0
      %338 = vmatpush1.msra.mxu0 0.0
      %339 = vmatprep.subr.mxu0 0.0
      %340 = vmatpush1.msra.mxu0 0.0
      %341 = vmatprep.subr.mxu0 0.0
      %342 = vmatpush1.msra.mxu0 0.0
      %343 = vmatprep.subr.mxu0 0.0
      %344 = vmatpush1.msra.mxu0 0.0
      %345 = vmatprep.subr.mxu0 0.0
      %346 = vmatpush1.msra.mxu0 0.0
      %347 = vmatprep.subr.mxu0 0.0
      %348 = vmatpush1.msra.mxu0 0.0
      %349 = vmatprep.subr.mxu0 0.0
      %350 = vmatpush1.msra.mxu0 0.0
      %351 = vmatprep.subr.mxu0 0.0
      %352 = vmatpush1.msra.mxu0 0.0
      %353 = vmatprep.subr.mxu0 0.0
      %354 = vmatpush1.msra.mxu0 0.0
      %355 = vmatprep.subr.mxu0 0.0
      %356 = vmatpush1.msra.mxu0 0.0
      %357 = vmatprep.subr.mxu0 0.0
      %358 = vmatpush1.msra.mxu0 0.0
      %359 = vmatprep.subr.mxu0 0.0
      %360 = vmatpush1.msra.mxu0 0.0
      %361 = vmatprep.subr.mxu0 0.0
      %362 = vmatpush1.msra.mxu0 0.0
      %363 = vmatprep.subr.mxu0 0.0
      %364 = vmatpush1.msra.mxu0 0.0
      %365 = vmatprep.subr.mxu0 0.0
      %366 = vmatpush1.msra.mxu0 0.0
      %367 = vmatprep.subr.mxu0 0.0
      %368 = vmatpush1.msra.mxu0 0.0
      %369 = vmatprep.subr.mxu0 0.0
      %370 = vmatpush1.msra.mxu0 0.0
      %371 = vmatprep.mubr.f32.mxu0 0.0
      %372 = vmatmul.mubr.f32.gmra.mrb[0].mxu0 %v305
      %v373 = vpop.f32.mrb[0].mxu0
      %v374 = vadd.f32 0.0, %v373
      %v375 = vpop.f32.mrb[0].mxu0
      %376 = vdwg.mxu0
      %v377 = vld [vmem:[%s3] sm:$0xf]
      %v380 = vunpack.c.l.s4 1966171168
      %v381 = vunpack.c.0.s8 %v380
      %v382 = vlaneseq
      %v383 = vshrl.u32 %v382, 7
      %v384 = vsub.s32 %v381, %v383
      %v385 = vrot.slane %v377, %v384
      %v386 = vcombine.high %v385, %v385
      %v388 = vunpack.c.l.s4 1966171168
      %v389 = vunpack.c.0.s8 %v388
      %v390 = vlaneseq
      %v391 = vshrl.u32 %v390, 7
      %v392 = vsub.s32 %v389, %v391
      %v393 = vrot.slane %v385, %v392
      %v395 = vunpack.c.l.s4 1966171168
      %v396 = vunpack.c.0.s8 %v395
      %v397 = vlaneseq
      %v398 = vshrl.u32 %v397, 7
      %v399 = vsub.s32 %v396, %v398
      %v400 = vrot.slane %v386, %v399
      %v401 = vcombine.high %v393, %v393
      %v402 = vcombine.high %v400, %v400
      %v403 = vld [vmem:[%s4] sm:$0xf]
      %v406 = vunpack.c.l.s4 1966171168
      %v407 = vunpack.c.0.s8 %v406
      %v408 = vlaneseq
      %v409 = vshrl.u32 %v408, 7
      %v410 = vsub.s32 %v407, %v409
      %v411 = vrot.slane %v403, %v410
      %v412 = vcombine.high %v411, %v411
      %v414 = vunpack.c.l.s4 1966171168
      %v415 = vunpack.c.0.s8 %v414
      %v416 = vlaneseq
      %v417 = vshrl.u32 %v416, 7
      %v418 = vsub.s32 %v415, %v417
      %v419 = vrot.slane %v411, %v418
      %v421 = vunpack.c.l.s4 1966171168
      %v422 = vunpack.c.0.s8 %v421
      %v423 = vlaneseq
      %v424 = vshrl.u32 %v423, 7
      %v425 = vsub.s32 %v422, %v424
      %v426 = vrot.slane %v412, %v425
      %v427 = vcombine.high %v419, %v419
      %v428 = vcombine.high %v426, %v426
      %v429 = vlaneseq
      %v430 = vshrl.u32 %v429, 7
      %v431 = vsub.s32 0, %v430
      %v432 = vrot.slane %v393, %v431
      %v433 = vlaneseq
      %v434 = vshrl.u32 %v433, 7
      %v435 = vsub.s32 0, %v434
      %v436 = vrot.slane %v400, %v435
      %v437 = vlaneseq
      %v438 = vshrl.u32 %v437, 7
      %v439 = vsub.s32 0, %v438
      %v440 = vrot.slane %v401, %v439
      %v441 = vlaneseq
      %v442 = vshrl.u32 %v441, 7
      %v443 = vsub.s32 0, %v442
      %v444 = vrot.slane %v402, %v443
      %445 = vset.pattern.permute.xlu0 0
      %446 = vperm.xlu0 %445, %v432
      %v447 = vpop.permute.xlu0 %446
      %449 = vset.pattern.permute.xlu0 0
      %450 = vperm.xlu0 %449, %v436
      %v451 = vpop.permute.xlu0 %450
      %453 = vset.pattern.permute.xlu0 0
      %454 = vperm.xlu0 %453, %v440
      %v455 = vpop.permute.xlu0 %454
      %457 = vset.pattern.permute.xlu0 0
      %458 = vperm.xlu0 %457, %v444
      %v459 = vpop.permute.xlu0 %458
      %v461 = vmul.f32 %v374, %v447
      %v462 = vmul.f32 %v374, %v451
      %v463 = vmul.f32 %v374, %v455
      %v464 = vmul.f32 %v374, %v459
      %v465 = vlaneseq
      %v466 = vshrl.u32 %v465, 7
      %v467 = vsub.s32 0, %v466
      %v468 = vrot.slane %v419, %v467
      %v469 = vlaneseq
      %v470 = vshrl.u32 %v469, 7
      %v471 = vsub.s32 0, %v470
      %v472 = vrot.slane %v426, %v471
      %v473 = vlaneseq
      %v474 = vshrl.u32 %v473, 7
      %v475 = vsub.s32 0, %v474
      %v476 = vrot.slane %v427, %v475
      %v477 = vlaneseq
      %v478 = vshrl.u32 %v477, 7
      %v479 = vsub.s32 0, %v478
      %v480 = vrot.slane %v428, %v479
      %481 = vset.pattern.permute.xlu0 0
      %482 = vperm.xlu0 %481, %v468
      %v483 = vpop.permute.xlu0 %482
      %485 = vset.pattern.permute.xlu0 0
      %486 = vperm.xlu0 %485, %v472
      %v487 = vpop.permute.xlu0 %486
      %489 = vset.pattern.permute.xlu0 0
      %490 = vperm.xlu0 %489, %v476
      %v491 = vpop.permute.xlu0 %490
      %493 = vset.pattern.permute.xlu0 0
      %494 = vperm.xlu0 %493, %v480
      %v495 = vpop.permute.xlu0 %494
      %v497 = vadd.f32 %v461, %v483
      %v498 = vadd.f32 %v462, %v487
      %v499 = vadd.f32 %v463, %v491
      %v500 = vadd.f32 %v464, %v495
      %vm501 = vcmask 64512
      %502 = vst.msk [vmem:[%s224] sm:$0xff] %vm501, %v497
      %503 = vst.msk [vmem:[%s224 + $0x8] sm:$0xff] %vm501, %v498
      %504 = vst.msk [vmem:[%s224 + $0x10] sm:$0xff] %vm501, %v499
      %505 = vst.msk [vmem:[%s224 + $0x18] sm:$0xff] %vm501, %v500
      %p506 = scmp.lt.s32.totalorder %s16, 1
      %s507 = scalar_select %p506, %s16, 1
      %s508 = smul.addr %s507, 4
      %s509 = smul.addr %s508, 8
      %s510 = scalar_lea.vmem %s5, %s509
      // Predicated region
      $region41: #{_lambda_.4} parent=39 // pred_check
        %p511 = pneg %p144
      $region42: #{_lambda_.4} parent=39 // pred_check_branch
        %513 = sbr.rel (%p511) target = $region44
      $region43: #{_lambda_.4} parent=39 // pred_region
        _
      $region44: #{_lambda_.4} parent=39 // pred_fallthru
        _
    $region40: #{_lambda_.4} parent=5 // pred_fallthru
      _
    %p514 = scmp.le.s32.totalorder 2, %s11
    // Predicated region
    $region45: #{_lambda_.4} parent=5 // pred_check
      %p515 = pneg %p514
    $region46: #{_lambda_.4} parent=5 // pred_check_branch
      %517 = sbr.rel (%p515) target = $region48
    $region47: #{_lambda_.4} parent=5 // pred_region
      %s518 = ssub.s32 %s11, 2
      // Predicated region
      $region49: #{_lambda_.4} parent=47 // pred_check
        %p519 = pneg %p150
      $region50: #{_lambda_.4} parent=47 // pred_check_branch
        %521 = sbr.rel (%p519) target = $region52
      $region51: #{_lambda_.4} parent=47 // pred_region
        %p522 = scmp.lt.s32.totalorder %s17, 1
        %s523 = scalar_select %p522, %s17, 1
        %s524 = smul.addr %s523, 4
        %s525 = smul.addr %s524, 8
        %s526 = scalar_lea.vmem %s5, %s525
      $region52: #{_lambda_.4} parent=47 // pred_fallthru
        _
    $region48: #{_lambda_.4} parent=5 // pred_fallthru
      _
  $region6: #{_lambda_.4} parent=0 // loop_footer
    %s15 = sadd.s32 1, %s11
  $region7: #{_lambda_.4} parent=0 // loop_footer_branch
    %10 = sbr.rel target = $region3
  $region8: #{_lambda_.4} parent=0 // loop_exit
    _

// kernel: _lambda_.7
$region0: #{_lambda_.7}
  #allocation0 [shape = 'u32[]', space=smem, size = 0x4, offset = 0x4, fixed_abs, tag = 'smem constant byte address 0x4 - core index']
  #allocation1 [shape = 'u32[144,128]{1,0:T(1,128)}', space=vmem, size = 0x12000, scoped, tag = 'internal scratch']
  %s0 = inlined_call_operand.vmem [shape: f32[2,16,4096], index: 0, kind: input, shape index: {}]
  %s1 = inlined_call_operand.vmem [shape: f32[2,4096,3], index: 1, kind: input, shape index: {}]
  %s2 = inlined_call_operand.vmem [shape: f32[2,16,1], index: 2, kind: input, shape index: {}]
  %s3 = inlined_call_operand.vmem [shape: f32[2,16,1], index: 3, kind: input, shape index: {}]
  %s4 = inlined_call_operand.vmem [shape: f32[2,16,3], index: 4, kind: output, shape index: {0}]
  %s5 = inlined_call_operand.vmem [shape: f32[2,16,4096], index: 5, kind: output, shape index: {1}]
  %6 = xla_tuple %s4, %s5
  %s7 = sld [smem:[#allocation0]]
  $region103: #{_lambda_.7} parent=0
    _
  %s9 = ssub.s32 1, %s7
  %s10 = scalar_select 0, %s9, %s7
  $region1: #{_lambda_.7} parent=0
    #allocation2 [shape = 'u8[262144]{0}', space=vmem, size = 0x40000, scoped, tag = 'input window, operand 0']
    #allocation3 [shape = 'u8[262144]{0}', space=vmem, size = 0x40000, scoped, tag = 'output window, operand 1']
    loop: start=0, step=1, limit=6
    $region2: #{_lambda_.7} parent=1 // loop_pre_header
      _
    $region3: #{_lambda_.7} parent=1 // loop_header
      %s12 = sphi 0, %s16
      %p13 = scmp.ge.s32.totalorder %s12, 6
      %s19 = sphi 0, %s31
      %s20 = sphi 0, %s27
      %s21 = sphi 0, %s19
      %s22 = sphi 0, %s20
      %s23 = sphi 0, %s21
      %s24 = sphi 0, %s22
      %s36 = sphi 0, %s38
      %s39 = sphi 0, %s36
      %s40 = sphi 0, %s39
      %s56 = sphi 0, %s40
      %s64 = sphi 0, %s66
      %s67 = sphi 0, %s64
      %s68 = sphi 0, %s67
      %s84 = sphi 0, %s68
      %s90 = sphi 0, %s92
      %s93 = sphi 0, %s90
      %s94 = sphi 0, %s93
      %s110 = sphi 0, %s94
      %s116 = sphi 0, %s118
      %s119 = sphi 0, %s116
      %s120 = sphi 0, %s119
      %s136 = sphi 0, %s120
      %s142 = sphi 0, %s144
      %s145 = sphi 0, %s142
      %s146 = sphi 0, %s145
      %s162 = sphi 0, %s146
      %s170 = sphi 0, %s172
      %s173 = sphi 0, %s170
      %s174 = sphi 0, %s173
      %s190 = sphi 0, %s174
    $region4: #{_lambda_.7} parent=1 // loop_header_branch
      %15 = sbr.rel (%p13) target = $region8
    $region5: #{_lambda_.7} parent=1 // loop_body
      %s17 = ssub.s32 %s12, 1
      %s18 = ssub.s32 %s12, 2
      %s25 = sadd.s32 1, %s20
      %p26 = scmp.ge.s32.totalorder %s25, 2
      %s27 = scalar_select %p26, 0, %s25
      %s28 = sadd.s32 1, %s19
      %s29 = scalar_select %p26, %s28, %s19
      %p30 = scmp.ge.s32.totalorder %s29, 2
      %s31 = scalar_select %p30, 0, %s29
      %s32 = ssub.s32 %s19, %s31
      %s33 = ssub.s32 %s20, %s27
      %s34 = sor.u32 %s32, %s33
      %p35 = scmp.eq.s32.totalorder %s34, 0
      %s37 = sadd.s32 %s36, 1
      %s38 = scalar_select %p35, %s36, %s37
      %p41 = pneg %p35
      %p42 = scmp.eq.s32.totalorder %s12, 3
      %p43 = por %p41, %p42
      %p44 = scmp.ne.s32.totalorder %s36, %s39
      %p45 = scmp.eq.s32.totalorder %s12, 0
      %p46 = por %p44, %p45
      %p47 = scmp.ne.s32.totalorder %s36, %s39
      %p48 = scmp.eq.s32.totalorder %s17, 3
      %p49 = por %p47, %p48
      %p50 = scmp.ne.s32.totalorder %s39, %s40
      %p51 = scmp.eq.s32.totalorder %s17, 0
      %p52 = por %p50, %p51
      %p53 = scmp.ne.s32.totalorder %s39, %s40
      %p54 = scmp.eq.s32.totalorder %s18, 3
      %p55 = por %p53, %p54
      %p57 = scmp.ne.s32.totalorder %s40, %s56
      %p58 = scmp.eq.s32.totalorder %s18, 0
      %p59 = por %p57, %p58
      %s60 = ssub.s32 %s19, %s31
      %s61 = ssub.s32 %s20, %s27
      %s62 = sor.u32 %s60, %s61
      %p63 = scmp.eq.s32.totalorder %s62, 0
      %s65 = sadd.s32 %s64, 1
      %s66 = scalar_select %p63, %s64, %s65
      %p69 = pneg %p63
      %p70 = scmp.eq.s32.totalorder %s12, 3
      %p71 = por %p69, %p70
      %p72 = scmp.ne.s32.totalorder %s64, %s67
      %p73 = scmp.eq.s32.totalorder %s12, 0
      %p74 = por %p72, %p73
      %p75 = scmp.ne.s32.totalorder %s64, %s67
      %p76 = scmp.eq.s32.totalorder %s17, 3
      %p77 = por %p75, %p76
      %p78 = scmp.ne.s32.totalorder %s67, %s68
      %p79 = scmp.eq.s32.totalorder %s17, 0
      %p80 = por %p78, %p79
      %p81 = scmp.ne.s32.totalorder %s67, %s68
      %p82 = scmp.eq.s32.totalorder %s18, 3
      %p83 = por %p81, %p82
      %p85 = scmp.ne.s32.totalorder %s68, %s84
      %p86 = scmp.eq.s32.totalorder %s18, 0
      %p87 = por %p85, %p86
      %s88 = ssub.s32 %s19, %s31
      %p89 = scmp.eq.s32.totalorder %s88, 0
      %s91 = sadd.s32 %s90, 1
      %s92 = scalar_select %p89, %s90, %s91
      %p95 = pneg %p89
      %p96 = scmp.eq.s32.totalorder %s12, 3
      %p97 = por %p95, %p96
      %p98 = scmp.ne.s32.totalorder %s90, %s93
      %p99 = scmp.eq.s32.totalorder %s12, 0
      %p100 = por %p98, %p99
      %p101 = scmp.ne.s32.totalorder %s90, %s93
      %p102 = scmp.eq.s32.totalorder %s17, 3
      %p103 = por %p101, %p102
      %p104 = scmp.ne.s32.totalorder %s93, %s94
      %p105 = scmp.eq.s32.totalorder %s17, 0
      %p106 = por %p104, %p105
      %p107 = scmp.ne.s32.totalorder %s93, %s94
      %p108 = scmp.eq.s32.totalorder %s18, 3
      %p109 = por %p107, %p108
      %p111 = scmp.ne.s32.totalorder %s94, %s110
      %p112 = scmp.eq.s32.totalorder %s18, 0
      %p113 = por %p111, %p112
      %s114 = ssub.s32 %s19, %s31
      %p115 = scmp.eq.s32.totalorder %s114, 0
      %s117 = sadd.s32 %s116, 1
      %s118 = scalar_select %p115, %s116, %s117
      %p121 = pneg %p115
      %p122 = scmp.eq.s32.totalorder %s12, 3
      %p123 = por %p121, %p122
      %p124 = scmp.ne.s32.totalorder %s116, %s119
      %p125 = scmp.eq.s32.totalorder %s12, 0
      %p126 = por %p124, %p125
      %p127 = scmp.ne.s32.totalorder %s116, %s119
      %p128 = scmp.eq.s32.totalorder %s17, 3
      %p129 = por %p127, %p128
      %p130 = scmp.ne.s32.totalorder %s119, %s120
      %p131 = scmp.eq.s32.totalorder %s17, 0
      %p132 = por %p130, %p131
      %p133 = scmp.ne.s32.totalorder %s119, %s120
      %p134 = scmp.eq.s32.totalorder %s18, 3
      %p135 = por %p133, %p134
      %p137 = scmp.ne.s32.totalorder %s120, %s136
      %p138 = scmp.eq.s32.totalorder %s18, 0
      %p139 = por %p137, %p138
      %s140 = ssub.s32 %s19, %s31
      %p141 = scmp.eq.s32.totalorder %s140, 0
      %s143 = sadd.s32 %s142, 1
      %s144 = scalar_select %p141, %s142, %s143
      %p147 = pneg %p141
      %p148 = scmp.eq.s32.totalorder %s12, 3
      %p149 = por %p147, %p148
      %p150 = scmp.ne.s32.totalorder %s142, %s145
      %p151 = scmp.eq.s32.totalorder %s12, 0
      %p152 = por %p150, %p151
      %p153 = scmp.ne.s32.totalorder %s142, %s145
      %p154 = scmp.eq.s32.totalorder %s17, 3
      %p155 = por %p153, %p154
      %p156 = scmp.ne.s32.totalorder %s145, %s146
      %p157 = scmp.eq.s32.totalorder %s17, 0
      %p158 = por %p156, %p157
      %p159 = scmp.ne.s32.totalorder %s145, %s146
      %p160 = scmp.eq.s32.totalorder %s18, 3
      %p161 = por %p159, %p160
      %p163 = scmp.ne.s32.totalorder %s146, %s162
      %p164 = scmp.eq.s32.totalorder %s18, 0
      %p165 = por %p163, %p164
      %s166 = ssub.s32 %s19, %s31
      %s167 = ssub.s32 %s20, %s27
      %s168 = sor.u32 %s166, %s167
      %p169 = scmp.eq.s32.totalorder %s168, 0
      %s171 = sadd.s32 %s170, 1
      %s172 = scalar_select %p169, %s170, %s171
      %p175 = pneg %p169
      %p176 = scmp.eq.s32.totalorder %s12, 3
      %p177 = por %p175, %p176
      %p178 = scmp.ne.s32.totalorder %s170, %s173
      %p179 = scmp.eq.s32.totalorder %s12, 0
      %p180 = por %p178, %p179
      %p181 = scmp.ne.s32.totalorder %s170, %s173
      %p182 = scmp.eq.s32.totalorder %s17, 3
      %p183 = por %p181, %p182
      %p184 = scmp.ne.s32.totalorder %s173, %s174
      %p185 = scmp.eq.s32.totalorder %s17, 0
      %p186 = por %p184, %p185
      %p187 = scmp.ne.s32.totalorder %s173, %s174
      %p188 = scmp.eq.s32.totalorder %s18, 3
      %p189 = por %p187, %p188
      %p191 = scmp.ne.s32.totalorder %s174, %s190
      %p192 = scmp.eq.s32.totalorder %s18, 0
      %p193 = por %p191, %p192
      %p194 = scmp.le.s32.totalorder 1, %s12
      %p195 = scmp.lt.s32.totalorder %s12, 5
      %p196 = pnand %p194, %p195
      %p197 = pneg %p196
      // Predicated region
      $region9: #{_lambda_.7} parent=5 // pred_check
        _
      $region10: #{_lambda_.7} parent=5 // pred_check_branch
        %199 = sbr.rel (%p196) target = $region12
      $region11: #{_lambda_.7} parent=5 // pred_region
        %s200 = ssub.s32 %s12, 1
      $region12: #{_lambda_.7} parent=5 // pred_fallthru
        _
      %p201 = scmp.lt.s32.totalorder %s12, 4
      // Predicated region
      $region13: #{_lambda_.7} parent=5 // pred_check
        %p202 = pneg %p201
      $region14: #{_lambda_.7} parent=5 // pred_check_branch
        %204 = sbr.rel (%p202) target = $region16
      $region15: #{_lambda_.7} parent=5 // pred_region
        // Predicated region
        $region17: #{_lambda_.7} parent=15 // pred_check
          %p205 = pneg %p46
        $region18: #{_lambda_.7} parent=15 // pred_check_branch
          %207 = sbr.rel (%p205) target = $region20
        $region19: #{_lambda_.7} parent=15 // pred_region
          %s208 = sand.u32 %s36, 1
          %s209 = sand.u32 %s36, 1
          %s210 = smul.addr %s209, 256
          %s211 = scalar_lea.vmem [#allocation2], %s210
          %s212 = smul.u32 16, %s20
          %s213 = smul.addr %s19, 64
          %s214 = sadd.s32 %s212, %s213
          %s215 = smul.addr %s214, 8
          %s216 = scalar_lea.vmem %s0, %s215
          // Predicated region
          $region21: #{_lambda_.7} parent=19 // pred_check
            _
          $region22: #{_lambda_.7} parent=19 // pred_check_branch
            %218 = sbr.rel (0) target = $region24
          $region23: #{_lambda_.7} parent=19 // pred_region
            // Predicated region
            $region25: #{_lambda_.7} parent=23 // pred_check
              _
            $region26: #{_lambda_.7} parent=23 // pred_check_branch
              %220 = sbr.rel (0) target = $region28
            $region27: #{_lambda_.7} parent=23 // pred_region
              loop: start=0, step=1, limit=1
              $region29: #{_lambda_.7} parent=27 // loop_pre_header
                _
              $region30: #{_lambda_.7} parent=27 // loop_header
                %s222 = sphi 0, %s226
                %p223 = scmp.ge.s32.totalorder %s222, 1
                %s227 = sphi %s216, %s216
                %s228 = sphi %s211, %s211
              $region31: #{_lambda_.7} parent=27 // loop_header_branch
                %225 = sbr.rel (%p223) target = $region35
              $region32: #{_lambda_.7} parent=27 // loop_body
                %v229 = vld [vmem:[%s227] sm:$0xff]
                %230 = vst [vmem:[%s228] sm:$0xff] %v229
                %v231 = vld [vmem:[%s227 + $0x8] sm:$0xff]
                %232 = vst [vmem:[%s228 + $0x8] sm:$0xff] %v231
                %v233 = vld [vmem:[%s227 + $0x10] sm:$0xff]
                %234 = vst [vmem:[%s228 + $0x10] sm:$0xff] %v233
                %v235 = vld [vmem:[%s227 + $0x18] sm:$0xff]
                %236 = vst [vmem:[%s228 + $0x18] sm:$0xff] %v235
                %v237 = vld [vmem:[%s227 + $0x20] sm:$0xff]
                %238 = vst [vmem:[%s228 + $0x20] sm:$0xff] %v237
                %v239 = vld [vmem:[%s227 + $0x28] sm:$0xff]
                %240 = vst [vmem:[%s228 + $0x28] sm:$0xff] %v239
                %v241 = vld [vmem:[%s227 + $0x30] sm:$0xff]
                %242 = vst [vmem:[%s228 + $0x30] sm:$0xff] %v241
                %v243 = vld [vmem:[%s227 + $0x38] sm:$0xff]
                %244 = vst [vmem:[%s228 + $0x38] sm:$0xff] %v243
                %v245 = vld [vmem:[%s227 + $0x40] sm:$0xff]
                %246 = vst [vmem:[%s228 + $0x40] sm:$0xff] %v245
                %v247 = vld [vmem:[%s227 + $0x48] sm:$0xff]
                %248 = vst [vmem:[%s228 + $0x48] sm:$0xff] %v247
                %v249 = vld [vmem:[%s227 + $0x50] sm:$0xff]
                %250 = vst [vmem:[%s228 + $0x50] sm:$0xff] %v249
                %v251 = vld [vmem:[%s227 + $0x58] sm:$0xff]
                %252 = vst [vmem:[%s228 + $0x58] sm:$0xff] %v251
                %v253 = vld [vmem:[%s227 + $0x60] sm:$0xff]
                %254 = vst [vmem:[%s228 + $0x60] sm:$0xff] %v253
                %v255 = vld [vmem:[%s227 + $0x68] sm:$0xff]
                %256 = vst [vmem:[%s228 + $0x68] sm:$0xff] %v255
                %v257 = vld [vmem:[%s227 + $0x70] sm:$0xff]
                %258 = vst [vmem:[%s228 + $0x70] sm:$0xff] %v257
                %v259 = vld [vmem:[%s227 + $0x78] sm:$0xff]
                %260 = vst [vmem:[%s228 + $0x78] sm:$0xff] %v259
                %v261 = vld [vmem:[%s227 + $0x100] sm:$0xff]
                %262 = vst [vmem:[%s228 + $0x80] sm:$0xff] %v261
                %v263 = vld [vmem:[%s227 + $0x108] sm:$0xff]
                %264 = vst [vmem:[%s228 + $0x88] sm:$0xff] %v263
                %v265 = vld [vmem:[%s227 + $0x110] sm:$0xff]
                %266 = vst [vmem:[%s228 + $0x90] sm:$0xff] %v265
                %v267 = vld [vmem:[%s227 + $0x118] sm:$0xff]
                %268 = vst [vmem:[%s228 + $0x98] sm:$0xff] %v267
                %v269 = vld [vmem:[%s227 + $0x120] sm:$0xff]
                %270 = vst [vmem:[%s228 + $0xa0] sm:$0xff] %v269
                %v271 = vld [vmem:[%s227 + $0x128] sm:$0xff]
                %272 = vst [vmem:[%s228 + $0xa8] sm:$0xff] %v271
                %v273 = vld [vmem:[%s227 + $0x130] sm:$0xff]
                %274 = vst [vmem:[%s228 + $0xb0] sm:$0xff] %v273
                %v275 = vld [vmem:[%s227 + $0x138] sm:$0xff]
                %276 = vst [vmem:[%s228 + $0xb8] sm:$0xff] %v275
                %v277 = vld [vmem:[%s227 + $0x140] sm:$0xff]
                %278 = vst [vmem:[%s228 + $0xc0] sm:$0xff] %v277
                %v279 = vld [vmem:[%s227 + $0x148] sm:$0xff]
                %280 = vst [vmem:[%s228 + $0xc8] sm:$0xff] %v279
                %v281 = vld [vmem:[%s227 + $0x150] sm:$0xff]
                %282 = vst [vmem:[%s228 + $0xd0] sm:$0xff] %v281
                %v283 = vld [vmem:[%s227 + $0x158] sm:$0xff]
                %284 = vst [vmem:[%s228 + $0xd8] sm:$0xff] %v283
                %v285 = vld [vmem:[%s227 + $0x160] sm:$0xff]
                %286 = vst [vmem:[%s228 + $0xe0] sm:$0xff] %v285
                %v287 = vld [vmem:[%s227 + $0x168] sm:$0xff]
                %288 = vst [vmem:[%s228 + $0xe8] sm:$0xff] %v287
                %v289 = vld [vmem:[%s227 + $0x170] sm:$0xff]
                %290 = vst [vmem:[%s228 + $0xf0] sm:$0xff] %v289
                %v291 = vld [vmem:[%s227 + $0x178] sm:$0xff]
                %292 = vst [vmem:[%s228 + $0xf8] sm:$0xff] %v291
              $region33: #{_lambda_.7} parent=27 // loop_footer
                %s226 = sadd.s32 1, %s222
              $region34: #{_lambda_.7} parent=27 // loop_footer_branch
                %221 = sbr.rel target = $region30
              $region35: #{_lambda_.7} parent=27 // loop_exit
                _
            $region28: #{_lambda_.7} parent=23 // pred_fallthru
              _
            // Predicated region
            $region36: #{_lambda_.7} parent=23 // pred_check
              _
            $region37: #{_lambda_.7} parent=23 // pred_check_branch
              %294 = sbr.rel target = $region39
            $region38: #{_lambda_.7} parent=23 // pred_region
              _
            $region39: #{_lambda_.7} parent=23 // pred_fallthru
              _
          $region24: #{_lambda_.7} parent=19 // pred_fallthru
            _
          %295 = vnop
        $region20: #{_lambda_.7} parent=15 // pred_fallthru
          _
        // Predicated region
        $region40: #{_lambda_.7} parent=15 // pred_check
          %p296 = pneg %p74
        $region41: #{_lambda_.7} parent=15 // pred_check_branch
          %298 = sbr.rel (%p296) target = $region43
        $region42: #{_lambda_.7} parent=15 // pred_region
          %s299 = smul.u32 256, %s20
          %p300 = scmp.lt.s32.totalorder %s19, 1
          %s301 = scalar_select %p300, %s19, 1
          %p302 = scmp.lt.s32.totalorder %s299, 511
          %s303 = scalar_select %p302, %s299, 511
          %s304 = smul.addr %s301, 512
          %s305 = sadd.s32 %s303, %s304
          %s306 = smul.addr %s305, 8
          %s307 = scalar_lea.vmem %s1, %s306
          %s308 = smul.u32 256, %s20
        $region43: #{_lambda_.7} parent=15 // pred_fallthru
          _
        // Predicated region
        $region44: #{_lambda_.7} parent=15 // pred_check
          %p309 = pneg %p100
        $region45: #{_lambda_.7} parent=15 // pred_check_branch
          %311 = sbr.rel (%p309) target = $region47
        $region46: #{_lambda_.7} parent=15 // pred_region
          %p312 = scmp.lt.s32.totalorder %s19, 1
          %s313 = scalar_select %p312, %s19, 1
          %s314 = smul.addr %s313, 2
          %s315 = smul.addr %s314, 8
          %s316 = scalar_lea.vmem %s2, %s315
        $region47: #{_lambda_.7} parent=15 // pred_fallthru
          _
        // Predicated region
        $region48: #{_lambda_.7} parent=15 // pred_check
          %p317 = pneg %p126
        $region49: #{_lambda_.7} parent=15 // pred_check_branch
          %319 = sbr.rel (%p317) target = $region51
        $region50: #{_lambda_.7} parent=15 // pred_region
          %p320 = scmp.lt.s32.totalorder %s19, 1
          %s321 = scalar_select %p320, %s19, 1
          %s322 = smul.addr %s321, 2
          %s323 = smul.addr %s322, 8
          %s324 = scalar_lea.vmem %s3, %s323
        $region51: #{_lambda_.7} parent=15 // pred_fallthru
          _
      $region16: #{_lambda_.7} parent=5 // pred_fallthru
        _
      %p325 = scmp.le.s32.totalorder 1, %s12
      %p326 = scmp.lt.s32.totalorder %s12, 5
      %p327 = pnand %p325, %p326
      %p328 = pneg %p327
      // Predicated region
      $region52: #{_lambda_.7} parent=5 // pred_check
        _
      $region53: #{_lambda_.7} parent=5 // pred_check_branch
        %330 = sbr.rel (%p327) target = $region55
      $region54: #{_lambda_.7} parent=5 // pred_region
        %s331 = ssub.s32 %s12, 1
        %s332 = sand.u32 %s39, 1
        %s333 = sand.u32 %s39, 1
        %s334 = smul.addr %s333, 256
        %s335 = scalar_lea.vmem [#allocation2], %s334
        // Predicated region
        $region56: #{_lambda_.7} parent=54 // pred_check
          %p336 = pneg %p52
        $region57: #{_lambda_.7} parent=54 // pred_check_branch
          %338 = sbr.rel (%p336) target = $region59
        $region58: #{_lambda_.7} parent=54 // pred_region
          _
        $region59: #{_lambda_.7} parent=54 // pred_fallthru
          _
        %s339 = sand.u32 %s39, 1
        %s340 = sand.u32 %s39, 1
        %s341 = smul.addr %s340, 256
        %s342 = scalar_lea.vmem [#allocation2], %s341
        %p343 = pneg %p52
        %p344 = pneg %p49
        %s345 = smul.u32 256, %s22
        %p346 = scmp.lt.s32.totalorder %s21, 1
        %s347 = scalar_select %p346, %s21, 1
        %p348 = scmp.lt.s32.totalorder %s345, 511
        %s349 = scalar_select %p348, %s345, 511
        %s350 = smul.addr %s347, 512
        %s351 = sadd.s32 %s349, %s350
        %s352 = smul.addr %s351, 8
        %s353 = scalar_lea.vmem %s1, %s352
        %p354 = pneg %p80
        %p355 = pneg %p77
        %p356 = scmp.lt.s32.totalorder %s21, 1
        %s357 = scalar_select %p356, %s21, 1
        %s358 = smul.addr %s357, 2
        %s359 = smul.addr %s358, 8
        %s360 = scalar_lea.vmem %s2, %s359
        %p361 = pneg %p106
        %p362 = pneg %p103
        %p363 = scmp.lt.s32.totalorder %s21, 1
        %s364 = scalar_select %p363, %s21, 1
        %s365 = smul.addr %s364, 2
        %s366 = smul.addr %s365, 8
        %s367 = scalar_lea.vmem %s3, %s366
        %p368 = pneg %p132
        %p369 = pneg %p129
        %p370 = pneg %p158
        %p371 = pneg %p155
        %p372 = scmp.lt.s32.totalorder %s21, 1
        %s373 = scalar_select %p372, %s21, 1
        %s374 = smul.addr %s373, 2
        %s375 = smul.addr %s374, 8
        %s376 = scalar_lea.vmem %s4, %s375
        %p377 = pneg %p186
        %p378 = pneg %p183
        %s379 = sand.u32 %s173, 1
        %s380 = sand.u32 %s173, 1
        %s381 = smul.addr %s380, 256
        %s382 = scalar_lea.vmem [#allocation3], %s381
        %s383 = smul.u32 16, %s22
        %s384 = smul.u32 256, %s22
        %p385 = scmp.lt.s32.totalorder %s21, 1
        %s386 = scalar_select %p385, %s21, 1
        %p387 = scmp.lt.s32.totalorder %s384, 511
        %s388 = scalar_select %p387, %s384, 511
        %s389 = smul.addr %s386, 512
        %s390 = sadd.s32 %s388, %s389
        %s391 = smul.addr %s390, 8
        %s392 = scalar_lea.vmem %s1, %s391
        %s393 = smul.u32 256, %s22
        %p394 = scmp.lt.s32.totalorder %s21, 1
        %s395 = scalar_select %p394, %s21, 1
        %s396 = smul.addr %s395, 2
        %s397 = smul.addr %s396, 8
        %s398 = scalar_lea.vmem %s2, %s397
        %p399 = scmp.lt.s32.totalorder %s21, 1
        %s400 = scalar_select %p399, %s21, 1
        %s401 = smul.addr %s400, 2
        %s402 = smul.addr %s401, 8
        %s403 = scalar_lea.vmem %s3, %s402
        %p404 = scmp.lt.s32.totalorder %s21, 1
        %s405 = scalar_select %p404, %s21, 1
        %s406 = smul.addr %s405, 2
        %s407 = smul.addr %s406, 8
        %s408 = scalar_lea.vmem %s4, %s407
        %s409 = smul.u32 16, %s22
        %p410 = scmp.eq.s32.totalorder %s22, 0
        // Predicated region
        $region60: #{_lambda_.7} parent=54 // pred_check
          %p411 = pneg %p410
        $region61: #{_lambda_.7} parent=54 // pred_check_branch
          %413 = sbr.rel (%p411) target = $region63
        $region62: #{_lambda_.7} parent=54 // pred_region
          %vm414 = vcmask 23552
          %415 = vst.msk [vmem:[%s408] sm:$0xff] %vm414, 0.0
          %416 = vst.msk [vmem:[%s408 + $0x8] sm:$0xff] %vm414, 0.0
        $region63: #{_lambda_.7} parent=54 // pred_fallthru
          _
        %v417 = vld [vmem:[%s335] sm:$0xff]
        %v418 = vld [vmem:[%s335 + $0x8] sm:$0xff]
        %v419 = vld [vmem:[%s335 + $0x10] sm:$0xff]
        %v420 = vld [vmem:[%s335 + $0x18] sm:$0xff]
        %v421 = vld [vmem:[%s335 + $0x20] sm:$0xff]
        %v422 = vld [vmem:[%s335 + $0x28] sm:$0xff]
        %v423 = vld [vmem:[%s335 + $0x30] sm:$0xff]
        %v424 = vld [vmem:[%s335 + $0x38] sm:$0xff]
        %v425 = vld [vmem:[%s335 + $0x40] sm:$0xff]
        %v426 = vld [vmem:[%s335 + $0x48] sm:$0xff]
        %v427 = vld [vmem:[%s335 + $0x50] sm:$0xff]
        %v428 = vld [vmem:[%s335 + $0x58] sm:$0xff]
        %v429 = vld [vmem:[%s335 + $0x60] sm:$0xff]
        %v430 = vld [vmem:[%s335 + $0x68] sm:$0xff]
        %v431 = vld [vmem:[%s335 + $0x70] sm:$0xff]
        %v432 = vld [vmem:[%s335 + $0x78] sm:$0xff]
        %v433 = vld [vmem:[%s335 + $0x80] sm:$0xff]
        %v434 = vld [vmem:[%s335 + $0x88] sm:$0xff]
        %v435 = vld [vmem:[%s335 + $0x90] sm:$0xff]
        %v436 = vld [vmem:[%s335 + $0x98] sm:$0xff]
        %v437 = vld [vmem:[%s335 + $0xa0] sm:$0xff]
        %v438 = vld [vmem:[%s335 + $0xa8] sm:$0xff]
        %v439 = vld [vmem:[%s335 + $0xb0] sm:$0xff]
        %v440 = vld [vmem:[%s335 + $0xb8] sm:$0xff]
        %v441 = vld [vmem:[%s335 + $0xc0] sm:$0xff]
        %v442 = vld [vmem:[%s335 + $0xc8] sm:$0xff]
        %v443 = vld [vmem:[%s335 + $0xd0] sm:$0xff]
        %v444 = vld [vmem:[%s335 + $0xd8] sm:$0xff]
        %v445 = vld [vmem:[%s335 + $0xe0] sm:$0xff]
        %v446 = vld [vmem:[%s335 + $0xe8] sm:$0xff]
        %v447 = vld [vmem:[%s335 + $0xf0] sm:$0xff]
        %v448 = vld [vmem:[%s335 + $0xf8] sm:$0xff]
        %v449 = vld [vmem:[%s403] sm:$0xff]
        %v450 = vld [vmem:[%s403 + $0x8] sm:$0xff]
        %v451 = vrcp.pop %v449
        %v452 = vmul.f32 1.0, %v451
        %v453 = vrcp.pop %v450
        %v454 = vmul.f32 1.0, %v453
        %v455 = vld [vmem:[%s398] sm:$0xff]
        %v456 = vld [vmem:[%s398 + $0x8] sm:$0xff]
        %458 = vset.pattern.permute.xlu0 0
        %459 = vperm.xlu0 %458, %v455
        %v460 = vpop.permute.xlu0 %459
        %463 = vset.pattern.permute.xlu0 0
        %464 = vperm.xlu0 %463, %v456
        %v465 = vpop.permute.xlu0 %464
        %v467 = vsub.f32 %v417, %v460
        %v468 = vsub.f32 %v418, %v460
        %v469 = vsub.f32 %v419, %v460
        %v470 = vsub.f32 %v420, %v460
        %v471 = vsub.f32 %v421, %v460
        %v472 = vsub.f32 %v422, %v460
        %v473 = vsub.f32 %v423, %v460
        %v474 = vsub.f32 %v424, %v460
        %v475 = vsub.f32 %v425, %v460
        %v476 = vsub.f32 %v426, %v460
        %v477 = vsub.f32 %v427, %v460
        %v478 = vsub.f32 %v428, %v460
        %v479 = vsub.f32 %v429, %v460
        %v480 = vsub.f32 %v430, %v460
        %v481 = vsub.f32 %v431, %v460
        %v482 = vsub.f32 %v432, %v460
        %v483 = vsub.f32 %v433, %v465
        %v484 = vsub.f32 %v434, %v465
        %v485 = vsub.f32 %v435, %v465
        %v486 = vsub.f32 %v436, %v465
        %v487 = vsub.f32 %v437, %v465
        %v488 = vsub.f32 %v438, %v465
        %v489 = vsub.f32 %v439, %v465
        %v490 = vsub.f32 %v440, %v465
        %v491 = vsub.f32 %v441, %v465
        %v492 = vsub.f32 %v442, %v465
        %v493 = vsub.f32 %v443, %v465
        %v494 = vsub.f32 %v444, %v465
        %v495 = vsub.f32 %v445, %v465
        %v496 = vsub.f32 %v446, %v465
        %v497 = vsub.f32 %v447, %v465
        %v498 = vsub.f32 %v448, %v465
        %v499 = vmul.f32 %v467, 1.442695
        %v500 = vpow.pop %v499
        %v501 = vmul.f32 %v468, 1.442695
        %v502 = vpow.pop %v501
        %v503 = vmul.f32 %v469, 1.442695
        %v504 = vpow.pop %v503
        %v505 = vmul.f32 %v470, 1.442695
        %v506 = vpow.pop %v505
        %v507 = vmul.f32 %v471, 1.442695
        %v508 = vpow.pop %v507
        %v509 = vmul.f32 %v472, 1.442695
        %v510 = vpow.pop %v509
        %v511 = vmul.f32 %v473, 1.442695
        %v512 = vpow.pop %v511
        %v513 = vmul.f32 %v474, 1.442695
        %v514 = vpow.pop %v513
        %v515 = vmul.f32 %v475, 1.442695
        %v516 = vpow.pop %v515
        %v517 = vmul.f32 %v476, 1.442695
        %v518 = vpow.pop %v517
        %v519 = vmul.f32 %v477, 1.442695
        %v520 = vpow.pop %v519
        %v521 = vmul.f32 %v478, 1.442695
        %v522 = vpow.pop %v521
        %v523 = vmul.f32 %v479, 1.442695
        %v524 = vpow.pop %v523
        %v525 = vmul.f32 %v480, 1.442695
        %v526 = vpow.pop %v525
        %v527 = vmul.f32 %v481, 1.442695
        %v528 = vpow.pop %v527
        %v529 = vmul.f32 %v482, 1.442695
        %v530 = vpow.pop %v529
        %v531 = vmul.f32 %v483, 1.442695
        %v532 = vpow.pop %v531
        %v533 = vmul.f32 %v484, 1.442695
        %v534 = vpow.pop %v533
        %v535 = vmul.f32 %v485, 1.442695
        %v536 = vpow.pop %v535
        %v537 = vmul.f32 %v486, 1.442695
        %v538 = vpow.pop %v537
        %v539 = vmul.f32 %v487, 1.442695
        %v540 = vpow.pop %v539
        %v541 = vmul.f32 %v488, 1.442695
        %v542 = vpow.pop %v541
        %v543 = vmul.f32 %v489, 1.442695
        %v544 = vpow.pop %v543
        %v545 = vmul.f32 %v490, 1.442695
        %v546 = vpow.pop %v545
        %v547 = vmul.f32 %v491, 1.442695
        %v548 = vpow.pop %v547
        %v549 = vmul.f32 %v492, 1.442695
        %v550 = vpow.pop %v549
        %v551 = vmul.f32 %v493, 1.442695
        %v552 = vpow.pop %v551
        %v553 = vmul.f32 %v494, 1.442695
        %v554 = vpow.pop %v553
        %v555 = vmul.f32 %v495, 1.442695
        %v556 = vpow.pop %v555
        %v557 = vmul.f32 %v496, 1.442695
        %v558 = vpow.pop %v557
        %v559 = vmul.f32 %v497, 1.442695
        %v560 = vpow.pop %v559
        %v561 = vmul.f32 %v498, 1.442695
        %v562 = vpow.pop %v561
        %564 = vset.pattern.permute.xlu0 0
        %565 = vperm.xlu0 %564, %v452
        %v566 = vpop.permute.xlu0 %565
        %569 = vset.pattern.permute.xlu0 0
        %570 = vperm.xlu0 %569, %v454
        %v571 = vpop.permute.xlu0 %570
        %v573 = vmul.f32 %v500, %v566
        %v574 = vmul.f32 %v502, %v566
        %v575 = vmul.f32 %v504, %v566
        %v576 = vmul.f32 %v506, %v566
        %v577 = vmul.f32 %v508, %v566
        %v578 = vmul.f32 %v510, %v566
        %v579 = vmul.f32 %v512, %v566
        %v580 = vmul.f32 %v514, %v566
        %v581 = vmul.f32 %v516, %v566
        %v582 = vmul.f32 %v518, %v566
        %v583 = vmul.f32 %v520, %v566
        %v584 = vmul.f32 %v522, %v566
        %v585 = vmul.f32 %v524, %v566
        %v586 = vmul.f32 %v526, %v566
        %v587 = vmul.f32 %v528, %v566
        %v588 = vmul.f32 %v530, %v566
        %v589 = vmul.f32 %v532, %v571
        %v590 = vmul.f32 %v534, %v571
        %v591 = vmul.f32 %v536, %v571
        %v592 = vmul.f32 %v538, %v571
        %v593 = vmul.f32 %v540, %v571
        %v594 = vmul.f32 %v542, %v571
        %v595 = vmul.f32 %v544, %v571
        %v596 = vmul.f32 %v546, %v571
        %v597 = vmul.f32 %v548, %v571
        %v598 = vmul.f32 %v550, %v571
        %v599 = vmul.f32 %v552, %v571
        %v600 = vmul.f32 %v554, %v571
        %v601 = vmul.f32 %v556, %v571
        %v602 = vmul.f32 %v558, %v571
        %v603 = vmul.f32 %v560, %v571
        %v604 = vmul.f32 %v562, %v571
        %605 = vst [vmem:[%s382] sm:$0xff] %v573
        %606 = vst [vmem:[%s382 + $0x8] sm:$0xff] %v574
        %607 = vst [vmem:[%s382 + $0x10] sm:$0xff] %v575
        %608 = vst [vmem:[%s382 + $0x18] sm:$0xff] %v576
        %609 = vst [vmem:[%s382 + $0x20] sm:$0xff] %v577
        %610 = vst [vmem:[%s382 + $0x28] sm:$0xff] %v578
        %611 = vst [vmem:[%s382 + $0x30] sm:$0xff] %v579
        %612 = vst [vmem:[%s382 + $0x38] sm:$0xff] %v580
        %613 = vst [vmem:[%s382 + $0x40] sm:$0xff] %v581
        %614 = vst [vmem:[%s382 + $0x48] sm:$0xff] %v582
        %615 = vst [vmem:[%s382 + $0x50] sm:$0xff] %v583
        %616 = vst [vmem:[%s382 + $0x58] sm:$0xff] %v584
        %617 = vst [vmem:[%s382 + $0x60] sm:$0xff] %v585
        %618 = vst [vmem:[%s382 + $0x68] sm:$0xff] %v586
        %619 = vst [vmem:[%s382 + $0x70] sm:$0xff] %v587
        %620 = vst [vmem:[%s382 + $0x78] sm:$0xff] %v588
        %621 = vst [vmem:[%s382 + $0x80] sm:$0xff] %v589
        %622 = vst [vmem:[%s382 + $0x88] sm:$0xff] %v590
        %623 = vst [vmem:[%s382 + $0x90] sm:$0xff] %v591
        %624 = vst [vmem:[%s382 + $0x98] sm:$0xff] %v592
        %625 = vst [vmem:[%s382 + $0xa0] sm:$0xff] %v593
        %626 = vst [vmem:[%s382 + $0xa8] sm:$0xff] %v594
        %627 = vst [vmem:[%s382 + $0xb0] sm:$0xff] %v595
        %628 = vst [vmem:[%s382 + $0xb8] sm:$0xff] %v596
        %629 = vst [vmem:[%s382 + $0xc0] sm:$0xff] %v597
        %630 = vst [vmem:[%s382 + $0xc8] sm:$0xff] %v598
        %631 = vst [vmem:[%s382 + $0xd0] sm:$0xff] %v599
        %632 = vst [vmem:[%s382 + $0xd8] sm:$0xff] %v600
        %633 = vst [vmem:[%s382 + $0xe0] sm:$0xff] %v601
        %634 = vst [vmem:[%s382 + $0xe8] sm:$0xff] %v602
        %635 = vst [vmem:[%s382 + $0xf0] sm:$0xff] %v603
        %636 = vst [vmem:[%s382 + $0xf8] sm:$0xff] %v604
        %v637 = vld [vmem:[%s408] sm:$0xff]
        %v638 = vld [vmem:[%s408 + $0x8] sm:$0xff]
        %v639 = vld [vmem:[%s392] sm:$0xff]
        %v640 = vld [vmem:[%s392 + $0x8] sm:$0xff]
        %v641 = vld [vmem:[%s392 + $0x10] sm:$0xff]
        %v642 = vld [vmem:[%s392 + $0x18] sm:$0xff]
        %v643 = vld [vmem:[%s392 + $0x20] sm:$0xff]
        %v644 = vld [vmem:[%s392 + $0x28] sm:$0xff]
        %v645 = vld [vmem:[%s392 + $0x30] sm:$0xff]
        %v646 = vld [vmem:[%s392 + $0x38] sm:$0xff]
        %v647 = vld [vmem:[%s392 + $0x40] sm:$0xff]
        %v648 = vld [vmem:[%s392 + $0x48] sm:$0xff]
        %v649 = vld [vmem:[%s392 + $0x50] sm:$0xff]
        %v650 = vld [vmem:[%s392 + $0x58] sm:$0xff]
        %v651 = vld [vmem:[%s392 + $0x60] sm:$0xff]
        %v652 = vld [vmem:[%s392 + $0x68] sm:$0xff]
        %v653 = vld [vmem:[%s392 + $0x70] sm:$0xff]
        %v654 = vld [vmem:[%s392 + $0x78] sm:$0xff]
        %v655 = vld [vmem:[%s392 + $0x80] sm:$0xff]
        %v656 = vld [vmem:[%s392 + $0x88] sm:$0xff]
        %v657 = vld [vmem:[%s392 + $0x90] sm:$0xff]
        %v658 = vld [vmem:[%s392 + $0x98] sm:$0xff]
        %v659 = vld [vmem:[%s392 + $0xa0] sm:$0xff]
        %v660 = vld [vmem:[%s392 + $0xa8] sm:$0xff]
        %v661 = vld [vmem:[%s392 + $0xb0] sm:$0xff]
        %v662 = vld [vmem:[%s392 + $0xb8] sm:$0xff]
        %v663 = vld [vmem:[%s392 + $0xc0] sm:$0xff]
        %v664 = vld [vmem:[%s392 + $0xc8] sm:$0xff]
        %v665 = vld [vmem:[%s392 + $0xd0] sm:$0xff]
        %v666 = vld [vmem:[%s392 + $0xd8] sm:$0xff]
        %v667 = vld [vmem:[%s392 + $0xe0] sm:$0xff]
        %v668 = vld [vmem:[%s392 + $0xe8] sm:$0xff]
        %v669 = vld [vmem:[%s392 + $0xf0] sm:$0xff]
        %v670 = vld [vmem:[%s392 + $0xf8] sm:$0xff]
        %v671 = vld [vmem:[%s392 + $0x100] sm:$0xff]
        %v672 = vld [vmem:[%s392 + $0x108] sm:$0xff]
        %v673 = vld [vmem:[%s392 + $0x110] sm:$0xff]
        %v674 = vld [vmem:[%s392 + $0x118] sm:$0xff]
        %v675 = vld [vmem:[%s392 + $0x120] sm:$0xff]
        %v676 = vld [vmem:[%s392 + $0x128] sm:$0xff]
        %v677 = vld [vmem:[%s392 + $0x130] sm:$0xff]
        %v678 = vld [vmem:[%s392 + $0x138] sm:$0xff]
        %v679 = vld [vmem:[%s392 + $0x140] sm:$0xff]
        %v680 = vld [vmem:[%s392 + $0x148] sm:$0xff]
        %v681 = vld [vmem:[%s392 + $0x150] sm:$0xff]
        %v682 = vld [vmem:[%s392 + $0x158] sm:$0xff]
        %v683 = vld [vmem:[%s392 + $0x160] sm:$0xff]
        %v684 = vld [vmem:[%s392 + $0x168] sm:$0xff]
        %v685 = vld [vmem:[%s392 + $0x170] sm:$0xff]
        %v686 = vld [vmem:[%s392 + $0x178] sm:$0xff]
        %v687 = vld [vmem:[%s392 + $0x180] sm:$0xff]
        %v688 = vld [vmem:[%s392 + $0x188] sm:$0xff]
        %v689 = vld [vmem:[%s392 + $0x190] sm:$0xff]
        %v690 = vld [vmem:[%s392 + $0x198] sm:$0xff]
        %v691 = vld [vmem:[%s392 + $0x1a0] sm:$0xff]
        %v692 = vld [vmem:[%s392 + $0x1a8] sm:$0xff]
        %v693 = vld [vmem:[%s392 + $0x1b0] sm:$0xff]
        %v694 = vld [vmem:[%s392 + $0x1b8] sm:$0xff]
        %v695 = vld [vmem:[%s392 + $0x1c0] sm:$0xff]
        %v696 = vld [vmem:[%s392 + $0x1c8] sm:$0xff]
        %v697 = vld [vmem:[%s392 + $0x1d0] sm:$0xff]
        %v698 = vld [vmem:[%s392 + $0x1d8] sm:$0xff]
        %v699 = vld [vmem:[%s392 + $0x1e0] sm:$0xff]
        %v700 = vld [vmem:[%s392 + $0x1e8] sm:$0xff]
        %v701 = vld [vmem:[%s392 + $0x1f0] sm:$0xff]
        %v702 = vld [vmem:[%s392 + $0x1f8] sm:$0xff]
        %v703 = vld [vmem:[%s392 + $0x200] sm:$0xff]
        %v704 = vld [vmem:[%s392 + $0x208] sm:$0xff]
        %v705 = vld [vmem:[%s392 + $0x210] sm:$0xff]
        %v706 = vld [vmem:[%s392 + $0x218] sm:$0xff]
        %v707 = vld [vmem:[%s392 + $0x220] sm:$0xff]
        %v708 = vld [vmem:[%s392 + $0x228] sm:$0xff]
        %v709 = vld [vmem:[%s392 + $0x230] sm:$0xff]
        %v710 = vld [vmem:[%s392 + $0x238] sm:$0xff]
        %v711 = vld [vmem:[%s392 + $0x240] sm:$0xff]
        %v712 = vld [vmem:[%s392 + $0x248] sm:$0xff]
        %v713 = vld [vmem:[%s392 + $0x250] sm:$0xff]
        %v714 = vld [vmem:[%s392 + $0x258] sm:$0xff]
        %v715 = vld [vmem:[%s392 + $0x260] sm:$0xff]
        %v716 = vld [vmem:[%s392 + $0x268] sm:$0xff]
        %v717 = vld [vmem:[%s392 + $0x270] sm:$0xff]
        %v718 = vld [vmem:[%s392 + $0x278] sm:$0xff]
        %v719 = vld [vmem:[%s392 + $0x280] sm:$0xff]
        %v720 = vld [vmem:[%s392 + $0x288] sm:$0xff]
        %v721 = vld [vmem:[%s392 + $0x290] sm:$0xff]
        %v722 = vld [vmem:[%s392 + $0x298] sm:$0xff]
        %v723 = vld [vmem:[%s392 + $0x2a0] sm:$0xff]
        %v724 = vld [vmem:[%s392 + $0x2a8] sm:$0xff]
        %v725 = vld [vmem:[%s392 + $0x2b0] sm:$0xff]
        %v726 = vld [vmem:[%s392 + $0x2b8] sm:$0xff]
        %v727 = vld [vmem:[%s392 + $0x2c0] sm:$0xff]
        %v728 = vld [vmem:[%s392 + $0x2c8] sm:$0xff]
        %v729 = vld [vmem:[%s392 + $0x2d0] sm:$0xff]
        %v730 = vld [vmem:[%s392 + $0x2d8] sm:$0xff]
        %v731 = vld [vmem:[%s392 + $0x2e0] sm:$0xff]
        %v732 = vld [vmem:[%s392 + $0x2e8] sm:$0xff]
        %v733 = vld [vmem:[%s392 + $0x2f0] sm:$0xff]
        %v734 = vld [vmem:[%s392 + $0x2f8] sm:$0xff]
        %v735 = vld [vmem:[%s392 + $0x300] sm:$0xff]
        %v736 = vld [vmem:[%s392 + $0x308] sm:$0xff]
        %v737 = vld [vmem:[%s392 + $0x310] sm:$0xff]
        %v738 = vld [vmem:[%s392 + $0x318] sm:$0xff]
        %v739 = vld [vmem:[%s392 + $0x320] sm:$0xff]
        %v740 = vld [vmem:[%s392 + $0x328] sm:$0xff]
        %v741 = vld [vmem:[%s392 + $0x330] sm:$0xff]
        %v742 = vld [vmem:[%s392 + $0x338] sm:$0xff]
        %v743 = vld [vmem:[%s392 + $0x340] sm:$0xff]
        %v744 = vld [vmem:[%s392 + $0x348] sm:$0xff]
        %v745 = vld [vmem:[%s392 + $0x350] sm:$0xff]
        %v746 = vld [vmem:[%s392 + $0x358] sm:$0xff]
        %v747 = vld [vmem:[%s392 + $0x360] sm:$0xff]
        %v748 = vld [vmem:[%s392 + $0x368] sm:$0xff]
        %v749 = vld [vmem:[%s392 + $0x370] sm:$0xff]
        %v750 = vld [vmem:[%s392 + $0x378] sm:$0xff]
        %v751 = vld [vmem:[%s392 + $0x380] sm:$0xff]
        %v752 = vld [vmem:[%s392 + $0x388] sm:$0xff]
        %v753 = vld [vmem:[%s392 + $0x390] sm:$0xff]
        %v754 = vld [vmem:[%s392 + $0x398] sm:$0xff]
        %v755 = vld [vmem:[%s392 + $0x3a0] sm:$0xff]
        %v756 = vld [vmem:[%s392 + $0x3a8] sm:$0xff]
        %v757 = vld [vmem:[%s392 + $0x3b0] sm:$0xff]
        %v758 = vld [vmem:[%s392 + $0x3b8] sm:$0xff]
        %v759 = vld [vmem:[%s392 + $0x3c0] sm:$0xff]
        %v760 = vld [vmem:[%s392 + $0x3c8] sm:$0xff]
        %v761 = vld [vmem:[%s392 + $0x3d0] sm:$0xff]
        %v762 = vld [vmem:[%s392 + $0x3d8] sm:$0xff]
        %v763 = vld [vmem:[%s392 + $0x3e0] sm:$0xff]
        %v764 = vld [vmem:[%s392 + $0x3e8] sm:$0xff]
        %v765 = vld [vmem:[%s392 + $0x3f0] sm:$0xff]
        %v766 = vld [vmem:[%s392 + $0x3f8] sm:$0xff]
        %v767 = vld [vmem:[%s392 + $0x400] sm:$0xff]
        %v768 = vld [vmem:[%s392 + $0x408] sm:$0xff]
        %v769 = vld [vmem:[%s392 + $0x410] sm:$0xff]
        %v770 = vld [vmem:[%s392 + $0x418] sm:$0xff]
        %v771 = vld [vmem:[%s392 + $0x420] sm:$0xff]
        %v772 = vld [vmem:[%s392 + $0x428] sm:$0xff]
        %v773 = vld [vmem:[%s392 + $0x430] sm:$0xff]
        %v774 = vld [vmem:[%s392 + $0x438] sm:$0xff]
        %v775 = vld [vmem:[%s392 + $0x440] sm:$0xff]
        %v776 = vld [vmem:[%s392 + $0x448] sm:$0xff]
        %v777 = vld [vmem:[%s392 + $0x450] sm:$0xff]
        %v778 = vld [vmem:[%s392 + $0x458] sm:$0xff]
        %v779 = vld [vmem:[%s392 + $0x460] sm:$0xff]
        %v780 = vld [vmem:[%s392 + $0x468] sm:$0xff]
        %v781 = vld [vmem:[%s392 + $0x470] sm:$0xff]
        %v782 = vld [vmem:[%s392 + $0x478] sm:$0xff]
        %v783 = vld [vmem:[%s392 + $0x480] sm:$0xff]
        %v784 = vld [vmem:[%s392 + $0x488] sm:$0xff]
        %v785 = vld [vmem:[%s392 + $0x490] sm:$0xff]
        %v786 = vld [vmem:[%s392 + $0x498] sm:$0xff]
        %v787 = vld [vmem:[%s392 + $0x4a0] sm:$0xff]
        %v788 = vld [vmem:[%s392 + $0x4a8] sm:$0xff]
        %v789 = vld [vmem:[%s392 + $0x4b0] sm:$0xff]
        %v790 = vld [vmem:[%s392 + $0x4b8] sm:$0xff]
        %v791 = vld [vmem:[%s392 + $0x4c0] sm:$0xff]
        %v792 = vld [vmem:[%s392 + $0x4c8] sm:$0xff]
        %v793 = vld [vmem:[%s392 + $0x4d0] sm:$0xff]
        %v794 = vld [vmem:[%s392 + $0x4d8] sm:$0xff]
        %v795 = vld [vmem:[%s392 + $0x4e0] sm:$0xff]
        %v796 = vld [vmem:[%s392 + $0x4e8] sm:$0xff]
        %v797 = vld [vmem:[%s392 + $0x4f0] sm:$0xff]
        %v798 = vld [vmem:[%s392 + $0x4f8] sm:$0xff]
        %v799 = vld [vmem:[%s392 + $0x500] sm:$0xff]
        %v800 = vld [vmem:[%s392 + $0x508] sm:$0xff]
        %v801 = vld [vmem:[%s392 + $0x510] sm:$0xff]
        %v802 = vld [vmem:[%s392 + $0x518] sm:$0xff]
        %v803 = vld [vmem:[%s392 + $0x520] sm:$0xff]
        %v804 = vld [vmem:[%s392 + $0x528] sm:$0xff]
        %v805 = vld [vmem:[%s392 + $0x530] sm:$0xff]
        %v806 = vld [vmem:[%s392 + $0x538] sm:$0xff]
        %v807 = vld [vmem:[%s392 + $0x540] sm:$0xff]
        %v808 = vld [vmem:[%s392 + $0x548] sm:$0xff]
        %v809 = vld [vmem:[%s392 + $0x550] sm:$0xff]
        %v810 = vld [vmem:[%s392 + $0x558] sm:$0xff]
        %v811 = vld [vmem:[%s392 + $0x560] sm:$0xff]
        %v812 = vld [vmem:[%s392 + $0x568] sm:$0xff]
        %v813 = vld [vmem:[%s392 + $0x570] sm:$0xff]
        %v814 = vld [vmem:[%s392 + $0x578] sm:$0xff]
        %v815 = vld [vmem:[%s392 + $0x580] sm:$0xff]
        %v816 = vld [vmem:[%s392 + $0x588] sm:$0xff]
        %v817 = vld [vmem:[%s392 + $0x590] sm:$0xff]
        %v818 = vld [vmem:[%s392 + $0x598] sm:$0xff]
        %v819 = vld [vmem:[%s392 + $0x5a0] sm:$0xff]
        %v820 = vld [vmem:[%s392 + $0x5a8] sm:$0xff]
        %v821 = vld [vmem:[%s392 + $0x5b0] sm:$0xff]
        %v822 = vld [vmem:[%s392 + $0x5b8] sm:$0xff]
        %v823 = vld [vmem:[%s392 + $0x5c0] sm:$0xff]
        %v824 = vld [vmem:[%s392 + $0x5c8] sm:$0xff]
        %v825 = vld [vmem:[%s392 + $0x5d0] sm:$0xff]
        %v826 = vld [vmem:[%s392 + $0x5d8] sm:$0xff]
        %v827 = vld [vmem:[%s392 + $0x5e0] sm:$0xff]
        %v828 = vld [vmem:[%s392 + $0x5e8] sm:$0xff]
        %v829 = vld [vmem:[%s392 + $0x5f0] sm:$0xff]
        %v830 = vld [vmem:[%s392 + $0x5f8] sm:$0xff]
        %v831 = vld [vmem:[%s392 + $0x600] sm:$0xff]
        %v832 = vld [vmem:[%s392 + $0x608] sm:$0xff]
        %v833 = vld [vmem:[%s392 + $0x610] sm:$0xff]
        %v834 = vld [vmem:[%s392 + $0x618] sm:$0xff]
        %v835 = vld [vmem:[%s392 + $0x620] sm:$0xff]
        %v836 = vld [vmem:[%s392 + $0x628] sm:$0xff]
        %v837 = vld [vmem:[%s392 + $0x630] sm:$0xff]
        %v838 = vld [vmem:[%s392 + $0x638] sm:$0xff]
        %v839 = vld [vmem:[%s392 + $0x640] sm:$0xff]
        %v840 = vld [vmem:[%s392 + $0x648] sm:$0xff]
        %v841 = vld [vmem:[%s392 + $0x650] sm:$0xff]
        %v842 = vld [vmem:[%s392 + $0x658] sm:$0xff]
        %v843 = vld [vmem:[%s392 + $0x660] sm:$0xff]
        %v844 = vld [vmem:[%s392 + $0x668] sm:$0xff]
        %v845 = vld [vmem:[%s392 + $0x670] sm:$0xff]
        %v846 = vld [vmem:[%s392 + $0x678] sm:$0xff]
        %v847 = vld [vmem:[%s392 + $0x680] sm:$0xff]
        %v848 = vld [vmem:[%s392 + $0x688] sm:$0xff]
        %v849 = vld [vmem:[%s392 + $0x690] sm:$0xff]
        %v850 = vld [vmem:[%s392 + $0x698] sm:$0xff]
        %v851 = vld [vmem:[%s392 + $0x6a0] sm:$0xff]
        %v852 = vld [vmem:[%s392 + $0x6a8] sm:$0xff]
        %v853 = vld [vmem:[%s392 + $0x6b0] sm:$0xff]
        %v854 = vld [vmem:[%s392 + $0x6b8] sm:$0xff]
        %v855 = vld [vmem:[%s392 + $0x6c0] sm:$0xff]
        %v856 = vld [vmem:[%s392 + $0x6c8] sm:$0xff]
        %v857 = vld [vmem:[%s392 + $0x6d0] sm:$0xff]
        %v858 = vld [vmem:[%s392 + $0x6d8] sm:$0xff]
        %v859 = vld [vmem:[%s392 + $0x6e0] sm:$0xff]
        %v860 = vld [vmem:[%s392 + $0x6e8] sm:$0xff]
        %v861 = vld [vmem:[%s392 + $0x6f0] sm:$0xff]
        %v862 = vld [vmem:[%s392 + $0x6f8] sm:$0xff]
        %v863 = vld [vmem:[%s392 + $0x700] sm:$0xff]
        %v864 = vld [vmem:[%s392 + $0x708] sm:$0xff]
        %v865 = vld [vmem:[%s392 + $0x710] sm:$0xff]
        %v866 = vld [vmem:[%s392 + $0x718] sm:$0xff]
        %v867 = vld [vmem:[%s392 + $0x720] sm:$0xff]
        %v868 = vld [vmem:[%s392 + $0x728] sm:$0xff]
        %v869 = vld [vmem:[%s392 + $0x730] sm:$0xff]
        %v870 = vld [vmem:[%s392 + $0x738] sm:$0xff]
        %v871 = vld [vmem:[%s392 + $0x740] sm:$0xff]
        %v872 = vld [vmem:[%s392 + $0x748] sm:$0xff]
        %v873 = vld [vmem:[%s392 + $0x750] sm:$0xff]
        %v874 = vld [vmem:[%s392 + $0x758] sm:$0xff]
        %v875 = vld [vmem:[%s392 + $0x760] sm:$0xff]
        %v876 = vld [vmem:[%s392 + $0x768] sm:$0xff]
        %v877 = vld [vmem:[%s392 + $0x770] sm:$0xff]
        %v878 = vld [vmem:[%s392 + $0x778] sm:$0xff]
        %v879 = vld [vmem:[%s392 + $0x780] sm:$0xff]
        %v880 = vld [vmem:[%s392 + $0x788] sm:$0xff]
        %v881 = vld [vmem:[%s392 + $0x790] sm:$0xff]
        %v882 = vld [vmem:[%s392 + $0x798] sm:$0xff]
        %v883 = vld [vmem:[%s392 + $0x7a0] sm:$0xff]
        %v884 = vld [vmem:[%s392 + $0x7a8] sm:$0xff]
        %v885 = vld [vmem:[%s392 + $0x7b0] sm:$0xff]
        %v886 = vld [vmem:[%s392 + $0x7b8] sm:$0xff]
        %v887 = vld [vmem:[%s392 + $0x7c0] sm:$0xff]
        %v888 = vld [vmem:[%s392 + $0x7c8] sm:$0xff]
        %v889 = vld [vmem:[%s392 + $0x7d0] sm:$0xff]
        %v890 = vld [vmem:[%s392 + $0x7d8] sm:$0xff]
        %v891 = vld [vmem:[%s392 + $0x7e0] sm:$0xff]
        %v892 = vld [vmem:[%s392 + $0x7e8] sm:$0xff]
        %v893 = vld [vmem:[%s392 + $0x7f0] sm:$0xff]
        %v894 = vld [vmem:[%s392 + $0x7f8] sm:$0xff]
        %895 = vmatprep.subr.mxu0 0.0
        %896 = vmatpush1.msra.mxu0 %v639
        %897 = vmatprep.subr.mxu0 0.0
        %898 = vmatpush1.msra.mxu0 %v640
        %899 = vmatprep.subr.mxu0 0.0
        %900 = vmatpush1.msra.mxu0 %v641
        %901 = vmatprep.subr.mxu0 0.0
        %902 = vmatpush1.msra.mxu0 %v642
        %903 = vmatprep.subr.mxu0 0.0
        %904 = vmatpush1.msra.mxu0 %v643
        %905 = vmatprep.subr.mxu0 0.0
        %906 = vmatpush1.msra.mxu0 %v644
        %907 = vmatprep.subr.mxu0 0.0
        %908 = vmatpush1.msra.mxu0 %v645
        %909 = vmatprep.subr.mxu0 0.0
        %910 = vmatpush1.msra.mxu0 %v646
        %911 = vmatprep.subr.mxu0 0.0
        %912 = vmatpush1.msra.mxu0 %v647
        %913 = vmatprep.subr.mxu0 0.0
        %914 = vmatpush1.msra.mxu0 %v648
        %915 = vmatprep.subr.mxu0 0.0
        %916 = vmatpush1.msra.mxu0 %v649
        %917 = vmatprep.subr.mxu0 0.0
        %918 = vmatpush1.msra.mxu0 %v650
        %919 = vmatprep.subr.mxu0 0.0
        %920 = vmatpush1.msra.mxu0 %v651
        %921 = vmatprep.subr.mxu0 0.0
        %922 = vmatpush1.msra.mxu0 %v652
        %923 = vmatprep.subr.mxu0 0.0
        %924 = vmatpush1.msra.mxu0 %v653
        %925 = vmatprep.subr.mxu0 0.0
        %926 = vmatpush1.msra.mxu0 %v654
        %927 = vmatprep.subr.mxu0 0.0
        %928 = vmatpush1.msra.mxu0 %v655
        %929 = vmatprep.subr.mxu0 0.0
        %930 = vmatpush1.msra.mxu0 %v656
        %931 = vmatprep.subr.mxu0 0.0
        %932 = vmatpush1.msra.mxu0 %v657
        %933 = vmatprep.subr.mxu0 0.0
        %934 = vmatpush1.msra.mxu0 %v658
        %935 = vmatprep.subr.mxu0 0.0
        %936 = vmatpush1.msra.mxu0 %v659
        %937 = vmatprep.subr.mxu0 0.0
        %938 = vmatpush1.msra.mxu0 %v660
        %939 = vmatprep.subr.mxu0 0.0
        %940 = vmatpush1.msra.mxu0 %v661
        %941 = vmatprep.subr.mxu0 0.0
        %942 = vmatpush1.msra.mxu0 %v662
        %943 = vmatprep.subr.mxu0 0.0
        %944 = vmatpush1.msra.mxu0 %v663
        %945 = vmatprep.subr.mxu0 0.0
        %946 = vmatpush1.msra.mxu0 %v664
        %947 = vmatprep.subr.mxu0 0.0
        %948 = vmatpush1.msra.mxu0 %v665
        %949 = vmatprep.subr.mxu0 0.0
        %950 = vmatpush1.msra.mxu0 %v666
        %951 = vmatprep.subr.mxu0 0.0
        %952 = vmatpush1.msra.mxu0 %v667
        %953 = vmatprep.subr.mxu0 0.0
        %954 = vmatpush1.msra.mxu0 %v668
        %955 = vmatprep.subr.mxu0 0.0
        %956 = vmatpush1.msra.mxu0 %v669
        %957 = vmatprep.subr.mxu0 0.0
        %958 = vmatpush1.msra.mxu0 %v670
        %959 = vmatprep.mubr.f32.mxu0 %v574
        %960 = vmatmul.mubr.f32.gmra.mrb[0].mxu0 %v573
        %v961 = vpop.f32.mrb[0].mxu0
        %v962 = vadd.f32 0.0, %v961
        %v963 = vpop.f32.mrb[0].mxu0
        %964 = vmatprep.mubr.f32.mxu0 %v590
        %965 = vmatmul.mubr.f32.gmra.mrb[0].mxu0 %v589
        %v966 = vpop.f32.mrb[0].mxu0
        %v967 = vadd.f32 0.0, %v966
        %v968 = vpop.f32.mrb[0].mxu0
        %969 = vdwg.mxu0
        %970 = vmatprep.subr.mxu0 0.0
        %971 = vmatpush1.msra.mxu0 %v671
        %972 = vmatprep.subr.mxu0 0.0
        %973 = vmatpush1.msra.mxu0 %v672
        %974 = vmatprep.subr.mxu0 0.0
        %975 = vmatpush1.msra.mxu0 %v673
        %976 = vmatprep.subr.mxu0 0.0
        %977 = vmatpush1.msra.mxu0 %v674
        %978 = vmatprep.subr.mxu0 0.0
        %979 = vmatpush1.msra.mxu0 %v675
        %980 = vmatprep.subr.mxu0 0.0
        %981 = vmatpush1.msra.mxu0 %v676
        %982 = vmatprep.subr.mxu0 0.0
        %983 = vmatpush1.msra.mxu0 %v677
        %984 = vmatprep.subr.mxu0 0.0
        %985 = vmatpush1.msra.mxu0 %v678
        %986 = vmatprep.subr.mxu0 0.0
        %987 = vmatpush1.msra.mxu0 %v679
        %988 = vmatprep.subr.mxu0 0.0
        %989 = vmatpush1.msra.mxu0 %v680
        %990 = vmatprep.subr.mxu0 0.0
        %991 = vmatpush1.msra.mxu0 %v681
        %992 = vmatprep.subr.mxu0 0.0
        %993 = vmatpush1.msra.mxu0 %v682
        %994 = vmatprep.subr.mxu0 0.0
        %995 = vmatpush1.msra.mxu0 %v683
        %996 = vmatprep.subr.mxu0 0.0
        %997 = vmatpush1.msra.mxu0 %v684
        %998 = vmatprep.subr.mxu0 0.0
        %999 = vmatpush1.msra.mxu0 %v685
        %1000 = vmatprep.subr.mxu0 0.0
        %1001 = vmatpush1.msra.mxu0 %v686
        %1002 = vmatprep.subr.mxu0 0.0
        %1003 = vmatpush1.msra.mxu0 %v687
        %1004 = vmatprep.subr.mxu0 0.0
        %1005 = vmatpush1.msra.mxu0 %v688
        %1006 = vmatprep.subr.mxu0 0.0
        %1007 = vmatpush1.msra.mxu0 %v689
        %1008 = vmatprep.subr.mxu0 0.0
        %1009 = vmatpush1.msra.mxu0 %v690
        %1010 = vmatprep.subr.mxu0 0.0
        %1011 = vmatpush1.msra.mxu0 %v691
        %1012 = vmatprep.subr.mxu0 0.0
        %1013 = vmatpush1.msra.mxu0 %v692
        %1014 = vmatprep.subr.mxu0 0.0
        %1015 = vmatpush1.msra.mxu0 %v693
        %1016 = vmatprep.subr.mxu0 0.0
        %1017 = vmatpush1.msra.mxu0 %v694
        %1018 = vmatprep.subr.mxu0 0.0
        %1019 = vmatpush1.msra.mxu0 %v695
        %1020 = vmatprep.subr.mxu0 0.0
        %1021 = vmatpush1.msra.mxu0 %v696
        %1022 = vmatprep.subr.mxu0 0.0
        %1023 = vmatpush1.msra.mxu0 %v697
        %1024 = vmatprep.subr.mxu0 0.0
        %1025 = vmatpush1.msra.mxu0 %v698
        %1026 = vmatprep.subr.mxu0 0.0
        %1027 = vmatpush1.msra.mxu0 %v699
        %1028 = vmatprep.subr.mxu0 0.0
        %1029 = vmatpush1.msra.mxu0 %v700
        %1030 = vmatprep.subr.mxu0 0.0
        %1031 = vmatpush1.msra.mxu0 %v701
        %1032 = vmatprep.subr.mxu0 0.0
        %1033 = vmatpush1.msra.mxu0 %v702
        %1034 = vmatprep.mubr.f32.mxu0 %v576
        %1035 = vmatmul.mubr.f32.gmra.mrb[0].mxu0 %v575
        %v1036 = vpop.f32.mrb[0].mxu0
        %v1037 = vadd.f32 %v962, %v1036
        %v1038 = vpop.f32.mrb[0].mxu0
        %1039 = vmatprep.mubr.f32.mxu0 %v592
        %1040 = vmatmul.mubr.f32.gmra.mrb[0].mxu0 %v591
        %v1041 = vpop.f32.mrb[0].mxu0
        %v1042 = vadd.f32 %v967, %v1041
        %v1043 = vpop.f32.mrb[0].mxu0
        %1044 = vdwg.mxu0
        %1045 = vmatprep.subr.mxu0 0.0
        %1046 = vmatpush1.msra.mxu0 %v703
        %1047 = vmatprep.subr.mxu0 0.0
        %1048 = vmatpush1.msra.mxu0 %v704
        %1049 = vmatprep.subr.mxu0 0.0
        %1050 = vmatpush1.msra.mxu0 %v705
        %1051 = vmatprep.subr.mxu0 0.0
        %1052 = vmatpush1.msra.mxu0 %v706
        %1053 = vmatprep.subr.mxu0 0.0
        %1054 = vmatpush1.msra.mxu0 %v707
        %1055 = vmatprep.subr.mxu0 0.0
        %1056 = vmatpush1.msra.mxu0 %v708
        %1057 = vmatprep.subr.mxu0 0.0
        %1058 = vmatpush1.msra.mxu0 %v709
        %1059 = vmatprep.subr.mxu0 0.0
        %1060 = vmatpush1.msra.mxu0 %v710
        %1061 = vmatprep.subr.mxu0 0.0
        %1062 = vmatpush1.msra.mxu0 %v711
        %1063 = vmatprep.subr.mxu0 0.0
        %1064 = vmatpush1.msra.mxu0 %v712
        %1065 = vmatprep.subr.mxu0 0.0
        %1066 = vmatpush1.msra.mxu0 %v713
        %1067 = vmatprep.subr.mxu0 0.0
        %1068 = vmatpush1.msra.mxu0 %v714
        %1069 = vmatprep.subr.mxu0 0.0
        %1070 = vmatpush1.msra.mxu0 %v715
        %1071 = vmatprep.subr.mxu0 0.0
        %1072 = vmatpush1.msra.mxu0 %v716
        %1073 = vmatprep.subr.mxu0 0.0
        %1074 = vmatpush1.msra.mxu0 %v717
        %1075 = vmatprep.subr.mxu0 0.0
        %1076 = vmatpush1.msra.mxu0 %v718
        %1077 = vmatprep.subr.mxu0 0.0
        %1078 = vmatpush1.msra.mxu0 %v719
        %1079 = vmatprep.subr.mxu0 0.0
        %1080 = vmatpush1.msra.mxu0 %v720
        %1081 = vmatprep.subr.mxu0 0.0
        %1082 = vmatpush1.msra.mxu0 %v721
        %1083 = vmatprep.subr.mxu0 0.0
        %1084 = vmatpush1.msra.mxu0 %v722
        %1085 = vmatprep.subr.mxu0 0.0
        %1086 = vmatpush1.msra.mxu0 %v723
        %1087 = vmatprep.subr.mxu0 0.0
        %1088 = vmatpush1.msra.mxu0 %v724
        %1089 = vmatprep.subr.mxu0 0.0
        %1090 = vmatpush1.msra.mxu0 %v725
        %1091 = vmatprep.subr.mxu0 0.0
        %1092 = vmatpush1.msra.mxu0 %v726
        %1093 = vmatprep.subr.mxu0 0.0
        %1094 = vmatpush1.msra.mxu0 %v727
        %1095 = vmatprep.subr.mxu0 0.0
        %1096 = vmatpush1.msra.mxu0 %v728
        %1097 = vmatprep.subr.mxu0 0.0
        %1098 = vmatpush1.msra.mxu0 %v729
        %1099 = vmatprep.subr.mxu0 0.0
        %1100 = vmatpush1.msra.mxu0 %v730
        %1101 = vmatprep.subr.mxu0 0.0
        %1102 = vmatpush1.msra.mxu0 %v731
        %1103 = vmatprep.subr.mxu0 0.0
        %1104 = vmatpush1.msra.mxu0 %v732
        %1105 = vmatprep.subr.mxu0 0.0
        %1106 = vmatpush1.msra.mxu0 %v733
        %1107 = vmatprep.subr.mxu0 0.0
        %1108 = vmatpush1.msra.mxu0 %v734
        %1109 = vmatprep.mubr.f32.mxu0 %v578
        %1110 = vmatmul.mubr.f32.gmra.mrb[0].mxu0 %v577
        %v1111 = vpop.f32.mrb[0].mxu0
        %v1112 = vadd.f32 %v1037, %v1111
        %v1113 = vpop.f32.mrb[0].mxu0
        %1114 = vmatprep.mubr.f32.mxu0 %v594
        %1115 = vmatmul.mubr.f32.gmra.mrb[0].mxu0 %v593
        %v1116 = vpop.f32.mrb[0].mxu0
        %v1117 = vadd.f32 %v1042, %v1116
        %v1118 = vpop.f32.mrb[0].mxu0
        %1119 = vdwg.mxu0
        %1120 = vmatprep.subr.mxu0 0.0
        %1121 = vmatpush1.msra.mxu0 %v735
        %1122 = vmatprep.subr.mxu0 0.0
        %1123 = vmatpush1.msra.mxu0 %v736
        %1124 = vmatprep.subr.mxu0 0.0
        %1125 = vmatpush1.msra.mxu0 %v737
        %1126 = vmatprep.subr.mxu0 0.0
        %1127 = vmatpush1.msra.mxu0 %v738
        %1128 = vmatprep.subr.mxu0 0.0
        %1129 = vmatpush1.msra.mxu0 %v739
        %1130 = vmatprep.subr.mxu0 0.0
        %1131 = vmatpush1.msra.mxu0 %v740
        %1132 = vmatprep.subr.mxu0 0.0
        %1133 = vmatpush1.msra.mxu0 %v741
        %1134 = vmatprep.subr.mxu0 0.0
        %1135 = vmatpush1.msra.mxu0 %v742
        %1136 = vmatprep.subr.mxu0 0.0
        %1137 = vmatpush1.msra.mxu0 %v743
        %1138 = vmatprep.subr.mxu0 0.0
        %1139 = vmatpush1.msra.mxu0 %v744
        %1140 = vmatprep.subr.mxu0 0.0
        %1141 = vmatpush1.msra.mxu0 %v745
        %1142 = vmatprep.subr.mxu0 0.0
        %1143 = vmatpush1.msra.mxu0 %v746
        %1144 = vmatprep.subr.mxu0 0.0
        %1145 = vmatpush1.msra.mxu0 %v747
        %1146 = vmatprep.subr.mxu0 0.0
        %1147 = vmatpush1.msra.mxu0 %v748
        %1148 = vmatprep.subr.mxu0 0.0
        %1149 = vmatpush1.msra.mxu0 %v749
        %1150 = vmatprep.subr.mxu0 0.0
        %1151 = vmatpush1.msra.mxu0 %v750
        %1152 = vmatprep.subr.mxu0 0.0
        %1153 = vmatpush1.msra.mxu0 %v751
        %1154 = vmatprep.subr.mxu0 0.0
        %1155 = vmatpush1.msra.mxu0 %v752
        %1156 = vmatprep.subr.mxu0 0.0
        %1157 = vmatpush1.msra.mxu0 %v753
        %1158 = vmatprep.subr.mxu0 0.0
        %1159 = vmatpush1.msra.mxu0 %v754
        %1160 = vmatprep.subr.mxu0 0.0
        %1161 = vmatpush1.msra.mxu0 %v755
        %1162 = vmatprep.subr.mxu0 0.0
        %1163 = vmatpush1.msra.mxu0 %v756
        %1164 = vmatprep.subr.mxu0 0.0
        %1165 = vmatpush1.msra.mxu0 %v757
        %1166 = vmatprep.subr.mxu0 0.0
        %1167 = vmatpush1.msra.mxu0 %v758
        %1168 = vmatprep.subr.mxu0 0.0
        %1169 = vmatpush1.msra.mxu0 %v759
        %1170 = vmatprep.subr.mxu0 0.0
        %1171 = vmatpush1.msra.mxu0 %v760
        %1172 = vmatprep.subr.mxu0 0.0
        %1173 = vmatpush1.msra.mxu0 %v761
        %1174 = vmatprep.subr.mxu0 0.0
        %1175 = vmatpush1.msra.mxu0 %v762
        %1176 = vmatprep.subr.mxu0 0.0
        %1177 = vmatpush1.msra.mxu0 %v763
        %1178 = vmatprep.subr.mxu0 0.0
        %1179 = vmatpush1.msra.mxu0 %v764
        %1180 = vmatprep.subr.mxu0 0.0
        %1181 = vmatpush1.msra.mxu0 %v765
        %1182 = vmatprep.subr.mxu0 0.0
        %1183 = vmatpush1.msra.mxu0 %v766
        %1184 = vmatprep.mubr.f32.mxu0 %v580
        %1185 = vmatmul.mubr.f32.gmra.mrb[0].mxu0 %v579
        %v1186 = vpop.f32.mrb[0].mxu0
        %v1187 = vadd.f32 %v1112, %v1186
        %v1188 = vpop.f32.mrb[0].mxu0
        %1189 = vmatprep.mubr.f32.mxu0 %v596
        %1190 = vmatmul.mubr.f32.gmra.mrb[0].mxu0 %v595
        %v1191 = vpop.f32.mrb[0].mxu0
        %v1192 = vadd.f32 %v1117, %v1191
        %v1193 = vpop.f32.mrb[0].mxu0
        %1194 = vdwg.mxu0
        %1195 = vmatprep.subr.mxu0 0.0
        %1196 = vmatpush1.msra.mxu0 %v767
        %1197 = vmatprep.subr.mxu0 0.0
        %1198 = vmatpush1.msra.mxu0 %v768
        %1199 = vmatprep.subr.mxu0 0.0
        %1200 = vmatpush1.msra.mxu0 %v769
        %1201 = vmatprep.subr.mxu0 0.0
        %1202 = vmatpush1.msra.mxu0 %v770
        %1203 = vmatprep.subr.mxu0 0.0
        %1204 = vmatpush1.msra.mxu0 %v771
        %1205 = vmatprep.subr.mxu0 0.0
        %1206 = vmatpush1.msra.mxu0 %v772
        %1207 = vmatprep.subr.mxu0 0.0
        %1208 = vmatpush1.msra.mxu0 %v773
        %1209 = vmatprep.subr.mxu0 0.0
        %1210 = vmatpush1.msra.mxu0 %v774
        %1211 = vmatprep.subr.mxu0 0.0
        %1212 = vmatpush1.msra.mxu0 %v775
        %1213 = vmatprep.subr.mxu0 0.0
        %1214 = vmatpush1.msra.mxu0 %v776
        %1215 = vmatprep.subr.mxu0 0.0
        %1216 = vmatpush1.msra.mxu0 %v777
        %1217 = vmatprep.subr.mxu0 0.0
        %1218 = vmatpush1.msra.mxu0 %v778
        %1219 = vmatprep.subr.mxu0 0.0
        %1220 = vmatpush1.msra.mxu0 %v779
        %1221 = vmatprep.subr.mxu0 0.0
        %1222 = vmatpush1.msra.mxu0 %v780
        %1223 = vmatprep.subr.mxu0 0.0
        %1224 = vmatpush1.msra.mxu0 %v781
        %1225 = vmatprep.subr.mxu0 0.0
        %1226 = vmatpush1.msra.mxu0 %v782
        %1227 = vmatprep.subr.mxu0 0.0
        %1228 = vmatpush1.msra.mxu0 %v783
        %1229 = vmatprep.subr.mxu0 0.0
        %1230 = vmatpush1.msra.mxu0 %v784
        %1231 = vmatprep.subr.mxu0 0.0
        %1232 = vmatpush1.msra.mxu0 %v785
        %1233 = vmatprep.subr.mxu0 0.0
        %1234 = vmatpush1.msra.mxu0 %v786
        %1235 = vmatprep.subr.mxu0 0.0
        %1236 = vmatpush1.msra.mxu0 %v787
        %1237 = vmatprep.subr.mxu0 0.0
        %1238 = vmatpush1.msra.mxu0 %v788
        %1239 = vmatprep.subr.mxu0 0.0
        %1240 = vmatpush1.msra.mxu0 %v789
        %1241 = vmatprep.subr.mxu0 0.0
        %1242 = vmatpush1.msra.mxu0 %v790
        %1243 = vmatprep.subr.mxu0 0.0
        %1244 = vmatpush1.msra.mxu0 %v791
        %1245 = vmatprep.subr.mxu0 0.0
        %1246 = vmatpush1.msra.mxu0 %v792
        %1247 = vmatprep.subr.mxu0 0.0
        %1248 = vmatpush1.msra.mxu0 %v793
        %1249 = vmatprep.subr.mxu0 0.0
        %1250 = vmatpush1.msra.mxu0 %v794
        %1251 = vmatprep.subr.mxu0 0.0
        %1252 = vmatpush1.msra.mxu0 %v795
        %1253 = vmatprep.subr.mxu0 0.0
        %1254 = vmatpush1.msra.mxu0 %v796
        %1255 = vmatprep.subr.mxu0 0.0
        %1256 = vmatpush1.msra.mxu0 %v797
        %1257 = vmatprep.subr.mxu0 0.0
        %1258 = vmatpush1.msra.mxu0 %v798
        %1259 = vmatprep.mubr.f32.mxu0 %v582
        %1260 = vmatmul.mubr.f32.gmra.mrb[0].mxu0 %v581
        %v1261 = vpop.f32.mrb[0].mxu0
        %v1262 = vadd.f32 %v1187, %v1261
        %v1263 = vpop.f32.mrb[0].mxu0
        %1264 = vmatprep.mubr.f32.mxu0 %v598
        %1265 = vmatmul.mubr.f32.gmra.mrb[0].mxu0 %v597
        %v1266 = vpop.f32.mrb[0].mxu0
        %v1267 = vadd.f32 %v1192, %v1266
        %v1268 = vpop.f32.mrb[0].mxu0
        %1269 = vdwg.mxu0
        %1270 = vmatprep.subr.mxu0 0.0
        %1271 = vmatpush1.msra.mxu0 %v799
        %1272 = vmatprep.subr.mxu0 0.0
        %1273 = vmatpush1.msra.mxu0 %v800
        %1274 = vmatprep.subr.mxu0 0.0
        %1275 = vmatpush1.msra.mxu0 %v801
        %1276 = vmatprep.subr.mxu0 0.0
        %1277 = vmatpush1.msra.mxu0 %v802
        %1278 = vmatprep.subr.mxu0 0.0
        %1279 = vmatpush1.msra.mxu0 %v803
        %1280 = vmatprep.subr.mxu0 0.0
        %1281 = vmatpush1.msra.mxu0 %v804
        %1282 = vmatprep.subr.mxu0 0.0
        %1283 = vmatpush1.msra.mxu0 %v805
        %1284 = vmatprep.subr.mxu0 0.0
        %1285 = vmatpush1.msra.mxu0 %v806
        %1286 = vmatprep.subr.mxu0 0.0
        %1287 = vmatpush1.msra.mxu0 %v807
        %1288 = vmatprep.subr.mxu0 0.0
        %1289 = vmatpush1.msra.mxu0 %v808
        %1290 = vmatprep.subr.mxu0 0.0
        %1291 = vmatpush1.msra.mxu0 %v809
        %1292 = vmatprep.subr.mxu0 0.0
        %1293 = vmatpush1.msra.mxu0 %v810
        %1294 = vmatprep.subr.mxu0 0.0
        %1295 = vmatpush1.msra.mxu0 %v811
        %1296 = vmatprep.subr.mxu0 0.0
        %1297 = vmatpush1.msra.mxu0 %v812
        %1298 = vmatprep.subr.mxu0 0.0
        %1299 = vmatpush1.msra.mxu0 %v813
        %1300 = vmatprep.subr.mxu0 0.0
        %1301 = vmatpush1.msra.mxu0 %v814
        %1302 = vmatprep.subr.mxu0 0.0
        %1303 = vmatpush1.msra.mxu0 %v815
        %1304 = vmatprep.subr.mxu0 0.0
        %1305 = vmatpush1.msra.mxu0 %v816
        %1306 = vmatprep.subr.mxu0 0.0
        %1307 = vmatpush1.msra.mxu0 %v817
        %1308 = vmatprep.subr.mxu0 0.0
        %1309 = vmatpush1.msra.mxu0 %v818
        %1310 = vmatprep.subr.mxu0 0.0
        %1311 = vmatpush1.msra.mxu0 %v819
        %1312 = vmatprep.subr.mxu0 0.0
        %1313 = vmatpush1.msra.mxu0 %v820
        %1314 = vmatprep.subr.mxu0 0.0
        %1315 = vmatpush1.msra.mxu0 %v821
        %1316 = vmatprep.subr.mxu0 0.0
        %1317 = vmatpush1.msra.mxu0 %v822
        %1318 = vmatprep.subr.mxu0 0.0
        %1319 = vmatpush1.msra.mxu0 %v823
        %1320 = vmatprep.subr.mxu0 0.0
        %1321 = vmatpush1.msra.mxu0 %v824
        %1322 = vmatprep.subr.mxu0 0.0
        %1323 = vmatpush1.msra.mxu0 %v825
        %1324 = vmatprep.subr.mxu0 0.0
        %1325 = vmatpush1.msra.mxu0 %v826
        %1326 = vmatprep.subr.mxu0 0.0
        %1327 = vmatpush1.msra.mxu0 %v827
        %1328 = vmatprep.subr.mxu0 0.0
        %1329 = vmatpush1.msra.mxu0 %v828
        %1330 = vmatprep.subr.mxu0 0.0
        %1331 = vmatpush1.msra.mxu0 %v829
        %1332 = vmatprep.subr.mxu0 0.0
        %1333 = vmatpush1.msra.mxu0 %v830
        %1334 = vmatprep.mubr.f32.mxu0 %v584
        %1335 = vmatmul.mubr.f32.gmra.mrb[0].mxu0 %v583
        %v1336 = vpop.f32.mrb[0].mxu0
        %v1337 = vadd.f32 %v1262, %v1336
        %v1338 = vpop.f32.mrb[0].mxu0
        %1339 = vmatprep.mubr.f32.mxu0 %v600
        %1340 = vmatmul.mubr.f32.gmra.mrb[0].mxu0 %v599
        %v1341 = vpop.f32.mrb[0].mxu0
        %v1342 = vadd.f32 %v1267, %v1341
        %v1343 = vpop.f32.mrb[0].mxu0
        %1344 = vdwg.mxu0
        %1345 = vmatprep.subr.mxu0 0.0
        %1346 = vmatpush1.msra.mxu0 %v831
        %1347 = vmatprep.subr.mxu0 0.0
        %1348 = vmatpush1.msra.mxu0 %v832
        %1349 = vmatprep.subr.mxu0 0.0
        %1350 = vmatpush1.msra.mxu0 %v833
        %1351 = vmatprep.subr.mxu0 0.0
        %1352 = vmatpush1.msra.mxu0 %v834
        %1353 = vmatprep.subr.mxu0 0.0
        %1354 = vmatpush1.msra.mxu0 %v835
        %1355 = vmatprep.subr.mxu0 0.0
        %1356 = vmatpush1.msra.mxu0 %v836
        %1357 = vmatprep.subr.mxu0 0.0
        %1358 = vmatpush1.msra.mxu0 %v837
        %1359 = vmatprep.subr.mxu0 0.0
        %1360 = vmatpush1.msra.mxu0 %v838
        %1361 = vmatprep.subr.mxu0 0.0
        %1362 = vmatpush1.msra.mxu0 %v839
        %1363 = vmatprep.subr.mxu0 0.0
        %1364 = vmatpush1.msra.mxu0 %v840
        %1365 = vmatprep.subr.mxu0 0.0
        %1366 = vmatpush1.msra.mxu0 %v841
        %1367 = vmatprep.subr.mxu0 0.0
        %1368 = vmatpush1.msra.mxu0 %v842
        %1369 = vmatprep.subr.mxu0 0.0
        %1370 = vmatpush1.msra.mxu0 %v843
        %1371 = vmatprep.subr.mxu0 0.0
        %1372 = vmatpush1.msra.mxu0 %v844
        %1373 = vmatprep.subr.mxu0 0.0
        %1374 = vmatpush1.msra.mxu0 %v845
        %1375 = vmatprep.subr.mxu0 0.0
        %1376 = vmatpush1.msra.mxu0 %v846
        %1377 = vmatprep.subr.mxu0 0.0
        %1378 = vmatpush1.msra.mxu0 %v847
        %1379 = vmatprep.subr.mxu0 0.0
        %1380 = vmatpush1.msra.mxu0 %v848
        %1381 = vmatprep.subr.mxu0 0.0
        %1382 = vmatpush1.msra.mxu0 %v849
        %1383 = vmatprep.subr.mxu0 0.0
        %1384 = vmatpush1.msra.mxu0 %v850
        %1385 = vmatprep.subr.mxu0 0.0
        %1386 = vmatpush1.msra.mxu0 %v851
        %1387 = vmatprep.subr.mxu0 0.0
        %1388 = vmatpush1.msra.mxu0 %v852
        %1389 = vmatprep.subr.mxu0 0.0
        %1390 = vmatpush1.msra.mxu0 %v853
        %1391 = vmatprep.subr.mxu0 0.0
        %1392 = vmatpush1.msra.mxu0 %v854
        %1393 = vmatprep.subr.mxu0 0.0
        %1394 = vmatpush1.msra.mxu0 %v855
        %1395 = vmatprep.subr.mxu0 0.0
        %1396 = vmatpush1.msra.mxu0 %v856
        %1397 = vmatprep.subr.mxu0 0.0
        %1398 = vmatpush1.msra.mxu0 %v857
        %1399 = vmatprep.subr.mxu0 0.0
        %1400 = vmatpush1.msra.mxu0 %v858
        %1401 = vmatprep.subr.mxu0 0.0
        %1402 = vmatpush1.msra.mxu0 %v859
        %1403 = vmatprep.subr.mxu0 0.0
        %1404 = vmatpush1.msra.mxu0 %v860
        %1405 = vmatprep.subr.mxu0 0.0
        %1406 = vmatpush1.msra.mxu0 %v861
        %1407 = vmatprep.subr.mxu0 0.0
        %1408 = vmatpush1.msra.mxu0 %v862
        %1409 = vmatprep.mubr.f32.mxu0 %v586
        %1410 = vmatmul.mubr.f32.gmra.mrb[0].mxu0 %v585
        %v1411 = vpop.f32.mrb[0].mxu0
        %v1412 = vadd.f32 %v1337, %v1411
        %v1413 = vpop.f32.mrb[0].mxu0
        %1414 = vmatprep.mubr.f32.mxu0 %v602
        %1415 = vmatmul.mubr.f32.gmra.mrb[0].mxu0 %v601
        %v1416 = vpop.f32.mrb[0].mxu0
        %v1417 = vadd.f32 %v1342, %v1416
        %v1418 = vpop.f32.mrb[0].mxu0
        %1419 = vdwg.mxu0
        %1420 = vmatprep.subr.mxu0 0.0
        %1421 = vmatpush1.msra.mxu0 %v863
        %1422 = vmatprep.subr.mxu0 0.0
        %1423 = vmatpush1.msra.mxu0 %v864
        %1424 = vmatprep.subr.mxu0 0.0
        %1425 = vmatpush1.msra.mxu0 %v865
        %1426 = vmatprep.subr.mxu0 0.0
        %1427 = vmatpush1.msra.mxu0 %v866
        %1428 = vmatprep.subr.mxu0 0.0
        %1429 = vmatpush1.msra.mxu0 %v867
        %1430 = vmatprep.subr.mxu0 0.0
        %1431 = vmatpush1.msra.mxu0 %v868
        %1432 = vmatprep.subr.mxu0 0.0
        %1433 = vmatpush1.msra.mxu0 %v869
        %1434 = vmatprep.subr.mxu0 0.0
        %1435 = vmatpush1.msra.mxu0 %v870
        %1436 = vmatprep.subr.mxu0 0.0
        %1437 = vmatpush1.msra.mxu0 %v871
        %1438 = vmatprep.subr.mxu0 0.0
        %1439 = vmatpush1.msra.mxu0 %v872
        %1440 = vmatprep.subr.mxu0 0.0
        %1441 = vmatpush1.msra.mxu0 %v873
        %1442 = vmatprep.subr.mxu0 0.0
        %1443 = vmatpush1.msra.mxu0 %v874
        %1444 = vmatprep.subr.mxu0 0.0
        %1445 = vmatpush1.msra.mxu0 %v875
        %1446 = vmatprep.subr.mxu0 0.0
        %1447 = vmatpush1.msra.mxu0 %v876
        %1448 = vmatprep.subr.mxu0 0.0
        %1449 = vmatpush1.msra.mxu0 %v877
        %1450 = vmatprep.subr.mxu0 0.0
        %1451 = vmatpush1.msra.mxu0 %v878
        %1452 = vmatprep.subr.mxu0 0.0
        %1453 = vmatpush1.msra.mxu0 %v879
        %1454 = vmatprep.subr.mxu0 0.0
        %1455 = vmatpush1.msra.mxu0 %v880
        %1456 = vmatprep.subr.mxu0 0.0
        %1457 = vmatpush1.msra.mxu0 %v881
        %1458 = vmatprep.subr.mxu0 0.0
        %1459 = vmatpush1.msra.mxu0 %v882
        %1460 = vmatprep.subr.mxu0 0.0
        %1461 = vmatpush1.msra.mxu0 %v883
        %1462 = vmatprep.subr.mxu0 0.0
        %1463 = vmatpush1.msra.mxu0 %v884
        %1464 = vmatprep.subr.mxu0 0.0
        %1465 = vmatpush1.msra.mxu0 %v885
        %1466 = vmatprep.subr.mxu0 0.0
        %1467 = vmatpush1.msra.mxu0 %v886
        %1468 = vmatprep.subr.mxu0 0.0
        %1469 = vmatpush1.msra.mxu0 %v887
        %1470 = vmatprep.subr.mxu0 0.0
        %1471 = vmatpush1.msra.mxu0 %v888
        %1472 = vmatprep.subr.mxu0 0.0
        %1473 = vmatpush1.msra.mxu0 %v889
        %1474 = vmatprep.subr.mxu0 0.0
        %1475 = vmatpush1.msra.mxu0 %v890
        %1476 = vmatprep.subr.mxu0 0.0
        %1477 = vmatpush1.msra.mxu0 %v891
        %1478 = vmatprep.subr.mxu0 0.0
        %1479 = vmatpush1.msra.mxu0 %v892
        %1480 = vmatprep.subr.mxu0 0.0
        %1481 = vmatpush1.msra.mxu0 %v893
        %1482 = vmatprep.subr.mxu0 0.0
        %1483 = vmatpush1.msra.mxu0 %v894
        %1484 = vmatprep.mubr.f32.mxu0 %v588
        %1485 = vmatmul.mubr.f32.gmra.mrb[0].mxu0 %v587
        %v1486 = vpop.f32.mrb[0].mxu0
        %v1487 = vadd.f32 %v1412, %v1486
        %v1488 = vpop.f32.mrb[0].mxu0
        %1489 = vmatprep.mubr.f32.mxu0 %v604
        %1490 = vmatmul.mubr.f32.gmra.mrb[0].mxu0 %v603
        %v1491 = vpop.f32.mrb[0].mxu0
        %v1492 = vadd.f32 %v1417, %v1491
        %v1493 = vpop.f32.mrb[0].mxu0
        %1494 = vdwg.mxu0
        %v1495 = vadd.f32 %v637, %v1487
        %v1496 = vadd.f32 %v638, %v1492
        %vm1497 = vcmask 23552
        %1498 = vst.msk [vmem:[%s408] sm:$0xff] %vm1497, %v1495
        %1499 = vst.msk [vmem:[%s408 + $0x8] sm:$0xff] %vm1497, %v1496
        %p1500 = scmp.lt.s32.totalorder %s21, 1
        %s1501 = scalar_select %p1500, %s21, 1
        %s1502 = smul.addr %s1501, 2
        %s1503 = smul.addr %s1502, 8
        %s1504 = scalar_lea.vmem %s4, %s1503
        %s1505 = sand.u32 %s173, 1
        %s1506 = sand.u32 %s173, 1
        %s1507 = smul.addr %s1506, 256
        %s1508 = scalar_lea.vmem [#allocation3], %s1507
        // Predicated region
        $region64: #{_lambda_.7} parent=54 // pred_check
          %p1509 = pneg %p155
        $region65: #{_lambda_.7} parent=54 // pred_check_branch
          %1511 = sbr.rel (%p1509) target = $region67
        $region66: #{_lambda_.7} parent=54 // pred_region
          _
        $region67: #{_lambda_.7} parent=54 // pred_fallthru
          _
        // Predicated region
        $region68: #{_lambda_.7} parent=54 // pred_check
          %p1512 = pneg %p183
        $region69: #{_lambda_.7} parent=54 // pred_check_branch
          %1514 = sbr.rel (%p1512) target = $region71
        $region70: #{_lambda_.7} parent=54 // pred_region
          %s1515 = smul.u32 16, %s22
          %s1516 = smul.addr %s21, 64
          %s1517 = sadd.s32 %s1515, %s1516
          %s1518 = smul.addr %s1517, 8
          %s1519 = scalar_lea.vmem %s5, %s1518
          // Predicated region
          $region72: #{_lambda_.7} parent=70 // pred_check
            _
          $region73: #{_lambda_.7} parent=70 // pred_check_branch
            %1521 = sbr.rel (0) target = $region75
          $region74: #{_lambda_.7} parent=70 // pred_region
            // Predicated region
            $region76: #{_lambda_.7} parent=74 // pred_check
              _
            $region77: #{_lambda_.7} parent=74 // pred_check_branch
              %1523 = sbr.rel (0) target = $region79
            $region78: #{_lambda_.7} parent=74 // pred_region
              loop: start=0, step=1, limit=1
              $region80: #{_lambda_.7} parent=78 // loop_pre_header
                _
              $region81: #{_lambda_.7} parent=78 // loop_header
                %s1525 = sphi 0, %s1529
                %p1526 = scmp.ge.s32.totalorder %s1525, 1
                %s1530 = sphi %s1508, %s1508
                %s1531 = sphi %s1519, %s1519
              $region82: #{_lambda_.7} parent=78 // loop_header_branch
                %1528 = sbr.rel (%p1526) target = $region86
              $region83: #{_lambda_.7} parent=78 // loop_body
                %v1532 = vld [vmem:[%s1530] sm:$0xff]
                %1533 = vst [vmem:[%s1531] sm:$0xff] %v1532
                %v1534 = vld [vmem:[%s1530 + $0x8] sm:$0xff]
                %1535 = vst [vmem:[%s1531 + $0x8] sm:$0xff] %v1534
                %v1536 = vld [vmem:[%s1530 + $0x10] sm:$0xff]
                %1537 = vst [vmem:[%s1531 + $0x10] sm:$0xff] %v1536
                %v1538 = vld [vmem:[%s1530 + $0x18] sm:$0xff]
                %1539 = vst [vmem:[%s1531 + $0x18] sm:$0xff] %v1538
                %v1540 = vld [vmem:[%s1530 + $0x20] sm:$0xff]
                %1541 = vst [vmem:[%s1531 + $0x20] sm:$0xff] %v1540
                %v1542 = vld [vmem:[%s1530 + $0x28] sm:$0xff]
                %1543 = vst [vmem:[%s1531 + $0x28] sm:$0xff] %v1542
                %v1544 = vld [vmem:[%s1530 + $0x30] sm:$0xff]
                %1545 = vst [vmem:[%s1531 + $0x30] sm:$0xff] %v1544
                %v1546 = vld [vmem:[%s1530 + $0x38] sm:$0xff]
                %1547 = vst [vmem:[%s1531 + $0x38] sm:$0xff] %v1546
                %v1548 = vld [vmem:[%s1530 + $0x40] sm:$0xff]
                %1549 = vst [vmem:[%s1531 + $0x40] sm:$0xff] %v1548
                %v1550 = vld [vmem:[%s1530 + $0x48] sm:$0xff]
                %1551 = vst [vmem:[%s1531 + $0x48] sm:$0xff] %v1550
                %v1552 = vld [vmem:[%s1530 + $0x50] sm:$0xff]
                %1553 = vst [vmem:[%s1531 + $0x50] sm:$0xff] %v1552
                %v1554 = vld [vmem:[%s1530 + $0x58] sm:$0xff]
                %1555 = vst [vmem:[%s1531 + $0x58] sm:$0xff] %v1554
                %v1556 = vld [vmem:[%s1530 + $0x60] sm:$0xff]
                %1557 = vst [vmem:[%s1531 + $0x60] sm:$0xff] %v1556
                %v1558 = vld [vmem:[%s1530 + $0x68] sm:$0xff]
                %1559 = vst [vmem:[%s1531 + $0x68] sm:$0xff] %v1558
                %v1560 = vld [vmem:[%s1530 + $0x70] sm:$0xff]
                %1561 = vst [vmem:[%s1531 + $0x70] sm:$0xff] %v1560
                %v1562 = vld [vmem:[%s1530 + $0x78] sm:$0xff]
                %1563 = vst [vmem:[%s1531 + $0x78] sm:$0xff] %v1562
                %v1564 = vld [vmem:[%s1530 + $0x80] sm:$0xff]
                %1565 = vst [vmem:[%s1531 + $0x100] sm:$0xff] %v1564
                %v1566 = vld [vmem:[%s1530 + $0x88] sm:$0xff]
                %1567 = vst [vmem:[%s1531 + $0x108] sm:$0xff] %v1566
                %v1568 = vld [vmem:[%s1530 + $0x90] sm:$0xff]
                %1569 = vst [vmem:[%s1531 + $0x110] sm:$0xff] %v1568
                %v1570 = vld [vmem:[%s1530 + $0x98] sm:$0xff]
                %1571 = vst [vmem:[%s1531 + $0x118] sm:$0xff] %v1570
                %v1572 = vld [vmem:[%s1530 + $0xa0] sm:$0xff]
                %1573 = vst [vmem:[%s1531 + $0x120] sm:$0xff] %v1572
                %v1574 = vld [vmem:[%s1530 + $0xa8] sm:$0xff]
                %1575 = vst [vmem:[%s1531 + $0x128] sm:$0xff] %v1574
                %v1576 = vld [vmem:[%s1530 + $0xb0] sm:$0xff]
                %1577 = vst [vmem:[%s1531 + $0x130] sm:$0xff] %v1576
                %v1578 = vld [vmem:[%s1530 + $0xb8] sm:$0xff]
                %1579 = vst [vmem:[%s1531 + $0x138] sm:$0xff] %v1578
                %v1580 = vld [vmem:[%s1530 + $0xc0] sm:$0xff]
                %1581 = vst [vmem:[%s1531 + $0x140] sm:$0xff] %v1580
                %v1582 = vld [vmem:[%s1530 + $0xc8] sm:$0xff]
                %1583 = vst [vmem:[%s1531 + $0x148] sm:$0xff] %v1582
                %v1584 = vld [vmem:[%s1530 + $0xd0] sm:$0xff]
                %1585 = vst [vmem:[%s1531 + $0x150] sm:$0xff] %v1584
                %v1586 = vld [vmem:[%s1530 + $0xd8] sm:$0xff]
                %1587 = vst [vmem:[%s1531 + $0x158] sm:$0xff] %v1586
                %v1588 = vld [vmem:[%s1530 + $0xe0] sm:$0xff]
                %1589 = vst [vmem:[%s1531 + $0x160] sm:$0xff] %v1588
                %v1590 = vld [vmem:[%s1530 + $0xe8] sm:$0xff]
                %1591 = vst [vmem:[%s1531 + $0x168] sm:$0xff] %v1590
                %v1592 = vld [vmem:[%s1530 + $0xf0] sm:$0xff]
                %1593 = vst [vmem:[%s1531 + $0x170] sm:$0xff] %v1592
                %v1594 = vld [vmem:[%s1530 + $0xf8] sm:$0xff]
                %1595 = vst [vmem:[%s1531 + $0x178] sm:$0xff] %v1594
              $region84: #{_lambda_.7} parent=78 // loop_footer
                %s1529 = sadd.s32 1, %s1525
              $region85: #{_lambda_.7} parent=78 // loop_footer_branch
                %1524 = sbr.rel target = $region81
              $region86: #{_lambda_.7} parent=78 // loop_exit
                _
            $region79: #{_lambda_.7} parent=74 // pred_fallthru
              _
            // Predicated region
            $region87: #{_lambda_.7} parent=74 // pred_check
              _
            $region88: #{_lambda_.7} parent=74 // pred_check_branch
              %1597 = sbr.rel target = $region90
            $region89: #{_lambda_.7} parent=74 // pred_region
              _
            $region90: #{_lambda_.7} parent=74 // pred_fallthru
              _
          $region75: #{_lambda_.7} parent=70 // pred_fallthru
            _
          %1598 = vnop
        $region71: #{_lambda_.7} parent=54 // pred_fallthru
          _
      $region55: #{_lambda_.7} parent=5 // pred_fallthru
        _
      %p1599 = scmp.le.s32.totalorder 2, %s12
      // Predicated region
      $region91: #{_lambda_.7} parent=5 // pred_check
        %p1600 = pneg %p1599
      $region92: #{_lambda_.7} parent=5 // pred_check_branch
        %1602 = sbr.rel (%p1600) target = $region94
      $region93: #{_lambda_.7} parent=5 // pred_region
        %s1603 = ssub.s32 %s12, 2
        // Predicated region
        $region95: #{_lambda_.7} parent=93 // pred_check
          %p1604 = pneg %p161
        $region96: #{_lambda_.7} parent=93 // pred_check_branch
          %1606 = sbr.rel (%p1604) target = $region98
        $region97: #{_lambda_.7} parent=93 // pred_region
          %p1607 = scmp.lt.s32.totalorder %s23, 1
          %s1608 = scalar_select %p1607, %s23, 1
          %s1609 = smul.addr %s1608, 2
          %s1610 = smul.addr %s1609, 8
          %s1611 = scalar_lea.vmem %s4, %s1610
        $region98: #{_lambda_.7} parent=93 // pred_fallthru
          _
        // Predicated region
        $region99: #{_lambda_.7} parent=93 // pred_check
          %p1612 = pneg %p189
        $region100: #{_lambda_.7} parent=93 // pred_check_branch
          %1614 = sbr.rel (%p1612) target = $region102
        $region101: #{_lambda_.7} parent=93 // pred_region
          %s1615 = sand.u32 %s174, 1
          %s1616 = sand.u32 %s174, 1
          %s1617 = smul.addr %s1616, 256
          %s1618 = scalar_lea.vmem [#allocation3], %s1617
        $region102: #{_lambda_.7} parent=93 // pred_fallthru
          _
      $region94: #{_lambda_.7} parent=5 // pred_fallthru
        _
    $region6: #{_lambda_.7} parent=1 // loop_footer
      %s16 = sadd.s32 1, %s12
    $region7: #{_lambda_.7} parent=1 // loop_footer_branch
      %11 = sbr.rel target = $region3
    $region8: #{_lambda_.7} parent=1 // loop_exit
      _

// kernel: _lambda_.6
$region0: #{_lambda_.6}
  #allocation0 [shape = 'u32[]', space=smem, size = 0x4, offset = 0x4, fixed_abs, tag = 'smem constant byte address 0x4 - core index']
  #allocation1 [shape = 'u32[144,128]{1,0:T(1,128)}', space=vmem, size = 0x12000, scoped, tag = 'internal scratch']
  %s0 = inlined_call_operand.vmem [shape: f32[2,3,4096], index: 0, kind: input, shape index: {}]
  %s1 = inlined_call_operand.vmem [shape: f32[4,3,4], index: 1, kind: input, shape index: {}]
  %s2 = inlined_call_operand.vmem [shape: bf16[4,32,64], index: 2, kind: input, shape index: {}]
  %s3 = inlined_call_operand.vmem [shape: f32[32,1], index: 3, kind: input, shape index: {}]
  %s4 = inlined_call_operand.vmem [shape: f32[16,32], index: 4, kind: input, shape index: {}]
  %s5 = inlined_call_operand.vmem [shape: f32[16,1], index: 5, kind: input, shape index: {}]
  %s6 = inlined_call_operand.vmem [shape: f32[8,1], index: 6, kind: input, shape index: {}, may-alias: {6,7}]
  %s7 = inlined_call_operand.vmem [shape: f32[8,1], index: 7, kind: input, shape index: {}, may-alias: {6,7}]
  %s8 = inlined_call_operand.vmem [shape: f32[2,16,4096], index: 8, kind: output, shape index: {0}]
  %s9 = inlined_call_operand.vmem [shape: f32[2,16,1], index: 9, kind: output, shape index: {1}]
  %s10 = inlined_call_operand.vmem [shape: f32[2,16,1], index: 10, kind: output, shape index: {2}]
  %11 = xla_tuple %s8, %s9, %s10
  %s12 = sld [smem:[#allocation0]]
  $region104: #{_lambda_.6} parent=0
    _
  %s14 = ssub.s32 1, %s12
  %s15 = scalar_select 0, %s14, %s12
  $region1: #{_lambda_.6} parent=0
    #allocation2 [shape = 'u8[131072]{0}', space=vmem, size = 0x20000, scoped, tag = 'output window, operand 0']
    loop: start=0, step=1, limit=10
    $region2: #{_lambda_.6} parent=1 // loop_pre_header
      _
    $region3: #{_lambda_.6} parent=1 // loop_header
      %s17 = sphi 0, %s21
      %p18 = scmp.ge.s32.totalorder %s17, 10
      %s24 = sphi 0, %s36
      %s25 = sphi 0, %s32
      %s26 = sphi 0, %s24
      %s27 = sphi 0, %s25
      %s28 = sphi 0, %s26
      %s29 = sphi 0, %s27
      %s41 = sphi 0, %s43
      %s44 = sphi 0, %s41
      %s45 = sphi 0, %s44
      %s61 = sphi 0, %s45
      %s67 = sphi 0, %s69
      %s70 = sphi 0, %s67
      %s71 = sphi 0, %s70
      %s87 = sphi 0, %s71
      %s93 = sphi 0, %s95
      %s96 = sphi 0, %s93
      %s97 = sphi 0, %s96
      %s113 = sphi 0, %s97
      %s117 = sphi 0, %s117
      %s119 = sphi 0, %s117
      %s120 = sphi 0, %s119
      %s134 = sphi 0, %s120
      %s138 = sphi 0, %s138
      %s140 = sphi 0, %s138
      %s141 = sphi 0, %s140
      %s155 = sphi 0, %s141
      %s159 = sphi 0, %s159
      %s161 = sphi 0, %s159
      %s162 = sphi 0, %s161
      %s176 = sphi 0, %s162
      %s180 = sphi 0, %s180
      %s182 = sphi 0, %s180
      %s183 = sphi 0, %s182
      %s197 = sphi 0, %s183
      %s201 = sphi 0, %s201
      %s203 = sphi 0, %s201
      %s204 = sphi 0, %s203
      %s218 = sphi 0, %s204
      %s226 = sphi 0, %s228
      %s229 = sphi 0, %s226
      %s230 = sphi 0, %s229
      %s246 = sphi 0, %s230
      %s252 = sphi 0, %s254
      %s255 = sphi 0, %s252
      %s256 = sphi 0, %s255
      %s272 = sphi 0, %s256
      %s278 = sphi 0, %s280
      %s281 = sphi 0, %s278
      %s282 = sphi 0, %s281
      %s298 = sphi 0, %s282
    $region4: #{_lambda_.6} parent=1 // loop_header_branch
      %20 = sbr.rel (%p18) target = $region8
    $region5: #{_lambda_.6} parent=1 // loop_body
      %s22 = ssub.s32 %s17, 1
      %s23 = ssub.s32 %s17, 2
      %s30 = sadd.s32 1, %s25
      %p31 = scmp.ge.s32.totalorder %s30, 4
      %s32 = scalar_select %p31, 0, %s30
      %s33 = sadd.s32 1, %s24
      %s34 = scalar_select %p31, %s33, %s24
      %p35 = scmp.ge.s32.totalorder %s34, 2
      %s36 = scalar_select %p35, 0, %s34
      %s37 = ssub.s32 %s24, %s36
      %s38 = ssub.s32 %s25, %s32
      %s39 = sor.u32 %s37, %s38
      %p40 = scmp.eq.s32.totalorder %s39, 0
      %s42 = sadd.s32 %s41, 1
      %s43 = scalar_select %p40, %s41, %s42
      %p46 = pneg %p40
      %p47 = scmp.eq.s32.totalorder %s17, 7
      %p48 = por %p46, %p47
      %p49 = scmp.ne.s32.totalorder %s41, %s44
      %p50 = scmp.eq.s32.totalorder %s17, 0
      %p51 = por %p49, %p50
      %p52 = scmp.ne.s32.totalorder %s41, %s44
      %p53 = scmp.eq.s32.totalorder %s22, 7
      %p54 = por %p52, %p53
      %p55 = scmp.ne.s32.totalorder %s44, %s45
      %p56 = scmp.eq.s32.totalorder %s22, 0
      %p57 = por %p55, %p56
      %p58 = scmp.ne.s32.totalorder %s44, %s45
      %p59 = scmp.eq.s32.totalorder %s23, 7
      %p60 = por %p58, %p59
      %p62 = scmp.ne.s32.totalorder %s45, %s61
      %p63 = scmp.eq.s32.totalorder %s23, 0
      %p64 = por %p62, %p63
      %s65 = ssub.s32 %s24, %s36
      %p66 = scmp.eq.s32.totalorder %s65, 0
      %s68 = sadd.s32 %s67, 1
      %s69 = scalar_select %p66, %s67, %s68
      %p72 = pneg %p66
      %p73 = scmp.eq.s32.totalorder %s17, 7
      %p74 = por %p72, %p73
      %p75 = scmp.ne.s32.totalorder %s67, %s70
      %p76 = scmp.eq.s32.totalorder %s17, 0
      %p77 = por %p75, %p76
      %p78 = scmp.ne.s32.totalorder %s67, %s70
      %p79 = scmp.eq.s32.totalorder %s22, 7
      %p80 = por %p78, %p79
      %p81 = scmp.ne.s32.totalorder %s70, %s71
      %p82 = scmp.eq.s32.totalorder %s22, 0
      %p83 = por %p81, %p82
      %p84 = scmp.ne.s32.totalorder %s70, %s71
      %p85 = scmp.eq.s32.totalorder %s23, 7
      %p86 = por %p84, %p85
      %p88 = scmp.ne.s32.totalorder %s71, %s87
      %p89 = scmp.eq.s32.totalorder %s23, 0
      %p90 = por %p88, %p89
      %s91 = ssub.s32 %s24, %s36
      %p92 = scmp.eq.s32.totalorder %s91, 0
      %s94 = sadd.s32 %s93, 1
      %s95 = scalar_select %p92, %s93, %s94
      %p98 = pneg %p92
      %p99 = scmp.eq.s32.totalorder %s17, 7
      %p100 = por %p98, %p99
      %p101 = scmp.ne.s32.totalorder %s93, %s96
      %p102 = scmp.eq.s32.totalorder %s17, 0
      %p103 = por %p101, %p102
      %p104 = scmp.ne.s32.totalorder %s93, %s96
      %p105 = scmp.eq.s32.totalorder %s22, 7
      %p106 = por %p104, %p105
      %p107 = scmp.ne.s32.totalorder %s96, %s97
      %p108 = scmp.eq.s32.totalorder %s22, 0
      %p109 = por %p107, %p108
      %p110 = scmp.ne.s32.totalorder %s96, %s97
      %p111 = scmp.eq.s32.totalorder %s23, 7
      %p112 = por %p110, %p111
      %p114 = scmp.ne.s32.totalorder %s97, %s113
      %p115 = scmp.eq.s32.totalorder %s23, 0
      %p116 = por %p114, %p115
      %s118 = sadd.s32 %s117, 1
      %p121 = scmp.eq.s32.totalorder %s17, 7
      %p122 = scmp.ne.s32.totalorder %s117, %s119
      %p123 = scmp.eq.s32.totalorder %s17, 0
      %p124 = por %p122, %p123
      %p125 = scmp.ne.s32.totalorder %s117, %s119
      %p126 = scmp.eq.s32.totalorder %s22, 7
      %p127 = por %p125, %p126
      %p128 = scmp.ne.s32.totalorder %s119, %s120
      %p129 = scmp.eq.s32.totalorder %s22, 0
      %p130 = por %p128, %p129
      %p131 = scmp.ne.s32.totalorder %s119, %s120
      %p132 = scmp.eq.s32.totalorder %s23, 7
      %p133 = por %p131, %p132
      %p135 = scmp.ne.s32.totalorder %s120, %s134
      %p136 = scmp.eq.s32.totalorder %s23, 0
      %p137 = por %p135, %p136
      %s139 = sadd.s32 %s138, 1
      %p142 = scmp.eq.s32.totalorder %s17, 7
      %p143 = scmp.ne.s32.totalorder %s138, %s140
      %p144 = scmp.eq.s32.totalorder %s17, 0
      %p145 = por %p143, %p144
      %p146 = scmp.ne.s32.totalorder %s138, %s140
      %p147 = scmp.eq.s32.totalorder %s22, 7
      %p148 = por %p146, %p147
      %p149 = scmp.ne.s32.totalorder %s140, %s141
      %p150 = scmp.eq.s32.totalorder %s22, 0
      %p151 = por %p149, %p150
      %p152 = scmp.ne.s32.totalorder %s140, %s141
      %p153 = scmp.eq.s32.totalorder %s23, 7
      %p154 = por %p152, %p153
      %p156 = scmp.ne.s32.totalorder %s141, %s155
      %p157 = scmp.eq.s32.totalorder %s23, 0
      %p158 = por %p156, %p157
      %s160 = sadd.s32 %s159, 1
      %p163 = scmp.eq.s32.totalorder %s17, 7
      %p164 = scmp.ne.s32.totalorder %s159, %s161
      %p165 = scmp.eq.s32.totalorder %s17, 0
      %p166 = por %p164, %p165
      %p167 = scmp.ne.s32.totalorder %s159, %s161
      %p168 = scmp.eq.s32.totalorder %s22, 7
      %p169 = por %p167, %p168
      %p170 = scmp.ne.s32.totalorder %s161, %s162
      %p171 = scmp.eq.s32.totalorder %s22, 0
      %p172 = por %p170, %p171
      %p173 = scmp.ne.s32.totalorder %s161, %s162
      %p174 = scmp.eq.s32.totalorder %s23, 7
      %p175 = por %p173, %p174
      %p177 = scmp.ne.s32.totalorder %s162, %s176
      %p178 = scmp.eq.s32.totalorder %s23, 0
      %p179 = por %p177, %p178
      %s181 = sadd.s32 %s180, 1
      %p184 = scmp.eq.s32.totalorder %s17, 7
      %p185 = scmp.ne.s32.totalorder %s180, %s182
      %p186 = scmp.eq.s32.totalorder %s17, 0
      %p187 = por %p185, %p186
      %p188 = scmp.ne.s32.totalorder %s180, %s182
      %p189 = scmp.eq.s32.totalorder %s22, 7
      %p190 = por %p188, %p189
      %p191 = scmp.ne.s32.totalorder %s182, %s183
      %p192 = scmp.eq.s32.totalorder %s22, 0
      %p193 = por %p191, %p192
      %p194 = scmp.ne.s32.totalorder %s182, %s183
      %p195 = scmp.eq.s32.totalorder %s23, 7
      %p196 = por %p194, %p195
      %p198 = scmp.ne.s32.totalorder %s183, %s197
      %p199 = scmp.eq.s32.totalorder %s23, 0
      %p200 = por %p198, %p199
      %s202 = sadd.s32 %s201, 1
      %p205 = scmp.eq.s32.totalorder %s17, 7
      %p206 = scmp.ne.s32.totalorder %s201, %s203
      %p207 = scmp.eq.s32.totalorder %s17, 0
      %p208 = por %p206, %p207
      %p209 = scmp.ne.s32.totalorder %s201, %s203
      %p210 = scmp.eq.s32.totalorder %s22, 7
      %p211 = por %p209, %p210
      %p212 = scmp.ne.s32.totalorder %s203, %s204
      %p213 = scmp.eq.s32.totalorder %s22, 0
      %p214 = por %p212, %p213
      %p215 = scmp.ne.s32.totalorder %s203, %s204
      %p216 = scmp.eq.s32.totalorder %s23, 7
      %p217 = por %p215, %p216
      %p219 = scmp.ne.s32.totalorder %s204, %s218
      %p220 = scmp.eq.s32.totalorder %s23, 0
      %p221 = por %p219, %p220
      %s222 = ssub.s32 %s24, %s36
      %s223 = ssub.s32 %s25, %s32
      %s224 = sor.u32 %s222, %s223
      %p225 = scmp.eq.s32.totalorder %s224, 0
      %s227 = sadd.s32 %s226, 1
      %s228 = scalar_select %p225, %s226, %s227
      %p231 = pneg %p225
      %p232 = scmp.eq.s32.totalorder %s17, 7
      %p233 = por %p231, %p232
      %p234 = scmp.ne.s32.totalorder %s226, %s229
      %p235 = scmp.eq.s32.totalorder %s17, 0
      %p236 = por %p234, %p235
      %p237 = scmp.ne.s32.totalorder %s226, %s229
      %p238 = scmp.eq.s32.totalorder %s22, 7
      %p239 = por %p237, %p238
      %p240 = scmp.ne.s32.totalorder %s229, %s230
      %p241 = scmp.eq.s32.totalorder %s22, 0
      %p242 = por %p240, %p241
      %p243 = scmp.ne.s32.totalorder %s229, %s230
      %p244 = scmp.eq.s32.totalorder %s23, 7
      %p245 = por %p243, %p244
      %p247 = scmp.ne.s32.totalorder %s230, %s246
      %p248 = scmp.eq.s32.totalorder %s23, 0
      %p249 = por %p247, %p248
      %s250 = ssub.s32 %s24, %s36
      %p251 = scmp.eq.s32.totalorder %s250, 0
      %s253 = sadd.s32 %s252, 1
      %s254 = scalar_select %p251, %s252, %s253
      %p257 = pneg %p251
      %p258 = scmp.eq.s32.totalorder %s17, 7
      %p259 = por %p257, %p258
      %p260 = scmp.ne.s32.totalorder %s252, %s255
      %p261 = scmp.eq.s32.totalorder %s17, 0
      %p262 = por %p260, %p261
      %p263 = scmp.ne.s32.totalorder %s252, %s255
      %p264 = scmp.eq.s32.totalorder %s22, 7
      %p265 = por %p263, %p264
      %p266 = scmp.ne.s32.totalorder %s255, %s256
      %p267 = scmp.eq.s32.totalorder %s22, 0
      %p268 = por %p266, %p267
      %p269 = scmp.ne.s32.totalorder %s255, %s256
      %p270 = scmp.eq.s32.totalorder %s23, 7
      %p271 = por %p269, %p270
      %p273 = scmp.ne.s32.totalorder %s256, %s272
      %p274 = scmp.eq.s32.totalorder %s23, 0
      %p275 = por %p273, %p274
      %s276 = ssub.s32 %s24, %s36
      %p277 = scmp.eq.s32.totalorder %s276, 0
      %s279 = sadd.s32 %s278, 1
      %s280 = scalar_select %p277, %s278, %s279
      %p283 = pneg %p277
      %p284 = scmp.eq.s32.totalorder %s17, 7
      %p285 = por %p283, %p284
      %p286 = scmp.ne.s32.totalorder %s278, %s281
      %p287 = scmp.eq.s32.totalorder %s17, 0
      %p288 = por %p286, %p287
      %p289 = scmp.ne.s32.totalorder %s278, %s281
      %p290 = scmp.eq.s32.totalorder %s22, 7
      %p291 = por %p289, %p290
      %p292 = scmp.ne.s32.totalorder %s281, %s282
      %p293 = scmp.eq.s32.totalorder %s22, 0
      %p294 = por %p292, %p293
      %p295 = scmp.ne.s32.totalorder %s281, %s282
      %p296 = scmp.eq.s32.totalorder %s23, 7
      %p297 = por %p295, %p296
      %p299 = scmp.ne.s32.totalorder %s282, %s298
      %p300 = scmp.eq.s32.totalorder %s23, 0
      %p301 = por %p299, %p300
      %p302 = scmp.le.s32.totalorder 1, %s17
      %p303 = scmp.lt.s32.totalorder %s17, 9
      %p304 = pnand %p302, %p303
      %p305 = pneg %p304
      // Predicated region
      $region9: #{_lambda_.6} parent=5 // pred_check
        _
      $region10: #{_lambda_.6} parent=5 // pred_check_branch
        %307 = sbr.rel (%p304) target = $region12
      $region11: #{_lambda_.6} parent=5 // pred_region
        %s308 = ssub.s32 %s17, 1
        // Predicated region
        $region13: #{_lambda_.6} parent=11 // pred_check
          %p309 = pneg %p130
        $region14: #{_lambda_.6} parent=11 // pred_check_branch
          %311 = sbr.rel (%p309) target = $region16
        $region15: #{_lambda_.6} parent=11 // pred_region
          _
        $region16: #{_lambda_.6} parent=11 // pred_fallthru
          _
        // Predicated region
        $region17: #{_lambda_.6} parent=11 // pred_check
          %p312 = pneg %p151
        $region18: #{_lambda_.6} parent=11 // pred_check_branch
          %314 = sbr.rel (%p312) target = $region20
        $region19: #{_lambda_.6} parent=11 // pred_region
          _
        $region20: #{_lambda_.6} parent=11 // pred_fallthru
          _
        // Predicated region
        $region21: #{_lambda_.6} parent=11 // pred_check
          %p315 = pneg %p172
        $region22: #{_lambda_.6} parent=11 // pred_check_branch
          %317 = sbr.rel (%p315) target = $region24
        $region23: #{_lambda_.6} parent=11 // pred_region
          _
        $region24: #{_lambda_.6} parent=11 // pred_fallthru
          _
        // Predicated region
        $region25: #{_lambda_.6} parent=11 // pred_check
          %p318 = pneg %p193
        $region26: #{_lambda_.6} parent=11 // pred_check_branch
          %320 = sbr.rel (%p318) target = $region28
        $region27: #{_lambda_.6} parent=11 // pred_region
          _
        $region28: #{_lambda_.6} parent=11 // pred_fallthru
          _
        // Predicated region
        $region29: #{_lambda_.6} parent=11 // pred_check
          %p321 = pneg %p214
        $region30: #{_lambda_.6} parent=11 // pred_check_branch
          %323 = sbr.rel (%p321) target = $region32
        $region31: #{_lambda_.6} parent=11 // pred_region
          _
        $region32: #{_lambda_.6} parent=11 // pred_fallthru
          _
      $region12: #{_lambda_.6} parent=5 // pred_fallthru
        _
      %p324 = scmp.lt.s32.totalorder %s17, 8
      // Predicated region
      $region33: #{_lambda_.6} parent=5 // pred_check
        %p325 = pneg %p324
      $region34: #{_lambda_.6} parent=5 // pred_check_branch
        %327 = sbr.rel (%p325) target = $region36
      $region35: #{_lambda_.6} parent=5 // pred_region
        // Predicated region
        $region37: #{_lambda_.6} parent=35 // pred_check
          %p328 = pneg %p51
        $region38: #{_lambda_.6} parent=35 // pred_check_branch
          %330 = sbr.rel (%p328) target = $region40
        $region39: #{_lambda_.6} parent=35 // pred_region
          %s331 = smul.u32 8, %s25
          %p332 = scmp.lt.s32.totalorder %s24, 1
          %s333 = scalar_select %p332, %s24, 1
          %p334 = scmp.lt.s32.totalorder %s331, 31
          %s335 = scalar_select %p334, %s331, 31
          %s336 = smul.addr %s333, 32
          %s337 = sadd.s32 %s335, %s336
          %s338 = smul.addr %s337, 4
          %s339 = scalar_lea.vmem %s0, %s338
          %s340 = smul.u32 8, %s25
        $region40: #{_lambda_.6} parent=35 // pred_fallthru
          _
        // Predicated region
        $region41: #{_lambda_.6} parent=35 // pred_check
          %p341 = pneg %p77
        $region42: #{_lambda_.6} parent=35 // pred_check_branch
          %343 = sbr.rel (%p341) target = $region44
        $region43: #{_lambda_.6} parent=35 // pred_region
          %s344 = smul.u32 2, %s24
          %p345 = scmp.lt.s32.totalorder %s344, 3
          %s346 = scalar_select %p345, %s344, 3
          %s347 = smul.addr %s346, 4
          %s348 = scalar_lea.vmem %s1, %s347
          %s349 = smul.u32 2, %s24
        $region44: #{_lambda_.6} parent=35 // pred_fallthru
          _
        // Predicated region
        $region45: #{_lambda_.6} parent=35 // pred_check
          %p350 = pneg %p103
        $region46: #{_lambda_.6} parent=35 // pred_check_branch
          %352 = sbr.rel (%p350) target = $region48
        $region47: #{_lambda_.6} parent=35 // pred_region
          %s353 = smul.u32 2, %s24
          %p354 = scmp.lt.s32.totalorder %s353, 3
          %s355 = scalar_select %p354, %s353, 3
          %s356 = smul.addr %s355, 4
          %s357 = smul.addr %s356, 4
          %s358 = scalar_lea.vmem %s2, %s357
          %s359 = smul.u32 2, %s24
        $region48: #{_lambda_.6} parent=35 // pred_fallthru
          _
      $region36: #{_lambda_.6} parent=5 // pred_fallthru
        _
      %p360 = scmp.le.s32.totalorder 1, %s17
      %p361 = scmp.lt.s32.totalorder %s17, 9
      %p362 = pnand %p360, %p361
      %p363 = pneg %p362
      // Predicated region
      $region49: #{_lambda_.6} parent=5 // pred_check
        _
      $region50: #{_lambda_.6} parent=5 // pred_check_branch
        %365 = sbr.rel (%p362) target = $region52
      $region51: #{_lambda_.6} parent=5 // pred_region
        %s366 = ssub.s32 %s17, 1
        %s367 = smul.u32 8, %s27
        %p368 = scmp.lt.s32.totalorder %s26, 1
        %s369 = scalar_select %p368, %s26, 1
        %p370 = scmp.lt.s32.totalorder %s367, 31
        %s371 = scalar_select %p370, %s367, 31
        %s372 = smul.addr %s369, 32
        %s373 = sadd.s32 %s371, %s372
        %s374 = smul.addr %s373, 4
        %s375 = scalar_lea.vmem %s0, %s374
        %p376 = pneg %p57
        %p377 = pneg %p54
        %s378 = smul.u32 2, %s26
        %p379 = scmp.lt.s32.totalorder %s378, 3
        %s380 = scalar_select %p379, %s378, 3
        %s381 = smul.addr %s380, 4
        %s382 = scalar_lea.vmem %s1, %s381
        %p383 = pneg %p83
        %p384 = pneg %p80
        %s385 = smul.u32 2, %s26
        %p386 = scmp.lt.s32.totalorder %s385, 3
        %s387 = scalar_select %p386, %s385, 3
        %s388 = smul.addr %s387, 4
        %s389 = smul.addr %s388, 4
        %s390 = scalar_lea.vmem %s2, %s389
        %p391 = pneg %p109
        %p392 = pneg %p106
        %p393 = pneg %p130
        %p394 = pneg %p127
        %p395 = pneg %p151
        %p396 = pneg %p148
        %p397 = pneg %p172
        %p398 = pneg %p169
        %p399 = pneg %p193
        %p400 = pneg %p190
        %p401 = pneg %p214
        %p402 = pneg %p211
        %p403 = pneg %p242
        %p404 = pneg %p239
        %s405 = sand.u32 %s229, 1
        %s406 = sand.u32 %s229, 1
        %s407 = smul.addr %s406, 128
        %s408 = scalar_lea.vmem [#allocation2], %s407
        %p409 = pneg %p268
        %p410 = pneg %p265
        %p411 = scmp.lt.s32.totalorder %s26, 1
        %s412 = scalar_select %p411, %s26, 1
        %s413 = smul.addr %s412, 2
        %s414 = smul.addr %s413, 8
        %s415 = scalar_lea.vmem %s9, %s414
        %p416 = pneg %p294
        %p417 = pneg %p291
        %p418 = scmp.lt.s32.totalorder %s26, 1
        %s419 = scalar_select %p418, %s26, 1
        %s420 = smul.addr %s419, 2
        %s421 = smul.addr %s420, 8
        %s422 = scalar_lea.vmem %s10, %s421
        %s423 = smul.u32 8, %s27
        %p424 = scmp.lt.s32.totalorder %s26, 1
        %s425 = scalar_select %p424, %s26, 1
        %p426 = scmp.lt.s32.totalorder %s423, 31
        %s427 = scalar_select %p426, %s423, 31
        %s428 = smul.addr %s425, 32
        %s429 = sadd.s32 %s427, %s428
        %s430 = smul.addr %s429, 4
        %s431 = scalar_lea.vmem %s0, %s430
        %s432 = smul.u32 8, %s27
        %s433 = smul.u32 2, %s26
        %p434 = scmp.lt.s32.totalorder %s433, 3
        %s435 = scalar_select %p434, %s433, 3
        %s436 = smul.addr %s435, 4
        %s437 = scalar_lea.vmem %s1, %s436
        %s438 = smul.u32 2, %s26
        %s439 = smul.u32 2, %s26
        %p440 = scmp.lt.s32.totalorder %s439, 3
        %s441 = scalar_select %p440, %s439, 3
        %s442 = smul.addr %s441, 4
        %s443 = smul.addr %s442, 4
        %s444 = scalar_lea.vmem %s2, %s443
        %s445 = smul.u32 2, %s26
        %s446 = smul.u32 8, %s27
        %p447 = scmp.lt.s32.totalorder %s26, 1
        %s448 = scalar_select %p447, %s26, 1
        %s449 = smul.addr %s448, 2
        %s450 = smul.addr %s449, 8
        %s451 = scalar_lea.vmem %s9, %s450
        %p452 = scmp.lt.s32.totalorder %s26, 1
        %s453 = scalar_select %p452, %s26, 1
        %s454 = smul.addr %s453, 2
        %s455 = smul.addr %s454, 8
        %s456 = scalar_lea.vmem %s10, %s455
        %v458 = vld [vmem:[%s431] sm:$0x77]
        %v459 = vld [vmem:[%s431 + $0x8] sm:$0x77]
        %v460 = vld [vmem:[%s431 + $0x10] sm:$0x77]
        %v461 = vld [vmem:[%s431 + $0x18] sm:$0x77]
        %v462 = vld [vmem:[%s437] sm:$0x7]
        %464 = vset.pattern.permute.xlu0 0
        %465 = vperm.xlu0 %464, %v462
        %v466 = vpop.permute.xlu0 %465
        %v472 = vlaneseq
        %v473 = vshrl.u32 %v472, 7
        %v474 = vsub.s32 0, %v473
        %v475 = vrot.slane %v458, %v474
        %v476 = vlaneseq
        %v477 = vshrl.u32 %v476, 7
        %v478 = vsub.s32 4, %v477
        %v479 = vrot.slane %v458, %v478
        %v480 = vlaneseq
        %v481 = vshrl.u32 %v480, 7
        %v482 = vsub.s32 0, %v481
        %v483 = vrot.slane %v459, %v482
        %v484 = vlaneseq
        %v485 = vshrl.u32 %v484, 7
        %v486 = vsub.s32 4, %v485
        %v487 = vrot.slane %v459, %v486
        %v488 = vlaneseq
        %v489 = vshrl.u32 %v488, 7
        %v490 = vsub.s32 0, %v489
        %v491 = vrot.slane %v460, %v490
        %v492 = vlaneseq
        %v493 = vshrl.u32 %v492, 7
        %v494 = vsub.s32 4, %v493
        %v495 = vrot.slane %v460, %v494
        %v496 = vlaneseq
        %v497 = vshrl.u32 %v496, 7
        %v498 = vsub.s32 0, %v497
        %v499 = vrot.slane %v461, %v498
        %v500 = vlaneseq
        %v501 = vshrl.u32 %v500, 7
        %v502 = vsub.s32 4, %v501
        %v503 = vrot.slane %v461, %v502
        %v512 = vlaneseq
        %v513 = vshrl.u32 %v512, 7
        %v514 = vsub.s32 0, %v513
        %v515 = vrot.slane %v475, %v514
        %v516 = vlaneseq
        %v517 = vshrl.u32 %v516, 7
        %v518 = vsub.s32 0, %v517
        %v519 = vrot.slane %v479, %v518
        %v520 = vlaneseq
        %v521 = vshrl.u32 %v520, 7
        %v522 = vsub.s32 0, %v521
        %v523 = vrot.slane %v483, %v522
        %v524 = vlaneseq
        %v525 = vshrl.u32 %v524, 7
        %v526 = vsub.s32 0, %v525
        %v527 = vrot.slane %v487, %v526
        %v528 = vlaneseq
        %v529 = vshrl.u32 %v528, 7
        %v530 = vsub.s32 0, %v529
        %v531 = vrot.slane %v491, %v530
        %v532 = vlaneseq
        %v533 = vshrl.u32 %v532, 7
        %v534 = vsub.s32 0, %v533
        %v535 = vrot.slane %v495, %v534
        %v536 = vlaneseq
        %v537 = vshrl.u32 %v536, 7
        %v538 = vsub.s32 0, %v537
        %v539 = vrot.slane %v499, %v538
        %v540 = vlaneseq
        %v541 = vshrl.u32 %v540, 7
        %v542 = vsub.s32 0, %v541
        %v543 = vrot.slane %v503, %v542
        %v544 = vmul.f32 %v466, %v515
        %v545 = vmul.f32 %v466, %v519
        %v546 = vmul.f32 %v466, %v523
        %v547 = vmul.f32 %v466, %v527
        %v548 = vmul.f32 %v466, %v531
        %v549 = vmul.f32 %v466, %v535
        %v550 = vmul.f32 %v466, %v539
        %v551 = vmul.f32 %v466, %v543
        %552 = vset.pattern.permute.xlu0 1
        %553 = vperm.xlu0 %552, %v462
        %v554 = vpop.permute.xlu0 %553
        %v556 = vlaneseq
        %v557 = vshrl.u32 %v556, 7
        %v558 = vsub.s32 1, %v557
        %v559 = vrot.slane %v458, %v558
        %v560 = vlaneseq
        %v561 = vshrl.u32 %v560, 7
        %v562 = vsub.s32 5, %v561
        %v563 = vrot.slane %v458, %v562
        %v564 = vlaneseq
        %v565 = vshrl.u32 %v564, 7
        %v566 = vsub.s32 1, %v565
        %v567 = vrot.slane %v459, %v566
        %v568 = vlaneseq
        %v569 = vshrl.u32 %v568, 7
        %v570 = vsub.s32 5, %v569
        %v571 = vrot.slane %v459, %v570
        %v572 = vlaneseq
        %v573 = vshrl.u32 %v572, 7
        %v574 = vsub.s32 1, %v573
        %v575 = vrot.slane %v460, %v574
        %v576 = vlaneseq
        %v577 = vshrl.u32 %v576, 7
        %v578 = vsub.s32 5, %v577
        %v579 = vrot.slane %v460, %v578
        %v580 = vlaneseq
        %v581 = vshrl.u32 %v580, 7
        %v582 = vsub.s32 1, %v581
        %v583 = vrot.slane %v461, %v582
        %v584 = vlaneseq
        %v585 = vshrl.u32 %v584, 7
        %v586 = vsub.s32 5, %v585
        %v587 = vrot.slane %v461, %v586
        %v596 = vlaneseq
        %v597 = vshrl.u32 %v596, 7
        %v598 = vsub.s32 1, %v597
        %v599 = vrot.slane %v559, %v598
        %v600 = vlaneseq
        %v601 = vshrl.u32 %v600, 7
        %v602 = vsub.s32 1, %v601
        %v603 = vrot.slane %v563, %v602
        %v604 = vlaneseq
        %v605 = vshrl.u32 %v604, 7
        %v606 = vsub.s32 1, %v605
        %v607 = vrot.slane %v567, %v606
        %v608 = vlaneseq
        %v609 = vshrl.u32 %v608, 7
        %v610 = vsub.s32 1, %v609
        %v611 = vrot.slane %v571, %v610
        %v612 = vlaneseq
        %v613 = vshrl.u32 %v612, 7
        %v614 = vsub.s32 1, %v613
        %v615 = vrot.slane %v575, %v614
        %v616 = vlaneseq
        %v617 = vshrl.u32 %v616, 7
        %v618 = vsub.s32 1, %v617
        %v619 = vrot.slane %v579, %v618
        %v620 = vlaneseq
        %v621 = vshrl.u32 %v620, 7
        %v622 = vsub.s32 1, %v621
        %v623 = vrot.slane %v583, %v622
        %v624 = vlaneseq
        %v625 = vshrl.u32 %v624, 7
        %v626 = vsub.s32 1, %v625
        %v627 = vrot.slane %v587, %v626
        %v628 = vmul.f32 %v554, %v599
        %v629 = vmul.f32 %v554, %v603
        %v630 = vmul.f32 %v554, %v607
        %v631 = vmul.f32 %v554, %v611
        %v632 = vmul.f32 %v554, %v615
        %v633 = vmul.f32 %v554, %v619
        %v634 = vmul.f32 %v554, %v623
        %v635 = vmul.f32 %v554, %v627
        %v636 = vadd.f32 %v544, %v628
        %v637 = vadd.f32 %v545, %v629
        %v638 = vadd.f32 %v546, %v630
        %v639 = vadd.f32 %v547, %v631
        %v640 = vadd.f32 %v548, %v632
        %v641 = vadd.f32 %v549, %v633
        %v642 = vadd.f32 %v550, %v634
        %v643 = vadd.f32 %v551, %v635
        %644 = vset.pattern.permute.xlu0 2
        %645 = vperm.xlu0 %644, %v462
        %v646 = vpop.permute.xlu0 %645
        %v648 = vlaneseq
        %v649 = vshrl.u32 %v648, 7
        %v650 = vsub.s32 2, %v649
        %v651 = vrot.slane %v458, %v650
        %v652 = vlaneseq
        %v653 = vshrl.u32 %v652, 7
        %v654 = vsub.s32 6, %v653
        %v655 = vrot.slane %v458, %v654
        %v656 = vlaneseq
        %v657 = vshrl.u32 %v656, 7
        %v658 = vsub.s32 2, %v657
        %v659 = vrot.slane %v459, %v658
        %v660 = vlaneseq
        %v661 = vshrl.u32 %v660, 7
        %v662 = vsub.s32 6, %v661
        %v663 = vrot.slane %v459, %v662
        %v664 = vlaneseq
        %v665 = vshrl.u32 %v664, 7
        %v666 = vsub.s32 2, %v665
        %v667 = vrot.slane %v460, %v666
        %v668 = vlaneseq
        %v669 = vshrl.u32 %v668, 7
        %v670 = vsub.s32 6, %v669
        %v671 = vrot.slane %v460, %v670
        %v672 = vlaneseq
        %v673 = vshrl.u32 %v672, 7
        %v674 = vsub.s32 2, %v673
        %v675 = vrot.slane %v461, %v674
        %v676 = vlaneseq
        %v677 = vshrl.u32 %v676, 7
        %v678 = vsub.s32 6, %v677
        %v679 = vrot.slane %v461, %v678
        %v688 = vlaneseq
        %v689 = vshrl.u32 %v688, 7
        %v690 = vsub.s32 2, %v689
        %v691 = vrot.slane %v651, %v690
        %v692 = vlaneseq
        %v693 = vshrl.u32 %v692, 7
        %v694 = vsub.s32 2, %v693
        %v695 = vrot.slane %v655, %v694
        %v696 = vlaneseq
        %v697 = vshrl.u32 %v696, 7
        %v698 = vsub.s32 2, %v697
        %v699 = vrot.slane %v659, %v698
        %v700 = vlaneseq
        %v701 = vshrl.u32 %v700, 7
        %v702 = vsub.s32 2, %v701
        %v703 = vrot.slane %v663, %v702
        %v704 = vlaneseq
        %v705 = vshrl.u32 %v704, 7
        %v706 = vsub.s32 2, %v705
        %v707 = vrot.slane %v667, %v706
        %v708 = vlaneseq
        %v709 = vshrl.u32 %v708, 7
        %v710 = vsub.s32 2, %v709
        %v711 = vrot.slane %v671, %v710
        %v712 = vlaneseq
        %v713 = vshrl.u32 %v712, 7
        %v714 = vsub.s32 2, %v713
        %v715 = vrot.slane %v675, %v714
        %v716 = vlaneseq
        %v717 = vshrl.u32 %v716, 7
        %v718 = vsub.s32 2, %v717
        %v719 = vrot.slane %v679, %v718
        %v720 = vmul.f32 %v646, %v691
        %v721 = vmul.f32 %v646, %v695
        %v722 = vmul.f32 %v646, %v699
        %v723 = vmul.f32 %v646, %v703
        %v724 = vmul.f32 %v646, %v707
        %v725 = vmul.f32 %v646, %v711
        %v726 = vmul.f32 %v646, %v715
        %v727 = vmul.f32 %v646, %v719
        %v728 = vadd.f32 %v636, %v720
        %v729 = vadd.f32 %v637, %v721
        %v730 = vadd.f32 %v638, %v722
        %v731 = vadd.f32 %v639, %v723
        %v732 = vadd.f32 %v640, %v724
        %v733 = vadd.f32 %v641, %v725
        %v734 = vadd.f32 %v642, %v726
        %v735 = vadd.f32 %v643, %v727
        %736 = vset.pattern.permute.xlu0 3
        %737 = vperm.xlu0 %736, %v462
        %v738 = vpop.permute.xlu0 %737
        %v740 = vadd.f32 %v728, %v738
        %v741 = vadd.f32 %v729, %v738
        %v742 = vadd.f32 %v730, %v738
        %v743 = vadd.f32 %v731, %v738
        %v744 = vadd.f32 %v732, %v738
        %v745 = vadd.f32 %v733, %v738
        %v746 = vadd.f32 %v734, %v738
        %v747 = vadd.f32 %v735, %v738
        %vm748 = vcmp.le.f32.partialorder %v740, 0.0
        %vm749 = vcmp.le.f32.partialorder %v741, 0.0
        %vm750 = vcmp.le.f32.partialorder %v742, 0.0
        %vm751 = vcmp.le.f32.partialorder %v743, 0.0
        %vm752 = vcmp.le.f32.partialorder %v744, 0.0
        %vm753 = vcmp.le.f32.partialorder %v745, 0.0
        %vm754 = vcmp.le.f32.partialorder %v746, 0.0
        %vm755 = vcmp.le.f32.partialorder %v747, 0.0
        %vm756 = vcmp.eq.f32.partialorder %v740, 0.0
        %vm757 = vcmp.eq.f32.partialorder %v741, 0.0
        %vm758 = vcmp.eq.f32.partialorder %v742, 0.0
        %vm759 = vcmp.eq.f32.partialorder %v743, 0.0
        %vm760 = vcmp.eq.f32.partialorder %v744, 0.0
        %vm761 = vcmp.eq.f32.partialorder %v745, 0.0
        %vm762 = vcmp.eq.f32.partialorder %v746, 0.0
        %vm763 = vcmp.eq.f32.partialorder %v747, 0.0
        %v764 = vsel %vm756, 1.0, %v740
        %v765 = vsel %vm757, 1.0, %v741
        %v766 = vsel %vm758, 1.0, %v742
        %v767 = vsel %vm759, 1.0, %v743
        %v768 = vsel %vm760, 1.0, %v744
        %v769 = vsel %vm761, 1.0, %v745
        %v770 = vsel %vm762, 1.0, %v746
        %v771 = vsel %vm763, 1.0, %v747
        %v772 = vrcp.pop %v764
        %v773 = vrcp.pop %v765
        %v774 = vrcp.pop %v766
        %v775 = vrcp.pop %v767
        %v776 = vrcp.pop %v768
        %v777 = vrcp.pop %v769
        %v778 = vrcp.pop %v770
        %v779 = vrcp.pop %v771
        %v788 = vrot.slane %v772, 2
        %v789 = vrot.slane %v773, 2
        %v790 = vrot.slane %v774, 2
        %v791 = vrot.slane %v775, 2
        %v792 = vrot.slane %v776, 2
        %v793 = vrot.slane %v777, 2
        %v794 = vrot.slane %v778, 2
        %v795 = vrot.slane %v779, 2
        %v804 = vmul.f32 %v740, %v788
        %v805 = vmul.f32 %v741, %v789
        %v806 = vmul.f32 %v742, %v790
        %v807 = vmul.f32 %v743, %v791
        %v808 = vmul.f32 %v744, %v792
        %v809 = vmul.f32 %v745, %v793
        %v810 = vmul.f32 %v746, %v794
        %v811 = vmul.f32 %v747, %v795
        %v812 = vmul.f32 %v804, 0.875
        %v813 = vmul.f32 %v805, 0.875
        %v814 = vmul.f32 %v806, 0.875
        %v815 = vmul.f32 %v807, 0.875
        %v816 = vmul.f32 %v808, 0.875
        %v817 = vmul.f32 %v809, 0.875
        %v818 = vmul.f32 %v810, 0.875
        %v819 = vmul.f32 %v811, 0.875
        %v820 = vrot.slane %v772, 1
        %v821 = vrot.slane %v773, 1
        %v822 = vrot.slane %v774, 1
        %v823 = vrot.slane %v775, 1
        %v824 = vrot.slane %v776, 1
        %v825 = vrot.slane %v777, 1
        %v826 = vrot.slane %v778, 1
        %v827 = vrot.slane %v779, 1
        %v836 = vmul.f32 %v740, %v820
        %v837 = vmul.f32 %v741, %v821
        %v838 = vmul.f32 %v742, %v822
        %v839 = vmul.f32 %v743, %v823
        %v840 = vmul.f32 %v744, %v824
        %v841 = vmul.f32 %v745, %v825
        %v842 = vmul.f32 %v746, %v826
        %v843 = vmul.f32 %v747, %v827
        %v844 = vmul.f32 %v836, 0.875
        %v845 = vmul.f32 %v837, 0.875
        %v846 = vmul.f32 %v838, 0.875
        %v847 = vmul.f32 %v839, 0.875
        %v848 = vmul.f32 %v840, 0.875
        %v849 = vmul.f32 %v841, 0.875
        %v850 = vmul.f32 %v842, 0.875
        %v851 = vmul.f32 %v843, 0.875
        %v852 = vld [vmem:[%s6] sm:$0xff]
        %v853 = vlaneseq
        %v854 = vshrl.u32 %v853, 7
        %v855 = vsub.s32 0, %v854
        %v856 = vrot.slane %v812, %v855
        %v857 = vlaneseq
        %v858 = vshrl.u32 %v857, 7
        %v859 = vsub.s32 0, %v858
        %v860 = vrot.slane %v813, %v859
        %v861 = vlaneseq
        %v862 = vshrl.u32 %v861, 7
        %v863 = vsub.s32 0, %v862
        %v864 = vrot.slane %v814, %v863
        %v865 = vlaneseq
        %v866 = vshrl.u32 %v865, 7
        %v867 = vsub.s32 0, %v866
        %v868 = vrot.slane %v815, %v867
        %v869 = vlaneseq
        %v870 = vshrl.u32 %v869, 7
        %v871 = vsub.s32 0, %v870
        %v872 = vrot.slane %v816, %v871
        %v873 = vlaneseq
        %v874 = vshrl.u32 %v873, 7
        %v875 = vsub.s32 0, %v874
        %v876 = vrot.slane %v817, %v875
        %v877 = vlaneseq
        %v878 = vshrl.u32 %v877, 7
        %v879 = vsub.s32 0, %v878
        %v880 = vrot.slane %v818, %v879
        %v881 = vlaneseq
        %v882 = vshrl.u32 %v881, 7
        %v883 = vsub.s32 0, %v882
        %v884 = vrot.slane %v819, %v883
        %886 = vset.pattern.permute.xlu0 0
        %887 = vperm.xlu0 %886, %v852
        %v888 = vpop.permute.xlu0 %887
        %v890 = vsub.f32 %v856, %v888
        %v891 = vsub.f32 %v860, %v888
        %v892 = vsub.f32 %v864, %v888
        %v893 = vsub.f32 %v868, %v888
        %v894 = vsub.f32 %v872, %v888
        %v895 = vsub.f32 %v876, %v888
        %v896 = vsub.f32 %v880, %v888
        %v897 = vsub.f32 %v884, %v888
        %v898 = vand.u32 2147483647, %v890
        %v899 = vand.u32 2147483647, %v891
        %v900 = vand.u32 2147483647, %v892
        %v901 = vand.u32 2147483647, %v893
        %v902 = vand.u32 2147483647, %v894
        %v903 = vand.u32 2147483647, %v895
        %v904 = vand.u32 2147483647, %v896
        %v905 = vand.u32 2147483647, %v897
        %v906 = vsub.f32 1.0, %v898
        %v907 = vsub.f32 1.0, %v899
        %v908 = vsub.f32 1.0, %v900
        %v909 = vsub.f32 1.0, %v901
        %v910 = vsub.f32 1.0, %v902
        %v911 = vsub.f32 1.0, %v903
        %v912 = vsub.f32 1.0, %v904
        %v913 = vsub.f32 1.0, %v905
        %v914 = vmax.f32 %v906, 0.0
        %v915 = vmax.f32 %v907, 0.0
        %v916 = vmax.f32 %v908, 0.0
        %v917 = vmax.f32 %v909, 0.0
        %v918 = vmax.f32 %v910, 0.0
        %v919 = vmax.f32 %v911, 0.0
        %v920 = vmax.f32 %v912, 0.0
        %v921 = vmax.f32 %v913, 0.0
        %v922 = vld [vmem:[%s7] sm:$0xff]
        %v923 = vlaneseq
        %v924 = vshrl.u32 %v923, 7
        %v925 = vsub.s32 1, %v924
        %v926 = vrot.slane %v844, %v925
        %v927 = vlaneseq
        %v928 = vshrl.u32 %v927, 7
        %v929 = vsub.s32 1, %v928
        %v930 = vrot.slane %v845, %v929
        %v931 = vlaneseq
        %v932 = vshrl.u32 %v931, 7
        %v933 = vsub.s32 1, %v932
        %v934 = vrot.slane %v846, %v933
        %v935 = vlaneseq
        %v936 = vshrl.u32 %v935, 7
        %v937 = vsub.s32 1, %v936
        %v938 = vrot.slane %v847, %v937
        %v939 = vlaneseq
        %v940 = vshrl.u32 %v939, 7
        %v941 = vsub.s32 1, %v940
        %v942 = vrot.slane %v848, %v941
        %v943 = vlaneseq
        %v944 = vshrl.u32 %v943, 7
        %v945 = vsub.s32 1, %v944
        %v946 = vrot.slane %v849, %v945
        %v947 = vlaneseq
        %v948 = vshrl.u32 %v947, 7
        %v949 = vsub.s32 1, %v948
        %v950 = vrot.slane %v850, %v949
        %v951 = vlaneseq
        %v952 = vshrl.u32 %v951, 7
        %v953 = vsub.s32 1, %v952
        %v954 = vrot.slane %v851, %v953
        %956 = vset.pattern.permute.xlu0 0
        %957 = vperm.xlu0 %956, %v922
        %v958 = vpop.permute.xlu0 %957
        %v960 = vsub.f32 %v926, %v958
        %v961 = vsub.f32 %v930, %v958
        %v962 = vsub.f32 %v934, %v958
        %v963 = vsub.f32 %v938, %v958
        %v964 = vsub.f32 %v942, %v958
        %v965 = vsub.f32 %v946, %v958
        %v966 = vsub.f32 %v950, %v958
        %v967 = vsub.f32 %v954, %v958
        %v968 = vand.u32 2147483647, %v960
        %v969 = vand.u32 2147483647, %v961
        %v970 = vand.u32 2147483647, %v962
        %v971 = vand.u32 2147483647, %v963
        %v972 = vand.u32 2147483647, %v964
        %v973 = vand.u32 2147483647, %v965
        %v974 = vand.u32 2147483647, %v966
        %v975 = vand.u32 2147483647, %v967
        %v976 = vsub.f32 1.0, %v968
        %v977 = vsub.f32 1.0, %v969
        %v978 = vsub.f32 1.0, %v970
        %v979 = vsub.f32 1.0, %v971
        %v980 = vsub.f32 1.0, %v972
        %v981 = vsub.f32 1.0, %v973
        %v982 = vsub.f32 1.0, %v974
        %v983 = vsub.f32 1.0, %v975
        %v984 = vmax.f32 %v976, 0.0
        %v985 = vmax.f32 %v977, 0.0
        %v986 = vmax.f32 %v978, 0.0
        %v987 = vmax.f32 %v979, 0.0
        %v988 = vmax.f32 %v980, 0.0
        %v989 = vmax.f32 %v981, 0.0
        %v990 = vmax.f32 %v982, 0.0
        %v991 = vmax.f32 %v983, 0.0
        %v1000 = vcombine.low %v984, %v985
        %v1001 = vcombine.high %v984, %v985
        %v1002 = vcombine.low %v986, %v987
        %v1003 = vcombine.high %v986, %v987
        %v1004 = vcombine.low %v988, %v989
        %v1005 = vcombine.high %v988, %v989
        %v1006 = vcombine.low %v990, %v991
        %v1007 = vcombine.high %v990, %v991
        %v1009 = vunpack.c.l.s4 1966171168
        %v1010 = vunpack.c.0.s8 %v1009
        %v1011 = vlaneseq
        %v1012 = vshrl.u32 %v1011, 7
        %v1013 = vsub.s32 %v1010, %v1012
        %v1014 = vrot.slane %v1000, %v1013
        %v1016 = vunpack.c.l.s4 1966171168
        %v1017 = vunpack.c.0.s8 %v1016
        %v1018 = vlaneseq
        %v1019 = vshrl.u32 %v1018, 7
        %v1020 = vsub.s32 %v1017, %v1019
        %v1021 = vrot.slane %v1001, %v1020
        %v1023 = vunpack.c.l.s4 1966171168
        %v1024 = vunpack.c.0.s8 %v1023
        %v1025 = vlaneseq
        %v1026 = vshrl.u32 %v1025, 7
        %v1027 = vsub.s32 %v1024, %v1026
        %v1028 = vrot.slane %v1002, %v1027
        %v1030 = vunpack.c.l.s4 1966171168
        %v1031 = vunpack.c.0.s8 %v1030
        %v1032 = vlaneseq
        %v1033 = vshrl.u32 %v1032, 7
        %v1034 = vsub.s32 %v1031, %v1033
        %v1035 = vrot.slane %v1003, %v1034
        %v1037 = vunpack.c.l.s4 1966171168
        %v1038 = vunpack.c.0.s8 %v1037
        %v1039 = vlaneseq
        %v1040 = vshrl.u32 %v1039, 7
        %v1041 = vsub.s32 %v1038, %v1040
        %v1042 = vrot.slane %v1004, %v1041
        %v1044 = vunpack.c.l.s4 1966171168
        %v1045 = vunpack.c.0.s8 %v1044
        %v1046 = vlaneseq
        %v1047 = vshrl.u32 %v1046, 7
        %v1048 = vsub.s32 %v1045, %v1047
        %v1049 = vrot.slane %v1005, %v1048
        %v1051 = vunpack.c.l.s4 1966171168
        %v1052 = vunpack.c.0.s8 %v1051
        %v1053 = vlaneseq
        %v1054 = vshrl.u32 %v1053, 7
        %v1055 = vsub.s32 %v1052, %v1054
        %v1056 = vrot.slane %v1006, %v1055
        %v1058 = vunpack.c.l.s4 1966171168
        %v1059 = vunpack.c.0.s8 %v1058
        %v1060 = vlaneseq
        %v1061 = vshrl.u32 %v1060, 7
        %v1062 = vsub.s32 %v1059, %v1061
        %v1063 = vrot.slane %v1007, %v1062
        %v1064 = vcombine.low %v1014, %v1028
        %v1065 = vcombine.high %v1014, %v1028
        %v1066 = vcombine.low %v1021, %v1035
        %v1067 = vcombine.high %v1021, %v1035
        %v1068 = vcombine.low %v1042, %v1056
        %v1069 = vcombine.high %v1042, %v1056
        %v1070 = vcombine.low %v1049, %v1063
        %v1071 = vcombine.high %v1049, %v1063
        %v1073 = vunpack.c.l.s4 1966171168
        %v1074 = vunpack.c.0.s8 %v1073
        %v1075 = vlaneseq
        %v1076 = vshrl.u32 %v1075, 7
        %v1077 = vsub.s32 %v1074, %v1076
        %v1078 = vrot.slane %v1064, %v1077
        %v1080 = vunpack.c.l.s4 1966171168
        %v1081 = vunpack.c.0.s8 %v1080
        %v1082 = vlaneseq
        %v1083 = vshrl.u32 %v1082, 7
        %v1084 = vsub.s32 %v1081, %v1083
        %v1085 = vrot.slane %v1066, %v1084
        %v1087 = vunpack.c.l.s4 1966171168
        %v1088 = vunpack.c.0.s8 %v1087
        %v1089 = vlaneseq
        %v1090 = vshrl.u32 %v1089, 7
        %v1091 = vsub.s32 %v1088, %v1090
        %v1092 = vrot.slane %v1065, %v1091
        %v1094 = vunpack.c.l.s4 1966171168
        %v1095 = vunpack.c.0.s8 %v1094
        %v1096 = vlaneseq
        %v1097 = vshrl.u32 %v1096, 7
        %v1098 = vsub.s32 %v1095, %v1097
        %v1099 = vrot.slane %v1067, %v1098
        %v1101 = vunpack.c.l.s4 1966171168
        %v1102 = vunpack.c.0.s8 %v1101
        %v1103 = vlaneseq
        %v1104 = vshrl.u32 %v1103, 7
        %v1105 = vsub.s32 %v1102, %v1104
        %v1106 = vrot.slane %v1068, %v1105
        %v1108 = vunpack.c.l.s4 1966171168
        %v1109 = vunpack.c.0.s8 %v1108
        %v1110 = vlaneseq
        %v1111 = vshrl.u32 %v1110, 7
        %v1112 = vsub.s32 %v1109, %v1111
        %v1113 = vrot.slane %v1070, %v1112
        %v1115 = vunpack.c.l.s4 1966171168
        %v1116 = vunpack.c.0.s8 %v1115
        %v1117 = vlaneseq
        %v1118 = vshrl.u32 %v1117, 7
        %v1119 = vsub.s32 %v1116, %v1118
        %v1120 = vrot.slane %v1069, %v1119
        %v1122 = vunpack.c.l.s4 1966171168
        %v1123 = vunpack.c.0.s8 %v1122
        %v1124 = vlaneseq
        %v1125 = vshrl.u32 %v1124, 7
        %v1126 = vsub.s32 %v1123, %v1125
        %v1127 = vrot.slane %v1071, %v1126
        %v1128 = vcombine.low %v1078, %v1106
        %v1129 = vcombine.high %v1078, %v1106
        %v1130 = vcombine.low %v1085, %v1113
        %v1131 = vcombine.high %v1085, %v1113
        %v1132 = vcombine.low %v1092, %v1120
        %v1133 = vcombine.high %v1092, %v1120
        %v1134 = vcombine.low %v1099, %v1127
        %v1135 = vcombine.high %v1099, %v1127
        %v1136 = vlaneseq
        %v1137 = vshrl.u32 %v1136, 7
        %v1138 = vsub.s32 0, %v1137
        %v1139 = vrot.slane %v1128, %v1138
        %v1140 = vlaneseq
        %v1141 = vshrl.u32 %v1140, 7
        %v1142 = vsub.s32 1, %v1141
        %v1143 = vrot.slane %v1128, %v1142
        %v1144 = vlaneseq
        %v1145 = vshrl.u32 %v1144, 7
        %v1146 = vsub.s32 2, %v1145
        %v1147 = vrot.slane %v1128, %v1146
        %v1148 = vlaneseq
        %v1149 = vshrl.u32 %v1148, 7
        %v1150 = vsub.s32 3, %v1149
        %v1151 = vrot.slane %v1128, %v1150
        %v1152 = vlaneseq
        %v1153 = vshrl.u32 %v1152, 7
        %v1154 = vsub.s32 4, %v1153
        %v1155 = vrot.slane %v1128, %v1154
        %v1156 = vlaneseq
        %v1157 = vshrl.u32 %v1156, 7
        %v1158 = vsub.s32 5, %v1157
        %v1159 = vrot.slane %v1128, %v1158
        %v1160 = vlaneseq
        %v1161 = vshrl.u32 %v1160, 7
        %v1162 = vsub.s32 6, %v1161
        %v1163 = vrot.slane %v1128, %v1162
        %v1164 = vlaneseq
        %v1165 = vshrl.u32 %v1164, 7
        %v1166 = vsub.s32 7, %v1165
        %v1167 = vrot.slane %v1128, %v1166
        %v1168 = vlaneseq
        %v1169 = vshrl.u32 %v1168, 7
        %v1170 = vsub.s32 0, %v1169
        %v1171 = vrot.slane %v1132, %v1170
        %v1172 = vlaneseq
        %v1173 = vshrl.u32 %v1172, 7
        %v1174 = vsub.s32 1, %v1173
        %v1175 = vrot.slane %v1132, %v1174
        %v1176 = vlaneseq
        %v1177 = vshrl.u32 %v1176, 7
        %v1178 = vsub.s32 2, %v1177
        %v1179 = vrot.slane %v1132, %v1178
        %v1180 = vlaneseq
        %v1181 = vshrl.u32 %v1180, 7
        %v1182 = vsub.s32 3, %v1181
        %v1183 = vrot.slane %v1132, %v1182
        %v1184 = vlaneseq
        %v1185 = vshrl.u32 %v1184, 7
        %v1186 = vsub.s32 4, %v1185
        %v1187 = vrot.slane %v1132, %v1186
        %v1188 = vlaneseq
        %v1189 = vshrl.u32 %v1188, 7
        %v1190 = vsub.s32 5, %v1189
        %v1191 = vrot.slane %v1132, %v1190
        %v1192 = vlaneseq
        %v1193 = vshrl.u32 %v1192, 7
        %v1194 = vsub.s32 6, %v1193
        %v1195 = vrot.slane %v1132, %v1194
        %v1196 = vlaneseq
        %v1197 = vshrl.u32 %v1196, 7
        %v1198 = vsub.s32 7, %v1197
        %v1199 = vrot.slane %v1132, %v1198
        %v1200 = vlaneseq
        %v1201 = vshrl.u32 %v1200, 7
        %v1202 = vsub.s32 0, %v1201
        %v1203 = vrot.slane %v1129, %v1202
        %v1204 = vlaneseq
        %v1205 = vshrl.u32 %v1204, 7
        %v1206 = vsub.s32 1, %v1205
        %v1207 = vrot.slane %v1129, %v1206
        %v1208 = vlaneseq
        %v1209 = vshrl.u32 %v1208, 7
        %v1210 = vsub.s32 2, %v1209
        %v1211 = vrot.slane %v1129, %v1210
        %v1212 = vlaneseq
        %v1213 = vshrl.u32 %v1212, 7
        %v1214 = vsub.s32 3, %v1213
        %v1215 = vrot.slane %v1129, %v1214
        %v1216 = vlaneseq
        %v1217 = vshrl.u32 %v1216, 7
        %v1218 = vsub.s32 4, %v1217
        %v1219 = vrot.slane %v1129, %v1218
        %v1220 = vlaneseq
        %v1221 = vshrl.u32 %v1220, 7
        %v1222 = vsub.s32 5, %v1221
        %v1223 = vrot.slane %v1129, %v1222
        %v1224 = vlaneseq
        %v1225 = vshrl.u32 %v1224, 7
        %v1226 = vsub.s32 6, %v1225
        %v1227 = vrot.slane %v1129, %v1226
        %v1228 = vlaneseq
        %v1229 = vshrl.u32 %v1228, 7
        %v1230 = vsub.s32 7, %v1229
        %v1231 = vrot.slane %v1129, %v1230
        %v1232 = vlaneseq
        %v1233 = vshrl.u32 %v1232, 7
        %v1234 = vsub.s32 0, %v1233
        %v1235 = vrot.slane %v1133, %v1234
        %v1236 = vlaneseq
        %v1237 = vshrl.u32 %v1236, 7
        %v1238 = vsub.s32 1, %v1237
        %v1239 = vrot.slane %v1133, %v1238
        %v1240 = vlaneseq
        %v1241 = vshrl.u32 %v1240, 7
        %v1242 = vsub.s32 2, %v1241
        %v1243 = vrot.slane %v1133, %v1242
        %v1244 = vlaneseq
        %v1245 = vshrl.u32 %v1244, 7
        %v1246 = vsub.s32 3, %v1245
        %v1247 = vrot.slane %v1133, %v1246
        %v1248 = vlaneseq
        %v1249 = vshrl.u32 %v1248, 7
        %v1250 = vsub.s32 4, %v1249
        %v1251 = vrot.slane %v1133, %v1250
        %v1252 = vlaneseq
        %v1253 = vshrl.u32 %v1252, 7
        %v1254 = vsub.s32 5, %v1253
        %v1255 = vrot.slane %v1133, %v1254
        %v1256 = vlaneseq
        %v1257 = vshrl.u32 %v1256, 7
        %v1258 = vsub.s32 6, %v1257
        %v1259 = vrot.slane %v1133, %v1258
        %v1260 = vlaneseq
        %v1261 = vshrl.u32 %v1260, 7
        %v1262 = vsub.s32 7, %v1261
        %v1263 = vrot.slane %v1133, %v1262
        %v1264 = vlaneseq
        %v1265 = vshrl.u32 %v1264, 7
        %v1266 = vsub.s32 0, %v1265
        %v1267 = vrot.slane %v1130, %v1266
        %v1268 = vlaneseq
        %v1269 = vshrl.u32 %v1268, 7
        %v1270 = vsub.s32 1, %v1269
        %v1271 = vrot.slane %v1130, %v1270
        %v1272 = vlaneseq
        %v1273 = vshrl.u32 %v1272, 7
        %v1274 = vsub.s32 2, %v1273
        %v1275 = vrot.slane %v1130, %v1274
        %v1276 = vlaneseq
        %v1277 = vshrl.u32 %v1276, 7
        %v1278 = vsub.s32 3, %v1277
        %v1279 = vrot.slane %v1130, %v1278
        %v1280 = vlaneseq
        %v1281 = vshrl.u32 %v1280, 7
        %v1282 = vsub.s32 4, %v1281
        %v1283 = vrot.slane %v1130, %v1282
        %v1284 = vlaneseq
        %v1285 = vshrl.u32 %v1284, 7
        %v1286 = vsub.s32 5, %v1285
        %v1287 = vrot.slane %v1130, %v1286
        %v1288 = vlaneseq
        %v1289 = vshrl.u32 %v1288, 7
        %v1290 = vsub.s32 6, %v1289
        %v1291 = vrot.slane %v1130, %v1290
        %v1292 = vlaneseq
        %v1293 = vshrl.u32 %v1292, 7
        %v1294 = vsub.s32 7, %v1293
        %v1295 = vrot.slane %v1130, %v1294
        %v1296 = vlaneseq
        %v1297 = vshrl.u32 %v1296, 7
        %v1298 = vsub.s32 0, %v1297
        %v1299 = vrot.slane %v1134, %v1298
        %v1300 = vlaneseq
        %v1301 = vshrl.u32 %v1300, 7
        %v1302 = vsub.s32 1, %v1301
        %v1303 = vrot.slane %v1134, %v1302
        %v1304 = vlaneseq
        %v1305 = vshrl.u32 %v1304, 7
        %v1306 = vsub.s32 2, %v1305
        %v1307 = vrot.slane %v1134, %v1306
        %v1308 = vlaneseq
        %v1309 = vshrl.u32 %v1308, 7
        %v1310 = vsub.s32 3, %v1309
        %v1311 = vrot.slane %v1134, %v1310
        %v1312 = vlaneseq
        %v1313 = vshrl.u32 %v1312, 7
        %v1314 = vsub.s32 4, %v1313
        %v1315 = vrot.slane %v1134, %v1314
        %v1316 = vlaneseq
        %v1317 = vshrl.u32 %v1316, 7
        %v1318 = vsub.s32 5, %v1317
        %v1319 = vrot.slane %v1134, %v1318
        %v1320 = vlaneseq
        %v1321 = vshrl.u32 %v1320, 7
        %v1322 = vsub.s32 6, %v1321
        %v1323 = vrot.slane %v1134, %v1322
        %v1324 = vlaneseq
        %v1325 = vshrl.u32 %v1324, 7
        %v1326 = vsub.s32 7, %v1325
        %v1327 = vrot.slane %v1134, %v1326
        %v1328 = vlaneseq
        %v1329 = vshrl.u32 %v1328, 7
        %v1330 = vsub.s32 0, %v1329
        %v1331 = vrot.slane %v1131, %v1330
        %v1332 = vlaneseq
        %v1333 = vshrl.u32 %v1332, 7
        %v1334 = vsub.s32 1, %v1333
        %v1335 = vrot.slane %v1131, %v1334
        %v1336 = vlaneseq
        %v1337 = vshrl.u32 %v1336, 7
        %v1338 = vsub.s32 2, %v1337
        %v1339 = vrot.slane %v1131, %v1338
        %v1340 = vlaneseq
        %v1341 = vshrl.u32 %v1340, 7
        %v1342 = vsub.s32 3, %v1341
        %v1343 = vrot.slane %v1131, %v1342
        %v1344 = vlaneseq
        %v1345 = vshrl.u32 %v1344, 7
        %v1346 = vsub.s32 4, %v1345
        %v1347 = vrot.slane %v1131, %v1346
        %v1348 = vlaneseq
        %v1349 = vshrl.u32 %v1348, 7
        %v1350 = vsub.s32 5, %v1349
        %v1351 = vrot.slane %v1131, %v1350
        %v1352 = vlaneseq
        %v1353 = vshrl.u32 %v1352, 7
        %v1354 = vsub.s32 6, %v1353
        %v1355 = vrot.slane %v1131, %v1354
        %v1356 = vlaneseq
        %v1357 = vshrl.u32 %v1356, 7
        %v1358 = vsub.s32 7, %v1357
        %v1359 = vrot.slane %v1131, %v1358
        %v1360 = vlaneseq
        %v1361 = vshrl.u32 %v1360, 7
        %v1362 = vsub.s32 0, %v1361
        %v1363 = vrot.slane %v1135, %v1362
        %v1364 = vlaneseq
        %v1365 = vshrl.u32 %v1364, 7
        %v1366 = vsub.s32 1, %v1365
        %v1367 = vrot.slane %v1135, %v1366
        %v1368 = vlaneseq
        %v1369 = vshrl.u32 %v1368, 7
        %v1370 = vsub.s32 2, %v1369
        %v1371 = vrot.slane %v1135, %v1370
        %v1372 = vlaneseq
        %v1373 = vshrl.u32 %v1372, 7
        %v1374 = vsub.s32 3, %v1373
        %v1375 = vrot.slane %v1135, %v1374
        %v1376 = vlaneseq
        %v1377 = vshrl.u32 %v1376, 7
        %v1378 = vsub.s32 4, %v1377
        %v1379 = vrot.slane %v1135, %v1378
        %v1380 = vlaneseq
        %v1381 = vshrl.u32 %v1380, 7
        %v1382 = vsub.s32 5, %v1381
        %v1383 = vrot.slane %v1135, %v1382
        %v1384 = vlaneseq
        %v1385 = vshrl.u32 %v1384, 7
        %v1386 = vsub.s32 6, %v1385
        %v1387 = vrot.slane %v1135, %v1386
        %v1388 = vlaneseq
        %v1389 = vshrl.u32 %v1388, 7
        %v1390 = vsub.s32 7, %v1389
        %v1391 = vrot.slane %v1135, %v1390
        %v1456 = vmul.f32 %v1139, %v914
        %v1457 = vmul.f32 %v1143, %v915
        %v1458 = vmul.f32 %v1147, %v916
        %v1459 = vmul.f32 %v1151, %v917
        %v1460 = vmul.f32 %v1155, %v918
        %v1461 = vmul.f32 %v1159, %v919
        %v1462 = vmul.f32 %v1163, %v920
        %v1463 = vmul.f32 %v1167, %v921
        %v1464 = vmul.f32 %v1171, %v914
        %v1465 = vmul.f32 %v1175, %v915
        %v1466 = vmul.f32 %v1179, %v916
        %v1467 = vmul.f32 %v1183, %v917
        %v1468 = vmul.f32 %v1187, %v918
        %v1469 = vmul.f32 %v1191, %v919
        %v1470 = vmul.f32 %v1195, %v920
        %v1471 = vmul.f32 %v1199, %v921
        %v1472 = vmul.f32 %v1203, %v914
        %v1473 = vmul.f32 %v1207, %v915
        %v1474 = vmul.f32 %v1211, %v916
        %v1475 = vmul.f32 %v1215, %v917
        %v1476 = vmul.f32 %v1219, %v918
        %v1477 = vmul.f32 %v1223, %v919
        %v1478 = vmul.f32 %v1227, %v920
        %v1479 = vmul.f32 %v1231, %v921
        %v1480 = vmul.f32 %v1235, %v914
        %v1481 = vmul.f32 %v1239, %v915
        %v1482 = vmul.f32 %v1243, %v916
        %v1483 = vmul.f32 %v1247, %v917
        %v1484 = vmul.f32 %v1251, %v918
        %v1485 = vmul.f32 %v1255, %v919
        %v1486 = vmul.f32 %v1259, %v920
        %v1487 = vmul.f32 %v1263, %v921
        %v1488 = vmul.f32 %v1267, %v914
        %v1489 = vmul.f32 %v1271, %v915
        %v1490 = vmul.f32 %v1275, %v916
        %v1491 = vmul.f32 %v1279, %v917
        %v1492 = vmul.f32 %v1283, %v918
        %v1493 = vmul.f32 %v1287, %v919
        %v1494 = vmul.f32 %v1291, %v920
        %v1495 = vmul.f32 %v1295, %v921
        %v1496 = vmul.f32 %v1299, %v914
        %v1497 = vmul.f32 %v1303, %v915
        %v1498 = vmul.f32 %v1307, %v916
        %v1499 = vmul.f32 %v1311, %v917
        %v1500 = vmul.f32 %v1315, %v918
        %v1501 = vmul.f32 %v1319, %v919
        %v1502 = vmul.f32 %v1323, %v920
        %v1503 = vmul.f32 %v1327, %v921
        %v1504 = vmul.f32 %v1331, %v914
        %v1505 = vmul.f32 %v1335, %v915
        %v1506 = vmul.f32 %v1339, %v916
        %v1507 = vmul.f32 %v1343, %v917
        %v1508 = vmul.f32 %v1347, %v918
        %v1509 = vmul.f32 %v1351, %v919
        %v1510 = vmul.f32 %v1355, %v920
        %v1511 = vmul.f32 %v1359, %v921
        %v1512 = vmul.f32 %v1363, %v914
        %v1513 = vmul.f32 %v1367, %v915
        %v1514 = vmul.f32 %v1371, %v916
        %v1515 = vmul.f32 %v1375, %v917
        %v1516 = vmul.f32 %v1379, %v918
        %v1517 = vmul.f32 %v1383, %v919
        %v1518 = vmul.f32 %v1387, %v920
        %v1519 = vmul.f32 %v1391, %v921
        %v1520 = vld [vmem:[%s444] sm:$0xf]
        %v1521 = vld [vmem:[%s444 + $0x4] sm:$0xf]
        %v1522 = vld [vmem:[%s444 + $0x8] sm:$0xf]
        %v1523 = vld [vmem:[%s444 + $0xc] sm:$0xf]
        %v1524 = vpack.c.bf16 %v1464, %v1456
        %v1525 = vpack.c.bf16 %v1465, %v1457
        %v1526 = vpack.c.bf16 %v1466, %v1458
        %v1527 = vpack.c.bf16 %v1467, %v1459
        %v1528 = vpack.c.bf16 %v1468, %v1460
        %v1529 = vpack.c.bf16 %v1469, %v1461
        %v1530 = vpack.c.bf16 %v1470, %v1462
        %v1531 = vpack.c.bf16 %v1471, %v1463
        %v1532 = vpack.c.bf16 %v1480, %v1472
        %v1533 = vpack.c.bf16 %v1481, %v1473
        %v1534 = vpack.c.bf16 %v1482, %v1474
        %v1535 = vpack.c.bf16 %v1483, %v1475
        %v1536 = vpack.c.bf16 %v1484, %v1476
        %v1537 = vpack.c.bf16 %v1485, %v1477
        %v1538 = vpack.c.bf16 %v1486, %v1478
        %v1539 = vpack.c.bf16 %v1487, %v1479
        %v1540 = vpack.c.bf16 %v1496, %v1488
        %v1541 = vpack.c.bf16 %v1497, %v1489
        %v1542 = vpack.c.bf16 %v1498, %v1490
        %v1543 = vpack.c.bf16 %v1499, %v1491
        %v1544 = vpack.c.bf16 %v1500, %v1492
        %v1545 = vpack.c.bf16 %v1501, %v1493
        %v1546 = vpack.c.bf16 %v1502, %v1494
        %v1547 = vpack.c.bf16 %v1503, %v1495
        %v1548 = vpack.c.bf16 %v1512, %v1504
        %v1549 = vpack.c.bf16 %v1513, %v1505
        %v1550 = vpack.c.bf16 %v1514, %v1506
        %v1551 = vpack.c.bf16 %v1515, %v1507
        %v1552 = vpack.c.bf16 %v1516, %v1508
        %v1553 = vpack.c.bf16 %v1517, %v1509
        %v1554 = vpack.c.bf16 %v1518, %v1510
        %v1555 = vpack.c.bf16 %v1519, %v1511
        %v1560 = vunpack.c.l.b16 %v1520
        %v1561 = vunpack.c.l.b16 %v1521
        %v1562 = vunpack.c.l.b16 %v1522
        %v1563 = vunpack.c.l.b16 %v1523
        %v1564 = vpack.c.b16 %v1561, %v1560
        %v1565 = vpack.c.b16 %v1563, %v1562
        %vm1566 = vcmask 523264
        %v1568 = vsel %vm1566, %v1564, 0
        %v1571 = vsel %vm1566, %v1565, 0
        %1573 = vmatprep.subr.bf16.mxu0 %v1525
        %1574 = vmatpush1.bf16.msra.mxu0 %v1524
        %1575 = vmatprep.subr.bf16.mxu0 %v1533
        %1576 = vmatpush1.bf16.msra.mxu0 %v1532
        %1577 = vmatprep.subr.bf16.mxu0 %v1541
        %1578 = vmatpush1.bf16.msra.mxu0 %v1540
        %1579 = vmatprep.subr.bf16.mxu0 %v1549
        %1580 = vmatpush1.bf16.msra.mxu0 %v1548
        %1581 = vmatprep.subr.bf16.mxu0 0
        %1582 = vmatpush1.bf16.msra.mxu0 0
        %1583 = vmatprep.subr.bf16.mxu0 0
        %1584 = vmatpush1.bf16.msra.mxu0 0
        %1585 = vmatprep.subr.bf16.mxu0 0
        %1586 = vmatpush1.bf16.msra.mxu0 0
        %1587 = vmatprep.subr.bf16.mxu0 0
        %1588 = vmatpush1.bf16.msra.mxu0 0
        %1589 = vmatprep.subr.bf16.mxu0 0
        %1590 = vmatpush1.bf16.msra.mxu0 0
        %1591 = vmatprep.subr.bf16.mxu0 0
        %1592 = vmatpush1.bf16.msra.mxu0 0
        %1593 = vmatprep.subr.bf16.mxu0 0
        %1594 = vmatpush1.bf16.msra.mxu0 0
        %1595 = vmatprep.subr.bf16.mxu0 0
        %1596 = vmatpush1.bf16.msra.mxu0 0
        %1597 = vmatprep.subr.bf16.mxu0 0
        %1598 = vmatpush1.bf16.msra.mxu0 0
        %1599 = vmatprep.subr.bf16.mxu0 0
        %1600 = vmatpush1.bf16.msra.mxu0 0
        %1601 = vmatprep.subr.bf16.mxu0 0
        %1602 = vmatpush1.bf16.msra.mxu0 0
        %1603 = vmatprep.subr.bf16.mxu0 0
        %1604 = vmatpush1.bf16.msra.mxu0 0
        %1605 = vmatprep.mubr.bf16.mxu0 0
        %1606 = vmatmul.mubr.bf16.gmra.mrb[0].mxu0 %v1568
        %v1607 = vpop.f32.mrb[0].mxu0
        %v1608 = vadd.f32 0.0, %v1607
        %v1609 = vpop.f32.mrb[0].mxu0
        %v1610 = vadd.f32 0.0, %v1609
        %v1611 = vpop.f32.mrb[0].mxu0
        %v1612 = vadd.f32 0.0, %v1611
        %v1613 = vpop.f32.mrb[0].mxu0
        %v1614 = vadd.f32 0.0, %v1613
        %1615 = vmatprep.mubr.bf16.mxu0 0
        %1616 = vmatmul.mubr.bf16.gmra.mrb[0].mxu0 %v1571
        %v1617 = vpop.f32.mrb[0].mxu0
        %v1618 = vadd.f32 0.0, %v1617
        %v1619 = vpop.f32.mrb[0].mxu0
        %v1620 = vadd.f32 0.0, %v1619
        %v1621 = vpop.f32.mrb[0].mxu0
        %v1622 = vadd.f32 0.0, %v1621
        %v1623 = vpop.f32.mrb[0].mxu0
        %v1624 = vadd.f32 0.0, %v1623
        %1625 = vdwg.mxu0
        %1626 = vmatprep.subr.bf16.mxu0 %v1527
        %1627 = vmatpush1.bf16.msra.mxu0 %v1526
        %1628 = vmatprep.subr.bf16.mxu0 %v1535
        %1629 = vmatpush1.bf16.msra.mxu0 %v1534
        %1630 = vmatprep.subr.bf16.mxu0 %v1543
        %1631 = vmatpush1.bf16.msra.mxu0 %v1542
        %1632 = vmatprep.subr.bf16.mxu0 %v1551
        %1633 = vmatpush1.bf16.msra.mxu0 %v1550
        %1634 = vmatprep.subr.bf16.mxu0 0
        %1635 = vmatpush1.bf16.msra.mxu0 0
        %1636 = vmatprep.subr.bf16.mxu0 0
        %1637 = vmatpush1.bf16.msra.mxu0 0
        %1638 = vmatprep.subr.bf16.mxu0 0
        %1639 = vmatpush1.bf16.msra.mxu0 0
        %1640 = vmatprep.subr.bf16.mxu0 0
        %1641 = vmatpush1.bf16.msra.mxu0 0
        %1642 = vmatprep.subr.bf16.mxu0 0
        %1643 = vmatpush1.bf16.msra.mxu0 0
        %1644 = vmatprep.subr.bf16.mxu0 0
        %1645 = vmatpush1.bf16.msra.mxu0 0
        %1646 = vmatprep.subr.bf16.mxu0 0
        %1647 = vmatpush1.bf16.msra.mxu0 0
        %1648 = vmatprep.subr.bf16.mxu0 0
        %1649 = vmatpush1.bf16.msra.mxu0 0
        %1650 = vmatprep.subr.bf16.mxu0 0
        %1651 = vmatpush1.bf16.msra.mxu0 0
        %1652 = vmatprep.subr.bf16.mxu0 0
        %1653 = vmatpush1.bf16.msra.mxu0 0
        %1654 = vmatprep.subr.bf16.mxu0 0
        %1655 = vmatpush1.bf16.msra.mxu0 0
        %1656 = vmatprep.subr.bf16.mxu0 0
        %1657 = vmatpush1.bf16.msra.mxu0 0
        %1658 = vmatprep.mubr.bf16.mxu0 0
        %1659 = vmatmul.mubr.bf16.gmra.mrb[0].mxu0 %v1568
        %v1660 = vpop.f32.mrb[0].mxu0
        %v1661 = vadd.f32 0.0, %v1660
        %v1662 = vpop.f32.mrb[0].mxu0
        %v1663 = vadd.f32 0.0, %v1662
        %v1664 = vpop.f32.mrb[0].mxu0
        %v1665 = vadd.f32 0.0, %v1664
        %v1666 = vpop.f32.mrb[0].mxu0
        %v1667 = vadd.f32 0.0, %v1666
        %1668 = vmatprep.mubr.bf16.mxu0 0
        %1669 = vmatmul.mubr.bf16.gmra.mrb[0].mxu0 %v1571
        %v1670 = vpop.f32.mrb[0].mxu0
        %v1671 = vadd.f32 0.0, %v1670
        %v1672 = vpop.f32.mrb[0].mxu0
        %v1673 = vadd.f32 0.0, %v1672
        %v1674 = vpop.f32.mrb[0].mxu0
        %v1675 = vadd.f32 0.0, %v1674
        %v1676 = vpop.f32.mrb[0].mxu0
        %v1677 = vadd.f32 0.0, %v1676
        %1678 = vdwg.mxu0
        %1679 = vmatprep.subr.bf16.mxu0 %v1529
        %1680 = vmatpush1.bf16.msra.mxu0 %v1528
        %1681 = vmatprep.subr.bf16.mxu0 %v1537
        %1682 = vmatpush1.bf16.msra.mxu0 %v1536
        %1683 = vmatprep.subr.bf16.mxu0 %v1545
        %1684 = vmatpush1.bf16.msra.mxu0 %v1544
        %1685 = vmatprep.subr.bf16.mxu0 %v1553
        %1686 = vmatpush1.bf16.msra.mxu0 %v1552
        %1687 = vmatprep.subr.bf16.mxu0 0
        %1688 = vmatpush1.bf16.msra.mxu0 0
        %1689 = vmatprep.subr.bf16.mxu0 0
        %1690 = vmatpush1.bf16.msra.mxu0 0
        %1691 = vmatprep.subr.bf16.mxu0 0
        %1692 = vmatpush1.bf16.msra.mxu0 0
        %1693 = vmatprep.subr.bf16.mxu0 0
        %1694 = vmatpush1.bf16.msra.mxu0 0
        %1695 = vmatprep.subr.bf16.mxu0 0
        %1696 = vmatpush1.bf16.msra.mxu0 0
        %1697 = vmatprep.subr.bf16.mxu0 0
        %1698 = vmatpush1.bf16.msra.mxu0 0
        %1699 = vmatprep.subr.bf16.mxu0 0
        %1700 = vmatpush1.bf16.msra.mxu0 0
        %1701 = vmatprep.subr.bf16.mxu0 0
        %1702 = vmatpush1.bf16.msra.mxu0 0
        %1703 = vmatprep.subr.bf16.mxu0 0
        %1704 = vmatpush1.bf16.msra.mxu0 0
        %1705 = vmatprep.subr.bf16.mxu0 0
        %1706 = vmatpush1.bf16.msra.mxu0 0
        %1707 = vmatprep.subr.bf16.mxu0 0
        %1708 = vmatpush1.bf16.msra.mxu0 0
        %1709 = vmatprep.subr.bf16.mxu0 0
        %1710 = vmatpush1.bf16.msra.mxu0 0
        %1711 = vmatprep.mubr.bf16.mxu0 0
        %1712 = vmatmul.mubr.bf16.gmra.mrb[0].mxu0 %v1568
        %v1713 = vpop.f32.mrb[0].mxu0
        %v1714 = vadd.f32 0.0, %v1713
        %v1715 = vpop.f32.mrb[0].mxu0
        %v1716 = vadd.f32 0.0, %v1715
        %v1717 = vpop.f32.mrb[0].mxu0
        %v1718 = vadd.f32 0.0, %v1717
        %v1719 = vpop.f32.mrb[0].mxu0
        %v1720 = vadd.f32 0.0, %v1719
        %1721 = vmatprep.mubr.bf16.mxu0 0
        %1722 = vmatmul.mubr.bf16.gmra.mrb[0].mxu0 %v1571
        %v1723 = vpop.f32.mrb[0].mxu0
        %v1724 = vadd.f32 0.0, %v1723
        %v1725 = vpop.f32.mrb[0].mxu0
        %v1726 = vadd.f32 0.0, %v1725
        %v1727 = vpop.f32.mrb[0].mxu0
        %v1728 = vadd.f32 0.0, %v1727
        %v1729 = vpop.f32.mrb[0].mxu0
        %v1730 = vadd.f32 0.0, %v1729
        %1731 = vdwg.mxu0
        %1732 = vmatprep.subr.bf16.mxu0 %v1531
        %1733 = vmatpush1.bf16.msra.mxu0 %v1530
        %1734 = vmatprep.subr.bf16.mxu0 %v1539
        %1735 = vmatpush1.bf16.msra.mxu0 %v1538
        %1736 = vmatprep.subr.bf16.mxu0 %v1547
        %1737 = vmatpush1.bf16.msra.mxu0 %v1546
        %1738 = vmatprep.subr.bf16.mxu0 %v1555
        %1739 = vmatpush1.bf16.msra.mxu0 %v1554
        %1740 = vmatprep.subr.bf16.mxu0 0
        %1741 = vmatpush1.bf16.msra.mxu0 0
        %1742 = vmatprep.subr.bf16.mxu0 0
        %1743 = vmatpush1.bf16.msra.mxu0 0
        %1744 = vmatprep.subr.bf16.mxu0 0
        %1745 = vmatpush1.bf16.msra.mxu0 0
        %1746 = vmatprep.subr.bf16.mxu0 0
        %1747 = vmatpush1.bf16.msra.mxu0 0
        %1748 = vmatprep.subr.bf16.mxu0 0
        %1749 = vmatpush1.bf16.msra.mxu0 0
        %1750 = vmatprep.subr.bf16.mxu0 0
        %1751 = vmatpush1.bf16.msra.mxu0 0
        %1752 = vmatprep.subr.bf16.mxu0 0
        %1753 = vmatpush1.bf16.msra.mxu0 0
        %1754 = vmatprep.subr.bf16.mxu0 0
        %1755 = vmatpush1.bf16.msra.mxu0 0
        %1756 = vmatprep.subr.bf16.mxu0 0
        %1757 = vmatpush1.bf16.msra.mxu0 0
        %1758 = vmatprep.subr.bf16.mxu0 0
        %1759 = vmatpush1.bf16.msra.mxu0 0
        %1760 = vmatprep.subr.bf16.mxu0 0
        %1761 = vmatpush1.bf16.msra.mxu0 0
        %1762 = vmatprep.subr.bf16.mxu0 0
        %1763 = vmatpush1.bf16.msra.mxu0 0
        %1764 = vmatprep.mubr.bf16.mxu0 0
        %1765 = vmatmul.mubr.bf16.gmra.mrb[0].mxu0 %v1568
        %v1766 = vpop.f32.mrb[0].mxu0
        %v1767 = vadd.f32 0.0, %v1766
        %v1768 = vpop.f32.mrb[0].mxu0
        %v1769 = vadd.f32 0.0, %v1768
        %v1770 = vpop.f32.mrb[0].mxu0
        %v1771 = vadd.f32 0.0, %v1770
        %v1772 = vpop.f32.mrb[0].mxu0
        %v1773 = vadd.f32 0.0, %v1772
        %1774 = vmatprep.mubr.bf16.mxu0 0
        %1775 = vmatmul.mubr.bf16.gmra.mrb[0].mxu0 %v1571
        %v1776 = vpop.f32.mrb[0].mxu0
        %v1777 = vadd.f32 0.0, %v1776
        %v1778 = vpop.f32.mrb[0].mxu0
        %v1779 = vadd.f32 0.0, %v1778
        %v1780 = vpop.f32.mrb[0].mxu0
        %v1781 = vadd.f32 0.0, %v1780
        %v1782 = vpop.f32.mrb[0].mxu0
        %v1783 = vadd.f32 0.0, %v1782
        %1784 = vdwg.mxu0
        %v1785 = vsel %vm748, 1, 0
        %v1786 = vsel %vm749, 1, 0
        %v1787 = vsel %vm750, 1, 0
        %v1788 = vsel %vm751, 1, 0
        %v1789 = vsel %vm752, 1, 0
        %v1790 = vsel %vm753, 1, 0
        %v1791 = vsel %vm754, 1, 0
        %v1792 = vsel %vm755, 1, 0
        %v1793 = vlaneseq
        %v1794 = vshrl.u32 %v1793, 7
        %v1795 = vsub.s32 2, %v1794
        %v1796 = vrot.slane %v1785, %v1795
        %v1797 = vlaneseq
        %v1798 = vshrl.u32 %v1797, 7
        %v1799 = vsub.s32 2, %v1798
        %v1800 = vrot.slane %v1786, %v1799
        %v1801 = vlaneseq
        %v1802 = vshrl.u32 %v1801, 7
        %v1803 = vsub.s32 2, %v1802
        %v1804 = vrot.slane %v1787, %v1803
        %v1805 = vlaneseq
        %v1806 = vshrl.u32 %v1805, 7
        %v1807 = vsub.s32 2, %v1806
        %v1808 = vrot.slane %v1788, %v1807
        %v1809 = vlaneseq
        %v1810 = vshrl.u32 %v1809, 7
        %v1811 = vsub.s32 2, %v1810
        %v1812 = vrot.slane %v1789, %v1811
        %v1813 = vlaneseq
        %v1814 = vshrl.u32 %v1813, 7
        %v1815 = vsub.s32 2, %v1814
        %v1816 = vrot.slane %v1790, %v1815
        %v1817 = vlaneseq
        %v1818 = vshrl.u32 %v1817, 7
        %v1819 = vsub.s32 2, %v1818
        %v1820 = vrot.slane %v1791, %v1819
        %v1821 = vlaneseq
        %v1822 = vshrl.u32 %v1821, 7
        %v1823 = vsub.s32 2, %v1822
        %v1824 = vrot.slane %v1792, %v1823
        %vm1825 = vcmp.eq.s32.totalorder %v1796, 1
        %vm1826 = vcmp.eq.s32.totalorder %v1800, 1
        %vm1827 = vcmp.eq.s32.totalorder %v1804, 1
        %vm1828 = vcmp.eq.s32.totalorder %v1808, 1
        %vm1829 = vcmp.eq.s32.totalorder %v1812, 1
        %vm1830 = vcmp.eq.s32.totalorder %v1816, 1
        %vm1831 = vcmp.eq.s32.totalorder %v1820, 1
        %vm1832 = vcmp.eq.s32.totalorder %v1824, 1
        %v1833 = vsel %vm1825, 0.0, %v1608
        %v1834 = vsel %vm1826, 0.0, %v1610
        %v1835 = vsel %vm1827, 0.0, %v1661
        %v1836 = vsel %vm1828, 0.0, %v1663
        %v1837 = vsel %vm1829, 0.0, %v1714
        %v1838 = vsel %vm1830, 0.0, %v1716
        %v1839 = vsel %vm1831, 0.0, %v1767
        %v1840 = vsel %vm1832, 0.0, %v1769
        %v1841 = vsel %vm1825, 0.0, %v1612
        %v1842 = vsel %vm1826, 0.0, %v1614
        %v1843 = vsel %vm1827, 0.0, %v1665
        %v1844 = vsel %vm1828, 0.0, %v1667
        %v1845 = vsel %vm1829, 0.0, %v1718
        %v1846 = vsel %vm1830, 0.0, %v1720
        %v1847 = vsel %vm1831, 0.0, %v1771
        %v1848 = vsel %vm1832, 0.0, %v1773
        %v1849 = vsel %vm1825, 0.0, %v1618
        %v1850 = vsel %vm1826, 0.0, %v1620
        %v1851 = vsel %vm1827, 0.0, %v1671
        %v1852 = vsel %vm1828, 0.0, %v1673
        %v1853 = vsel %vm1829, 0.0, %v1724
        %v1854 = vsel %vm1830, 0.0, %v1726
        %v1855 = vsel %vm1831, 0.0, %v1777
        %v1856 = vsel %vm1832, 0.0, %v1779
        %v1857 = vsel %vm1825, 0.0, %v1622
        %v1858 = vsel %vm1826, 0.0, %v1624
        %v1859 = vsel %vm1827, 0.0, %v1675
        %v1860 = vsel %vm1828, 0.0, %v1677
        %v1861 = vsel %vm1829, 0.0, %v1728
        %v1862 = vsel %vm1830, 0.0, %v1730
        %v1863 = vsel %vm1831, 0.0, %v1781
        %v1864 = vsel %vm1832, 0.0, %v1783
        %v1865 = vadd.f32 %v1833, 0.0
        %v1866 = vadd.f32 %v1834, 0.0
        %v1867 = vadd.f32 %v1835, 0.0
        %v1868 = vadd.f32 %v1836, 0.0
        %v1869 = vadd.f32 %v1837, 0.0
        %v1870 = vadd.f32 %v1838, 0.0
        %v1871 = vadd.f32 %v1839, 0.0
        %v1872 = vadd.f32 %v1840, 0.0
        %v1873 = vadd.f32 %v1841, 0.0
        %v1874 = vadd.f32 %v1842, 0.0
        %v1875 = vadd.f32 %v1843, 0.0
        %v1876 = vadd.f32 %v1844, 0.0
        %v1877 = vadd.f32 %v1845, 0.0
        %v1878 = vadd.f32 %v1846, 0.0
        %v1879 = vadd.f32 %v1847, 0.0
        %v1880 = vadd.f32 %v1848, 0.0
        %v1881 = vadd.f32 %v1849, 0.0
        %v1882 = vadd.f32 %v1850, 0.0
        %v1883 = vadd.f32 %v1851, 0.0
        %v1884 = vadd.f32 %v1852, 0.0
        %v1885 = vadd.f32 %v1853, 0.0
        %v1886 = vadd.f32 %v1854, 0.0
        %v1887 = vadd.f32 %v1855, 0.0
        %v1888 = vadd.f32 %v1856, 0.0
        %v1889 = vadd.f32 %v1857, 0.0
        %v1890 = vadd.f32 %v1858, 0.0
        %v1891 = vadd.f32 %v1859, 0.0
        %v1892 = vadd.f32 %v1860, 0.0
        %v1893 = vadd.f32 %v1861, 0.0
        %v1894 = vadd.f32 %v1862, 0.0
        %v1895 = vadd.f32 %v1863, 0.0
        %v1896 = vadd.f32 %v1864, 0.0
        %s1897 = scalar_lea.vmem %s437, 4
        %v1898 = vld [vmem:[%s1897] sm:$0x7]
        %1900 = vset.pattern.permute.xlu0 0
        %1901 = vperm.xlu0 %1900, %v1898
        %v1902 = vpop.permute.xlu0 %1901
        %v1904 = vmul.f32 %v1902, %v515
        %v1905 = vmul.f32 %v1902, %v519
        %v1906 = vmul.f32 %v1902, %v523
        %v1907 = vmul.f32 %v1902, %v527
        %v1908 = vmul.f32 %v1902, %v531
        %v1909 = vmul.f32 %v1902, %v535
        %v1910 = vmul.f32 %v1902, %v539
        %v1911 = vmul.f32 %v1902, %v543
        %1912 = vset.pattern.permute.xlu0 1
        %1913 = vperm.xlu0 %1912, %v1898
        %v1914 = vpop.permute.xlu0 %1913
        %v1916 = vmul.f32 %v1914, %v599
        %v1917 = vmul.f32 %v1914, %v603
        %v1918 = vmul.f32 %v1914, %v607
        %v1919 = vmul.f32 %v1914, %v611
        %v1920 = vmul.f32 %v1914, %v615
        %v1921 = vmul.f32 %v1914, %v619
        %v1922 = vmul.f32 %v1914, %v623
        %v1923 = vmul.f32 %v1914, %v627
        %v1924 = vadd.f32 %v1904, %v1916
        %v1925 = vadd.f32 %v1905, %v1917
        %v1926 = vadd.f32 %v1906, %v1918
        %v1927 = vadd.f32 %v1907, %v1919
        %v1928 = vadd.f32 %v1908, %v1920
        %v1929 = vadd.f32 %v1909, %v1921
        %v1930 = vadd.f32 %v1910, %v1922
        %v1931 = vadd.f32 %v1911, %v1923
        %1932 = vset.pattern.permute.xlu0 2
        %1933 = vperm.xlu0 %1932, %v1898
        %v1934 = vpop.permute.xlu0 %1933
        %v1936 = vmul.f32 %v1934, %v691
        %v1937 = vmul.f32 %v1934, %v695
        %v1938 = vmul.f32 %v1934, %v699
        %v1939 = vmul.f32 %v1934, %v703
        %v1940 = vmul.f32 %v1934, %v707
        %v1941 = vmul.f32 %v1934, %v711
        %v1942 = vmul.f32 %v1934, %v715
        %v1943 = vmul.f32 %v1934, %v719
        %v1944 = vadd.f32 %v1924, %v1936
        %v1945 = vadd.f32 %v1925, %v1937
        %v1946 = vadd.f32 %v1926, %v1938
        %v1947 = vadd.f32 %v1927, %v1939
        %v1948 = vadd.f32 %v1928, %v1940
        %v1949 = vadd.f32 %v1929, %v1941
        %v1950 = vadd.f32 %v1930, %v1942
        %v1951 = vadd.f32 %v1931, %v1943
        %1952 = vset.pattern.permute.xlu0 3
        %1953 = vperm.xlu0 %1952, %v1898
        %v1954 = vpop.permute.xlu0 %1953
        %v1956 = vadd.f32 %v1944, %v1954
        %v1957 = vadd.f32 %v1945, %v1954
        %v1958 = vadd.f32 %v1946, %v1954
        %v1959 = vadd.f32 %v1947, %v1954
        %v1960 = vadd.f32 %v1948, %v1954
        %v1961 = vadd.f32 %v1949, %v1954
        %v1962 = vadd.f32 %v1950, %v1954
        %v1963 = vadd.f32 %v1951, %v1954
        %vm1964 = vcmp.le.f32.partialorder %v1956, 0.0
        %vm1965 = vcmp.le.f32.partialorder %v1957, 0.0
        %vm1966 = vcmp.le.f32.partialorder %v1958, 0.0
        %vm1967 = vcmp.le.f32.partialorder %v1959, 0.0
        %vm1968 = vcmp.le.f32.partialorder %v1960, 0.0
        %vm1969 = vcmp.le.f32.partialorder %v1961, 0.0
        %vm1970 = vcmp.le.f32.partialorder %v1962, 0.0
        %vm1971 = vcmp.le.f32.partialorder %v1963, 0.0
        %vm1972 = vcmp.eq.f32.partialorder %v1956, 0.0
        %vm1973 = vcmp.eq.f32.partialorder %v1957, 0.0
        %vm1974 = vcmp.eq.f32.partialorder %v1958, 0.0
        %vm1975 = vcmp.eq.f32.partialorder %v1959, 0.0
        %vm1976 = vcmp.eq.f32.partialorder %v1960, 0.0
        %vm1977 = vcmp.eq.f32.partialorder %v1961, 0.0
        %vm1978 = vcmp.eq.f32.partialorder %v1962, 0.0
        %vm1979 = vcmp.eq.f32.partialorder %v1963, 0.0
        %v1980 = vsel %vm1972, 1.0, %v1956
        %v1981 = vsel %vm1973, 1.0, %v1957
        %v1982 = vsel %vm1974, 1.0, %v1958
        %v1983 = vsel %vm1975, 1.0, %v1959
        %v1984 = vsel %vm1976, 1.0, %v1960
        %v1985 = vsel %vm1977, 1.0, %v1961
        %v1986 = vsel %vm1978, 1.0, %v1962
        %v1987 = vsel %vm1979, 1.0, %v1963
        %v1988 = vrcp.pop %v1980
        %v1989 = vrcp.pop %v1981
        %v1990 = vrcp.pop %v1982
        %v1991 = vrcp.pop %v1983
        %v1992 = vrcp.pop %v1984
        %v1993 = vrcp.pop %v1985
        %v1994 = vrcp.pop %v1986
        %v1995 = vrcp.pop %v1987
        %v2004 = vrot.slane %v1988, 2
        %v2005 = vrot.slane %v1989, 2
        %v2006 = vrot.slane %v1990, 2
        %v2007 = vrot.slane %v1991, 2
        %v2008 = vrot.slane %v1992, 2
        %v2009 = vrot.slane %v1993, 2
        %v2010 = vrot.slane %v1994, 2
        %v2011 = vrot.slane %v1995, 2
        %v2020 = vmul.f32 %v1956, %v2004
        %v2021 = vmul.f32 %v1957, %v2005
        %v2022 = vmul.f32 %v1958, %v2006
        %v2023 = vmul.f32 %v1959, %v2007
        %v2024 = vmul.f32 %v1960, %v2008
        %v2025 = vmul.f32 %v1961, %v2009
        %v2026 = vmul.f32 %v1962, %v2010
        %v2027 = vmul.f32 %v1963, %v2011
        %v2028 = vmul.f32 %v2020, 0.875
        %v2029 = vmul.f32 %v2021, 0.875
        %v2030 = vmul.f32 %v2022, 0.875
        %v2031 = vmul.f32 %v2023, 0.875
        %v2032 = vmul.f32 %v2024, 0.875
        %v2033 = vmul.f32 %v2025, 0.875
        %v2034 = vmul.f32 %v2026, 0.875
        %v2035 = vmul.f32 %v2027, 0.875
        %v2036 = vrot.slane %v1988, 1
        %v2037 = vrot.slane %v1989, 1
        %v2038 = vrot.slane %v1990, 1
        %v2039 = vrot.slane %v1991, 1
        %v2040 = vrot.slane %v1992, 1
        %v2041 = vrot.slane %v1993, 1
        %v2042 = vrot.slane %v1994, 1
        %v2043 = vrot.slane %v1995, 1
        %v2052 = vmul.f32 %v1956, %v2036
        %v2053 = vmul.f32 %v1957, %v2037
        %v2054 = vmul.f32 %v1958, %v2038
        %v2055 = vmul.f32 %v1959, %v2039
        %v2056 = vmul.f32 %v1960, %v2040
        %v2057 = vmul.f32 %v1961, %v2041
        %v2058 = vmul.f32 %v1962, %v2042
        %v2059 = vmul.f32 %v1963, %v2043
        %v2060 = vmul.f32 %v2052, 0.875
        %v2061 = vmul.f32 %v2053, 0.875
        %v2062 = vmul.f32 %v2054, 0.875
        %v2063 = vmul.f32 %v2055, 0.875
        %v2064 = vmul.f32 %v2056, 0.875
        %v2065 = vmul.f32 %v2057, 0.875
        %v2066 = vmul.f32 %v2058, 0.875
        %v2067 = vmul.f32 %v2059, 0.875
        %v2068 = vlaneseq
        %v2069 = vshrl.u32 %v2068, 7
        %v2070 = vsub.s32 0, %v2069
        %v2071 = vrot.slane %v2028, %v2070
        %v2072 = vlaneseq
        %v2073 = vshrl.u32 %v2072, 7
        %v2074 = vsub.s32 0, %v2073
        %v2075 = vrot.slane %v2029, %v2074
        %v2076 = vlaneseq
        %v2077 = vshrl.u32 %v2076, 7
        %v2078 = vsub.s32 0, %v2077
        %v2079 = vrot.slane %v2030, %v2078
        %v2080 = vlaneseq
        %v2081 = vshrl.u32 %v2080, 7
        %v2082 = vsub.s32 0, %v2081
        %v2083 = vrot.slane %v2031, %v2082
        %v2084 = vlaneseq
        %v2085 = vshrl.u32 %v2084, 7
        %v2086 = vsub.s32 0, %v2085
        %v2087 = vrot.slane %v2032, %v2086
        %v2088 = vlaneseq
        %v2089 = vshrl.u32 %v2088, 7
        %v2090 = vsub.s32 0, %v2089
        %v2091 = vrot.slane %v2033, %v2090
        %v2092 = vlaneseq
        %v2093 = vshrl.u32 %v2092, 7
        %v2094 = vsub.s32 0, %v2093
        %v2095 = vrot.slane %v2034, %v2094
        %v2096 = vlaneseq
        %v2097 = vshrl.u32 %v2096, 7
        %v2098 = vsub.s32 0, %v2097
        %v2099 = vrot.slane %v2035, %v2098
        %v2100 = vsub.f32 %v2071, %v888
        %v2101 = vsub.f32 %v2075, %v888
        %v2102 = vsub.f32 %v2079, %v888
        %v2103 = vsub.f32 %v2083, %v888
        %v2104 = vsub.f32 %v2087, %v888
        %v2105 = vsub.f32 %v2091, %v888
        %v2106 = vsub.f32 %v2095, %v888
        %v2107 = vsub.f32 %v2099, %v888
        %v2108 = vand.u32 2147483647, %v2100
        %v2109 = vand.u32 2147483647, %v2101
        %v2110 = vand.u32 2147483647, %v2102
        %v2111 = vand.u32 2147483647, %v2103
        %v2112 = vand.u32 2147483647, %v2104
        %v2113 = vand.u32 2147483647, %v2105
        %v2114 = vand.u32 2147483647, %v2106
        %v2115 = vand.u32 2147483647, %v2107
        %v2116 = vsub.f32 1.0, %v2108
        %v2117 = vsub.f32 1.0, %v2109
        %v2118 = vsub.f32 1.0, %v2110
        %v2119 = vsub.f32 1.0, %v2111
        %v2120 = vsub.f32 1.0, %v2112
        %v2121 = vsub.f32 1.0, %v2113
        %v2122 = vsub.f32 1.0, %v2114
        %v2123 = vsub.f32 1.0, %v2115
        %v2124 = vmax.f32 %v2116, 0.0
        %v2125 = vmax.f32 %v2117, 0.0
        %v2126 = vmax.f32 %v2118, 0.0
        %v2127 = vmax.f32 %v2119, 0.0
        %v2128 = vmax.f32 %v2120, 0.0
        %v2129 = vmax.f32 %v2121, 0.0
        %v2130 = vmax.f32 %v2122, 0.0
        %v2131 = vmax.f32 %v2123, 0.0
        %v2132 = vlaneseq
        %v2133 = vshrl.u32 %v2132, 7
        %v2134 = vsub.s32 1, %v2133
        %v2135 = vrot.slane %v2060, %v2134
        %v2136 = vlaneseq
        %v2137 = vshrl.u32 %v2136, 7
        %v2138 = vsub.s32 1, %v2137
        %v2139 = vrot.slane %v2061, %v2138
        %v2140 = vlaneseq
        %v2141 = vshrl.u32 %v2140, 7
        %v2142 = vsub.s32 1, %v2141
        %v2143 = vrot.slane %v2062, %v2142
        %v2144 = vlaneseq
        %v2145 = vshrl.u32 %v2144, 7
        %v2146 = vsub.s32 1, %v2145
        %v2147 = vrot.slane %v2063, %v2146
        %v2148 = vlaneseq
        %v2149 = vshrl.u32 %v2148, 7
        %v2150 = vsub.s32 1, %v2149
        %v2151 = vrot.slane %v2064, %v2150
        %v2152 = vlaneseq
        %v2153 = vshrl.u32 %v2152, 7
        %v2154 = vsub.s32 1, %v2153
        %v2155 = vrot.slane %v2065, %v2154
        %v2156 = vlaneseq
        %v2157 = vshrl.u32 %v2156, 7
        %v2158 = vsub.s32 1, %v2157
        %v2159 = vrot.slane %v2066, %v2158
        %v2160 = vlaneseq
        %v2161 = vshrl.u32 %v2160, 7
        %v2162 = vsub.s32 1, %v2161
        %v2163 = vrot.slane %v2067, %v2162
        %v2164 = vsub.f32 %v2135, %v958
        %v2165 = vsub.f32 %v2139, %v958
        %v2166 = vsub.f32 %v2143, %v958
        %v2167 = vsub.f32 %v2147, %v958
        %v2168 = vsub.f32 %v2151, %v958
        %v2169 = vsub.f32 %v2155, %v958
        %v2170 = vsub.f32 %v2159, %v958
        %v2171 = vsub.f32 %v2163, %v958
        %v2172 = vand.u32 2147483647, %v2164
        %v2173 = vand.u32 2147483647, %v2165
        %v2174 = vand.u32 2147483647, %v2166
        %v2175 = vand.u32 2147483647, %v2167
        %v2176 = vand.u32 2147483647, %v2168
        %v2177 = vand.u32 2147483647, %v2169
        %v2178 = vand.u32 2147483647, %v2170
        %v2179 = vand.u32 2147483647, %v2171
        %v2180 = vsub.f32 1.0, %v2172
        %v2181 = vsub.f32 1.0, %v2173
        %v2182 = vsub.f32 1.0, %v2174
        %v2183 = vsub.f32 1.0, %v2175
        %v2184 = vsub.f32 1.0, %v2176
        %v2185 = vsub.f32 1.0, %v2177
        %v2186 = vsub.f32 1.0, %v2178
        %v2187 = vsub.f32 1.0, %v2179
        %v2188 = vmax.f32 %v2180, 0.0
        %v2189 = vmax.f32 %v2181, 0.0
        %v2190 = vmax.f32 %v2182, 0.0
        %v2191 = vmax.f32 %v2183, 0.0
        %v2192 = vmax.f32 %v2184, 0.0
        %v2193 = vmax.f32 %v2185, 0.0
        %v2194 = vmax.f32 %v2186, 0.0
        %v2195 = vmax.f32 %v2187, 0.0
        %v2204 = vcombine.low %v2188, %v2189
        %v2205 = vcombine.high %v2188, %v2189
        %v2206 = vcombine.low %v2190, %v2191
        %v2207 = vcombine.high %v2190, %v2191
        %v2208 = vcombine.low %v2192, %v2193
        %v2209 = vcombine.high %v2192, %v2193
        %v2210 = vcombine.low %v2194, %v2195
        %v2211 = vcombine.high %v2194, %v2195
        %v2213 = vunpack.c.l.s4 1966171168
        %v2214 = vunpack.c.0.s8 %v2213
        %v2215 = vlaneseq
        %v2216 = vshrl.u32 %v2215, 7
        %v2217 = vsub.s32 %v2214, %v2216
        %v2218 = vrot.slane %v2204, %v2217
        %v2220 = vunpack.c.l.s4 1966171168
        %v2221 = vunpack.c.0.s8 %v2220
        %v2222 = vlaneseq
        %v2223 = vshrl.u32 %v2222, 7
        %v2224 = vsub.s32 %v2221, %v2223
        %v2225 = vrot.slane %v2205, %v2224
        %v2227 = vunpack.c.l.s4 1966171168
        %v2228 = vunpack.c.0.s8 %v2227
        %v2229 = vlaneseq
        %v2230 = vshrl.u32 %v2229, 7
        %v2231 = vsub.s32 %v2228, %v2230
        %v2232 = vrot.slane %v2206, %v2231
        %v2234 = vunpack.c.l.s4 1966171168
        %v2235 = vunpack.c.0.s8 %v2234
        %v2236 = vlaneseq
        %v2237 = vshrl.u32 %v2236, 7
        %v2238 = vsub.s32 %v2235, %v2237
        %v2239 = vrot.slane %v2207, %v2238
        %v2241 = vunpack.c.l.s4 1966171168
        %v2242 = vunpack.c.0.s8 %v2241
        %v2243 = vlaneseq
        %v2244 = vshrl.u32 %v2243, 7
        %v2245 = vsub.s32 %v2242, %v2244
        %v2246 = vrot.slane %v2208, %v2245
        %v2248 = vunpack.c.l.s4 1966171168
        %v2249 = vunpack.c.0.s8 %v2248
        %v2250 = vlaneseq
        %v2251 = vshrl.u32 %v2250, 7
        %v2252 = vsub.s32 %v2249, %v2251
        %v2253 = vrot.slane %v2209, %v2252
        %v2255 = vunpack.c.l.s4 1966171168
        %v2256 = vunpack.c.0.s8 %v2255
        %v2257 = vlaneseq
        %v2258 = vshrl.u32 %v2257, 7
        %v2259 = vsub.s32 %v2256, %v2258
        %v2260 = vrot.slane %v2210, %v2259
        %v2262 = vunpack.c.l.s4 1966171168
        %v2263 = vunpack.c.0.s8 %v2262
        %v2264 = vlaneseq
        %v2265 = vshrl.u32 %v2264, 7
        %v2266 = vsub.s32 %v2263, %v2265
        %v2267 = vrot.slane %v2211, %v2266
        %v2268 = vcombine.low %v2218, %v2232
        %v2269 = vcombine.high %v2218, %v2232
        %v2270 = vcombine.low %v2225, %v2239
        %v2271 = vcombine.high %v2225, %v2239
        %v2272 = vcombine.low %v2246, %v2260
        %v2273 = vcombine.high %v2246, %v2260
        %v2274 = vcombine.low %v2253, %v2267
        %v2275 = vcombine.high %v2253, %v2267
        %v2277 = vunpack.c.l.s4 1966171168
        %v2278 = vunpack.c.0.s8 %v2277
        %v2279 = vlaneseq
        %v2280 = vshrl.u32 %v2279, 7
        %v2281 = vsub.s32 %v2278, %v2280
        %v2282 = vrot.slane %v2268, %v2281
        %v2284 = vunpack.c.l.s4 1966171168
        %v2285 = vunpack.c.0.s8 %v2284
        %v2286 = vlaneseq
        %v2287 = vshrl.u32 %v2286, 7
        %v2288 = vsub.s32 %v2285, %v2287
        %v2289 = vrot.slane %v2270, %v2288
        %v2291 = vunpack.c.l.s4 1966171168
        %v2292 = vunpack.c.0.s8 %v2291
        %v2293 = vlaneseq
        %v2294 = vshrl.u32 %v2293, 7
        %v2295 = vsub.s32 %v2292, %v2294
        %v2296 = vrot.slane %v2269, %v2295
        %v2298 = vunpack.c.l.s4 1966171168
        %v2299 = vunpack.c.0.s8 %v2298
        %v2300 = vlaneseq
        %v2301 = vshrl.u32 %v2300, 7
        %v2302 = vsub.s32 %v2299, %v2301
        %v2303 = vrot.slane %v2271, %v2302
        %v2305 = vunpack.c.l.s4 1966171168
        %v2306 = vunpack.c.0.s8 %v2305
        %v2307 = vlaneseq
        %v2308 = vshrl.u32 %v2307, 7
        %v2309 = vsub.s32 %v2306, %v2308
        %v2310 = vrot.slane %v2272, %v2309
        %v2312 = vunpack.c.l.s4 1966171168
        %v2313 = vunpack.c.0.s8 %v2312
        %v2314 = vlaneseq
        %v2315 = vshrl.u32 %v2314, 7
        %v2316 = vsub.s32 %v2313, %v2315
        %v2317 = vrot.slane %v2274, %v2316
        %v2319 = vunpack.c.l.s4 1966171168
        %v2320 = vunpack.c.0.s8 %v2319
        %v2321 = vlaneseq
        %v2322 = vshrl.u32 %v2321, 7
        %v2323 = vsub.s32 %v2320, %v2322
        %v2324 = vrot.slane %v2273, %v2323
        %v2326 = vunpack.c.l.s4 1966171168
        %v2327 = vunpack.c.0.s8 %v2326
        %v2328 = vlaneseq
        %v2329 = vshrl.u32 %v2328, 7
        %v2330 = vsub.s32 %v2327, %v2329
        %v2331 = vrot.slane %v2275, %v2330
        %v2332 = vcombine.low %v2282, %v2310
        %v2333 = vcombine.high %v2282, %v2310
        %v2334 = vcombine.low %v2289, %v2317
        %v2335 = vcombine.high %v2289, %v2317
        %v2336 = vcombine.low %v2296, %v2324
        %v2337 = vcombine.high %v2296, %v2324
        %v2338 = vcombine.low %v2303, %v2331
        %v2339 = vcombine.high %v2303, %v2331
        %v2340 = vlaneseq
        %v2341 = vshrl.u32 %v2340, 7
        %v2342 = vsub.s32 0, %v2341
        %v2343 = vrot.slane %v2332, %v2342
        %v2344 = vlaneseq
        %v2345 = vshrl.u32 %v2344, 7
        %v2346 = vsub.s32 1, %v2345
        %v2347 = vrot.slane %v2332, %v2346
        %v2348 = vlaneseq
        %v2349 = vshrl.u32 %v2348, 7
        %v2350 = vsub.s32 2, %v2349
        %v2351 = vrot.slane %v2332, %v2350
        %v2352 = vlaneseq
        %v2353 = vshrl.u32 %v2352, 7
        %v2354 = vsub.s32 3, %v2353
        %v2355 = vrot.slane %v2332, %v2354
        %v2356 = vlaneseq
        %v2357 = vshrl.u32 %v2356, 7
        %v2358 = vsub.s32 4, %v2357
        %v2359 = vrot.slane %v2332, %v2358
        %v2360 = vlaneseq
        %v2361 = vshrl.u32 %v2360, 7
        %v2362 = vsub.s32 5, %v2361
        %v2363 = vrot.slane %v2332, %v2362
        %v2364 = vlaneseq
        %v2365 = vshrl.u32 %v2364, 7
        %v2366 = vsub.s32 6, %v2365
        %v2367 = vrot.slane %v2332, %v2366
        %v2368 = vlaneseq
        %v2369 = vshrl.u32 %v2368, 7
        %v2370 = vsub.s32 7, %v2369
        %v2371 = vrot.slane %v2332, %v2370
        %v2372 = vlaneseq
        %v2373 = vshrl.u32 %v2372, 7
        %v2374 = vsub.s32 0, %v2373
        %v2375 = vrot.slane %v2336, %v2374
        %v2376 = vlaneseq
        %v2377 = vshrl.u32 %v2376, 7
        %v2378 = vsub.s32 1, %v2377
        %v2379 = vrot.slane %v2336, %v2378
        %v2380 = vlaneseq
        %v2381 = vshrl.u32 %v2380, 7
        %v2382 = vsub.s32 2, %v2381
        %v2383 = vrot.slane %v2336, %v2382
        %v2384 = vlaneseq
        %v2385 = vshrl.u32 %v2384, 7
        %v2386 = vsub.s32 3, %v2385
        %v2387 = vrot.slane %v2336, %v2386
        %v2388 = vlaneseq
        %v2389 = vshrl.u32 %v2388, 7
        %v2390 = vsub.s32 4, %v2389
        %v2391 = vrot.slane %v2336, %v2390
        %v2392 = vlaneseq
        %v2393 = vshrl.u32 %v2392, 7
        %v2394 = vsub.s32 5, %v2393
        %v2395 = vrot.slane %v2336, %v2394
        %v2396 = vlaneseq
        %v2397 = vshrl.u32 %v2396, 7
        %v2398 = vsub.s32 6, %v2397
        %v2399 = vrot.slane %v2336, %v2398
        %v2400 = vlaneseq
        %v2401 = vshrl.u32 %v2400, 7
        %v2402 = vsub.s32 7, %v2401
        %v2403 = vrot.slane %v2336, %v2402
        %v2404 = vlaneseq
        %v2405 = vshrl.u32 %v2404, 7
        %v2406 = vsub.s32 0, %v2405
        %v2407 = vrot.slane %v2333, %v2406
        %v2408 = vlaneseq
        %v2409 = vshrl.u32 %v2408, 7
        %v2410 = vsub.s32 1, %v2409
        %v2411 = vrot.slane %v2333, %v2410
        %v2412 = vlaneseq
        %v2413 = vshrl.u32 %v2412, 7
        %v2414 = vsub.s32 2, %v2413
        %v2415 = vrot.slane %v2333, %v2414
        %v2416 = vlaneseq
        %v2417 = vshrl.u32 %v2416, 7
        %v2418 = vsub.s32 3, %v2417
        %v2419 = vrot.slane %v2333, %v2418
        %v2420 = vlaneseq
        %v2421 = vshrl.u32 %v2420, 7
        %v2422 = vsub.s32 4, %v2421
        %v2423 = vrot.slane %v2333, %v2422
        %v2424 = vlaneseq
        %v2425 = vshrl.u32 %v2424, 7
        %v2426 = vsub.s32 5, %v2425
        %v2427 = vrot.slane %v2333, %v2426
        %v2428 = vlaneseq
        %v2429 = vshrl.u32 %v2428, 7
        %v2430 = vsub.s32 6, %v2429
        %v2431 = vrot.slane %v2333, %v2430
        %v2432 = vlaneseq
        %v2433 = vshrl.u32 %v2432, 7
        %v2434 = vsub.s32 7, %v2433
        %v2435 = vrot.slane %v2333, %v2434
        %v2436 = vlaneseq
        %v2437 = vshrl.u32 %v2436, 7
        %v2438 = vsub.s32 0, %v2437
        %v2439 = vrot.slane %v2337, %v2438
        %v2440 = vlaneseq
        %v2441 = vshrl.u32 %v2440, 7
        %v2442 = vsub.s32 1, %v2441
        %v2443 = vrot.slane %v2337, %v2442
        %v2444 = vlaneseq
        %v2445 = vshrl.u32 %v2444, 7
        %v2446 = vsub.s32 2, %v2445
        %v2447 = vrot.slane %v2337, %v2446
        %v2448 = vlaneseq
        %v2449 = vshrl.u32 %v2448, 7
        %v2450 = vsub.s32 3, %v2449
        %v2451 = vrot.slane %v2337, %v2450
        %v2452 = vlaneseq
        %v2453 = vshrl.u32 %v2452, 7
        %v2454 = vsub.s32 4, %v2453
        %v2455 = vrot.slane %v2337, %v2454
        %v2456 = vlaneseq
        %v2457 = vshrl.u32 %v2456, 7
        %v2458 = vsub.s32 5, %v2457
        %v2459 = vrot.slane %v2337, %v2458
        %v2460 = vlaneseq
        %v2461 = vshrl.u32 %v2460, 7
        %v2462 = vsub.s32 6, %v2461
        %v2463 = vrot.slane %v2337, %v2462
        %v2464 = vlaneseq
        %v2465 = vshrl.u32 %v2464, 7
        %v2466 = vsub.s32 7, %v2465
        %v2467 = vrot.slane %v2337, %v2466
        %v2468 = vlaneseq
        %v2469 = vshrl.u32 %v2468, 7
        %v2470 = vsub.s32 0, %v2469
        %v2471 = vrot.slane %v2334, %v2470
        %v2472 = vlaneseq
        %v2473 = vshrl.u32 %v2472, 7
        %v2474 = vsub.s32 1, %v2473
        %v2475 = vrot.slane %v2334, %v2474
        %v2476 = vlaneseq
        %v2477 = vshrl.u32 %v2476, 7
        %v2478 = vsub.s32 2, %v2477
        %v2479 = vrot.slane %v2334, %v2478
        %v2480 = vlaneseq
        %v2481 = vshrl.u32 %v2480, 7
        %v2482 = vsub.s32 3, %v2481
        %v2483 = vrot.slane %v2334, %v2482
        %v2484 = vlaneseq
        %v2485 = vshrl.u32 %v2484, 7
        %v2486 = vsub.s32 4, %v2485
        %v2487 = vrot.slane %v2334, %v2486
        %v2488 = vlaneseq
        %v2489 = vshrl.u32 %v2488, 7
        %v2490 = vsub.s32 5, %v2489
        %v2491 = vrot.slane %v2334, %v2490
        %v2492 = vlaneseq
        %v2493 = vshrl.u32 %v2492, 7
        %v2494 = vsub.s32 6, %v2493
        %v2495 = vrot.slane %v2334, %v2494
        %v2496 = vlaneseq
        %v2497 = vshrl.u32 %v2496, 7
        %v2498 = vsub.s32 7, %v2497
        %v2499 = vrot.slane %v2334, %v2498
        %v2500 = vlaneseq
        %v2501 = vshrl.u32 %v2500, 7
        %v2502 = vsub.s32 0, %v2501
        %v2503 = vrot.slane %v2338, %v2502
        %v2504 = vlaneseq
        %v2505 = vshrl.u32 %v2504, 7
        %v2506 = vsub.s32 1, %v2505
        %v2507 = vrot.slane %v2338, %v2506
        %v2508 = vlaneseq
        %v2509 = vshrl.u32 %v2508, 7
        %v2510 = vsub.s32 2, %v2509
        %v2511 = vrot.slane %v2338, %v2510
        %v2512 = vlaneseq
        %v2513 = vshrl.u32 %v2512, 7
        %v2514 = vsub.s32 3, %v2513
        %v2515 = vrot.slane %v2338, %v2514
        %v2516 = vlaneseq
        %v2517 = vshrl.u32 %v2516, 7
        %v2518 = vsub.s32 4, %v2517
        %v2519 = vrot.slane %v2338, %v2518
        %v2520 = vlaneseq
        %v2521 = vshrl.u32 %v2520, 7
        %v2522 = vsub.s32 5, %v2521
        %v2523 = vrot.slane %v2338, %v2522
        %v2524 = vlaneseq
        %v2525 = vshrl.u32 %v2524, 7
        %v2526 = vsub.s32 6, %v2525
        %v2527 = vrot.slane %v2338, %v2526
        %v2528 = vlaneseq
        %v2529 = vshrl.u32 %v2528, 7
        %v2530 = vsub.s32 7, %v2529
        %v2531 = vrot.slane %v2338, %v2530
        %v2532 = vlaneseq
        %v2533 = vshrl.u32 %v2532, 7
        %v2534 = vsub.s32 0, %v2533
        %v2535 = vrot.slane %v2335, %v2534
        %v2536 = vlaneseq
        %v2537 = vshrl.u32 %v2536, 7
        %v2538 = vsub.s32 1, %v2537
        %v2539 = vrot.slane %v2335, %v2538
        %v2540 = vlaneseq
        %v2541 = vshrl.u32 %v2540, 7
        %v2542 = vsub.s32 2, %v2541
        %v2543 = vrot.slane %v2335, %v2542
        %v2544 = vlaneseq
        %v2545 = vshrl.u32 %v2544, 7
        %v2546 = vsub.s32 3, %v2545
        %v2547 = vrot.slane %v2335, %v2546
        %v2548 = vlaneseq
        %v2549 = vshrl.u32 %v2548, 7
        %v2550 = vsub.s32 4, %v2549
        %v2551 = vrot.slane %v2335, %v2550
        %v2552 = vlaneseq
        %v2553 = vshrl.u32 %v2552, 7
        %v2554 = vsub.s32 5, %v2553
        %v2555 = vrot.slane %v2335, %v2554
        %v2556 = vlaneseq
        %v2557 = vshrl.u32 %v2556, 7
        %v2558 = vsub.s32 6, %v2557
        %v2559 = vrot.slane %v2335, %v2558
        %v2560 = vlaneseq
        %v2561 = vshrl.u32 %v2560, 7
        %v2562 = vsub.s32 7, %v2561
        %v2563 = vrot.slane %v2335, %v2562
        %v2564 = vlaneseq
        %v2565 = vshrl.u32 %v2564, 7
        %v2566 = vsub.s32 0, %v2565
        %v2567 = vrot.slane %v2339, %v2566
        %v2568 = vlaneseq
        %v2569 = vshrl.u32 %v2568, 7
        %v2570 = vsub.s32 1, %v2569
        %v2571 = vrot.slane %v2339, %v2570
        %v2572 = vlaneseq
        %v2573 = vshrl.u32 %v2572, 7
        %v2574 = vsub.s32 2, %v2573
        %v2575 = vrot.slane %v2339, %v2574
        %v2576 = vlaneseq
        %v2577 = vshrl.u32 %v2576, 7
        %v2578 = vsub.s32 3, %v2577
        %v2579 = vrot.slane %v2339, %v2578
        %v2580 = vlaneseq
        %v2581 = vshrl.u32 %v2580, 7
        %v2582 = vsub.s32 4, %v2581
        %v2583 = vrot.slane %v2339, %v2582
        %v2584 = vlaneseq
        %v2585 = vshrl.u32 %v2584, 7
        %v2586 = vsub.s32 5, %v2585
        %v2587 = vrot.slane %v2339, %v2586
        %v2588 = vlaneseq
        %v2589 = vshrl.u32 %v2588, 7
        %v2590 = vsub.s32 6, %v2589
        %v2591 = vrot.slane %v2339, %v2590
        %v2592 = vlaneseq
        %v2593 = vshrl.u32 %v2592, 7
        %v2594 = vsub.s32 7, %v2593
        %v2595 = vrot.slane %v2339, %v2594
        %v2660 = vmul.f32 %v2343, %v2124
        %v2661 = vmul.f32 %v2347, %v2125
        %v2662 = vmul.f32 %v2351, %v2126
        %v2663 = vmul.f32 %v2355, %v2127
        %v2664 = vmul.f32 %v2359, %v2128
        %v2665 = vmul.f32 %v2363, %v2129
        %v2666 = vmul.f32 %v2367, %v2130
        %v2667 = vmul.f32 %v2371, %v2131
        %v2668 = vmul.f32 %v2375, %v2124
        %v2669 = vmul.f32 %v2379, %v2125
        %v2670 = vmul.f32 %v2383, %v2126
        %v2671 = vmul.f32 %v2387, %v2127
        %v2672 = vmul.f32 %v2391, %v2128
        %v2673 = vmul.f32 %v2395, %v2129
        %v2674 = vmul.f32 %v2399, %v2130
        %v2675 = vmul.f32 %v2403, %v2131
        %v2676 = vmul.f32 %v2407, %v2124
        %v2677 = vmul.f32 %v2411, %v2125
        %v2678 = vmul.f32 %v2415, %v2126
        %v2679 = vmul.f32 %v2419, %v2127
        %v2680 = vmul.f32 %v2423, %v2128
        %v2681 = vmul.f32 %v2427, %v2129
        %v2682 = vmul.f32 %v2431, %v2130
        %v2683 = vmul.f32 %v2435, %v2131
        %v2684 = vmul.f32 %v2439, %v2124
        %v2685 = vmul.f32 %v2443, %v2125
        %v2686 = vmul.f32 %v2447, %v2126
        %v2687 = vmul.f32 %v2451, %v2127
        %v2688 = vmul.f32 %v2455, %v2128
        %v2689 = vmul.f32 %v2459, %v2129
        %v2690 = vmul.f32 %v2463, %v2130
        %v2691 = vmul.f32 %v2467, %v2131
        %v2692 = vmul.f32 %v2471, %v2124
        %v2693 = vmul.f32 %v2475, %v2125
        %v2694 = vmul.f32 %v2479, %v2126
        %v2695 = vmul.f32 %v2483, %v2127
        %v2696 = vmul.f32 %v2487, %v2128
        %v2697 = vmul.f32 %v2491, %v2129
        %v2698 = vmul.f32 %v2495, %v2130
        %v2699 = vmul.f32 %v2499, %v2131
        %v2700 = vmul.f32 %v2503, %v2124
        %v2701 = vmul.f32 %v2507, %v2125
        %v2702 = vmul.f32 %v2511, %v2126
        %v2703 = vmul.f32 %v2515, %v2127
        %v2704 = vmul.f32 %v2519, %v2128
        %v2705 = vmul.f32 %v2523, %v2129
        %v2706 = vmul.f32 %v2527, %v2130
        %v2707 = vmul.f32 %v2531, %v2131
        %v2708 = vmul.f32 %v2535, %v2124
        %v2709 = vmul.f32 %v2539, %v2125
        %v2710 = vmul.f32 %v2543, %v2126
        %v2711 = vmul.f32 %v2547, %v2127
        %v2712 = vmul.f32 %v2551, %v2128
        %v2713 = vmul.f32 %v2555, %v2129
        %v2714 = vmul.f32 %v2559, %v2130
        %v2715 = vmul.f32 %v2563, %v2131
        %v2716 = vmul.f32 %v2567, %v2124
        %v2717 = vmul.f32 %v2571, %v2125
        %v2718 = vmul.f32 %v2575, %v2126
        %v2719 = vmul.f32 %v2579, %v2127
        %v2720 = vmul.f32 %v2583, %v2128
        %v2721 = vmul.f32 %v2587, %v2129
        %v2722 = vmul.f32 %v2591, %v2130
        %v2723 = vmul.f32 %v2595, %v2131
        %s2724 = scalar_lea.vmem %s444, 16
        %v2725 = vld [vmem:[%s2724] sm:$0xf]
        %v2726 = vld [vmem:[%s2724 + $0x4] sm:$0xf]
        %v2727 = vld [vmem:[%s2724 + $0x8] sm:$0xf]
        %v2728 = vld [vmem:[%s2724 + $0xc] sm:$0xf]
        %v2729 = vpack.c.bf16 %v2668, %v2660
        %v2730 = vpack.c.bf16 %v2669, %v2661
        %v2731 = vpack.c.bf16 %v2670, %v2662
        %v2732 = vpack.c.bf16 %v2671, %v2663
        %v2733 = vpack.c.bf16 %v2672, %v2664
        %v2734 = vpack.c.bf16 %v2673, %v2665
        %v2735 = vpack.c.bf16 %v2674, %v2666
        %v2736 = vpack.c.bf16 %v2675, %v2667
        %v2737 = vpack.c.bf16 %v2684, %v2676
        %v2738 = vpack.c.bf16 %v2685, %v2677
        %v2739 = vpack.c.bf16 %v2686, %v2678
        %v2740 = vpack.c.bf16 %v2687, %v2679
        %v2741 = vpack.c.bf16 %v2688, %v2680
        %v2742 = vpack.c.bf16 %v2689, %v2681
        %v2743 = vpack.c.bf16 %v2690, %v2682
        %v2744 = vpack.c.bf16 %v2691, %v2683
        %v2745 = vpack.c.bf16 %v2700, %v2692
        %v2746 = vpack.c.bf16 %v2701, %v2693
        %v2747 = vpack.c.bf16 %v2702, %v2694
        %v2748 = vpack.c.bf16 %v2703, %v2695
        %v2749 = vpack.c.bf16 %v2704, %v2696
        %v2750 = vpack.c.bf16 %v2705, %v2697
        %v2751 = vpack.c.bf16 %v2706, %v2698
        %v2752 = vpack.c.bf16 %v2707, %v2699
        %v2753 = vpack.c.bf16 %v2716, %v2708
        %v2754 = vpack.c.bf16 %v2717, %v2709
        %v2755 = vpack.c.bf16 %v2718, %v2710
        %v2756 = vpack.c.bf16 %v2719, %v2711
        %v2757 = vpack.c.bf16 %v2720, %v2712
        %v2758 = vpack.c.bf16 %v2721, %v2713
        %v2759 = vpack.c.bf16 %v2722, %v2714
        %v2760 = vpack.c.bf16 %v2723, %v2715
        %v2765 = vunpack.c.l.b16 %v2725
        %v2766 = vunpack.c.l.b16 %v2726
        %v2767 = vunpack.c.l.b16 %v2727
        %v2768 = vunpack.c.l.b16 %v2728
        %v2769 = vpack.c.b16 %v2766, %v2765
        %v2770 = vpack.c.b16 %v2768, %v2767
        %v2772 = vsel %vm1566, %v2769, 0
        %v2775 = vsel %vm1566, %v2770, 0
        %2777 = vmatprep.subr.bf16.mxu0 %v2730
        %2778 = vmatpush1.bf16.msra.mxu0 %v2729
        %2779 = vmatprep.subr.bf16.mxu0 %v2738
        %2780 = vmatpush1.bf16.msra.mxu0 %v2737
        %2781 = vmatprep.subr.bf16.mxu0 %v2746
        %2782 = vmatpush1.bf16.msra.mxu0 %v2745
        %2783 = vmatprep.subr.bf16.mxu0 %v2754
        %2784 = vmatpush1.bf16.msra.mxu0 %v2753
        %2785 = vmatprep.subr.bf16.mxu0 0
        %2786 = vmatpush1.bf16.msra.mxu0 0
        %2787 = vmatprep.subr.bf16.mxu0 0
        %2788 = vmatpush1.bf16.msra.mxu0 0
        %2789 = vmatprep.subr.bf16.mxu0 0
        %2790 = vmatpush1.bf16.msra.mxu0 0
        %2791 = vmatprep.subr.bf16.mxu0 0
        %2792 = vmatpush1.bf16.msra.mxu0 0
        %2793 = vmatprep.subr.bf16.mxu0 0
        %2794 = vmatpush1.bf16.msra.mxu0 0
        %2795 = vmatprep.subr.bf16.mxu0 0
        %2796 = vmatpush1.bf16.msra.mxu0 0
        %2797 = vmatprep.subr.bf16.mxu0 0
        %2798 = vmatpush1.bf16.msra.mxu0 0
        %2799 = vmatprep.subr.bf16.mxu0 0
        %2800 = vmatpush1.bf16.msra.mxu0 0
        %2801 = vmatprep.subr.bf16.mxu0 0
        %2802 = vmatpush1.bf16.msra.mxu0 0
        %2803 = vmatprep.subr.bf16.mxu0 0
        %2804 = vmatpush1.bf16.msra.mxu0 0
        %2805 = vmatprep.subr.bf16.mxu0 0
        %2806 = vmatpush1.bf16.msra.mxu0 0
        %2807 = vmatprep.subr.bf16.mxu0 0
        %2808 = vmatpush1.bf16.msra.mxu0 0
        %2809 = vmatprep.mubr.bf16.mxu0 0
        %2810 = vmatmul.mubr.bf16.gmra.mrb[0].mxu0 %v2772
        %v2811 = vpop.f32.mrb[0].mxu0
        %v2812 = vadd.f32 0.0, %v2811
        %v2813 = vpop.f32.mrb[0].mxu0
        %v2814 = vadd.f32 0.0, %v2813
        %v2815 = vpop.f32.mrb[0].mxu0
        %v2816 = vadd.f32 0.0, %v2815
        %v2817 = vpop.f32.mrb[0].mxu0
        %v2818 = vadd.f32 0.0, %v2817
        %2819 = vmatprep.mubr.bf16.mxu0 0
        %2820 = vmatmul.mubr.bf16.gmra.mrb[0].mxu0 %v2775
        %v2821 = vpop.f32.mrb[0].mxu0
        %v2822 = vadd.f32 0.0, %v2821
        %v2823 = vpop.f32.mrb[0].mxu0
        %v2824 = vadd.f32 0.0, %v2823
        %v2825 = vpop.f32.mrb[0].mxu0
        %v2826 = vadd.f32 0.0, %v2825
        %v2827 = vpop.f32.mrb[0].mxu0
        %v2828 = vadd.f32 0.0, %v2827
        %2829 = vdwg.mxu0
        %2830 = vmatprep.subr.bf16.mxu0 %v2732
        %2831 = vmatpush1.bf16.msra.mxu0 %v2731
        %2832 = vmatprep.subr.bf16.mxu0 %v2740
        %2833 = vmatpush1.bf16.msra.mxu0 %v2739
        %2834 = vmatprep.subr.bf16.mxu0 %v2748
        %2835 = vmatpush1.bf16.msra.mxu0 %v2747
        %2836 = vmatprep.subr.bf16.mxu0 %v2756
        %2837 = vmatpush1.bf16.msra.mxu0 %v2755
        %2838 = vmatprep.subr.bf16.mxu0 0
        %2839 = vmatpush1.bf16.msra.mxu0 0
        %2840 = vmatprep.subr.bf16.mxu0 0
        %2841 = vmatpush1.bf16.msra.mxu0 0
        %2842 = vmatprep.subr.bf16.mxu0 0
        %2843 = vmatpush1.bf16.msra.mxu0 0
        %2844 = vmatprep.subr.bf16.mxu0 0
        %2845 = vmatpush1.bf16.msra.mxu0 0
        %2846 = vmatprep.subr.bf16.mxu0 0
        %2847 = vmatpush1.bf16.msra.mxu0 0
        %2848 = vmatprep.subr.bf16.mxu0 0
        %2849 = vmatpush1.bf16.msra.mxu0 0
        %2850 = vmatprep.subr.bf16.mxu0 0
        %2851 = vmatpush1.bf16.msra.mxu0 0
        %2852 = vmatprep.subr.bf16.mxu0 0
        %2853 = vmatpush1.bf16.msra.mxu0 0
        %2854 = vmatprep.subr.bf16.mxu0 0
        %2855 = vmatpush1.bf16.msra.mxu0 0
        %2856 = vmatprep.subr.bf16.mxu0 0
        %2857 = vmatpush1.bf16.msra.mxu0 0
        %2858 = vmatprep.subr.bf16.mxu0 0
        %2859 = vmatpush1.bf16.msra.mxu0 0
        %2860 = vmatprep.subr.bf16.mxu0 0
        %2861 = vmatpush1.bf16.msra.mxu0 0
        %2862 = vmatprep.mubr.bf16.mxu0 0
        %2863 = vmatmul.mubr.bf16.gmra.mrb[0].mxu0 %v2772
        %v2864 = vpop.f32.mrb[0].mxu0
        %v2865 = vadd.f32 0.0, %v2864
        %v2866 = vpop.f32.mrb[0].mxu0
        %v2867 = vadd.f32 0.0, %v2866
        %v2868 = vpop.f32.mrb[0].mxu0
        %v2869 = vadd.f32 0.0, %v2868
        %v2870 = vpop.f32.mrb[0].mxu0
        %v2871 = vadd.f32 0.0, %v2870
        %2872 = vmatprep.mubr.bf16.mxu0 0
        %2873 = vmatmul.mubr.bf16.gmra.mrb[0].mxu0 %v2775
        %v2874 = vpop.f32.mrb[0].mxu0
        %v2875 = vadd.f32 0.0, %v2874
        %v2876 = vpop.f32.mrb[0].mxu0
        %v2877 = vadd.f32 0.0, %v2876
        %v2878 = vpop.f32.mrb[0].mxu0
        %v2879 = vadd.f32 0.0, %v2878
        %v2880 = vpop.f32.mrb[0].mxu0
        %v2881 = vadd.f32 0.0, %v2880
        %2882 = vdwg.mxu0
        %2883 = vmatprep.subr.bf16.mxu0 %v2734
        %2884 = vmatpush1.bf16.msra.mxu0 %v2733
        %2885 = vmatprep.subr.bf16.mxu0 %v2742
        %2886 = vmatpush1.bf16.msra.mxu0 %v2741
        %2887 = vmatprep.subr.bf16.mxu0 %v2750
        %2888 = vmatpush1.bf16.msra.mxu0 %v2749
        %2889 = vmatprep.subr.bf16.mxu0 %v2758
        %2890 = vmatpush1.bf16.msra.mxu0 %v2757
        %2891 = vmatprep.subr.bf16.mxu0 0
        %2892 = vmatpush1.bf16.msra.mxu0 0
        %2893 = vmatprep.subr.bf16.mxu0 0
        %2894 = vmatpush1.bf16.msra.mxu0 0
        %2895 = vmatprep.subr.bf16.mxu0 0
        %2896 = vmatpush1.bf16.msra.mxu0 0
        %2897 = vmatprep.subr.bf16.mxu0 0
        %2898 = vmatpush1.bf16.msra.mxu0 0
        %2899 = vmatprep.subr.bf16.mxu0 0
        %2900 = vmatpush1.bf16.msra.mxu0 0
        %2901 = vmatprep.subr.bf16.mxu0 0
        %2902 = vmatpush1.bf16.msra.mxu0 0
        %2903 = vmatprep.subr.bf16.mxu0 0
        %2904 = vmatpush1.bf16.msra.mxu0 0
        %2905 = vmatprep.subr.bf16.mxu0 0
        %2906 = vmatpush1.bf16.msra.mxu0 0
        %2907 = vmatprep.subr.bf16.mxu0 0
        %2908 = vmatpush1.bf16.msra.mxu0 0
        %2909 = vmatprep.subr.bf16.mxu0 0
        %2910 = vmatpush1.bf16.msra.mxu0 0
        %2911 = vmatprep.subr.bf16.mxu0 0
        %2912 = vmatpush1.bf16.msra.mxu0 0
        %2913 = vmatprep.subr.bf16.mxu0 0
        %2914 = vmatpush1.bf16.msra.mxu0 0
        %2915 = vmatprep.mubr.bf16.mxu0 0
        %2916 = vmatmul.mubr.bf16.gmra.mrb[0].mxu0 %v2772
        %v2917 = vpop.f32.mrb[0].mxu0
        %v2918 = vadd.f32 0.0, %v2917
        %v2919 = vpop.f32.mrb[0].mxu0
        %v2920 = vadd.f32 0.0, %v2919
        %v2921 = vpop.f32.mrb[0].mxu0
        %v2922 = vadd.f32 0.0, %v2921
        %v2923 = vpop.f32.mrb[0].mxu0
        %v2924 = vadd.f32 0.0, %v2923
        %2925 = vmatprep.mubr.bf16.mxu0 0
        %2926 = vmatmul.mubr.bf16.gmra.mrb[0].mxu0 %v2775
        %v2927 = vpop.f32.mrb[0].mxu0
        %v2928 = vadd.f32 0.0, %v2927
        %v2929 = vpop.f32.mrb[0].mxu0
        %v2930 = vadd.f32 0.0, %v2929
        %v2931 = vpop.f32.mrb[0].mxu0
        %v2932 = vadd.f32 0.0, %v2931
        %v2933 = vpop.f32.mrb[0].mxu0
        %v2934 = vadd.f32 0.0, %v2933
        %2935 = vdwg.mxu0
        %2936 = vmatprep.subr.bf16.mxu0 %v2736
        %2937 = vmatpush1.bf16.msra.mxu0 %v2735
        %2938 = vmatprep.subr.bf16.mxu0 %v2744
        %2939 = vmatpush1.bf16.msra.mxu0 %v2743
        %2940 = vmatprep.subr.bf16.mxu0 %v2752
        %2941 = vmatpush1.bf16.msra.mxu0 %v2751
        %2942 = vmatprep.subr.bf16.mxu0 %v2760
        %2943 = vmatpush1.bf16.msra.mxu0 %v2759
        %2944 = vmatprep.subr.bf16.mxu0 0
        %2945 = vmatpush1.bf16.msra.mxu0 0
        %2946 = vmatprep.subr.bf16.mxu0 0
        %2947 = vmatpush1.bf16.msra.mxu0 0
        %2948 = vmatprep.subr.bf16.mxu0 0
        %2949 = vmatpush1.bf16.msra.mxu0 0
        %2950 = vmatprep.subr.bf16.mxu0 0
        %2951 = vmatpush1.bf16.msra.mxu0 0
        %2952 = vmatprep.subr.bf16.mxu0 0
        %2953 = vmatpush1.bf16.msra.mxu0 0
        %2954 = vmatprep.subr.bf16.mxu0 0
        %2955 = vmatpush1.bf16.msra.mxu0 0
        %2956 = vmatprep.subr.bf16.mxu0 0
        %2957 = vmatpush1.bf16.msra.mxu0 0
        %2958 = vmatprep.subr.bf16.mxu0 0
        %2959 = vmatpush1.bf16.msra.mxu0 0
        %2960 = vmatprep.subr.bf16.mxu0 0
        %2961 = vmatpush1.bf16.msra.mxu0 0
        %2962 = vmatprep.subr.bf16.mxu0 0
        %2963 = vmatpush1.bf16.msra.mxu0 0
        %2964 = vmatprep.subr.bf16.mxu0 0
        %2965 = vmatpush1.bf16.msra.mxu0 0
        %2966 = vmatprep.subr.bf16.mxu0 0
        %2967 = vmatpush1.bf16.msra.mxu0 0
        %2968 = vmatprep.mubr.bf16.mxu0 0
        %2969 = vmatmul.mubr.bf16.gmra.mrb[0].mxu0 %v2772
        %v2970 = vpop.f32.mrb[0].mxu0
        %v2971 = vadd.f32 0.0, %v2970
        %v2972 = vpop.f32.mrb[0].mxu0
        %v2973 = vadd.f32 0.0, %v2972
        %v2974 = vpop.f32.mrb[0].mxu0
        %v2975 = vadd.f32 0.0, %v2974
        %v2976 = vpop.f32.mrb[0].mxu0
        %v2977 = vadd.f32 0.0, %v2976
        %2978 = vmatprep.mubr.bf16.mxu0 0
        %2979 = vmatmul.mubr.bf16.gmra.mrb[0].mxu0 %v2775
        %v2980 = vpop.f32.mrb[0].mxu0
        %v2981 = vadd.f32 0.0, %v2980
        %v2982 = vpop.f32.mrb[0].mxu0
        %v2983 = vadd.f32 0.0, %v2982
        %v2984 = vpop.f32.mrb[0].mxu0
        %v2985 = vadd.f32 0.0, %v2984
        %v2986 = vpop.f32.mrb[0].mxu0
        %v2987 = vadd.f32 0.0, %v2986
        %2988 = vdwg.mxu0
        %v2989 = vsel %vm1964, 1, 0
        %v2990 = vsel %vm1965, 1, 0
        %v2991 = vsel %vm1966, 1, 0
        %v2992 = vsel %vm1967, 1, 0
        %v2993 = vsel %vm1968, 1, 0
        %v2994 = vsel %vm1969, 1, 0
        %v2995 = vsel %vm1970, 1, 0
        %v2996 = vsel %vm1971, 1, 0
        %v2997 = vlaneseq
        %v2998 = vshrl.u32 %v2997, 7
        %v2999 = vsub.s32 2, %v2998
        %v3000 = vrot.slane %v2989, %v2999
        %v3001 = vlaneseq
        %v3002 = vshrl.u32 %v3001, 7
        %v3003 = vsub.s32 2, %v3002
        %v3004 = vrot.slane %v2990, %v3003
        %v3005 = vlaneseq
        %v3006 = vshrl.u32 %v3005, 7
        %v3007 = vsub.s32 2, %v3006
        %v3008 = vrot.slane %v2991, %v3007
        %v3009 = vlaneseq
        %v3010 = vshrl.u32 %v3009, 7
        %v3011 = vsub.s32 2, %v3010
        %v3012 = vrot.slane %v2992, %v3011
        %v3013 = vlaneseq
        %v3014 = vshrl.u32 %v3013, 7
        %v3015 = vsub.s32 2, %v3014
        %v3016 = vrot.slane %v2993, %v3015
        %v3017 = vlaneseq
        %v3018 = vshrl.u32 %v3017, 7
        %v3019 = vsub.s32 2, %v3018
        %v3020 = vrot.slane %v2994, %v3019
        %v3021 = vlaneseq
        %v3022 = vshrl.u32 %v3021, 7
        %v3023 = vsub.s32 2, %v3022
        %v3024 = vrot.slane %v2995, %v3023
        %v3025 = vlaneseq
        %v3026 = vshrl.u32 %v3025, 7
        %v3027 = vsub.s32 2, %v3026
        %v3028 = vrot.slane %v2996, %v3027
        %vm3029 = vcmp.eq.s32.totalorder %v3000, 1
        %vm3030 = vcmp.eq.s32.totalorder %v3004, 1
        %vm3031 = vcmp.eq.s32.totalorder %v3008, 1
        %vm3032 = vcmp.eq.s32.totalorder %v3012, 1
        %vm3033 = vcmp.eq.s32.totalorder %v3016, 1
        %vm3034 = vcmp.eq.s32.totalorder %v3020, 1
        %vm3035 = vcmp.eq.s32.totalorder %v3024, 1
        %vm3036 = vcmp.eq.s32.totalorder %v3028, 1
        %v3037 = vsel %vm3029, 0.0, %v2812
        %v3038 = vsel %vm3030, 0.0, %v2814
        %v3039 = vsel %vm3031, 0.0, %v2865
        %v3040 = vsel %vm3032, 0.0, %v2867
        %v3041 = vsel %vm3033, 0.0, %v2918
        %v3042 = vsel %vm3034, 0.0, %v2920
        %v3043 = vsel %vm3035, 0.0, %v2971
        %v3044 = vsel %vm3036, 0.0, %v2973
        %v3045 = vsel %vm3029, 0.0, %v2816
        %v3046 = vsel %vm3030, 0.0, %v2818
        %v3047 = vsel %vm3031, 0.0, %v2869
        %v3048 = vsel %vm3032, 0.0, %v2871
        %v3049 = vsel %vm3033, 0.0, %v2922
        %v3050 = vsel %vm3034, 0.0, %v2924
        %v3051 = vsel %vm3035, 0.0, %v2975
        %v3052 = vsel %vm3036, 0.0, %v2977
        %v3053 = vsel %vm3029, 0.0, %v2822
        %v3054 = vsel %vm3030, 0.0, %v2824
        %v3055 = vsel %vm3031, 0.0, %v2875
        %v3056 = vsel %vm3032, 0.0, %v2877
        %v3057 = vsel %vm3033, 0.0, %v2928
        %v3058 = vsel %vm3034, 0.0, %v2930
        %v3059 = vsel %vm3035, 0.0, %v2981
        %v3060 = vsel %vm3036, 0.0, %v2983
        %v3061 = vsel %vm3029, 0.0, %v2826
        %v3062 = vsel %vm3030, 0.0, %v2828
        %v3063 = vsel %vm3031, 0.0, %v2879
        %v3064 = vsel %vm3032, 0.0, %v2881
        %v3065 = vsel %vm3033, 0.0, %v2932
        %v3066 = vsel %vm3034, 0.0, %v2934
        %v3067 = vsel %vm3035, 0.0, %v2985
        %v3068 = vsel %vm3036, 0.0, %v2987
        %v3069 = vadd.f32 %v1865, %v3037
        %v3070 = vadd.f32 %v1866, %v3038
        %v3071 = vadd.f32 %v1867, %v3039
        %v3072 = vadd.f32 %v1868, %v3040
        %v3073 = vadd.f32 %v1869, %v3041
        %v3074 = vadd.f32 %v1870, %v3042
        %v3075 = vadd.f32 %v1871, %v3043
        %v3076 = vadd.f32 %v1872, %v3044
        %v3077 = vadd.f32 %v1873, %v3045
        %v3078 = vadd.f32 %v1874, %v3046
        %v3079 = vadd.f32 %v1875, %v3047
        %v3080 = vadd.f32 %v1876, %v3048
        %v3081 = vadd.f32 %v1877, %v3049
        %v3082 = vadd.f32 %v1878, %v3050
        %v3083 = vadd.f32 %v1879, %v3051
        %v3084 = vadd.f32 %v1880, %v3052
        %v3085 = vadd.f32 %v1881, %v3053
        %v3086 = vadd.f32 %v1882, %v3054
        %v3087 = vadd.f32 %v1883, %v3055
        %v3088 = vadd.f32 %v1884, %v3056
        %v3089 = vadd.f32 %v1885, %v3057
        %v3090 = vadd.f32 %v1886, %v3058
        %v3091 = vadd.f32 %v1887, %v3059
        %v3092 = vadd.f32 %v1888, %v3060
        %v3093 = vadd.f32 %v1889, %v3061
        %v3094 = vadd.f32 %v1890, %v3062
        %v3095 = vadd.f32 %v1891, %v3063
        %v3096 = vadd.f32 %v1892, %v3064
        %v3097 = vadd.f32 %v1893, %v3065
        %v3098 = vadd.f32 %v1894, %v3066
        %v3099 = vadd.f32 %v1895, %v3067
        %v3100 = vadd.f32 %v1896, %v3068
        %v3101 = vld [vmem:[%s3] sm:$0xff]
        %v3102 = vld [vmem:[%s3 + $0x8] sm:$0xff]
        %v3103 = vld [vmem:[%s3 + $0x10] sm:$0xff]
        %v3104 = vld [vmem:[%s3 + $0x18] sm:$0xff]
        %3106 = vset.pattern.permute.xlu0 0
        %3107 = vperm.xlu0 %3106, %v3101
        %v3108 = vpop.permute.xlu0 %3107
        %3111 = vset.pattern.permute.xlu0 0
        %3112 = vperm.xlu0 %3111, %v3102
        %v3113 = vpop.permute.xlu0 %3112
        %3116 = vset.pattern.permute.xlu0 0
        %3117 = vperm.xlu0 %3116, %v3103
        %v3118 = vpop.permute.xlu0 %3117
        %3121 = vset.pattern.permute.xlu0 0
        %3122 = vperm.xlu0 %3121, %v3104
        %v3123 = vpop.permute.xlu0 %3122
        %v3125 = vadd.f32 %v3069, %v3108
        %v3126 = vadd.f32 %v3070, %v3108
        %v3127 = vadd.f32 %v3071, %v3108
        %v3128 = vadd.f32 %v3072, %v3108
        %v3129 = vadd.f32 %v3073, %v3108
        %v3130 = vadd.f32 %v3074, %v3108
        %v3131 = vadd.f32 %v3075, %v3108
        %v3132 = vadd.f32 %v3076, %v3108
        %v3133 = vadd.f32 %v3077, %v3113
        %v3134 = vadd.f32 %v3078, %v3113
        %v3135 = vadd.f32 %v3079, %v3113
        %v3136 = vadd.f32 %v3080, %v3113
        %v3137 = vadd.f32 %v3081, %v3113
        %v3138 = vadd.f32 %v3082, %v3113
        %v3139 = vadd.f32 %v3083, %v3113
        %v3140 = vadd.f32 %v3084, %v3113
        %v3141 = vadd.f32 %v3085, %v3118
        %v3142 = vadd.f32 %v3086, %v3118
        %v3143 = vadd.f32 %v3087, %v3118
        %v3144 = vadd.f32 %v3088, %v3118
        %v3145 = vadd.f32 %v3089, %v3118
        %v3146 = vadd.f32 %v3090, %v3118
        %v3147 = vadd.f32 %v3091, %v3118
        %v3148 = vadd.f32 %v3092, %v3118
        %v3149 = vadd.f32 %v3093, %v3123
        %v3150 = vadd.f32 %v3094, %v3123
        %v3151 = vadd.f32 %v3095, %v3123
        %v3152 = vadd.f32 %v3096, %v3123
        %v3153 = vadd.f32 %v3097, %v3123
        %v3154 = vadd.f32 %v3098, %v3123
        %v3155 = vadd.f32 %v3099, %v3123
        %v3156 = vadd.f32 %v3100, %v3123
        %v3157 = vmax.f32 %v3125, 0.0
        %v3158 = vmax.f32 %v3126, 0.0
        %v3159 = vmax.f32 %v3127, 0.0
        %v3160 = vmax.f32 %v3128, 0.0
        %v3161 = vmax.f32 %v3129, 0.0
        %v3162 = vmax.f32 %v3130, 0.0
        %v3163 = vmax.f32 %v3131, 0.0
        %v3164 = vmax.f32 %v3132, 0.0
        %v3165 = vmax.f32 %v3133, 0.0
        %v3166 = vmax.f32 %v3134, 0.0
        %v3167 = vmax.f32 %v3135, 0.0
        %v3168 = vmax.f32 %v3136, 0.0
        %v3169 = vmax.f32 %v3137, 0.0
        %v3170 = vmax.f32 %v3138, 0.0
        %v3171 = vmax.f32 %v3139, 0.0
        %v3172 = vmax.f32 %v3140, 0.0
        %v3173 = vmax.f32 %v3141, 0.0
        %v3174 = vmax.f32 %v3142, 0.0
        %v3175 = vmax.f32 %v3143, 0.0
        %v3176 = vmax.f32 %v3144, 0.0
        %v3177 = vmax.f32 %v3145, 0.0
        %v3178 = vmax.f32 %v3146, 0.0
        %v3179 = vmax.f32 %v3147, 0.0
        %v3180 = vmax.f32 %v3148, 0.0
        %v3181 = vmax.f32 %v3149, 0.0
        %v3182 = vmax.f32 %v3150, 0.0
        %v3183 = vmax.f32 %v3151, 0.0
        %v3184 = vmax.f32 %v3152, 0.0
        %v3185 = vmax.f32 %v3153, 0.0
        %v3186 = vmax.f32 %v3154, 0.0
        %v3187 = vmax.f32 %v3155, 0.0
        %v3188 = vmax.f32 %v3156, 0.0
        %v3189 = vld [vmem:[%s4] sm:$0xff]
        %v3190 = vld [vmem:[%s4 + $0x8] sm:$0xff]
        %v3191 = vld [vmem:[%s5] sm:$0xff]
        %v3192 = vld [vmem:[%s5 + $0x8] sm:$0xff]
        %3194 = vset.pattern.permute.xlu0 0
        %3195 = vperm.xlu0 %3194, %v3191
        %v3196 = vpop.permute.xlu0 %3195
        %3199 = vset.pattern.permute.xlu0 0
        %3200 = vperm.xlu0 %3199, %v3192
        %v3201 = vpop.permute.xlu0 %3200
        %vm3203 = vcmask 261120
        %v3205 = vsel %vm3203, %v3189, 0
        %v3208 = vsel %vm3203, %v3190, 0
        %3210 = vmatprep.subr.mxu0 %v3158
        %3211 = vmatpush1.msra.mxu0 %v3157
        %3212 = vmatprep.subr.mxu0 %v3166
        %3213 = vmatpush1.msra.mxu0 %v3165
        %3214 = vmatprep.subr.mxu0 %v3174
        %3215 = vmatpush1.msra.mxu0 %v3173
        %3216 = vmatprep.subr.mxu0 %v3182
        %3217 = vmatpush1.msra.mxu0 %v3181
        %3218 = vmatprep.subr.mxu0 0.0
        %3219 = vmatpush1.msra.mxu0 0.0
        %3220 = vmatprep.subr.mxu0 0.0
        %3221 = vmatpush1.msra.mxu0 0.0
        %3222 = vmatprep.subr.mxu0 0.0
        %3223 = vmatpush1.msra.mxu0 0.0
        %3224 = vmatprep.subr.mxu0 0.0
        %3225 = vmatpush1.msra.mxu0 0.0
        %3226 = vmatprep.subr.mxu0 0.0
        %3227 = vmatpush1.msra.mxu0 0.0
        %3228 = vmatprep.subr.mxu0 0.0
        %3229 = vmatpush1.msra.mxu0 0.0
        %3230 = vmatprep.subr.mxu0 0.0
        %3231 = vmatpush1.msra.mxu0 0.0
        %3232 = vmatprep.subr.mxu0 0.0
        %3233 = vmatpush1.msra.mxu0 0.0
        %3234 = vmatprep.subr.mxu0 0.0
        %3235 = vmatpush1.msra.mxu0 0.0
        %3236 = vmatprep.subr.mxu0 0.0
        %3237 = vmatpush1.msra.mxu0 0.0
        %3238 = vmatprep.subr.mxu0 0.0
        %3239 = vmatpush1.msra.mxu0 0.0
        %3240 = vmatprep.subr.mxu0 0.0
        %3241 = vmatpush1.msra.mxu0 0.0
        %3242 = vmatprep.subr.mxu0 0.0
        %3243 = vmatpush1.msra.mxu0 0.0
        %3244 = vmatprep.subr.mxu0 0.0
        %3245 = vmatpush1.msra.mxu0 0.0
        %3246 = vmatprep.subr.mxu0 0.0
        %3247 = vmatpush1.msra.mxu0 0.0
        %3248 = vmatprep.subr.mxu0 0.0
        %3249 = vmatpush1.msra.mxu0 0.0
        %3250 = vmatprep.subr.mxu0 0.0
        %3251 = vmatpush1.msra.mxu0 0.0
        %3252 = vmatprep.subr.mxu0 0.0
        %3253 = vmatpush1.msra.mxu0 0.0
        %3254 = vmatprep.subr.mxu0 0.0
        %3255 = vmatpush1.msra.mxu0 0.0
        %3256 = vmatprep.subr.mxu0 0.0
        %3257 = vmatpush1.msra.mxu0 0.0
        %3258 = vmatprep.subr.mxu0 0.0
        %3259 = vmatpush1.msra.mxu0 0.0
        %3260 = vmatprep.subr.mxu0 0.0
        %3261 = vmatpush1.msra.mxu0 0.0
        %3262 = vmatprep.subr.mxu0 0.0
        %3263 = vmatpush1.msra.mxu0 0.0
        %3264 = vmatprep.subr.mxu0 0.0
        %3265 = vmatpush1.msra.mxu0 0.0
        %3266 = vmatprep.subr.mxu0 0.0
        %3267 = vmatpush1.msra.mxu0 0.0
        %3268 = vmatprep.subr.mxu0 0.0
        %3269 = vmatpush1.msra.mxu0 0.0
        %3270 = vmatprep.subr.mxu0 0.0
        %3271 = vmatpush1.msra.mxu0 0.0
        %3272 = vmatprep.subr.mxu0 0.0
        %3273 = vmatpush1.msra.mxu0 0.0
        %3274 = vmatprep.mubr.f32.mxu0 0.0
        %3275 = vmatmul.mubr.f32.gmra.mrb[0].mxu0 %v3205
        %v3276 = vpop.f32.mrb[0].mxu0
        %v3277 = vadd.f32 %v3196, %v3276
        %v3278 = vpop.f32.mrb[0].mxu0
        %v3279 = vadd.f32 %v3196, %v3278
        %3280 = vmatprep.mubr.f32.mxu0 0.0
        %3281 = vmatmul.mubr.f32.gmra.mrb[0].mxu0 %v3208
        %v3282 = vpop.f32.mrb[0].mxu0
        %v3283 = vadd.f32 %v3201, %v3282
        %v3284 = vpop.f32.mrb[0].mxu0
        %v3285 = vadd.f32 %v3201, %v3284
        %3286 = vdwg.mxu0
        %3287 = vmatprep.subr.mxu0 %v3160
        %3288 = vmatpush1.msra.mxu0 %v3159
        %3289 = vmatprep.subr.mxu0 %v3168
        %3290 = vmatpush1.msra.mxu0 %v3167
        %3291 = vmatprep.subr.mxu0 %v3176
        %3292 = vmatpush1.msra.mxu0 %v3175
        %3293 = vmatprep.subr.mxu0 %v3184
        %3294 = vmatpush1.msra.mxu0 %v3183
        %3295 = vmatprep.subr.mxu0 0.0
        %3296 = vmatpush1.msra.mxu0 0.0
        %3297 = vmatprep.subr.mxu0 0.0
        %3298 = vmatpush1.msra.mxu0 0.0
        %3299 = vmatprep.subr.mxu0 0.0
        %3300 = vmatpush1.msra.mxu0 0.0
        %3301 = vmatprep.subr.mxu0 0.0
        %3302 = vmatpush1.msra.mxu0 0.0
        %3303 = vmatprep.subr.mxu0 0.0
        %3304 = vmatpush1.msra.mxu0 0.0
        %3305 = vmatprep.subr.mxu0 0.0
        %3306 = vmatpush1.msra.mxu0 0.0
        %3307 = vmatprep.subr.mxu0 0.0
        %3308 = vmatpush1.msra.mxu0 0.0
        %3309 = vmatprep.subr.mxu0 0.0
        %3310 = vmatpush1.msra.mxu0 0.0
        %3311 = vmatprep.subr.mxu0 0.0
        %3312 = vmatpush1.msra.mxu0 0.0
        %3313 = vmatprep.subr.mxu0 0.0
        %3314 = vmatpush1.msra.mxu0 0.0
        %3315 = vmatprep.subr.mxu0 0.0
        %3316 = vmatpush1.msra.mxu0 0.0
        %3317 = vmatprep.subr.mxu0 0.0
        %3318 = vmatpush1.msra.mxu0 0.0
        %3319 = vmatprep.subr.mxu0 0.0
        %3320 = vmatpush1.msra.mxu0 0.0
        %3321 = vmatprep.subr.mxu0 0.0
        %3322 = vmatpush1.msra.mxu0 0.0
        %3323 = vmatprep.subr.mxu0 0.0
        %3324 = vmatpush1.msra.mxu0 0.0
        %3325 = vmatprep.subr.mxu0 0.0
        %3326 = vmatpush1.msra.mxu0 0.0
        %3327 = vmatprep.subr.mxu0 0.0
        %3328 = vmatpush1.msra.mxu0 0.0
        %3329 = vmatprep.subr.mxu0 0.0
        %3330 = vmatpush1.msra.mxu0 0.0
        %3331 = vmatprep.subr.mxu0 0.0
        %3332 = vmatpush1.msra.mxu0 0.0
        %3333 = vmatprep.subr.mxu0 0.0
        %3334 = vmatpush1.msra.mxu0 0.0
        %3335 = vmatprep.subr.mxu0 0.0
        %3336 = vmatpush1.msra.mxu0 0.0
        %3337 = vmatprep.subr.mxu0 0.0
        %3338 = vmatpush1.msra.mxu0 0.0
        %3339 = vmatprep.subr.mxu0 0.0
        %3340 = vmatpush1.msra.mxu0 0.0
        %3341 = vmatprep.subr.mxu0 0.0
        %3342 = vmatpush1.msra.mxu0 0.0
        %3343 = vmatprep.subr.mxu0 0.0
        %3344 = vmatpush1.msra.mxu0 0.0
        %3345 = vmatprep.subr.mxu0 0.0
        %3346 = vmatpush1.msra.mxu0 0.0
        %3347 = vmatprep.subr.mxu0 0.0
        %3348 = vmatpush1.msra.mxu0 0.0
        %3349 = vmatprep.subr.mxu0 0.0
        %3350 = vmatpush1.msra.mxu0 0.0
        %3351 = vmatprep.mubr.f32.mxu0 0.0
        %3352 = vmatmul.mubr.f32.gmra.mrb[0].mxu0 %v3205
        %v3353 = vpop.f32.mrb[0].mxu0
        %v3354 = vadd.f32 %v3196, %v3353
        %v3355 = vpop.f32.mrb[0].mxu0
        %v3356 = vadd.f32 %v3196, %v3355
        %3357 = vmatprep.mubr.f32.mxu0 0.0
        %3358 = vmatmul.mubr.f32.gmra.mrb[0].mxu0 %v3208
        %v3359 = vpop.f32.mrb[0].mxu0
        %v3360 = vadd.f32 %v3201, %v3359
        %v3361 = vpop.f32.mrb[0].mxu0
        %v3362 = vadd.f32 %v3201, %v3361
        %3363 = vdwg.mxu0
        %3364 = vmatprep.subr.mxu0 %v3162
        %3365 = vmatpush1.msra.mxu0 %v3161
        %3366 = vmatprep.subr.mxu0 %v3170
        %3367 = vmatpush1.msra.mxu0 %v3169
        %3368 = vmatprep.subr.mxu0 %v3178
        %3369 = vmatpush1.msra.mxu0 %v3177
        %3370 = vmatprep.subr.mxu0 %v3186
        %3371 = vmatpush1.msra.mxu0 %v3185
        %3372 = vmatprep.subr.mxu0 0.0
        %3373 = vmatpush1.msra.mxu0 0.0
        %3374 = vmatprep.subr.mxu0 0.0
        %3375 = vmatpush1.msra.mxu0 0.0
        %3376 = vmatprep.subr.mxu0 0.0
        %3377 = vmatpush1.msra.mxu0 0.0
        %3378 = vmatprep.subr.mxu0 0.0
        %3379 = vmatpush1.msra.mxu0 0.0
        %3380 = vmatprep.subr.mxu0 0.0
        %3381 = vmatpush1.msra.mxu0 0.0
        %3382 = vmatprep.subr.mxu0 0.0
        %3383 = vmatpush1.msra.mxu0 0.0
        %3384 = vmatprep.subr.mxu0 0.0
        %3385 = vmatpush1.msra.mxu0 0.0
        %3386 = vmatprep.subr.mxu0 0.0
        %3387 = vmatpush1.msra.mxu0 0.0
        %3388 = vmatprep.subr.mxu0 0.0
        %3389 = vmatpush1.msra.mxu0 0.0
        %3390 = vmatprep.subr.mxu0 0.0
        %3391 = vmatpush1.msra.mxu0 0.0
        %3392 = vmatprep.subr.mxu0 0.0
        %3393 = vmatpush1.msra.mxu0 0.0
        %3394 = vmatprep.subr.mxu0 0.0
        %3395 = vmatpush1.msra.mxu0 0.0
        %3396 = vmatprep.subr.mxu0 0.0
        %3397 = vmatpush1.msra.mxu0 0.0
        %3398 = vmatprep.subr.mxu0 0.0
        %3399 = vmatpush1.msra.mxu0 0.0
        %3400 = vmatprep.subr.mxu0 0.0
        %3401 = vmatpush1.msra.mxu0 0.0
        %3402 = vmatprep.subr.mxu0 0.0
        %3403 = vmatpush1.msra.mxu0 0.0
        %3404 = vmatprep.subr.mxu0 0.0
        %3405 = vmatpush1.msra.mxu0 0.0
        %3406 = vmatprep.subr.mxu0 0.0
        %3407 = vmatpush1.msra.mxu0 0.0
        %3408 = vmatprep.subr.mxu0 0.0
        %3409 = vmatpush1.msra.mxu0 0.0
        %3410 = vmatprep.subr.mxu0 0.0
        %3411 = vmatpush1.msra.mxu0 0.0
        %3412 = vmatprep.subr.mxu0 0.0
        %3413 = vmatpush1.msra.mxu0 0.0
        %3414 = vmatprep.subr.mxu0 0.0
        %3415 = vmatpush1.msra.mxu0 0.0
        %3416 = vmatprep.subr.mxu0 0.0
        %3417 = vmatpush1.msra.mxu0 0.0
        %3418 = vmatprep.subr.mxu0 0.0
        %3419 = vmatpush1.msra.mxu0 0.0
        %3420 = vmatprep.subr.mxu0 0.0
        %3421 = vmatpush1.msra.mxu0 0.0
        %3422 = vmatprep.subr.mxu0 0.0
        %3423 = vmatpush1.msra.mxu0 0.0
        %3424 = vmatprep.subr.mxu0 0.0
        %3425 = vmatpush1.msra.mxu0 0.0
        %3426 = vmatprep.subr.mxu0 0.0
        %3427 = vmatpush1.msra.mxu0 0.0
        %3428 = vmatprep.mubr.f32.mxu0 0.0
        %3429 = vmatmul.mubr.f32.gmra.mrb[0].mxu0 %v3205
        %v3430 = vpop.f32.mrb[0].mxu0
        %v3431 = vadd.f32 %v3196, %v3430
        %v3432 = vpop.f32.mrb[0].mxu0
        %v3433 = vadd.f32 %v3196, %v3432
        %3434 = vmatprep.mubr.f32.mxu0 0.0
        %3435 = vmatmul.mubr.f32.gmra.mrb[0].mxu0 %v3208
        %v3436 = vpop.f32.mrb[0].mxu0
        %v3437 = vadd.f32 %v3201, %v3436
        %v3438 = vpop.f32.mrb[0].mxu0
        %v3439 = vadd.f32 %v3201, %v3438
        %3440 = vdwg.mxu0
        %3441 = vmatprep.subr.mxu0 %v3164
        %3442 = vmatpush1.msra.mxu0 %v3163
        %3443 = vmatprep.subr.mxu0 %v3172
        %3444 = vmatpush1.msra.mxu0 %v3171
        %3445 = vmatprep.subr.mxu0 %v3180
        %3446 = vmatpush1.msra.mxu0 %v3179
        %3447 = vmatprep.subr.mxu0 %v3188
        %3448 = vmatpush1.msra.mxu0 %v3187
        %3449 = vmatprep.subr.mxu0 0.0
        %3450 = vmatpush1.msra.mxu0 0.0
        %3451 = vmatprep.subr.mxu0 0.0
        %3452 = vmatpush1.msra.mxu0 0.0
        %3453 = vmatprep.subr.mxu0 0.0
        %3454 = vmatpush1.msra.mxu0 0.0
        %3455 = vmatprep.subr.mxu0 0.0
        %3456 = vmatpush1.msra.mxu0 0.0
        %3457 = vmatprep.subr.mxu0 0.0
        %3458 = vmatpush1.msra.mxu0 0.0
        %3459 = vmatprep.subr.mxu0 0.0
        %3460 = vmatpush1.msra.mxu0 0.0
        %3461 = vmatprep.subr.mxu0 0.0
        %3462 = vmatpush1.msra.mxu0 0.0
        %3463 = vmatprep.subr.mxu0 0.0
        %3464 = vmatpush1.msra.mxu0 0.0
        %3465 = vmatprep.subr.mxu0 0.0
        %3466 = vmatpush1.msra.mxu0 0.0
        %3467 = vmatprep.subr.mxu0 0.0
        %3468 = vmatpush1.msra.mxu0 0.0
        %3469 = vmatprep.subr.mxu0 0.0
        %3470 = vmatpush1.msra.mxu0 0.0
        %3471 = vmatprep.subr.mxu0 0.0
        %3472 = vmatpush1.msra.mxu0 0.0
        %3473 = vmatprep.subr.mxu0 0.0
        %3474 = vmatpush1.msra.mxu0 0.0
        %3475 = vmatprep.subr.mxu0 0.0
        %3476 = vmatpush1.msra.mxu0 0.0
        %3477 = vmatprep.subr.mxu0 0.0
        %3478 = vmatpush1.msra.mxu0 0.0
        %3479 = vmatprep.subr.mxu0 0.0
        %3480 = vmatpush1.msra.mxu0 0.0
        %3481 = vmatprep.subr.mxu0 0.0
        %3482 = vmatpush1.msra.mxu0 0.0
        %3483 = vmatprep.subr.mxu0 0.0
        %3484 = vmatpush1.msra.mxu0 0.0
        %3485 = vmatprep.subr.mxu0 0.0
        %3486 = vmatpush1.msra.mxu0 0.0
        %3487 = vmatprep.subr.mxu0 0.0
        %3488 = vmatpush1.msra.mxu0 0.0
        %3489 = vmatprep.subr.mxu0 0.0
        %3490 = vmatpush1.msra.mxu0 0.0
        %3491 = vmatprep.subr.mxu0 0.0
        %3492 = vmatpush1.msra.mxu0 0.0
        %3493 = vmatprep.subr.mxu0 0.0
        %3494 = vmatpush1.msra.mxu0 0.0
        %3495 = vmatprep.subr.mxu0 0.0
        %3496 = vmatpush1.msra.mxu0 0.0
        %3497 = vmatprep.subr.mxu0 0.0
        %3498 = vmatpush1.msra.mxu0 0.0
        %3499 = vmatprep.subr.mxu0 0.0
        %3500 = vmatpush1.msra.mxu0 0.0
        %3501 = vmatprep.subr.mxu0 0.0
        %3502 = vmatpush1.msra.mxu0 0.0
        %3503 = vmatprep.subr.mxu0 0.0
        %3504 = vmatpush1.msra.mxu0 0.0
        %3505 = vmatprep.mubr.f32.mxu0 0.0
        %3506 = vmatmul.mubr.f32.gmra.mrb[0].mxu0 %v3205
        %v3507 = vpop.f32.mrb[0].mxu0
        %v3508 = vadd.f32 %v3196, %v3507
        %v3509 = vpop.f32.mrb[0].mxu0
        %v3510 = vadd.f32 %v3196, %v3509
        %3511 = vmatprep.mubr.f32.mxu0 0.0
        %3512 = vmatmul.mubr.f32.gmra.mrb[0].mxu0 %v3208
        %v3513 = vpop.f32.mrb[0].mxu0
        %v3514 = vadd.f32 %v3201, %v3513
        %v3515 = vpop.f32.mrb[0].mxu0
        %v3516 = vadd.f32 %v3201, %v3515
        %3517 = vdwg.mxu0
        %v3518 = vmul.f32 %v3277, 50.0
        %v3519 = vmul.f32 %v3279, 50.0
        %v3520 = vmul.f32 %v3354, 50.0
        %v3521 = vmul.f32 %v3356, 50.0
        %v3522 = vmul.f32 %v3431, 50.0
        %v3523 = vmul.f32 %v3433, 50.0
        %v3524 = vmul.f32 %v3508, 50.0
        %v3525 = vmul.f32 %v3510, 50.0
        %v3526 = vmul.f32 %v3283, 50.0
        %v3527 = vmul.f32 %v3285, 50.0
        %v3528 = vmul.f32 %v3360, 50.0
        %v3529 = vmul.f32 %v3362, 50.0
        %v3530 = vmul.f32 %v3437, 50.0
        %v3531 = vmul.f32 %v3439, 50.0
        %v3532 = vmul.f32 %v3514, 50.0
        %v3533 = vmul.f32 %v3516, 50.0
        %3534 = vst [vmem:[%s408] sm:$0xff] %v3518
        %3535 = vst [vmem:[%s408 + $0x8] sm:$0xff] %v3519
        %3536 = vst [vmem:[%s408 + $0x10] sm:$0xff] %v3520
        %3537 = vst [vmem:[%s408 + $0x18] sm:$0xff] %v3521
        %3538 = vst [vmem:[%s408 + $0x20] sm:$0xff] %v3522
        %3539 = vst [vmem:[%s408 + $0x28] sm:$0xff] %v3523
        %3540 = vst [vmem:[%s408 + $0x30] sm:$0xff] %v3524
        %3541 = vst [vmem:[%s408 + $0x38] sm:$0xff] %v3525
        %3542 = vst [vmem:[%s408 + $0x40] sm:$0xff] %v3526
        %3543 = vst [vmem:[%s408 + $0x48] sm:$0xff] %v3527
        %3544 = vst [vmem:[%s408 + $0x50] sm:$0xff] %v3528
        %3545 = vst [vmem:[%s408 + $0x58] sm:$0xff] %v3529
        %3546 = vst [vmem:[%s408 + $0x60] sm:$0xff] %v3530
        %3547 = vst [vmem:[%s408 + $0x68] sm:$0xff] %v3531
        %3548 = vst [vmem:[%s408 + $0x70] sm:$0xff] %v3532
        %3549 = vst [vmem:[%s408 + $0x78] sm:$0xff] %v3533
        %p3550 = scmp.eq.s32.totalorder %s27, 0
        // Predicated region
        $region53: #{_lambda_.6} parent=51 // pred_check
          %p3551 = pneg %p3550
        $region54: #{_lambda_.6} parent=51 // pred_check_branch
          %3553 = sbr.rel (%p3551) target = $region56
        $region55: #{_lambda_.6} parent=51 // pred_region
          %vm3554 = vcmask 7168
          %3555 = vst.msk [vmem:[%s451] sm:$0xff] %vm3554, -inf
          %3556 = vst.msk [vmem:[%s451 + $0x8] sm:$0xff] %vm3554, -inf
          %3557 = vst.msk [vmem:[%s456] sm:$0xff] %vm3554, 0.0
          %3558 = vst.msk [vmem:[%s456 + $0x8] sm:$0xff] %vm3554, 0.0
        $region56: #{_lambda_.6} parent=51 // pred_fallthru
          _
        %v3559 = vld [vmem:[%s451] sm:$0xff]
        %v3560 = vld [vmem:[%s451 + $0x8] sm:$0xff]
        %v3561 = vmax.f32 %v3518, %v3520
        %v3562 = vmax.f32 %v3519, %v3521
        %v3563 = vmax.f32 %v3561, %v3522
        %v3564 = vmax.f32 %v3562, %v3523
        %v3565 = vmax.f32 %v3563, %v3524
        %v3566 = vmax.f32 %v3564, %v3525
        %v3567 = vmax.f32 %v3565, %v3566
        %3568 = vmax.xlane.f32.xlu0 %v3567
        %v3569 = vpop.xlane.xlu0 %3568
        %v3570 = vmax.f32 %v3526, %v3528
        %v3571 = vmax.f32 %v3527, %v3529
        %v3572 = vmax.f32 %v3570, %v3530
        %v3573 = vmax.f32 %v3571, %v3531
        %v3574 = vmax.f32 %v3572, %v3532
        %v3575 = vmax.f32 %v3573, %v3533
        %v3576 = vmax.f32 %v3574, %v3575
        %3577 = vmax.xlane.f32.xlu0 %v3576
        %v3578 = vpop.xlane.xlu0 %3577
        %v3579 = vmax.f32 %v3559, %v3569
        %v3580 = vmax.f32 %v3560, %v3578
        %v3581 = vld [vmem:[%s456] sm:$0xff]
        %v3582 = vld [vmem:[%s456 + $0x8] sm:$0xff]
        %v3583 = vsub.f32 %v3559, %v3579
        %v3584 = vsub.f32 %v3560, %v3580
        %v3585 = vmul.f32 %v3583, 1.442695
        %v3586 = vpow.pop %v3585
        %v3587 = vmul.f32 %v3584, 1.442695
        %v3588 = vpow.pop %v3587
        %v3589 = vmul.f32 %v3581, %v3586
        %v3590 = vmul.f32 %v3582, %v3588
        %3592 = vset.pattern.permute.xlu0 0
        %3593 = vperm.xlu0 %3592, %v3579
        %v3594 = vpop.permute.xlu0 %3593
        %3597 = vset.pattern.permute.xlu0 0
        %3598 = vperm.xlu0 %3597, %v3580
        %v3599 = vpop.permute.xlu0 %3598
        %v3601 = vsub.f32 %v3518, %v3594
        %v3602 = vsub.f32 %v3519, %v3594
        %v3603 = vsub.f32 %v3520, %v3594
        %v3604 = vsub.f32 %v3521, %v3594
        %v3605 = vsub.f32 %v3522, %v3594
        %v3606 = vsub.f32 %v3523, %v3594
        %v3607 = vsub.f32 %v3524, %v3594
        %v3608 = vsub.f32 %v3525, %v3594
        %v3609 = vsub.f32 %v3526, %v3599
        %v3610 = vsub.f32 %v3527, %v3599
        %v3611 = vsub.f32 %v3528, %v3599
        %v3612 = vsub.f32 %v3529, %v3599
        %v3613 = vsub.f32 %v3530, %v3599
        %v3614 = vsub.f32 %v3531, %v3599
        %v3615 = vsub.f32 %v3532, %v3599
        %v3616 = vsub.f32 %v3533, %v3599
        %v3617 = vmul.f32 %v3601, 1.442695
        %v3618 = vpow.pop %v3617
        %v3619 = vmul.f32 %v3602, 1.442695
        %v3620 = vpow.pop %v3619
        %v3621 = vmul.f32 %v3603, 1.442695
        %v3622 = vpow.pop %v3621
        %v3623 = vmul.f32 %v3604, 1.442695
        %v3624 = vpow.pop %v3623
        %v3625 = vmul.f32 %v3605, 1.442695
        %v3626 = vpow.pop %v3625
        %v3627 = vmul.f32 %v3606, 1.442695
        %v3628 = vpow.pop %v3627
        %v3629 = vmul.f32 %v3607, 1.442695
        %v3630 = vpow.pop %v3629
        %v3631 = vmul.f32 %v3608, 1.442695
        %v3632 = vpow.pop %v3631
        %v3633 = vmul.f32 %v3609, 1.442695
        %v3634 = vpow.pop %v3633
        %v3635 = vmul.f32 %v3610, 1.442695
        %v3636 = vpow.pop %v3635
        %v3637 = vmul.f32 %v3611, 1.442695
        %v3638 = vpow.pop %v3637
        %v3639 = vmul.f32 %v3612, 1.442695
        %v3640 = vpow.pop %v3639
        %v3641 = vmul.f32 %v3613, 1.442695
        %v3642 = vpow.pop %v3641
        %v3643 = vmul.f32 %v3614, 1.442695
        %v3644 = vpow.pop %v3643
        %v3645 = vmul.f32 %v3615, 1.442695
        %v3646 = vpow.pop %v3645
        %v3647 = vmul.f32 %v3616, 1.442695
        %v3648 = vpow.pop %v3647
        %v3649 = vadd.f32 %v3618, %v3620
        %v3650 = vadd.f32 %v3649, %v3622
        %v3651 = vadd.f32 %v3650, %v3624
        %v3652 = vadd.f32 %v3651, %v3626
        %v3653 = vadd.f32 %v3652, %v3628
        %v3654 = vadd.f32 %v3653, %v3630
        %v3655 = vadd.f32 %v3654, %v3632
        %3656 = vadd.xlane.f32.xlu0 %v3655
        %v3657 = vpop.xlane.xlu0 %3656
        %v3658 = vadd.f32 %v3634, %v3636
        %v3659 = vadd.f32 %v3658, %v3638
        %v3660 = vadd.f32 %v3659, %v3640
        %v3661 = vadd.f32 %v3660, %v3642
        %v3662 = vadd.f32 %v3661, %v3644
        %v3663 = vadd.f32 %v3662, %v3646
        %v3664 = vadd.f32 %v3663, %v3648
        %3665 = vadd.xlane.f32.xlu0 %v3664
        %v3666 = vpop.xlane.xlu0 %3665
        %v3667 = vadd.f32 %v3589, %v3657
        %v3668 = vadd.f32 %v3590, %v3666
        %vm3669 = vcmask 7168
        %3670 = vst.msk [vmem:[%s456] sm:$0xff] %vm3669, %v3667
        %3671 = vst.msk [vmem:[%s456 + $0x8] sm:$0xff] %vm3669, %v3668
        %3672 = vst.msk [vmem:[%s451] sm:$0xff] %vm3669, %v3579
        %3673 = vst.msk [vmem:[%s451 + $0x8] sm:$0xff] %vm3669, %v3580
        %s3674 = sand.u32 %s229, 1
        %s3675 = sand.u32 %s229, 1
        %s3676 = smul.addr %s3675, 128
        %s3677 = scalar_lea.vmem [#allocation2], %s3676
        %p3678 = scmp.lt.s32.totalorder %s26, 1
        %s3679 = scalar_select %p3678, %s26, 1
        %s3680 = smul.addr %s3679, 2
        %s3681 = smul.addr %s3680, 8
        %s3682 = scalar_lea.vmem %s9, %s3681
        %p3683 = scmp.lt.s32.totalorder %s26, 1
        %s3684 = scalar_select %p3683, %s26, 1
        %s3685 = smul.addr %s3684, 2
        %s3686 = smul.addr %s3685, 8
        %s3687 = scalar_lea.vmem %s10, %s3686
        // Predicated region
        $region57: #{_lambda_.6} parent=51 // pred_check
          %p3688 = pneg %p239
        $region58: #{_lambda_.6} parent=51 // pred_check_branch
          %3690 = sbr.rel (%p3688) target = $region60
        $region59: #{_lambda_.6} parent=51 // pred_region
          %s3691 = smul.u32 8, %s27
          %s3692 = smul.addr %s26, 64
          %s3693 = sadd.s32 %s3691, %s3692
          %s3694 = smul.addr %s3693, 8
          %s3695 = scalar_lea.vmem %s8, %s3694
          // Predicated region
          $region61: #{_lambda_.6} parent=59 // pred_check
            _
          $region62: #{_lambda_.6} parent=59 // pred_check_branch
            %3697 = sbr.rel (0) target = $region64
          $region63: #{_lambda_.6} parent=59 // pred_region
            // Predicated region
            $region65: #{_lambda_.6} parent=63 // pred_check
              _
            $region66: #{_lambda_.6} parent=63 // pred_check_branch
              %3699 = sbr.rel (0) target = $region68
            $region67: #{_lambda_.6} parent=63 // pred_region
              loop: start=0, step=1, limit=1
              $region69: #{_lambda_.6} parent=67 // loop_pre_header
                _
              $region70: #{_lambda_.6} parent=67 // loop_header
                %s3701 = sphi 0, %s3705
                %p3702 = scmp.ge.s32.totalorder %s3701, 1
                %s3706 = sphi %s3677, %s3677
                %s3707 = sphi %s3695, %s3695
              $region71: #{_lambda_.6} parent=67 // loop_header_branch
                %3704 = sbr.rel (%p3702) target = $region75
              $region72: #{_lambda_.6} parent=67 // loop_body
                %v3708 = vld [vmem:[%s3706] sm:$0xff]
                %3709 = vst [vmem:[%s3707] sm:$0xff] %v3708
                %v3710 = vld [vmem:[%s3706 + $0x8] sm:$0xff]
                %3711 = vst [vmem:[%s3707 + $0x8] sm:$0xff] %v3710
                %v3712 = vld [vmem:[%s3706 + $0x10] sm:$0xff]
                %3713 = vst [vmem:[%s3707 + $0x10] sm:$0xff] %v3712
                %v3714 = vld [vmem:[%s3706 + $0x18] sm:$0xff]
                %3715 = vst [vmem:[%s3707 + $0x18] sm:$0xff] %v3714
                %v3716 = vld [vmem:[%s3706 + $0x20] sm:$0xff]
                %3717 = vst [vmem:[%s3707 + $0x20] sm:$0xff] %v3716
                %v3718 = vld [vmem:[%s3706 + $0x28] sm:$0xff]
                %3719 = vst [vmem:[%s3707 + $0x28] sm:$0xff] %v3718
                %v3720 = vld [vmem:[%s3706 + $0x30] sm:$0xff]
                %3721 = vst [vmem:[%s3707 + $0x30] sm:$0xff] %v3720
                %v3722 = vld [vmem:[%s3706 + $0x38] sm:$0xff]
                %3723 = vst [vmem:[%s3707 + $0x38] sm:$0xff] %v3722
                %v3724 = vld [vmem:[%s3706 + $0x40] sm:$0xff]
                %3725 = vst [vmem:[%s3707 + $0x100] sm:$0xff] %v3724
                %v3726 = vld [vmem:[%s3706 + $0x48] sm:$0xff]
                %3727 = vst [vmem:[%s3707 + $0x108] sm:$0xff] %v3726
                %v3728 = vld [vmem:[%s3706 + $0x50] sm:$0xff]
                %3729 = vst [vmem:[%s3707 + $0x110] sm:$0xff] %v3728
                %v3730 = vld [vmem:[%s3706 + $0x58] sm:$0xff]
                %3731 = vst [vmem:[%s3707 + $0x118] sm:$0xff] %v3730
                %v3732 = vld [vmem:[%s3706 + $0x60] sm:$0xff]
                %3733 = vst [vmem:[%s3707 + $0x120] sm:$0xff] %v3732
                %v3734 = vld [vmem:[%s3706 + $0x68] sm:$0xff]
                %3735 = vst [vmem:[%s3707 + $0x128] sm:$0xff] %v3734
                %v3736 = vld [vmem:[%s3706 + $0x70] sm:$0xff]
                %3737 = vst [vmem:[%s3707 + $0x130] sm:$0xff] %v3736
                %v3738 = vld [vmem:[%s3706 + $0x78] sm:$0xff]
                %3739 = vst [vmem:[%s3707 + $0x138] sm:$0xff] %v3738
              $region73: #{_lambda_.6} parent=67 // loop_footer
                %s3705 = sadd.s32 1, %s3701
              $region74: #{_lambda_.6} parent=67 // loop_footer_branch
                %3700 = sbr.rel target = $region70
              $region75: #{_lambda_.6} parent=67 // loop_exit
                _
            $region68: #{_lambda_.6} parent=63 // pred_fallthru
              _
            // Predicated region
            $region76: #{_lambda_.6} parent=63 // pred_check
              _
            $region77: #{_lambda_.6} parent=63 // pred_check_branch
              %3741 = sbr.rel target = $region79
            $region78: #{_lambda_.6} parent=63 // pred_region
              _
            $region79: #{_lambda_.6} parent=63 // pred_fallthru
              _
          $region64: #{_lambda_.6} parent=59 // pred_fallthru
            _
          %3742 = vnop
        $region60: #{_lambda_.6} parent=51 // pred_fallthru
          _
        // Predicated region
        $region80: #{_lambda_.6} parent=51 // pred_check
          %p3743 = pneg %p265
        $region81: #{_lambda_.6} parent=51 // pred_check_branch
          %3745 = sbr.rel (%p3743) target = $region83
        $region82: #{_lambda_.6} parent=51 // pred_region
          _
        $region83: #{_lambda_.6} parent=51 // pred_fallthru
          _
        // Predicated region
        $region84: #{_lambda_.6} parent=51 // pred_check
          %p3746 = pneg %p291
        $region85: #{_lambda_.6} parent=51 // pred_check_branch
          %3748 = sbr.rel (%p3746) target = $region87
        $region86: #{_lambda_.6} parent=51 // pred_region
          _
        $region87: #{_lambda_.6} parent=51 // pred_fallthru
          _
      $region52: #{_lambda_.6} parent=5 // pred_fallthru
        _
      %p3749 = scmp.le.s32.totalorder 2, %s17
      // Predicated region
      $region88: #{_lambda_.6} parent=5 // pred_check
        %p3750 = pneg %p3749
      $region89: #{_lambda_.6} parent=5 // pred_check_branch
        %3752 = sbr.rel (%p3750) target = $region91
      $region90: #{_lambda_.6} parent=5 // pred_region
        %s3753 = ssub.s32 %s17, 2
        // Predicated region
        $region92: #{_lambda_.6} parent=90 // pred_check
          %p3754 = pneg %p245
        $region93: #{_lambda_.6} parent=90 // pred_check_branch
          %3756 = sbr.rel (%p3754) target = $region95
        $region94: #{_lambda_.6} parent=90 // pred_region
          %s3757 = sand.u32 %s230, 1
          %s3758 = sand.u32 %s230, 1
          %s3759 = smul.addr %s3758, 128
          %s3760 = scalar_lea.vmem [#allocation2], %s3759
        $region95: #{_lambda_.6} parent=90 // pred_fallthru
          _
        // Predicated region
        $region96: #{_lambda_.6} parent=90 // pred_check
          %p3761 = pneg %p271
        $region97: #{_lambda_.6} parent=90 // pred_check_branch
          %3763 = sbr.rel (%p3761) target = $region99
        $region98: #{_lambda_.6} parent=90 // pred_region
          %p3764 = scmp.lt.s32.totalorder %s28, 1
          %s3765 = scalar_select %p3764, %s28, 1
          %s3766 = smul.addr %s3765, 2
          %s3767 = smul.addr %s3766, 8
          %s3768 = scalar_lea.vmem %s9, %s3767
        $region99: #{_lambda_.6} parent=90 // pred_fallthru
          _
        // Predicated region
        $region100: #{_lambda_.6} parent=90 // pred_check
          %p3769 = pneg %p297
        $region101: #{_lambda_.6} parent=90 // pred_check_branch
          %3771 = sbr.rel (%p3769) target = $region103
        $region102: #{_lambda_.6} parent=90 // pred_region
          %p3772 = scmp.lt.s32.totalorder %s28, 1
          %s3773 = scalar_select %p3772, %s28, 1
          %s3774 = smul.addr %s3773, 2
          %s3775 = smul.addr %s3774, 8
          %s3776 = scalar_lea.vmem %s10, %s3775
        $region103: #{_lambda_.6} parent=90 // pred_fallthru
          _
      $region91: #{_lambda_.6} parent=5 // pred_fallthru
        _
    $region6: #{_lambda_.6} parent=1 // loop_footer
      %s21 = sadd.s32 1, %s17
    $region7: #{_lambda_.6} parent=1 // loop_footer_branch
      %16 = sbr.rel target = $region3
    $region8: #{_lambda_.6} parent=1 // loop_exit
      _

</llo_original>
